<compile_context>
chip_gen: v5e
topology: v5e:2x2
jax: 0.10.0
libtpu: 0.0.40
codegen_flags: <defaults>
</compile_context>

<pallas_src>
import jax
import jax.numpy as jnp
from jax.experimental import pallas as pl
from jax.experimental.pallas import tpu as pltpu


_LANE = 128      # output-channel padding granularity (lane width)
_SUBL = 16       # matmul-row padding granularity (bf16 sublane packing)
_TM = 512        # rows per tile for the 1x1-conv matmul


def _round_up(x, m):
    return (x + m - 1) // m * m


# ----------------------------------------------------------------------------
# Tap plan / polyphase decomposition (JAX side, ~1x data, no 9x im2col)
# ----------------------------------------------------------------------------
def _tap_plan(stride):
    """For each of the 9 taps: (phase_index, row_offset, col_offset)."""
    plan = []
    for di in range(3):
        for dj in range(3):
            if stride == 1:
                plan.append((0, di, dj))
            else:  # stride 2: phase = (row parity, col parity)
                plan.append(((di % 2) * 2 + (dj % 2), di // 2, dj // 2))
    return plan


def _phases_stride1(x, ow_pad):
    """padding=1 conv: one zero-padded phase, width right-padded to ow_pad+2."""
    n, h, w, c = x.shape
    return [jnp.pad(x, ((0, 0), (1, 1), (1, 1 + ow_pad - w), (0, 0)))]


def _phases_stride2(x, oh, ow_pad):
    """stride-2 window: 4 even/odd polyphase tensors, shape (N, oh+1, ow_pad+1, C)."""
    phases = []
    for a in range(2):          # row parity
        for b in range(2):      # col parity
            p = x[:, a::2, b::2, :]
            phases.append(jnp.pad(
                p, ((0, 0), (0, oh + 1 - p.shape[1]),
                    (0, ow_pad + 1 - p.shape[2]), (0, 0))))
    return phases


# ----------------------------------------------------------------------------
# Fused 3x3 conv + folded-BN bias + ReLU (in-kernel shifted-tap accumulation)
# ----------------------------------------------------------------------------
def _make_conv3x3_kernel(plan, oh, ow_pad, num_phases):
    m = oh * ow_pad

    def kernel(*refs):
        phase_refs = refs[:num_phases]
        w_ref = refs[num_phases]          # (9, Cin, Cp) bf16, BN scale folded
        b_ref = refs[num_phases + 1]      # (1, Cp) f32
        o_ref = refs[num_phases + 2]      # (1, M, Cp)
        acc = None
        for t, (p, ro, co) in enumerate(plan):
            slab = phase_refs[p][0, ro:ro + oh, co:co + ow_pad, :]
            slab = slab.reshape(m, slab.shape[-1])      # sublane-aligned relabel
            part = jnp.dot(slab, w_ref[t], preferred_element_type=jnp.float32)
            acc = part if acc is None else acc + part
        y = jnp.maximum(acc + b_ref[...], 0.0)
        o_ref[0] = y.astype(o_ref.dtype)

    return kernel


def conv3x3_bn_relu(x, w_taps, bias, *, stride, padding, out_dtype=jnp.float32):
    """x: (N,H,W,Cin); w_taps: (9,Cin,Cout) f32 (BN scale folded); bias: (Cout,).

    Returns (N, OH, OW, Cout) in out_dtype. Grid over the batch; per grid step
    the kernel reads the phase tensors once and accumulates 9 tap matmuls.
    """
    n, h, w, cin = x.shape
    cout = w_taps.shape[-1]
    if padding:                      # module uses padding=1 only with stride=1
        oh, ow = h, w
    else:
        oh = (h - 3) // stride + 1
        ow = (w - 3) // stride + 1
    ow_pad = _round_up(ow, _SUBL)
    cp = _round_up(cout, _LANE)
    m = oh * ow_pad

    xb = x.astype(jnp.bfloat16)
    phases = (_phases_stride1(xb, ow_pad) if stride == 1
              else _phases_stride2(xb, oh, ow_pad))
    plan = _tap_plan(stride)

    w_p = w_taps.astype(jnp.float32)
    b_p = bias.astype(jnp.float32).reshape(1, cout)
    if cp != cout:
        w_p = jnp.pad(w_p, ((0, 0), (0, 0), (0, cp - cout)))
        b_p = jnp.pad(b_p, ((0, 0), (0, cp - cout)))
    w_p = w_p.astype(jnp.bfloat16)

    kernel = _make_conv3x3_kernel(plan, oh, ow_pad, len(phases))
    in_specs = [pl.BlockSpec((1,) + tuple(p.shape[1:]),
                             lambda i: (i, 0, 0, 0)) for p in phases]
    in_specs += [pl.BlockSpec(tuple(w_p.shape), lambda i: (0, 0, 0)),
                 pl.BlockSpec(tuple(b_p.shape), lambda i: (0, 0))]

    in_bytes = (sum(int(p.size) * 2 for p in phases)
                + int(w_p.size) * 2 + int(b_p.size) * 4)
    out_bytes = n * m * cp * jnp.dtype(out_dtype).itemsize

    out = pl.pallas_call(
        kernel,
        out_shape=jax.ShapeDtypeStruct((n, m, cp), out_dtype),
        grid_spec=pltpu.PrefetchScalarGridSpec(
            num_scalar_prefetch=0,
            grid=(n,),
            in_specs=in_specs,
            out_specs=pl.BlockSpec((1, m, cp), lambda i: (i, 0, 0)),
        ),
        compiler_params=pltpu.CompilerParams(
            dimension_semantics=("parallel",),
            vmem_limit_bytes=32 * 1024 * 1024),
        cost_estimate=pl.CostEstimate(
            flops=2 * n * m * cin * cp * 9,
            transcendentals=0,
            bytes_accessed=in_bytes + out_bytes),
    )(*phases, w_p, b_p)

    return out.reshape(n, oh, ow_pad, cp)[:, :, :ow, :cout]


# ----------------------------------------------------------------------------
# 1x1 conv + folded-BN bias + ReLU (row-tiled matmul, no im2col needed)
# ----------------------------------------------------------------------------
def _matmul_bias_relu_kernel(x_ref, w_ref, b_ref, o_ref):
    y = jnp.dot(x_ref[...], w_ref[...], preferred_element_type=jnp.float32)
    o_ref[...] = jnp.maximum(y + b_ref[...], 0.0).astype(o_ref.dtype)


def conv1x1_bn_relu(x, w_taps, bias, *, out_dtype=jnp.float32, tm=_TM):
    n, h, w, cin = x.shape
    cout = w_taps.shape[-1]
    m = n * h * w
    cp = _round_up(cout, _LANE)
    tm = min(tm, _round_up(m, _SUBL))
    mp = _round_up(m, tm)

    xm = x.reshape(m, cin).astype(jnp.bfloat16)
    if mp != m:
        xm = jnp.pad(xm, ((0, mp - m), (0, 0)))
    w_p = w_taps.reshape(cin, cout).astype(jnp.float32)
    b_p = bias.astype(jnp.float32).reshape(1, cout)
    if cp != cout:
        w_p = jnp.pad(w_p, ((0, 0), (0, cp - cout)))
        b_p = jnp.pad(b_p, ((0, 0), (0, cp - cout)))
    w_p = w_p.astype(jnp.bfloat16)

    out = pl.pallas_call(
        _matmul_bias_relu_kernel,
        out_shape=jax.ShapeDtypeStruct((mp, cp), out_dtype),
        grid_spec=pltpu.PrefetchScalarGridSpec(
            num_scalar_prefetch=0,
            grid=(mp // tm,),
            in_specs=[pl.BlockSpec((tm, cin), lambda i: (i, 0)),
                      pl.BlockSpec((cin, cp), lambda i: (0, 0)),
                      pl.BlockSpec((1, cp), lambda i: (0, 0))],
            out_specs=pl.BlockSpec((tm, cp), lambda i: (i, 0)),
        ),
        compiler_params=pltpu.CompilerParams(
            dimension_semantics=("parallel",)),
        cost_estimate=pl.CostEstimate(
            flops=2 * mp * cin * cp,
            transcendentals=0,
            bytes_accessed=mp * cin * 2 + cin * cp * 2
                           + mp * cp * jnp.dtype(out_dtype).itemsize),
    )(xm, w_p, b_p)
    return out[:m, :cout].reshape(n, h, w, cout)


# ----------------------------------------------------------------------------
# 3x3 / stride-2 max pool (in-kernel shifted-slab max, no tap stack)
# ----------------------------------------------------------------------------
def _make_pool_kernel(plan, oh, ow, num_phases):
    def kernel(*refs):
        phase_refs = refs[:num_phases]
        o_ref = refs[num_phases]
        acc = None
        for (p, ro, co) in plan:
            slab = phase_refs[p][0, ro:ro + oh, co:co + ow, :]
            acc = slab if acc is None else jnp.maximum(acc, slab)
        o_ref[0] = acc
    return kernel


def maxpool3x3_s2(x):
    n, h, w, c = x.shape
    oh = (h - 3) // 2 + 1
    ow = (w - 3) // 2 + 1
    phases = _phases_stride2(x, oh, ow)            # f32, ~1x input traffic
    plan = _tap_plan(2)
    kernel = _make_pool_kernel(plan, oh, ow, len(phases))
    in_specs = [pl.BlockSpec((1,) + tuple(p.shape[1:]),
                             lambda i: (i, 0, 0, 0)) for p in phases]
    return pl.pallas_call(
        kernel,
        out_shape=jax.ShapeDtypeStruct((n, oh, ow, c), x.dtype),
        grid_spec=pltpu.PrefetchScalarGridSpec(
            num_scalar_prefetch=0,
            grid=(n,),
            in_specs=in_specs,
            out_specs=pl.BlockSpec((1, oh, ow, c), lambda i: (i, 0, 0, 0)),
        ),
        compiler_params=pltpu.CompilerParams(
            dimension_semantics=("parallel",)),
        cost_estimate=pl.CostEstimate(
            flops=8 * n * oh * ow * c,
            transcendentals=0,
            bytes_accessed=sum(int(p.size) * 4 for p in phases)
                           + n * oh * ow * c * 4),
    )(*phases)


# ----------------------------------------------------------------------------
# Parameters (synthetic, deterministic) — BN scale folded into weights
# ----------------------------------------------------------------------------
def _fold_bn(gamma, beta, running_mean, running_var, eps=0.001):
    scale = gamma / jnp.sqrt(running_var + eps)
    bias = beta - running_mean * scale
    return scale, bias


def _make_basic_conv_params(key, cin, cout, ksize):
    kw_, kg, kb, km, kv = jax.random.split(key, 5)
    w = 0.1 * jax.random.normal(kw_, (cout, cin, ksize, ksize), jnp.float32)
    gamma = 0.5 + jax.random.uniform(kg, (cout,), jnp.float32)
    beta = 0.1 * jax.random.normal(kb, (cout,), jnp.float32)
    rmean = 0.1 * jax.random.normal(km, (cout,), jnp.float32)
    rvar = 0.5 + jax.random.uniform(kv, (cout,), jnp.float32)
    scale, bias = _fold_bn(gamma, beta, rmean, rvar)
    # (Cout, Cin, KH, KW) -> (KH*KW, Cin, Cout), tap index = di*KW + dj.
    w_taps = jnp.transpose(w, (2, 3, 1, 0)).reshape(ksize * ksize, cin, cout)
    w_taps = w_taps * scale[None, None, :]          # fold BN scale in f32
    return {"w": w_taps, "b": bias}


def init_inception_b_params(key, in_channels):
    k0, k1, k2, k3 = jax.random.split(key, 4)
    return {
        "branch3x3": _make_basic_conv_params(k0, in_channels, 384, 3),
        "dbl1": _make_basic_conv_params(k1, in_channels, 64, 1),
        "dbl2": _make_basic_conv_params(k2, 64, 96, 3),
        "dbl3": _make_basic_conv_params(k3, 96, 96, 3),
    }


# ----------------------------------------------------------------------------
# InceptionB forward
# ----------------------------------------------------------------------------
def inception_b_forward(x_nchw, params):
    x = jnp.transpose(x_nchw, (0, 2, 3, 1)).astype(jnp.float32)   # NHWC

    # branch3x3: 3x3 stride-2 conv + BN + ReLU (f32 output, final branch)
    pr = params["branch3x3"]
    b3 = conv3x3_bn_relu(x, pr["w"], pr["b"], stride=2, padding=0,
                         out_dtype=jnp.float32)

    # branch3x3dbl: 1x1 -> 3x3 pad 1 -> 3x3 stride 2 (bf16 intermediates)
    pr = params["dbl1"]
    d = conv1x1_bn_relu(x, pr["w"], pr["b"], out_dtype=jnp.bfloat16)
    pr = params["dbl2"]
    d = conv3x3_bn_relu(d, pr["w"], pr["b"], stride=1, padding=1,
                        out_dtype=jnp.bfloat16)
    pr = params["dbl3"]
    d = conv3x3_bn_relu(d, pr["w"], pr["b"], stride=2, padding=0,
                        out_dtype=jnp.float32)

    # branch_pool: max_pool2d(kernel=3, stride=2)
    bp = maxpool3x3_s2(x)

    out = jnp.concatenate([b3, d, bp], axis=-1)      # channel concat (NHWC)
    return jnp.transpose(out, (0, 3, 1, 2))          # back to NCHW


# ----------------------------------------------------------------------------
if __name__ == "__main__":
    key = jax.random.PRNGKey(0)
    k_x, k_p = jax.random.split(key)

    N, C, H, W = 2, 4, 16, 16
    x = jax.random.normal(k_x, (N, C, H, W), jnp.float32)
    params = init_inception_b_params(k_p, C)

    fwd = jax.jit(inception_b_forward)
    out = jax.block_until_ready(fwd(x, params))

    OH = (H - 3) // 2 + 1
    OW = (W - 3) // 2 + 1
    expected = (N, 384 + 96 + C, OH, OW)
    assert out.shape == expected, (out.shape, expected)
    assert bool(jnp.all(jnp.isfinite(out)))
    print("KERNEL_OK")
</pallas_src>

<mosaic_0001>
module attributes {stable_mosaic.version = 11 : i64} {
  func.func @kernel(%arg0: i32, %arg1: memref<1x8x8x4xf32, #tpu.memory_space<vmem>>, %arg2: memref<1x8x8x4xf32, #tpu.memory_space<vmem>>, %arg3: memref<1x8x8x4xf32, #tpu.memory_space<vmem>>, %arg4: memref<1x8x8x4xf32, #tpu.memory_space<vmem>>, %arg5: memref<1x7x7x4xf32, #tpu.memory_space<vmem>>) attributes {dimension_semantics = [#tpu.dimension_semantics<parallel>], iteration_bounds = array<i64: 2>, scalar_prefetch = 0 : i64, scratch_operands = 0 : i64, tpu.core_type = #tpu.core_type<tc>, window_params = [{transform_indices = @transform_0, window_bounds = array<i64: 1, 8, 8, 4>}, {transform_indices = @transform_1, window_bounds = array<i64: 1, 8, 8, 4>}, {transform_indices = @transform_2, window_bounds = array<i64: 1, 8, 8, 4>}, {transform_indices = @transform_3, window_bounds = array<i64: 1, 8, 8, 4>}, {transform_indices = @transform_4, window_bounds = array<i64: 1, 7, 7, 4>}]} {
    %c0 = arith.constant 0 : index
    %c0_0 = arith.constant 0 : index
    %c0_1 = arith.constant 0 : index
    %c0_2 = arith.constant 0 : index
    %0 = vector.load %arg1[%c0, %c0_0, %c0_1, %c0_2] : memref<1x8x8x4xf32, #tpu.memory_space<vmem>>, vector<1x7x7x4xf32>
    %1 = vector.shape_cast %0 : vector<1x7x7x4xf32> to vector<7x7x4xf32>
    %c0_3 = arith.constant 0 : index
    %c0_4 = arith.constant 0 : index
    %c0_5 = arith.constant 0 : index
    %c0_6 = arith.constant 0 : index
    %2 = vector.load %arg2[%c0_3, %c0_4, %c0_5, %c0_6] : memref<1x8x8x4xf32, #tpu.memory_space<vmem>>, vector<1x7x7x4xf32>
    %3 = vector.shape_cast %2 : vector<1x7x7x4xf32> to vector<7x7x4xf32>
    %4 = arith.maximumf %1, %3 : vector<7x7x4xf32>
    %c0_7 = arith.constant 0 : index
    %c0_8 = arith.constant 0 : index
    %c1 = arith.constant 1 : index
    %c0_9 = arith.constant 0 : index
    %5 = vector.load %arg1[%c0_7, %c0_8, %c1, %c0_9] : memref<1x8x8x4xf32, #tpu.memory_space<vmem>>, vector<1x7x7x4xf32>
    %6 = vector.shape_cast %5 : vector<1x7x7x4xf32> to vector<7x7x4xf32>
    %7 = arith.maximumf %4, %6 : vector<7x7x4xf32>
    %c0_10 = arith.constant 0 : index
    %c0_11 = arith.constant 0 : index
    %c0_12 = arith.constant 0 : index
    %c0_13 = arith.constant 0 : index
    %8 = vector.load %arg3[%c0_10, %c0_11, %c0_12, %c0_13] : memref<1x8x8x4xf32, #tpu.memory_space<vmem>>, vector<1x7x7x4xf32>
    %9 = vector.shape_cast %8 : vector<1x7x7x4xf32> to vector<7x7x4xf32>
    %10 = arith.maximumf %7, %9 : vector<7x7x4xf32>
    %c0_14 = arith.constant 0 : index
    %c0_15 = arith.constant 0 : index
    %c0_16 = arith.constant 0 : index
    %c0_17 = arith.constant 0 : index
    %11 = vector.load %arg4[%c0_14, %c0_15, %c0_16, %c0_17] : memref<1x8x8x4xf32, #tpu.memory_space<vmem>>, vector<1x7x7x4xf32>
    %12 = vector.shape_cast %11 : vector<1x7x7x4xf32> to vector<7x7x4xf32>
    %13 = arith.maximumf %10, %12 : vector<7x7x4xf32>
    %c0_18 = arith.constant 0 : index
    %c0_19 = arith.constant 0 : index
    %c1_20 = arith.constant 1 : index
    %c0_21 = arith.constant 0 : index
    %14 = vector.load %arg3[%c0_18, %c0_19, %c1_20, %c0_21] : memref<1x8x8x4xf32, #tpu.memory_space<vmem>>, vector<1x7x7x4xf32>
    %15 = vector.shape_cast %14 : vector<1x7x7x4xf32> to vector<7x7x4xf32>
    %16 = arith.maximumf %13, %15 : vector<7x7x4xf32>
    %c0_22 = arith.constant 0 : index
    %c1_23 = arith.constant 1 : index
    %c0_24 = arith.constant 0 : index
    %c0_25 = arith.constant 0 : index
    %17 = vector.load %arg1[%c0_22, %c1_23, %c0_24, %c0_25] : memref<1x8x8x4xf32, #tpu.memory_space<vmem>>, vector<1x7x7x4xf32>
    %18 = vector.shape_cast %17 : vector<1x7x7x4xf32> to vector<7x7x4xf32>
    %19 = arith.maximumf %16, %18 : vector<7x7x4xf32>
    %c0_26 = arith.constant 0 : index
    %c1_27 = arith.constant 1 : index
    %c0_28 = arith.constant 0 : index
    %c0_29 = arith.constant 0 : index
    %20 = vector.load %arg2[%c0_26, %c1_27, %c0_28, %c0_29] : memref<1x8x8x4xf32, #tpu.memory_space<vmem>>, vector<1x7x7x4xf32>
    %21 = vector.shape_cast %20 : vector<1x7x7x4xf32> to vector<7x7x4xf32>
    %22 = arith.maximumf %19, %21 : vector<7x7x4xf32>
    %c0_30 = arith.constant 0 : index
    %c1_31 = arith.constant 1 : index
    %c1_32 = arith.constant 1 : index
    %c0_33 = arith.constant 0 : index
    %23 = vector.load %arg1[%c0_30, %c1_31, %c1_32, %c0_33] : memref<1x8x8x4xf32, #tpu.memory_space<vmem>>, vector<1x7x7x4xf32>
    %24 = vector.shape_cast %23 : vector<1x7x7x4xf32> to vector<7x7x4xf32>
    %25 = arith.maximumf %22, %24 : vector<7x7x4xf32>
    %c0_34 = arith.constant 0 : index
    %c0_35 = arith.constant 0 : index
    %c0_36 = arith.constant 0 : index
    %c0_37 = arith.constant 0 : index
    %26 = vector.load %arg5[%c0_34, %c0_35, %c0_36, %c0_37] : memref<1x7x7x4xf32, #tpu.memory_space<vmem>>, vector<1x7x7x4xf32>
    %27 = vector.shape_cast %26 : vector<1x7x7x4xf32> to vector<7x7x4xf32>
    %28 = vector.shape_cast %25 : vector<7x7x4xf32> to vector<1x7x7x4xf32>
    tpu.vector_store %arg5[%c0_34, %c0_35, %c0_36, %c0_37], %28 {strides = array<i32>} : memref<1x7x7x4xf32, #tpu.memory_space<vmem>>, vector<1x7x7x4xf32>,
    return
  }
  func.func @transform_0(%arg0: i32) -> (i32, i32, i32, i32) {
    %c0_i32 = arith.constant 0 : i32
    %c0_i32_0 = arith.constant 0 : i32
    %c0_i32_1 = arith.constant 0 : i32
    %c0_i32_2 = arith.constant 0 : i32
    return %arg0, %c0_i32, %c0_i32_0, %c0_i32_1 : i32, i32, i32, i32
  }
  func.func @transform_1(%arg0: i32) -> (i32, i32, i32, i32) {
    %c0_i32 = arith.constant 0 : i32
    %c0_i32_0 = arith.constant 0 : i32
    %c0_i32_1 = arith.constant 0 : i32
    %c0_i32_2 = arith.constant 0 : i32
    return %arg0, %c0_i32, %c0_i32_0, %c0_i32_1 : i32, i32, i32, i32
  }
  func.func @transform_2(%arg0: i32) -> (i32, i32, i32, i32) {
    %c0_i32 = arith.constant 0 : i32
    %c0_i32_0 = arith.constant 0 : i32
    %c0_i32_1 = arith.constant 0 : i32
    %c0_i32_2 = arith.constant 0 : i32
    return %arg0, %c0_i32, %c0_i32_0, %c0_i32_1 : i32, i32, i32, i32
  }
  func.func @transform_3(%arg0: i32) -> (i32, i32, i32, i32) {
    %c0_i32 = arith.constant 0 : i32
    %c0_i32_0 = arith.constant 0 : i32
    %c0_i32_1 = arith.constant 0 : i32
    %c0_i32_2 = arith.constant 0 : i32
    return %arg0, %c0_i32, %c0_i32_0, %c0_i32_1 : i32, i32, i32, i32
  }
  func.func @transform_4(%arg0: i32) -> (i32, i32, i32, i32) {
    %c0_i32 = arith.constant 0 : i32
    %c0_i32_0 = arith.constant 0 : i32
    %c0_i32_1 = arith.constant 0 : i32
    %c0_i32_2 = arith.constant 0 : i32
    return %arg0, %c0_i32, %c0_i32_0, %c0_i32_1 : i32, i32, i32, i32
  }
}

module attributes {stable_mosaic.version = 11 : i64} {
  func.func @_matmul_bias_relu_kernel(%arg0: i32, %arg1: memref<512x4xbf16, #tpu.memory_space<vmem>>, %arg2: memref<4x128xbf16, #tpu.memory_space<vmem>>, %arg3: memref<1x128xf32, #tpu.memory_space<vmem>>, %arg4: memref<512x128xbf16, #tpu.memory_space<vmem>>) attributes {dimension_semantics = [#tpu.dimension_semantics<parallel>], iteration_bounds = array<i64: 1>, scalar_prefetch = 0 : i64, scratch_operands = 0 : i64, tpu.core_type = #tpu.core_type<tc>, window_params = [{transform_indices = @transform_0, window_bounds = array<i64: 512, 4>}, {pipeline_mode = #tpu.pipeline_mode<synchronous>, transform_indices = @transform_1, window_bounds = array<i64: 4, 128>}, {pipeline_mode = #tpu.pipeline_mode<synchronous>, transform_indices = @transform_2, window_bounds = array<i64: 1, 128>}, {transform_indices = @transform_3, window_bounds = array<i64: 512, 128>}]} {
    %c0 = arith.constant 0 : index
    %c0_0 = arith.constant 0 : index
    %0 = vector.load %arg1[%c0, %c0_0] : memref<512x4xbf16, #tpu.memory_space<vmem>>, vector<512x4xbf16>
    %c0_1 = arith.constant 0 : index
    %c0_2 = arith.constant 0 : index
    %1 = vector.load %arg2[%c0_1, %c0_2] : memref<4x128xbf16, #tpu.memory_space<vmem>>, vector<4x128xbf16>
    %cst = arith.constant dense<0.000000e+00> : vector<512x128xf32>
    %2 = tpu.matmul %0, %1, %cst {dimension_numbers = #tpu.dot_dimension_numbers<[1], [0], [0], [1], [0, 0, 1, 1], [], []>} : vector<512x4xbf16>, vector<4x128xbf16>, vector<512x128xf32> -> vector<512x128xf32>
    %c0_3 = arith.constant 0 : index
    %c0_4 = arith.constant 0 : index
    %3 = vector.load %arg3[%c0_3, %c0_4] : memref<1x128xf32, #tpu.memory_space<vmem>>, vector<1x128xf32>
    %4 = vector.broadcast %3 : vector<1x128xf32> to vector<512x128xf32>
    %5 = arith.addf %2, %4 : vector<512x128xf32>
    %cst_5 = arith.constant 0.000000e+00 : f32
    %6 = vector.broadcast %cst_5 : f32 to vector<512x128xf32>
    %7 = arith.maximumf %5, %6 : vector<512x128xf32>
    %8 = arith.truncf %7 : vector<512x128xf32> to vector<512x128xbf16>
    %c0_6 = arith.constant 0 : index
    %c0_7 = arith.constant 0 : index
    %9 = vector.load %arg4[%c0_6, %c0_7] : memref<512x128xbf16, #tpu.memory_space<vmem>>, vector<512x128xbf16>
    tpu.vector_store %arg4[%c0_6, %c0_7], %8 {strides = array<i32>} : memref<512x128xbf16, #tpu.memory_space<vmem>>, vector<512x128xbf16>,
    return
  }
  func.func @transform_0(%arg0: i32) -> (i32, i32) {
    %c0_i32 = arith.constant 0 : i32
    %c0_i32_0 = arith.constant 0 : i32
    return %arg0, %c0_i32 : i32, i32
  }
  func.func @transform_1(%arg0: i32) -> (i32, i32) {
    %c0_i32 = arith.constant 0 : i32
    %c0_i32_0 = arith.constant 0 : i32
    %c0_i32_1 = arith.constant 0 : i32
    return %c0_i32, %c0_i32_0 : i32, i32
  }
  func.func @transform_2(%arg0: i32) -> (i32, i32) {
    %c0_i32 = arith.constant 0 : i32
    %c0_i32_0 = arith.constant 0 : i32
    %c0_i32_1 = arith.constant 0 : i32
    return %c0_i32, %c0_i32_0 : i32, i32
  }
  func.func @transform_3(%arg0: i32) -> (i32, i32) {
    %c0_i32 = arith.constant 0 : i32
    %c0_i32_0 = arith.constant 0 : i32
    return %arg0, %c0_i32 : i32, i32
  }
}

module attributes {stable_mosaic.version = 11 : i64} {
  func.func @kernel(%arg0: i32, %arg1: memref<1x18x18x64xbf16, #tpu.memory_space<vmem>>, %arg2: memref<9x64x128xbf16, #tpu.memory_space<vmem>>, %arg3: memref<1x128xf32, #tpu.memory_space<vmem>>, %arg4: memref<1x256x128xbf16, #tpu.memory_space<vmem>>) attributes {dimension_semantics = [#tpu.dimension_semantics<parallel>], iteration_bounds = array<i64: 2>, scalar_prefetch = 0 : i64, scratch_operands = 0 : i64, tpu.core_type = #tpu.core_type<tc>, window_params = [{transform_indices = @transform_0, window_bounds = array<i64: 1, 18, 18, 64>}, {pipeline_mode = #tpu.pipeline_mode<synchronous>, transform_indices = @transform_1, window_bounds = array<i64: 9, 64, 128>}, {pipeline_mode = #tpu.pipeline_mode<synchronous>, transform_indices = @transform_2, window_bounds = array<i64: 1, 128>}, {transform_indices = @transform_3, window_bounds = array<i64: 1, 256, 128>}]} {
    %c0 = arith.constant 0 : index
    %c0_0 = arith.constant 0 : index
    %c0_1 = arith.constant 0 : index
    %c0_2 = arith.constant 0 : index
    %0 = vector.load %arg1[%c0, %c0_0, %c0_1, %c0_2] : memref<1x18x18x64xbf16, #tpu.memory_space<vmem>>, vector<1x16x16x64xbf16>
    %1 = vector.shape_cast %0 : vector<1x16x16x64xbf16> to vector<16x16x64xbf16>
    %2 = vector.shape_cast %1 : vector<16x16x64xbf16> to vector<256x64xbf16>
    %c0_3 = arith.constant 0 : index
    %c0_4 = arith.constant 0 : index
    %c0_5 = arith.constant 0 : index
    %3 = vector.load %arg2[%c0_3, %c0_4, %c0_5] : memref<9x64x128xbf16, #tpu.memory_space<vmem>>, vector<1x64x128xbf16>
    %4 = vector.shape_cast %3 : vector<1x64x128xbf16> to vector<64x128xbf16>
    %cst = arith.constant dense<0.000000e+00> : vector<256x128xf32>
    %5 = tpu.matmul %2, %4, %cst {dimension_numbers = #tpu.dot_dimension_numbers<[1], [0], [0], [1], [0, 0, 1, 1], [], []>} : vector<256x64xbf16>, vector<64x128xbf16>, vector<256x128xf32> -> vector<256x128xf32>
    %c0_6 = arith.constant 0 : index
    %c0_7 = arith.constant 0 : index
    %c1 = arith.constant 1 : index
    %c0_8 = arith.constant 0 : index
    %6 = vector.load %arg1[%c0_6, %c0_7, %c1, %c0_8] : memref<1x18x18x64xbf16, #tpu.memory_space<vmem>>, vector<1x16x16x64xbf16>
    %7 = vector.shape_cast %6 : vector<1x16x16x64xbf16> to vector<16x16x64xbf16>
    %8 = vector.shape_cast %7 : vector<16x16x64xbf16> to vector<256x64xbf16>
    %c1_9 = arith.constant 1 : index
    %c0_10 = arith.constant 0 : index
    %c0_11 = arith.constant 0 : index
    %9 = vector.load %arg2[%c1_9, %c0_10, %c0_11] : memref<9x64x128xbf16, #tpu.memory_space<vmem>>, vector<1x64x128xbf16>
    %10 = vector.shape_cast %9 : vector<1x64x128xbf16> to vector<64x128xbf16>
    %cst_12 = arith.constant dense<0.000000e+00> : vector<256x128xf32>
    %11 = tpu.matmul %8, %10, %cst_12 {dimension_numbers = #tpu.dot_dimension_numbers<[1], [0], [0], [1], [0, 0, 1, 1], [], []>} : vector<256x64xbf16>, vector<64x128xbf16>, vector<256x128xf32> -> vector<256x128xf32>
    %12 = arith.addf %5, %11 : vector<256x128xf32>
    %c0_13 = arith.constant 0 : index
    %c0_14 = arith.constant 0 : index
    %c2 = arith.constant 2 : index
    %c0_15 = arith.constant 0 : index
    %13 = vector.load %arg1[%c0_13, %c0_14, %c2, %c0_15] : memref<1x18x18x64xbf16, #tpu.memory_space<vmem>>, vector<1x16x16x64xbf16>
    %14 = vector.shape_cast %13 : vector<1x16x16x64xbf16> to vector<16x16x64xbf16>
    %15 = vector.shape_cast %14 : vector<16x16x64xbf16> to vector<256x64xbf16>
    %c2_16 = arith.constant 2 : index
    %c0_17 = arith.constant 0 : index
    %c0_18 = arith.constant 0 : index
    %16 = vector.load %arg2[%c2_16, %c0_17, %c0_18] : memref<9x64x128xbf16, #tpu.memory_space<vmem>>, vector<1x64x128xbf16>
    %17 = vector.shape_cast %16 : vector<1x64x128xbf16> to vector<64x128xbf16>
    %cst_19 = arith.constant dense<0.000000e+00> : vector<256x128xf32>
    %18 = tpu.matmul %15, %17, %cst_19 {dimension_numbers = #tpu.dot_dimension_numbers<[1], [0], [0], [1], [0, 0, 1, 1], [], []>} : vector<256x64xbf16>, vector<64x128xbf16>, vector<256x128xf32> -> vector<256x128xf32>
    %19 = arith.addf %12, %18 : vector<256x128xf32>
    %c0_20 = arith.constant 0 : index
    %c1_21 = arith.constant 1 : index
    %c0_22 = arith.constant 0 : index
    %c0_23 = arith.constant 0 : index
    %20 = vector.load %arg1[%c0_20, %c1_21, %c0_22, %c0_23] : memref<1x18x18x64xbf16, #tpu.memory_space<vmem>>, vector<1x16x16x64xbf16>
    %21 = vector.shape_cast %20 : vector<1x16x16x64xbf16> to vector<16x16x64xbf16>
    %22 = vector.shape_cast %21 : vector<16x16x64xbf16> to vector<256x64xbf16>
    %c3 = arith.constant 3 : index
    %c0_24 = arith.constant 0 : index
    %c0_25 = arith.constant 0 : index
    %23 = vector.load %arg2[%c3, %c0_24, %c0_25] : memref<9x64x128xbf16, #tpu.memory_space<vmem>>, vector<1x64x128xbf16>
    %24 = vector.shape_cast %23 : vector<1x64x128xbf16> to vector<64x128xbf16>
    %cst_26 = arith.constant dense<0.000000e+00> : vector<256x128xf32>
    %25 = tpu.matmul %22, %24, %cst_26 {dimension_numbers = #tpu.dot_dimension_numbers<[1], [0], [0], [1], [0, 0, 1, 1], [], []>} : vector<256x64xbf16>, vector<64x128xbf16>, vector<256x128xf32> -> vector<256x128xf32>
    %26 = arith.addf %19, %25 : vector<256x128xf32>
    %c0_27 = arith.constant 0 : index
    %c1_28 = arith.constant 1 : index
    %c1_29 = arith.constant 1 : index
    %c0_30 = arith.constant 0 : index
    %27 = vector.load %arg1[%c0_27, %c1_28, %c1_29, %c0_30] : memref<1x18x18x64xbf16, #tpu.memory_space<vmem>>, vector<1x16x16x64xbf16>
    %28 = vector.shape_cast %27 : vector<1x16x16x64xbf16> to vector<16x16x64xbf16>
    %29 = vector.shape_cast %28 : vector<16x16x64xbf16> to vector<256x64xbf16>
    %c4 = arith.constant 4 : index
    %c0_31 = arith.constant 0 : index
    %c0_32 = arith.constant 0 : index
    %30 = vector.load %arg2[%c4, %c0_31, %c0_32] : memref<9x64x128xbf16, #tpu.memory_space<vmem>>, vector<1x64x128xbf16>
    %31 = vector.shape_cast %30 : vector<1x64x128xbf16> to vector<64x128xbf16>
    %cst_33 = arith.constant dense<0.000000e+00> : vector<256x128xf32>
    %32 = tpu.matmul %29, %31, %cst_33 {dimension_numbers = #tpu.dot_dimension_numbers<[1], [0], [0], [1], [0, 0, 1, 1], [], []>} : vector<256x64xbf16>, vector<64x128xbf16>, vector<256x128xf32> -> vector<256x128xf32>
    %33 = arith.addf %26, %32 : vector<256x128xf32>
    %c0_34 = arith.constant 0 : index
    %c1_35 = arith.constant 1 : index
    %c2_36 = arith.constant 2 : index
    %c0_37 = arith.constant 0 : index
    %34 = vector.load %arg1[%c0_34, %c1_35, %c2_36, %c0_37] : memref<1x18x18x64xbf16, #tpu.memory_space<vmem>>, vector<1x16x16x64xbf16>
    %35 = vector.shape_cast %34 : vector<1x16x16x64xbf16> to vector<16x16x64xbf16>
    %36 = vector.shape_cast %35 : vector<16x16x64xbf16> to vector<256x64xbf16>
    %c5 = arith.constant 5 : index
    %c0_38 = arith.constant 0 : index
    %c0_39 = arith.constant 0 : index
    %37 = vector.load %arg2[%c5, %c0_38, %c0_39] : memref<9x64x128xbf16, #tpu.memory_space<vmem>>, vector<1x64x128xbf16>
    %38 = vector.shape_cast %37 : vector<1x64x128xbf16> to vector<64x128xbf16>
    %cst_40 = arith.constant dense<0.000000e+00> : vector<256x128xf32>
    %39 = tpu.matmul %36, %38, %cst_40 {dimension_numbers = #tpu.dot_dimension_numbers<[1], [0], [0], [1], [0, 0, 1, 1], [], []>} : vector<256x64xbf16>, vector<64x128xbf16>, vector<256x128xf32> -> vector<256x128xf32>
    %40 = arith.addf %33, %39 : vector<256x128xf32>
    %c0_41 = arith.constant 0 : index
    %c2_42 = arith.constant 2 : index
    %c0_43 = arith.constant 0 : index
    %c0_44 = arith.constant 0 : index
    %41 = vector.load %arg1[%c0_41, %c2_42, %c0_43, %c0_44] : memref<1x18x18x64xbf16, #tpu.memory_space<vmem>>, vector<1x16x16x64xbf16>
    %42 = vector.shape_cast %41 : vector<1x16x16x64xbf16> to vector<16x16x64xbf16>
    %43 = vector.shape_cast %42 : vector<16x16x64xbf16> to vector<256x64xbf16>
    %c6 = arith.constant 6 : index
    %c0_45 = arith.constant 0 : index
    %c0_46 = arith.constant 0 : index
    %44 = vector.load %arg2[%c6, %c0_45, %c0_46] : memref<9x64x128xbf16, #tpu.memory_space<vmem>>, vector<1x64x128xbf16>
    %45 = vector.shape_cast %44 : vector<1x64x128xbf16> to vector<64x128xbf16>
    %cst_47 = arith.constant dense<0.000000e+00> : vector<256x128xf32>
    %46 = tpu.matmul %43, %45, %cst_47 {dimension_numbers = #tpu.dot_dimension_numbers<[1], [0], [0], [1], [0, 0, 1, 1], [], []>} : vector<256x64xbf16>, vector<64x128xbf16>, vector<256x128xf32> -> vector<256x128xf32>
    %47 = arith.addf %40, %46 : vector<256x128xf32>
    %c0_48 = arith.constant 0 : index
    %c2_49 = arith.constant 2 : index
    %c1_50 = arith.constant 1 : index
    %c0_51 = arith.constant 0 : index
    %48 = vector.load %arg1[%c0_48, %c2_49, %c1_50, %c0_51] : memref<1x18x18x64xbf16, #tpu.memory_space<vmem>>, vector<1x16x16x64xbf16>
    %49 = vector.shape_cast %48 : vector<1x16x16x64xbf16> to vector<16x16x64xbf16>
    %50 = vector.shape_cast %49 : vector<16x16x64xbf16> to vector<256x64xbf16>
    %c7 = arith.constant 7 : index
    %c0_52 = arith.constant 0 : index
    %c0_53 = arith.constant 0 : index
    %51 = vector.load %arg2[%c7, %c0_52, %c0_53] : memref<9x64x128xbf16, #tpu.memory_space<vmem>>, vector<1x64x128xbf16>
    %52 = vector.shape_cast %51 : vector<1x64x128xbf16> to vector<64x128xbf16>
    %cst_54 = arith.constant dense<0.000000e+00> : vector<256x128xf32>
    %53 = tpu.matmul %50, %52, %cst_54 {dimension_numbers = #tpu.dot_dimension_numbers<[1], [0], [0], [1], [0, 0, 1, 1], [], []>} : vector<256x64xbf16>, vector<64x128xbf16>, vector<256x128xf32> -> vector<256x128xf32>
    %54 = arith.addf %47, %53 : vector<256x128xf32>
    %c0_55 = arith.constant 0 : index
    %c2_56 = arith.constant 2 : index
    %c2_57 = arith.constant 2 : index
    %c0_58 = arith.constant 0 : index
    %55 = vector.load %arg1[%c0_55, %c2_56, %c2_57, %c0_58] : memref<1x18x18x64xbf16, #tpu.memory_space<vmem>>, vector<1x16x16x64xbf16>
    %56 = vector.shape_cast %55 : vector<1x16x16x64xbf16> to vector<16x16x64xbf16>
    %57 = vector.shape_cast %56 : vector<16x16x64xbf16> to vector<256x64xbf16>
    %c8 = arith.constant 8 : index
    %c0_59 = arith.constant 0 : index
    %c0_60 = arith.constant 0 : index
    %58 = vector.load %arg2[%c8, %c0_59, %c0_60] : memref<9x64x128xbf16, #tpu.memory_space<vmem>>, vector<1x64x128xbf16>
    %59 = vector.shape_cast %58 : vector<1x64x128xbf16> to vector<64x128xbf16>
    %cst_61 = arith.constant dense<0.000000e+00> : vector<256x128xf32>
    %60 = tpu.matmul %57, %59, %cst_61 {dimension_numbers = #tpu.dot_dimension_numbers<[1], [0], [0], [1], [0, 0, 1, 1], [], []>} : vector<256x64xbf16>, vector<64x128xbf16>, vector<256x128xf32> -> vector<256x128xf32>
    %61 = arith.addf %54, %60 : vector<256x128xf32>
    %c0_62 = arith.constant 0 : index
    %c0_63 = arith.constant 0 : index
    %62 = vector.load %arg3[%c0_62, %c0_63] : memref<1x128xf32, #tpu.memory_space<vmem>>, vector<1x128xf32>
    %63 = vector.broadcast %62 : vector<1x128xf32> to vector<256x128xf32>
    %64 = arith.addf %61, %63 : vector<256x128xf32>
    %cst_64 = arith.constant 0.000000e+00 : f32
    %65 = vector.broadcast %cst_64 : f32 to vector<256x128xf32>
    %66 = arith.maximumf %64, %65 : vector<256x128xf32>
    %67 = arith.truncf %66 : vector<256x128xf32> to vector<256x128xbf16>
    %c0_65 = arith.constant 0 : index
    %c0_66 = arith.constant 0 : index
    %c0_67 = arith.constant 0 : index
    %68 = vector.load %arg4[%c0_65, %c0_66, %c0_67] : memref<1x256x128xbf16, #tpu.memory_space<vmem>>, vector<1x256x128xbf16>
    %69 = vector.shape_cast %68 : vector<1x256x128xbf16> to vector<256x128xbf16>
    %70 = vector.shape_cast %67 : vector<256x128xbf16> to vector<1x256x128xbf16>
    tpu.vector_store %arg4[%c0_65, %c0_66, %c0_67], %70 {strides = array<i32>} : memref<1x256x128xbf16, #tpu.memory_space<vmem>>, vector<1x256x128xbf16>,
    return
  }
  func.func @transform_0(%arg0: i32) -> (i32, i32, i32, i32) {
    %c0_i32 = arith.constant 0 : i32
    %c0_i32_0 = arith.constant 0 : i32
    %c0_i32_1 = arith.constant 0 : i32
    %c0_i32_2 = arith.constant 0 : i32
    return %arg0, %c0_i32, %c0_i32_0, %c0_i32_1 : i32, i32, i32, i32
  }
  func.func @transform_1(%arg0: i32) -> (i32, i32, i32) {
    %c0_i32 = arith.constant 0 : i32
    %c0_i32_0 = arith.constant 0 : i32
    %c0_i32_1 = arith.constant 0 : i32
    %c0_i32_2 = arith.constant 0 : i32
    return %c0_i32, %c0_i32_0, %c0_i32_1 : i32, i32, i32
  }
  func.func @transform_2(%arg0: i32) -> (i32, i32) {
    %c0_i32 = arith.constant 0 : i32
    %c0_i32_0 = arith.constant 0 : i32
    %c0_i32_1 = arith.constant 0 : i32
    return %c0_i32, %c0_i32_0 : i32, i32
  }
  func.func @transform_3(%arg0: i32) -> (i32, i32, i32) {
    %c0_i32 = arith.constant 0 : i32
    %c0_i32_0 = arith.constant 0 : i32
    %c0_i32_1 = arith.constant 0 : i32
    return %arg0, %c0_i32, %c0_i32_0 : i32, i32, i32
  }
}

module attributes {stable_mosaic.version = 11 : i64} {
  func.func @kernel(%arg0: i32, %arg1: memref<1x8x17x96xbf16, #tpu.memory_space<vmem>>, %arg2: memref<1x8x17x96xbf16, #tpu.memory_space<vmem>>, %arg3: memref<1x8x17x96xbf16, #tpu.memory_space<vmem>>, %arg4: memref<1x8x17x96xbf16, #tpu.memory_space<vmem>>, %arg5: memref<9x96x128xbf16, #tpu.memory_space<vmem>>, %arg6: memref<1x128xf32, #tpu.memory_space<vmem>>, %arg7: memref<1x112x128xf32, #tpu.memory_space<vmem>>) attributes {dimension_semantics = [#tpu.dimension_semantics<parallel>], iteration_bounds = array<i64: 2>, scalar_prefetch = 0 : i64, scratch_operands = 0 : i64, tpu.core_type = #tpu.core_type<tc>, window_params = [{transform_indices = @transform_0, window_bounds = array<i64: 1, 8, 17, 96>}, {transform_indices = @transform_1, window_bounds = array<i64: 1, 8, 17, 96>}, {transform_indices = @transform_2, window_bounds = array<i64: 1, 8, 17, 96>}, {transform_indices = @transform_3, window_bounds = array<i64: 1, 8, 17, 96>}, {pipeline_mode = #tpu.pipeline_mode<synchronous>, transform_indices = @transform_4, window_bounds = array<i64: 9, 96, 128>}, {pipeline_mode = #tpu.pipeline_mode<synchronous>, transform_indices = @transform_5, window_bounds = array<i64: 1, 128>}, {transform_indices = @transform_6, window_bounds = array<i64: 1, 112, 128>}]} {
    %c0 = arith.constant 0 : index
    %c0_0 = arith.constant 0 : index
    %c0_1 = arith.constant 0 : index
    %c0_2 = arith.constant 0 : index
    %0 = vector.load %arg1[%c0, %c0_0, %c0_1, %c0_2] : memref<1x8x17x96xbf16, #tpu.memory_space<vmem>>, vector<1x7x16x96xbf16>
    %1 = vector.shape_cast %0 : vector<1x7x16x96xbf16> to vector<7x16x96xbf16>
    %2 = vector.shape_cast %1 : vector<7x16x96xbf16> to vector<112x96xbf16>
    %c0_3 = arith.constant 0 : index
    %c0_4 = arith.constant 0 : index
    %c0_5 = arith.constant 0 : index
    %3 = vector.load %arg5[%c0_3, %c0_4, %c0_5] : memref<9x96x128xbf16, #tpu.memory_space<vmem>>, vector<1x96x128xbf16>
    %4 = vector.shape_cast %3 : vector<1x96x128xbf16> to vector<96x128xbf16>
    %cst = arith.constant dense<0.000000e+00> : vector<112x128xf32>
    %5 = tpu.matmul %2, %4, %cst {dimension_numbers = #tpu.dot_dimension_numbers<[1], [0], [0], [1], [0, 0, 1, 1], [], []>} : vector<112x96xbf16>, vector<96x128xbf16>, vector<112x128xf32> -> vector<112x128xf32>
    %c0_6 = arith.constant 0 : index
    %c0_7 = arith.constant 0 : index
    %c0_8 = arith.constant 0 : index
    %c0_9 = arith.constant 0 : index
    %6 = vector.load %arg2[%c0_6, %c0_7, %c0_8, %c0_9] : memref<1x8x17x96xbf16, #tpu.memory_space<vmem>>, vector<1x7x16x96xbf16>
    %7 = vector.shape_cast %6 : vector<1x7x16x96xbf16> to vector<7x16x96xbf16>
    %8 = vector.shape_cast %7 : vector<7x16x96xbf16> to vector<112x96xbf16>
    %c1 = arith.constant 1 : index
    %c0_10 = arith.constant 0 : index
    %c0_11 = arith.constant 0 : index
    %9 = vector.load %arg5[%c1, %c0_10, %c0_11] : memref<9x96x128xbf16, #tpu.memory_space<vmem>>, vector<1x96x128xbf16>
    %10 = vector.shape_cast %9 : vector<1x96x128xbf16> to vector<96x128xbf16>
    %cst_12 = arith.constant dense<0.000000e+00> : vector<112x128xf32>
    %11 = tpu.matmul %8, %10, %cst_12 {dimension_numbers = #tpu.dot_dimension_numbers<[1], [0], [0], [1], [0, 0, 1, 1], [], []>} : vector<112x96xbf16>, vector<96x128xbf16>, vector<112x128xf32> -> vector<112x128xf32>
    %12 = arith.addf %5, %11 : vector<112x128xf32>
    %c0_13 = arith.constant 0 : index
    %c0_14 = arith.constant 0 : index
    %c1_15 = arith.constant 1 : index
    %c0_16 = arith.constant 0 : index
    %13 = vector.load %arg1[%c0_13, %c0_14, %c1_15, %c0_16] : memref<1x8x17x96xbf16, #tpu.memory_space<vmem>>, vector<1x7x16x96xbf16>
    %14 = vector.shape_cast %13 : vector<1x7x16x96xbf16> to vector<7x16x96xbf16>
    %15 = vector.shape_cast %14 : vector<7x16x96xbf16> to vector<112x96xbf16>
    %c2 = arith.constant 2 : index
    %c0_17 = arith.constant 0 : index
    %c0_18 = arith.constant 0 : index
    %16 = vector.load %arg5[%c2, %c0_17, %c0_18] : memref<9x96x128xbf16, #tpu.memory_space<vmem>>, vector<1x96x128xbf16>
    %17 = vector.shape_cast %16 : vector<1x96x128xbf16> to vector<96x128xbf16>
    %cst_19 = arith.constant dense<0.000000e+00> : vector<112x128xf32>
    %18 = tpu.matmul %15, %17, %cst_19 {dimension_numbers = #tpu.dot_dimension_numbers<[1], [0], [0], [1], [0, 0, 1, 1], [], []>} : vector<112x96xbf16>, vector<96x128xbf16>, vector<112x128xf32> -> vector<112x128xf32>
    %19 = arith.addf %12, %18 : vector<112x128xf32>
    %c0_20 = arith.constant 0 : index
    %c0_21 = arith.constant 0 : index
    %c0_22 = arith.constant 0 : index
    %c0_23 = arith.constant 0 : index
    %20 = vector.load %arg3[%c0_20, %c0_21, %c0_22, %c0_23] : memref<1x8x17x96xbf16, #tpu.memory_space<vmem>>, vector<1x7x16x96xbf16>
    %21 = vector.shape_cast %20 : vector<1x7x16x96xbf16> to vector<7x16x96xbf16>
    %22 = vector.shape_cast %21 : vector<7x16x96xbf16> to vector<112x96xbf16>
    %c3 = arith.constant 3 : index
    %c0_24 = arith.constant 0 : index
    %c0_25 = arith.constant 0 : index
    %23 = vector.load %arg5[%c3, %c0_24, %c0_25] : memref<9x96x128xbf16, #tpu.memory_space<vmem>>, vector<1x96x128xbf16>
    %24 = vector.shape_cast %23 : vector<1x96x128xbf16> to vector<96x128xbf16>
    %cst_26 = arith.constant dense<0.000000e+00> : vector<112x128xf32>
    %25 = tpu.matmul %22, %24, %cst_26 {dimension_numbers = #tpu.dot_dimension_numbers<[1], [0], [0], [1], [0, 0, 1, 1], [], []>} : vector<112x96xbf16>, vector<96x128xbf16>, vector<112x128xf32> -> vector<112x128xf32>
    %26 = arith.addf %19, %25 : vector<112x128xf32>
    %c0_27 = arith.constant 0 : index
    %c0_28 = arith.constant 0 : index
    %c0_29 = arith.constant 0 : index
    %c0_30 = arith.constant 0 : index
    %27 = vector.load %arg4[%c0_27, %c0_28, %c0_29, %c0_30] : memref<1x8x17x96xbf16, #tpu.memory_space<vmem>>, vector<1x7x16x96xbf16>
    %28 = vector.shape_cast %27 : vector<1x7x16x96xbf16> to vector<7x16x96xbf16>
    %29 = vector.shape_cast %28 : vector<7x16x96xbf16> to vector<112x96xbf16>
    %c4 = arith.constant 4 : index
    %c0_31 = arith.constant 0 : index
    %c0_32 = arith.constant 0 : index
    %30 = vector.load %arg5[%c4, %c0_31, %c0_32] : memref<9x96x128xbf16, #tpu.memory_space<vmem>>, vector<1x96x128xbf16>
    %31 = vector.shape_cast %30 : vector<1x96x128xbf16> to vector<96x128xbf16>
    %cst_33 = arith.constant dense<0.000000e+00> : vector<112x128xf32>
    %32 = tpu.matmul %29, %31, %cst_33 {dimension_numbers = #tpu.dot_dimension_numbers<[1], [0], [0], [1], [0, 0, 1, 1], [], []>} : vector<112x96xbf16>, vector<96x128xbf16>, vector<112x128xf32> -> vector<112x128xf32>
    %33 = arith.addf %26, %32 : vector<112x128xf32>
    %c0_34 = arith.constant 0 : index
    %c0_35 = arith.constant 0 : index
    %c1_36 = arith.constant 1 : index
    %c0_37 = arith.constant 0 : index
    %34 = vector.load %arg3[%c0_34, %c0_35, %c1_36, %c0_37] : memref<1x8x17x96xbf16, #tpu.memory_space<vmem>>, vector<1x7x16x96xbf16>
    %35 = vector.shape_cast %34 : vector<1x7x16x96xbf16> to vector<7x16x96xbf16>
    %36 = vector.shape_cast %35 : vector<7x16x96xbf16> to vector<112x96xbf16>
    %c5 = arith.constant 5 : index
    %c0_38 = arith.constant 0 : index
    %c0_39 = arith.constant 0 : index
    %37 = vector.load %arg5[%c5, %c0_38, %c0_39] : memref<9x96x128xbf16, #tpu.memory_space<vmem>>, vector<1x96x128xbf16>
    %38 = vector.shape_cast %37 : vector<1x96x128xbf16> to vector<96x128xbf16>
    %cst_40 = arith.constant dense<0.000000e+00> : vector<112x128xf32>
    %39 = tpu.matmul %36, %38, %cst_40 {dimension_numbers = #tpu.dot_dimension_numbers<[1], [0], [0], [1], [0, 0, 1, 1], [], []>} : vector<112x96xbf16>, vector<96x128xbf16>, vector<112x128xf32> -> vector<112x128xf32>
    %40 = arith.addf %33, %39 : vector<112x128xf32>
    %c0_41 = arith.constant 0 : index
    %c1_42 = arith.constant 1 : index
    %c0_43 = arith.constant 0 : index
    %c0_44 = arith.constant 0 : index
    %41 = vector.load %arg1[%c0_41, %c1_42, %c0_43, %c0_44] : memref<1x8x17x96xbf16, #tpu.memory_space<vmem>>, vector<1x7x16x96xbf16>
    %42 = vector.shape_cast %41 : vector<1x7x16x96xbf16> to vector<7x16x96xbf16>
    %43 = vector.shape_cast %42 : vector<7x16x96xbf16> to vector<112x96xbf16>
    %c6 = arith.constant 6 : index
    %c0_45 = arith.constant 0 : index
    %c0_46 = arith.constant 0 : index
    %44 = vector.load %arg5[%c6, %c0_45, %c0_46] : memref<9x96x128xbf16, #tpu.memory_space<vmem>>, vector<1x96x128xbf16>
    %45 = vector.shape_cast %44 : vector<1x96x128xbf16> to vector<96x128xbf16>
    %cst_47 = arith.constant dense<0.000000e+00> : vector<112x128xf32>
    %46 = tpu.matmul %43, %45, %cst_47 {dimension_numbers = #tpu.dot_dimension_numbers<[1], [0], [0], [1], [0, 0, 1, 1], [], []>} : vector<112x96xbf16>, vector<96x128xbf16>, vector<112x128xf32> -> vector<112x128xf32>
    %47 = arith.addf %40, %46 : vector<112x128xf32>
    %c0_48 = arith.constant 0 : index
    %c1_49 = arith.constant 1 : index
    %c0_50 = arith.constant 0 : index
    %c0_51 = arith.constant 0 : index
    %48 = vector.load %arg2[%c0_48, %c1_49, %c0_50, %c0_51] : memref<1x8x17x96xbf16, #tpu.memory_space<vmem>>, vector<1x7x16x96xbf16>
    %49 = vector.shape_cast %48 : vector<1x7x16x96xbf16> to vector<7x16x96xbf16>
    %50 = vector.shape_cast %49 : vector<7x16x96xbf16> to vector<112x96xbf16>
    %c7 = arith.constant 7 : index
    %c0_52 = arith.constant 0 : index
    %c0_53 = arith.constant 0 : index
    %51 = vector.load %arg5[%c7, %c0_52, %c0_53] : memref<9x96x128xbf16, #tpu.memory_space<vmem>>, vector<1x96x128xbf16>
    %52 = vector.shape_cast %51 : vector<1x96x128xbf16> to vector<96x128xbf16>
    %cst_54 = arith.constant dense<0.000000e+00> : vector<112x128xf32>
    %53 = tpu.matmul %50, %52, %cst_54 {dimension_numbers = #tpu.dot_dimension_numbers<[1], [0], [0], [1], [0, 0, 1, 1], [], []>} : vector<112x96xbf16>, vector<96x128xbf16>, vector<112x128xf32> -> vector<112x128xf32>
    %54 = arith.addf %47, %53 : vector<112x128xf32>
    %c0_55 = arith.constant 0 : index
    %c1_56 = arith.constant 1 : index
    %c1_57 = arith.constant 1 : index
    %c0_58 = arith.constant 0 : index
    %55 = vector.load %arg1[%c0_55, %c1_56, %c1_57, %c0_58] : memref<1x8x17x96xbf16, #tpu.memory_space<vmem>>, vector<1x7x16x96xbf16>
    %56 = vector.shape_cast %55 : vector<1x7x16x96xbf16> to vector<7x16x96xbf16>
    %57 = vector.shape_cast %56 : vector<7x16x96xbf16> to vector<112x96xbf16>
    %c8 = arith.constant 8 : index
    %c0_59 = arith.constant 0 : index
    %c0_60 = arith.constant 0 : index
    %58 = vector.load %arg5[%c8, %c0_59, %c0_60] : memref<9x96x128xbf16, #tpu.memory_space<vmem>>, vector<1x96x128xbf16>
    %59 = vector.shape_cast %58 : vector<1x96x128xbf16> to vector<96x128xbf16>
    %cst_61 = arith.constant dense<0.000000e+00> : vector<112x128xf32>
    %60 = tpu.matmul %57, %59, %cst_61 {dimension_numbers = #tpu.dot_dimension_numbers<[1], [0], [0], [1], [0, 0, 1, 1], [], []>} : vector<112x96xbf16>, vector<96x128xbf16>, vector<112x128xf32> -> vector<112x128xf32>
    %61 = arith.addf %54, %60 : vector<112x128xf32>
    %c0_62 = arith.constant 0 : index
    %c0_63 = arith.constant 0 : index
    %62 = vector.load %arg6[%c0_62, %c0_63] : memref<1x128xf32, #tpu.memory_space<vmem>>, vector<1x128xf32>
    %63 = vector.broadcast %62 : vector<1x128xf32> to vector<112x128xf32>
    %64 = arith.addf %61, %63 : vector<112x128xf32>
    %cst_64 = arith.constant 0.000000e+00 : f32
    %65 = vector.broadcast %cst_64 : f32 to vector<112x128xf32>
    %66 = arith.maximumf %64, %65 : vector<112x128xf32>
    %c0_65 = arith.constant 0 : index
    %c0_66 = arith.constant 0 : index
    %c0_67 = arith.constant 0 : index
    %67 = vector.load %arg7[%c0_65, %c0_66, %c0_67] : memref<1x112x128xf32, #tpu.memory_space<vmem>>, vector<1x112x128xf32>
    %68 = vector.shape_cast %67 : vector<1x112x128xf32> to vector<112x128xf32>
    %69 = vector.shape_cast %66 : vector<112x128xf32> to vector<1x112x128xf32>
    tpu.vector_store %arg7[%c0_65, %c0_66, %c0_67], %69 {strides = array<i32>} : memref<1x112x128xf32, #tpu.memory_space<vmem>>, vector<1x112x128xf32>,
    return
  }
  func.func @transform_0(%arg0: i32) -> (i32, i32, i32, i32) {
    %c0_i32 = arith.constant 0 : i32
    %c0_i32_0 = arith.constant 0 : i32
    %c0_i32_1 = arith.constant 0 : i32
    %c0_i32_2 = arith.constant 0 : i32
    return %arg0, %c0_i32, %c0_i32_0, %c0_i32_1 : i32, i32, i32, i32
  }
  func.func @transform_1(%arg0: i32) -> (i32, i32, i32, i32) {
    %c0_i32 = arith.constant 0 : i32
    %c0_i32_0 = arith.constant 0 : i32
    %c0_i32_1 = arith.constant 0 : i32
    %c0_i32_2 = arith.constant 0 : i32
    return %arg0, %c0_i32, %c0_i32_0, %c0_i32_1 : i32, i32, i32, i32
  }
  func.func @transform_2(%arg0: i32) -> (i32, i32, i32, i32) {
    %c0_i32 = arith.constant 0 : i32
    %c0_i32_0 = arith.constant 0 : i32
    %c0_i32_1 = arith.constant 0 : i32
    %c0_i32_2 = arith.constant 0 : i32
    return %arg0, %c0_i32, %c0_i32_0, %c0_i32_1 : i32, i32, i32, i32
  }
  func.func @transform_3(%arg0: i32) -> (i32, i32, i32, i32) {
    %c0_i32 = arith.constant 0 : i32
    %c0_i32_0 = arith.constant 0 : i32
    %c0_i32_1 = arith.constant 0 : i32
    %c0_i32_2 = arith.constant 0 : i32
    return %arg0, %c0_i32, %c0_i32_0, %c0_i32_1 : i32, i32, i32, i32
  }
  func.func @transform_4(%arg0: i32) -> (i32, i32, i32) {
    %c0_i32 = arith.constant 0 : i32
    %c0_i32_0 = arith.constant 0 : i32
    %c0_i32_1 = arith.constant 0 : i32
    %c0_i32_2 = arith.constant 0 : i32
    return %c0_i32, %c0_i32_0, %c0_i32_1 : i32, i32, i32
  }
  func.func @transform_5(%arg0: i32) -> (i32, i32) {
    %c0_i32 = arith.constant 0 : i32
    %c0_i32_0 = arith.constant 0 : i32
    %c0_i32_1 = arith.constant 0 : i32
    return %c0_i32, %c0_i32_0 : i32, i32
  }
  func.func @transform_6(%arg0: i32) -> (i32, i32, i32) {
    %c0_i32 = arith.constant 0 : i32
    %c0_i32_0 = arith.constant 0 : i32
    %c0_i32_1 = arith.constant 0 : i32
    return %arg0, %c0_i32, %c0_i32_0 : i32, i32, i32
  }
}

module attributes {stable_mosaic.version = 11 : i64} {
  func.func @kernel(%arg0: i32, %arg1: memref<1x8x17x4xbf16, #tpu.memory_space<vmem>>, %arg2: memref<1x8x17x4xbf16, #tpu.memory_space<vmem>>, %arg3: memref<1x8x17x4xbf16, #tpu.memory_space<vmem>>, %arg4: memref<1x8x17x4xbf16, #tpu.memory_space<vmem>>, %arg5: memref<9x4x384xbf16, #tpu.memory_space<vmem>>, %arg6: memref<1x384xf32, #tpu.memory_space<vmem>>, %arg7: memref<1x112x384xf32, #tpu.memory_space<vmem>>) attributes {dimension_semantics = [#tpu.dimension_semantics<parallel>], iteration_bounds = array<i64: 2>, scalar_prefetch = 0 : i64, scratch_operands = 0 : i64, tpu.core_type = #tpu.core_type<tc>, window_params = [{transform_indices = @transform_0, window_bounds = array<i64: 1, 8, 17, 4>}, {transform_indices = @transform_1, window_bounds = array<i64: 1, 8, 17, 4>}, {transform_indices = @transform_2, window_bounds = array<i64: 1, 8, 17, 4>}, {transform_indices = @transform_3, window_bounds = array<i64: 1, 8, 17, 4>}, {pipeline_mode = #tpu.pipeline_mode<synchronous>, transform_indices = @transform_4, window_bounds = array<i64: 9, 4, 384>}, {pipeline_mode = #tpu.pipeline_mode<synchronous>, transform_indices = @transform_5, window_bounds = array<i64: 1, 384>}, {transform_indices = @transform_6, window_bounds = array<i64: 1, 112, 384>}]} {
    %c0 = arith.constant 0 : index
    %c0_0 = arith.constant 0 : index
    %c0_1 = arith.constant 0 : index
    %c0_2 = arith.constant 0 : index
    %0 = vector.load %arg1[%c0, %c0_0, %c0_1, %c0_2] : memref<1x8x17x4xbf16, #tpu.memory_space<vmem>>, vector<1x7x16x4xbf16>
    %1 = vector.shape_cast %0 : vector<1x7x16x4xbf16> to vector<7x16x4xbf16>
    %2 = vector.shape_cast %1 : vector<7x16x4xbf16> to vector<112x4xbf16>
    %c0_3 = arith.constant 0 : index
    %c0_4 = arith.constant 0 : index
    %c0_5 = arith.constant 0 : index
    %3 = vector.load %arg5[%c0_3, %c0_4, %c0_5] : memref<9x4x384xbf16, #tpu.memory_space<vmem>>, vector<1x4x384xbf16>
    %4 = vector.shape_cast %3 : vector<1x4x384xbf16> to vector<4x384xbf16>
    %cst = arith.constant dense<0.000000e+00> : vector<112x384xf32>
    %5 = tpu.matmul %2, %4, %cst {dimension_numbers = #tpu.dot_dimension_numbers<[1], [0], [0], [1], [0, 0, 1, 1], [], []>} : vector<112x4xbf16>, vector<4x384xbf16>, vector<112x384xf32> -> vector<112x384xf32>
    %c0_6 = arith.constant 0 : index
    %c0_7 = arith.constant 0 : index
    %c0_8 = arith.constant 0 : index
    %c0_9 = arith.constant 0 : index
    %6 = vector.load %arg2[%c0_6, %c0_7, %c0_8, %c0_9] : memref<1x8x17x4xbf16, #tpu.memory_space<vmem>>, vector<1x7x16x4xbf16>
    %7 = vector.shape_cast %6 : vector<1x7x16x4xbf16> to vector<7x16x4xbf16>
    %8 = vector.shape_cast %7 : vector<7x16x4xbf16> to vector<112x4xbf16>
    %c1 = arith.constant 1 : index
    %c0_10 = arith.constant 0 : index
    %c0_11 = arith.constant 0 : index
    %9 = vector.load %arg5[%c1, %c0_10, %c0_11] : memref<9x4x384xbf16, #tpu.memory_space<vmem>>, vector<1x4x384xbf16>
    %10 = vector.shape_cast %9 : vector<1x4x384xbf16> to vector<4x384xbf16>
    %cst_12 = arith.constant dense<0.000000e+00> : vector<112x384xf32>
    %11 = tpu.matmul %8, %10, %cst_12 {dimension_numbers = #tpu.dot_dimension_numbers<[1], [0], [0], [1], [0, 0, 1, 1], [], []>} : vector<112x4xbf16>, vector<4x384xbf16>, vector<112x384xf32> -> vector<112x384xf32>
    %12 = arith.addf %5, %11 : vector<112x384xf32>
    %c0_13 = arith.constant 0 : index
    %c0_14 = arith.constant 0 : index
    %c1_15 = arith.constant 1 : index
    %c0_16 = arith.constant 0 : index
    %13 = vector.load %arg1[%c0_13, %c0_14, %c1_15, %c0_16] : memref<1x8x17x4xbf16, #tpu.memory_space<vmem>>, vector<1x7x16x4xbf16>
    %14 = vector.shape_cast %13 : vector<1x7x16x4xbf16> to vector<7x16x4xbf16>
    %15 = vector.shape_cast %14 : vector<7x16x4xbf16> to vector<112x4xbf16>
    %c2 = arith.constant 2 : index
    %c0_17 = arith.constant 0 : index
    %c0_18 = arith.constant 0 : index
    %16 = vector.load %arg5[%c2, %c0_17, %c0_18] : memref<9x4x384xbf16, #tpu.memory_space<vmem>>, vector<1x4x384xbf16>
    %17 = vector.shape_cast %16 : vector<1x4x384xbf16> to vector<4x384xbf16>
    %cst_19 = arith.constant dense<0.000000e+00> : vector<112x384xf32>
    %18 = tpu.matmul %15, %17, %cst_19 {dimension_numbers = #tpu.dot_dimension_numbers<[1], [0], [0], [1], [0, 0, 1, 1], [], []>} : vector<112x4xbf16>, vector<4x384xbf16>, vector<112x384xf32> -> vector<112x384xf32>
    %19 = arith.addf %12, %18 : vector<112x384xf32>
    %c0_20 = arith.constant 0 : index
    %c0_21 = arith.constant 0 : index
    %c0_22 = arith.constant 0 : index
    %c0_23 = arith.constant 0 : index
    %20 = vector.load %arg3[%c0_20, %c0_21, %c0_22, %c0_23] : memref<1x8x17x4xbf16, #tpu.memory_space<vmem>>, vector<1x7x16x4xbf16>
    %21 = vector.shape_cast %20 : vector<1x7x16x4xbf16> to vector<7x16x4xbf16>
    %22 = vector.shape_cast %21 : vector<7x16x4xbf16> to vector<112x4xbf16>
    %c3 = arith.constant 3 : index
    %c0_24 = arith.constant 0 : index
    %c0_25 = arith.constant 0 : index
    %23 = vector.load %arg5[%c3, %c0_24, %c0_25] : memref<9x4x384xbf16, #tpu.memory_space<vmem>>, vector<1x4x384xbf16>
    %24 = vector.shape_cast %23 : vector<1x4x384xbf16> to vector<4x384xbf16>
    %cst_26 = arith.constant dense<0.000000e+00> : vector<112x384xf32>
    %25 = tpu.matmul %22, %24, %cst_26 {dimension_numbers = #tpu.dot_dimension_numbers<[1], [0], [0], [1], [0, 0, 1, 1], [], []>} : vector<112x4xbf16>, vector<4x384xbf16>, vector<112x384xf32> -> vector<112x384xf32>
    %26 = arith.addf %19, %25 : vector<112x384xf32>
    %c0_27 = arith.constant 0 : index
    %c0_28 = arith.constant 0 : index
    %c0_29 = arith.constant 0 : index
    %c0_30 = arith.constant 0 : index
    %27 = vector.load %arg4[%c0_27, %c0_28, %c0_29, %c0_30] : memref<1x8x17x4xbf16, #tpu.memory_space<vmem>>, vector<1x7x16x4xbf16>
    %28 = vector.shape_cast %27 : vector<1x7x16x4xbf16> to vector<7x16x4xbf16>
    %29 = vector.shape_cast %28 : vector<7x16x4xbf16> to vector<112x4xbf16>
    %c4 = arith.constant 4 : index
    %c0_31 = arith.constant 0 : index
    %c0_32 = arith.constant 0 : index
    %30 = vector.load %arg5[%c4, %c0_31, %c0_32] : memref<9x4x384xbf16, #tpu.memory_space<vmem>>, vector<1x4x384xbf16>
    %31 = vector.shape_cast %30 : vector<1x4x384xbf16> to vector<4x384xbf16>
    %cst_33 = arith.constant dense<0.000000e+00> : vector<112x384xf32>
    %32 = tpu.matmul %29, %31, %cst_33 {dimension_numbers = #tpu.dot_dimension_numbers<[1], [0], [0], [1], [0, 0, 1, 1], [], []>} : vector<112x4xbf16>, vector<4x384xbf16>, vector<112x384xf32> -> vector<112x384xf32>
    %33 = arith.addf %26, %32 : vector<112x384xf32>
    %c0_34 = arith.constant 0 : index
    %c0_35 = arith.constant 0 : index
    %c1_36 = arith.constant 1 : index
    %c0_37 = arith.constant 0 : index
    %34 = vector.load %arg3[%c0_34, %c0_35, %c1_36, %c0_37] : memref<1x8x17x4xbf16, #tpu.memory_space<vmem>>, vector<1x7x16x4xbf16>
    %35 = vector.shape_cast %34 : vector<1x7x16x4xbf16> to vector<7x16x4xbf16>
    %36 = vector.shape_cast %35 : vector<7x16x4xbf16> to vector<112x4xbf16>
    %c5 = arith.constant 5 : index
    %c0_38 = arith.constant 0 : index
    %c0_39 = arith.constant 0 : index
    %37 = vector.load %arg5[%c5, %c0_38, %c0_39] : memref<9x4x384xbf16, #tpu.memory_space<vmem>>, vector<1x4x384xbf16>
    %38 = vector.shape_cast %37 : vector<1x4x384xbf16> to vector<4x384xbf16>
    %cst_40 = arith.constant dense<0.000000e+00> : vector<112x384xf32>
    %39 = tpu.matmul %36, %38, %cst_40 {dimension_numbers = #tpu.dot_dimension_numbers<[1], [0], [0], [1], [0, 0, 1, 1], [], []>} : vector<112x4xbf16>, vector<4x384xbf16>, vector<112x384xf32> -> vector<112x384xf32>
    %40 = arith.addf %33, %39 : vector<112x384xf32>
    %c0_41 = arith.constant 0 : index
    %c1_42 = arith.constant 1 : index
    %c0_43 = arith.constant 0 : index
    %c0_44 = arith.constant 0 : index
    %41 = vector.load %arg1[%c0_41, %c1_42, %c0_43, %c0_44] : memref<1x8x17x4xbf16, #tpu.memory_space<vmem>>, vector<1x7x16x4xbf16>
    %42 = vector.shape_cast %41 : vector<1x7x16x4xbf16> to vector<7x16x4xbf16>
    %43 = vector.shape_cast %42 : vector<7x16x4xbf16> to vector<112x4xbf16>
    %c6 = arith.constant 6 : index
    %c0_45 = arith.constant 0 : index
    %c0_46 = arith.constant 0 : index
    %44 = vector.load %arg5[%c6, %c0_45, %c0_46] : memref<9x4x384xbf16, #tpu.memory_space<vmem>>, vector<1x4x384xbf16>
    %45 = vector.shape_cast %44 : vector<1x4x384xbf16> to vector<4x384xbf16>
    %cst_47 = arith.constant dense<0.000000e+00> : vector<112x384xf32>
    %46 = tpu.matmul %43, %45, %cst_47 {dimension_numbers = #tpu.dot_dimension_numbers<[1], [0], [0], [1], [0, 0, 1, 1], [], []>} : vector<112x4xbf16>, vector<4x384xbf16>, vector<112x384xf32> -> vector<112x384xf32>
    %47 = arith.addf %40, %46 : vector<112x384xf32>
    %c0_48 = arith.constant 0 : index
    %c1_49 = arith.constant 1 : index
    %c0_50 = arith.constant 0 : index
    %c0_51 = arith.constant 0 : index
    %48 = vector.load %arg2[%c0_48, %c1_49, %c0_50, %c0_51] : memref<1x8x17x4xbf16, #tpu.memory_space<vmem>>, vector<1x7x16x4xbf16>
    %49 = vector.shape_cast %48 : vector<1x7x16x4xbf16> to vector<7x16x4xbf16>
    %50 = vector.shape_cast %49 : vector<7x16x4xbf16> to vector<112x4xbf16>
    %c7 = arith.constant 7 : index
    %c0_52 = arith.constant 0 : index
    %c0_53 = arith.constant 0 : index
    %51 = vector.load %arg5[%c7, %c0_52, %c0_53] : memref<9x4x384xbf16, #tpu.memory_space<vmem>>, vector<1x4x384xbf16>
    %52 = vector.shape_cast %51 : vector<1x4x384xbf16> to vector<4x384xbf16>
    %cst_54 = arith.constant dense<0.000000e+00> : vector<112x384xf32>
    %53 = tpu.matmul %50, %52, %cst_54 {dimension_numbers = #tpu.dot_dimension_numbers<[1], [0], [0], [1], [0, 0, 1, 1], [], []>} : vector<112x4xbf16>, vector<4x384xbf16>, vector<112x384xf32> -> vector<112x384xf32>
    %54 = arith.addf %47, %53 : vector<112x384xf32>
    %c0_55 = arith.constant 0 : index
    %c1_56 = arith.constant 1 : index
    %c1_57 = arith.constant 1 : index
    %c0_58 = arith.constant 0 : index
    %55 = vector.load %arg1[%c0_55, %c1_56, %c1_57, %c0_58] : memref<1x8x17x4xbf16, #tpu.memory_space<vmem>>, vector<1x7x16x4xbf16>
    %56 = vector.shape_cast %55 : vector<1x7x16x4xbf16> to vector<7x16x4xbf16>
    %57 = vector.shape_cast %56 : vector<7x16x4xbf16> to vector<112x4xbf16>
    %c8 = arith.constant 8 : index
    %c0_59 = arith.constant 0 : index
    %c0_60 = arith.constant 0 : index
    %58 = vector.load %arg5[%c8, %c0_59, %c0_60] : memref<9x4x384xbf16, #tpu.memory_space<vmem>>, vector<1x4x384xbf16>
    %59 = vector.shape_cast %58 : vector<1x4x384xbf16> to vector<4x384xbf16>
    %cst_61 = arith.constant dense<0.000000e+00> : vector<112x384xf32>
    %60 = tpu.matmul %57, %59, %cst_61 {dimension_numbers = #tpu.dot_dimension_numbers<[1], [0], [0], [1], [0, 0, 1, 1], [], []>} : vector<112x4xbf16>, vector<4x384xbf16>, vector<112x384xf32> -> vector<112x384xf32>
    %61 = arith.addf %54, %60 : vector<112x384xf32>
    %c0_62 = arith.constant 0 : index
    %c0_63 = arith.constant 0 : index
    %62 = vector.load %arg6[%c0_62, %c0_63] : memref<1x384xf32, #tpu.memory_space<vmem>>, vector<1x384xf32>
    %63 = vector.broadcast %62 : vector<1x384xf32> to vector<112x384xf32>
    %64 = arith.addf %61, %63 : vector<112x384xf32>
    %cst_64 = arith.constant 0.000000e+00 : f32
    %65 = vector.broadcast %cst_64 : f32 to vector<112x384xf32>
    %66 = arith.maximumf %64, %65 : vector<112x384xf32>
    %c0_65 = arith.constant 0 : index
    %c0_66 = arith.constant 0 : index
    %c0_67 = arith.constant 0 : index
    %67 = vector.load %arg7[%c0_65, %c0_66, %c0_67] : memref<1x112x384xf32, #tpu.memory_space<vmem>>, vector<1x112x384xf32>
    %68 = vector.shape_cast %67 : vector<1x112x384xf32> to vector<112x384xf32>
    %69 = vector.shape_cast %66 : vector<112x384xf32> to vector<1x112x384xf32>
    tpu.vector_store %arg7[%c0_65, %c0_66, %c0_67], %69 {strides = array<i32>} : memref<1x112x384xf32, #tpu.memory_space<vmem>>, vector<1x112x384xf32>,
    return
  }
  func.func @transform_0(%arg0: i32) -> (i32, i32, i32, i32) {
    %c0_i32 = arith.constant 0 : i32
    %c0_i32_0 = arith.constant 0 : i32
    %c0_i32_1 = arith.constant 0 : i32
    %c0_i32_2 = arith.constant 0 : i32
    return %arg0, %c0_i32, %c0_i32_0, %c0_i32_1 : i32, i32, i32, i32
  }
  func.func @transform_1(%arg0: i32) -> (i32, i32, i32, i32) {
    %c0_i32 = arith.constant 0 : i32
    %c0_i32_0 = arith.constant 0 : i32
    %c0_i32_1 = arith.constant 0 : i32
    %c0_i32_2 = arith.constant 0 : i32
    return %arg0, %c0_i32, %c0_i32_0, %c0_i32_1 : i32, i32, i32, i32
  }
  func.func @transform_2(%arg0: i32) -> (i32, i32, i32, i32) {
    %c0_i32 = arith.constant 0 : i32
    %c0_i32_0 = arith.constant 0 : i32
    %c0_i32_1 = arith.constant 0 : i32
    %c0_i32_2 = arith.constant 0 : i32
    return %arg0, %c0_i32, %c0_i32_0, %c0_i32_1 : i32, i32, i32, i32
  }
  func.func @transform_3(%arg0: i32) -> (i32, i32, i32, i32) {
    %c0_i32 = arith.constant 0 : i32
    %c0_i32_0 = arith.constant 0 : i32
    %c0_i32_1 = arith.constant 0 : i32
    %c0_i32_2 = arith.constant 0 : i32
    return %arg0, %c0_i32, %c0_i32_0, %c0_i32_1 : i32, i32, i32, i32
  }
  func.func @transform_4(%arg0: i32) -> (i32, i32, i32) {
    %c0_i32 = arith.constant 0 : i32
    %c0_i32_0 = arith.constant 0 : i32
    %c0_i32_1 = arith.constant 0 : i32
    %c0_i32_2 = arith.constant 0 : i32
    return %c0_i32, %c0_i32_0, %c0_i32_1 : i32, i32, i32
  }
  func.func @transform_5(%arg0: i32) -> (i32, i32) {
    %c0_i32 = arith.constant 0 : i32
    %c0_i32_0 = arith.constant 0 : i32
    %c0_i32_1 = arith.constant 0 : i32
    return %c0_i32, %c0_i32_0 : i32, i32
  }
  func.func @transform_6(%arg0: i32) -> (i32, i32, i32) {
    %c0_i32 = arith.constant 0 : i32
    %c0_i32_0 = arith.constant 0 : i32
    %c0_i32_1 = arith.constant 0 : i32
    return %arg0, %c0_i32, %c0_i32_0 : i32, i32, i32
  }
}

</mosaic_0001>

<llo_original>
// kernel: inception_b_forward.9
$region0: #{inception_b_forward.9}
  #allocation0 [shape = 'u32[]', space=smem, size = 0x4, offset = 0x4, fixed_abs, tag = 'smem constant byte address 0x4 - core index']
  #allocation1 [shape = 'u32[72,128]{1,0:T(1,128)}', space=vmem, size = 0x9000, scoped, tag = 'internal scratch']
  %s0 = inlined_call_operand.vmem [shape: f32[2,8,8,4], index: 0, kind: input, shape index: {}]
  %s1 = inlined_call_operand.vmem [shape: f32[2,8,8,4], index: 1, kind: input, shape index: {}]
  %s2 = inlined_call_operand.vmem [shape: f32[2,8,8,4], index: 2, kind: input, shape index: {}]
  %s3 = inlined_call_operand.vmem [shape: f32[2,8,8,4], index: 3, kind: input, shape index: {}]
  %s4 = inlined_call_operand.vmem [shape: f32[2,7,7,4], index: 4, kind: output, shape index: {}]
  %s5 = sld [smem:[#allocation0]]
  $region49: #{inception_b_forward.9} parent=0
    _
  %s7 = ssub.s32 1, %s5
  %s8 = scalar_select 0, %s7, %s5
  loop: start=0, step=1, limit=4
  $region2: #{inception_b_forward.9} parent=0 // loop_pre_header
    _
  $region3: #{inception_b_forward.9} parent=0 // loop_header
    %s10 = sphi 0, %s14
    %p11 = scmp.ge.s32.totalorder %s10, 4
    %s20 = sphi 0, %s22
    %s23 = sphi 0, %s20
    %s24 = sphi 0, %s23
    %s40 = sphi 0, %s24
    %s46 = sphi 0, %s48
    %s49 = sphi 0, %s46
    %s50 = sphi 0, %s49
    %s66 = sphi 0, %s50
    %s72 = sphi 0, %s74
    %s75 = sphi 0, %s72
    %s76 = sphi 0, %s75
    %s92 = sphi 0, %s76
    %s98 = sphi 0, %s100
    %s101 = sphi 0, %s98
    %s102 = sphi 0, %s101
    %s118 = sphi 0, %s102
    %s124 = sphi 0, %s126
    %s127 = sphi 0, %s124
    %s128 = sphi 0, %s127
    %s144 = sphi 0, %s128
  $region4: #{inception_b_forward.9} parent=0 // loop_header_branch
    %13 = sbr.rel (%p11) target = $region8
  $region5: #{inception_b_forward.9} parent=0 // loop_body
    %s15 = ssub.s32 %s10, 1
    %s16 = ssub.s32 %s10, 2
    %s17 = sadd.s32 %s10, 1
    %s18 = ssub.s32 %s10, %s17
    %p19 = scmp.eq.s32.totalorder %s18, 0
    %s21 = sadd.s32 %s20, 1
    %s22 = scalar_select %p19, %s20, %s21
    %p25 = pneg %p19
    %p26 = scmp.eq.s32.totalorder %s10, 1
    %p27 = por %p25, %p26
    %p28 = scmp.ne.s32.totalorder %s20, %s23
    %p29 = scmp.eq.s32.totalorder %s10, 0
    %p30 = por %p28, %p29
    %p31 = scmp.ne.s32.totalorder %s20, %s23
    %p32 = scmp.eq.s32.totalorder %s15, 1
    %p33 = por %p31, %p32
    %p34 = scmp.ne.s32.totalorder %s23, %s24
    %p35 = scmp.eq.s32.totalorder %s15, 0
    %p36 = por %p34, %p35
    %p37 = scmp.ne.s32.totalorder %s23, %s24
    %p38 = scmp.eq.s32.totalorder %s16, 1
    %p39 = por %p37, %p38
    %p41 = scmp.ne.s32.totalorder %s24, %s40
    %p42 = scmp.eq.s32.totalorder %s16, 0
    %p43 = por %p41, %p42
    %s44 = ssub.s32 %s10, %s17
    %p45 = scmp.eq.s32.totalorder %s44, 0
    %s47 = sadd.s32 %s46, 1
    %s48 = scalar_select %p45, %s46, %s47
    %p51 = pneg %p45
    %p52 = scmp.eq.s32.totalorder %s10, 1
    %p53 = por %p51, %p52
    %p54 = scmp.ne.s32.totalorder %s46, %s49
    %p55 = scmp.eq.s32.totalorder %s10, 0
    %p56 = por %p54, %p55
    %p57 = scmp.ne.s32.totalorder %s46, %s49
    %p58 = scmp.eq.s32.totalorder %s15, 1
    %p59 = por %p57, %p58
    %p60 = scmp.ne.s32.totalorder %s49, %s50
    %p61 = scmp.eq.s32.totalorder %s15, 0
    %p62 = por %p60, %p61
    %p63 = scmp.ne.s32.totalorder %s49, %s50
    %p64 = scmp.eq.s32.totalorder %s16, 1
    %p65 = por %p63, %p64
    %p67 = scmp.ne.s32.totalorder %s50, %s66
    %p68 = scmp.eq.s32.totalorder %s16, 0
    %p69 = por %p67, %p68
    %s70 = ssub.s32 %s10, %s17
    %p71 = scmp.eq.s32.totalorder %s70, 0
    %s73 = sadd.s32 %s72, 1
    %s74 = scalar_select %p71, %s72, %s73
    %p77 = pneg %p71
    %p78 = scmp.eq.s32.totalorder %s10, 1
    %p79 = por %p77, %p78
    %p80 = scmp.ne.s32.totalorder %s72, %s75
    %p81 = scmp.eq.s32.totalorder %s10, 0
    %p82 = por %p80, %p81
    %p83 = scmp.ne.s32.totalorder %s72, %s75
    %p84 = scmp.eq.s32.totalorder %s15, 1
    %p85 = por %p83, %p84
    %p86 = scmp.ne.s32.totalorder %s75, %s76
    %p87 = scmp.eq.s32.totalorder %s15, 0
    %p88 = por %p86, %p87
    %p89 = scmp.ne.s32.totalorder %s75, %s76
    %p90 = scmp.eq.s32.totalorder %s16, 1
    %p91 = por %p89, %p90
    %p93 = scmp.ne.s32.totalorder %s76, %s92
    %p94 = scmp.eq.s32.totalorder %s16, 0
    %p95 = por %p93, %p94
    %s96 = ssub.s32 %s10, %s17
    %p97 = scmp.eq.s32.totalorder %s96, 0
    %s99 = sadd.s32 %s98, 1
    %s100 = scalar_select %p97, %s98, %s99
    %p103 = pneg %p97
    %p104 = scmp.eq.s32.totalorder %s10, 1
    %p105 = por %p103, %p104
    %p106 = scmp.ne.s32.totalorder %s98, %s101
    %p107 = scmp.eq.s32.totalorder %s10, 0
    %p108 = por %p106, %p107
    %p109 = scmp.ne.s32.totalorder %s98, %s101
    %p110 = scmp.eq.s32.totalorder %s15, 1
    %p111 = por %p109, %p110
    %p112 = scmp.ne.s32.totalorder %s101, %s102
    %p113 = scmp.eq.s32.totalorder %s15, 0
    %p114 = por %p112, %p113
    %p115 = scmp.ne.s32.totalorder %s101, %s102
    %p116 = scmp.eq.s32.totalorder %s16, 1
    %p117 = por %p115, %p116
    %p119 = scmp.ne.s32.totalorder %s102, %s118
    %p120 = scmp.eq.s32.totalorder %s16, 0
    %p121 = por %p119, %p120
    %s122 = ssub.s32 %s10, %s17
    %p123 = scmp.eq.s32.totalorder %s122, 0
    %s125 = sadd.s32 %s124, 1
    %s126 = scalar_select %p123, %s124, %s125
    %p129 = pneg %p123
    %p130 = scmp.eq.s32.totalorder %s10, 1
    %p131 = por %p129, %p130
    %p132 = scmp.ne.s32.totalorder %s124, %s127
    %p133 = scmp.eq.s32.totalorder %s10, 0
    %p134 = por %p132, %p133
    %p135 = scmp.ne.s32.totalorder %s124, %s127
    %p136 = scmp.eq.s32.totalorder %s15, 1
    %p137 = por %p135, %p136
    %p138 = scmp.ne.s32.totalorder %s127, %s128
    %p139 = scmp.eq.s32.totalorder %s15, 0
    %p140 = por %p138, %p139
    %p141 = scmp.ne.s32.totalorder %s127, %s128
    %p142 = scmp.eq.s32.totalorder %s16, 1
    %p143 = por %p141, %p142
    %p145 = scmp.ne.s32.totalorder %s128, %s144
    %p146 = scmp.eq.s32.totalorder %s16, 0
    %p147 = por %p145, %p146
    %p148 = scmp.le.s32.totalorder 1, %s10
    %p149 = scmp.lt.s32.totalorder %s10, 3
    %p150 = pnand %p148, %p149
    %p151 = pneg %p150
    // Predicated region
    $region9: #{inception_b_forward.9} parent=5 // pred_check
      _
    $region10: #{inception_b_forward.9} parent=5 // pred_check_branch
      %153 = sbr.rel (%p150) target = $region12
    $region11: #{inception_b_forward.9} parent=5 // pred_region
      %s154 = ssub.s32 %s10, 1
    $region12: #{inception_b_forward.9} parent=5 // pred_fallthru
      _
    %p155 = scmp.lt.s32.totalorder %s10, 2
    // Predicated region
    $region13: #{inception_b_forward.9} parent=5 // pred_check
      %p156 = pneg %p155
    $region14: #{inception_b_forward.9} parent=5 // pred_check_branch
      %158 = sbr.rel (%p156) target = $region16
    $region15: #{inception_b_forward.9} parent=5 // pred_region
      // Predicated region
      $region17: #{inception_b_forward.9} parent=15 // pred_check
        %p159 = pneg %p30
      $region18: #{inception_b_forward.9} parent=15 // pred_check_branch
        %161 = sbr.rel (%p159) target = $region20
      $region19: #{inception_b_forward.9} parent=15 // pred_region
        %p162 = scmp.lt.s32.totalorder %s10, 1
        %s163 = scalar_select %p162, %s10, 1
        %s164 = smul.addr %s163, 8
        %s165 = smul.addr %s164, 8
        %s166 = scalar_lea.vmem %s0, %s165
      $region20: #{inception_b_forward.9} parent=15 // pred_fallthru
        _
      // Predicated region
      $region21: #{inception_b_forward.9} parent=15 // pred_check
        %p167 = pneg %p56
      $region22: #{inception_b_forward.9} parent=15 // pred_check_branch
        %169 = sbr.rel (%p167) target = $region24
      $region23: #{inception_b_forward.9} parent=15 // pred_region
        %p170 = scmp.lt.s32.totalorder %s10, 1
        %s171 = scalar_select %p170, %s10, 1
        %s172 = smul.addr %s171, 8
        %s173 = smul.addr %s172, 8
        %s174 = scalar_lea.vmem %s1, %s173
      $region24: #{inception_b_forward.9} parent=15 // pred_fallthru
        _
      // Predicated region
      $region25: #{inception_b_forward.9} parent=15 // pred_check
        %p175 = pneg %p82
      $region26: #{inception_b_forward.9} parent=15 // pred_check_branch
        %177 = sbr.rel (%p175) target = $region28
      $region27: #{inception_b_forward.9} parent=15 // pred_region
        %p178 = scmp.lt.s32.totalorder %s10, 1
        %s179 = scalar_select %p178, %s10, 1
        %s180 = smul.addr %s179, 8
        %s181 = smul.addr %s180, 8
        %s182 = scalar_lea.vmem %s2, %s181
      $region28: #{inception_b_forward.9} parent=15 // pred_fallthru
        _
      // Predicated region
      $region29: #{inception_b_forward.9} parent=15 // pred_check
        %p183 = pneg %p108
      $region30: #{inception_b_forward.9} parent=15 // pred_check_branch
        %185 = sbr.rel (%p183) target = $region32
      $region31: #{inception_b_forward.9} parent=15 // pred_region
        %p186 = scmp.lt.s32.totalorder %s10, 1
        %s187 = scalar_select %p186, %s10, 1
        %s188 = smul.addr %s187, 8
        %s189 = smul.addr %s188, 8
        %s190 = scalar_lea.vmem %s3, %s189
      $region32: #{inception_b_forward.9} parent=15 // pred_fallthru
        _
    $region16: #{inception_b_forward.9} parent=5 // pred_fallthru
      _
    %p191 = scmp.le.s32.totalorder 1, %s10
    %p192 = scmp.lt.s32.totalorder %s10, 3
    %p193 = pnand %p191, %p192
    %p194 = pneg %p193
    // Predicated region
    $region33: #{inception_b_forward.9} parent=5 // pred_check
      _
    $region34: #{inception_b_forward.9} parent=5 // pred_check_branch
      %196 = sbr.rel (%p193) target = $region36
    $region35: #{inception_b_forward.9} parent=5 // pred_region
      %s197 = ssub.s32 %s10, 1
      %p198 = scmp.lt.s32.totalorder %s15, 1
      %s199 = scalar_select %p198, %s15, 1
      %s200 = smul.addr %s199, 8
      %s201 = smul.addr %s200, 8
      %s202 = scalar_lea.vmem %s0, %s201
      %p203 = pneg %p36
      %p204 = pneg %p33
      %p205 = scmp.lt.s32.totalorder %s15, 1
      %s206 = scalar_select %p205, %s15, 1
      %s207 = smul.addr %s206, 8
      %s208 = smul.addr %s207, 8
      %s209 = scalar_lea.vmem %s1, %s208
      %p210 = pneg %p62
      %p211 = pneg %p59
      %p212 = scmp.lt.s32.totalorder %s15, 1
      %s213 = scalar_select %p212, %s15, 1
      %s214 = smul.addr %s213, 8
      %s215 = smul.addr %s214, 8
      %s216 = scalar_lea.vmem %s2, %s215
      %p217 = pneg %p88
      %p218 = pneg %p85
      %p219 = scmp.lt.s32.totalorder %s15, 1
      %s220 = scalar_select %p219, %s15, 1
      %s221 = smul.addr %s220, 8
      %s222 = smul.addr %s221, 8
      %s223 = scalar_lea.vmem %s3, %s222
      %p224 = pneg %p114
      %p225 = pneg %p111
      %p226 = pneg %p140
      %p227 = pneg %p137
      %p228 = scmp.lt.s32.totalorder %s15, 1
      %s229 = scalar_select %p228, %s15, 1
      %s230 = smul.addr %s229, 7
      %s231 = smul.addr %s230, 8
      %s232 = scalar_lea.vmem %s4, %s231
      %p233 = scmp.lt.s32.totalorder %s15, 1
      %s234 = scalar_select %p233, %s15, 1
      %s235 = smul.addr %s234, 8
      %s236 = smul.addr %s235, 8
      %s237 = scalar_lea.vmem %s0, %s236
      %p238 = scmp.lt.s32.totalorder %s15, 1
      %s239 = scalar_select %p238, %s15, 1
      %s240 = smul.addr %s239, 8
      %s241 = smul.addr %s240, 8
      %s242 = scalar_lea.vmem %s1, %s241
      %p243 = scmp.lt.s32.totalorder %s15, 1
      %s244 = scalar_select %p243, %s15, 1
      %s245 = smul.addr %s244, 8
      %s246 = smul.addr %s245, 8
      %s247 = scalar_lea.vmem %s2, %s246
      %p248 = scmp.lt.s32.totalorder %s15, 1
      %s249 = scalar_select %p248, %s15, 1
      %s250 = smul.addr %s249, 8
      %s251 = smul.addr %s250, 8
      %s252 = scalar_lea.vmem %s3, %s251
      %p253 = scmp.lt.s32.totalorder %s15, 1
      %s254 = scalar_select %p253, %s15, 1
      %s255 = smul.addr %s254, 7
      %s256 = smul.addr %s255, 8
      %s257 = scalar_lea.vmem %s4, %s256
      %v258 = vld [vmem:[%s237] sm:$0x7f]
      %v259 = vld [vmem:[%s237 + $0x8] sm:$0x7f]
      %v260 = vld [vmem:[%s237 + $0x10] sm:$0x7f]
      %v261 = vld [vmem:[%s237 + $0x18] sm:$0x7f]
      %v262 = vld [vmem:[%s237 + $0x20] sm:$0x7f]
      %v263 = vld [vmem:[%s237 + $0x28] sm:$0x7f]
      %v264 = vld [vmem:[%s237 + $0x30] sm:$0x7f]
      %v265 = vld [vmem:[%s242] sm:$0x7f]
      %v266 = vld [vmem:[%s242 + $0x8] sm:$0x7f]
      %v267 = vld [vmem:[%s242 + $0x10] sm:$0x7f]
      %v268 = vld [vmem:[%s242 + $0x18] sm:$0x7f]
      %v269 = vld [vmem:[%s242 + $0x20] sm:$0x7f]
      %v270 = vld [vmem:[%s242 + $0x28] sm:$0x7f]
      %v271 = vld [vmem:[%s242 + $0x30] sm:$0x7f]
      %v272 = vmax.f32 %v258, %v265
      %v273 = vmax.f32 %v259, %v266
      %v274 = vmax.f32 %v260, %v267
      %v275 = vmax.f32 %v261, %v268
      %v276 = vmax.f32 %v262, %v269
      %v277 = vmax.f32 %v263, %v270
      %v278 = vmax.f32 %v264, %v271
      %v279 = vld [vmem:[%s237 + $0x1] sm:$0x7f]
      %v280 = vld [vmem:[%s237 + $0x9] sm:$0x7f]
      %v281 = vld [vmem:[%s237 + $0x11] sm:$0x7f]
      %v282 = vld [vmem:[%s237 + $0x19] sm:$0x7f]
      %v283 = vld [vmem:[%s237 + $0x21] sm:$0x7f]
      %v284 = vld [vmem:[%s237 + $0x29] sm:$0x7f]
      %v285 = vld [vmem:[%s237 + $0x31] sm:$0x7f]
      %v286 = vmax.f32 %v272, %v279
      %v287 = vmax.f32 %v273, %v280
      %v288 = vmax.f32 %v274, %v281
      %v289 = vmax.f32 %v275, %v282
      %v290 = vmax.f32 %v276, %v283
      %v291 = vmax.f32 %v277, %v284
      %v292 = vmax.f32 %v278, %v285
      %v293 = vld [vmem:[%s247] sm:$0x7f]
      %v294 = vld [vmem:[%s247 + $0x8] sm:$0x7f]
      %v295 = vld [vmem:[%s247 + $0x10] sm:$0x7f]
      %v296 = vld [vmem:[%s247 + $0x18] sm:$0x7f]
      %v297 = vld [vmem:[%s247 + $0x20] sm:$0x7f]
      %v298 = vld [vmem:[%s247 + $0x28] sm:$0x7f]
      %v299 = vld [vmem:[%s247 + $0x30] sm:$0x7f]
      %v300 = vmax.f32 %v286, %v293
      %v301 = vmax.f32 %v287, %v294
      %v302 = vmax.f32 %v288, %v295
      %v303 = vmax.f32 %v289, %v296
      %v304 = vmax.f32 %v290, %v297
      %v305 = vmax.f32 %v291, %v298
      %v306 = vmax.f32 %v292, %v299
      %v307 = vld [vmem:[%s252] sm:$0x7f]
      %v308 = vld [vmem:[%s252 + $0x8] sm:$0x7f]
      %v309 = vld [vmem:[%s252 + $0x10] sm:$0x7f]
      %v310 = vld [vmem:[%s252 + $0x18] sm:$0x7f]
      %v311 = vld [vmem:[%s252 + $0x20] sm:$0x7f]
      %v312 = vld [vmem:[%s252 + $0x28] sm:$0x7f]
      %v313 = vld [vmem:[%s252 + $0x30] sm:$0x7f]
      %v314 = vmax.f32 %v300, %v307
      %v315 = vmax.f32 %v301, %v308
      %v316 = vmax.f32 %v302, %v309
      %v317 = vmax.f32 %v303, %v310
      %v318 = vmax.f32 %v304, %v311
      %v319 = vmax.f32 %v305, %v312
      %v320 = vmax.f32 %v306, %v313
      %v321 = vld [vmem:[%s247 + $0x1] sm:$0x7f]
      %v322 = vld [vmem:[%s247 + $0x9] sm:$0x7f]
      %v323 = vld [vmem:[%s247 + $0x11] sm:$0x7f]
      %v324 = vld [vmem:[%s247 + $0x19] sm:$0x7f]
      %v325 = vld [vmem:[%s247 + $0x21] sm:$0x7f]
      %v326 = vld [vmem:[%s247 + $0x29] sm:$0x7f]
      %v327 = vld [vmem:[%s247 + $0x31] sm:$0x7f]
      %v328 = vmax.f32 %v314, %v321
      %v329 = vmax.f32 %v315, %v322
      %v330 = vmax.f32 %v316, %v323
      %v331 = vmax.f32 %v317, %v324
      %v332 = vmax.f32 %v318, %v325
      %v333 = vmax.f32 %v319, %v326
      %v334 = vmax.f32 %v320, %v327
      %s335 = scalar_lea.vmem %s237, 8
      %v336 = vld [vmem:[%s335] sm:$0x7f]
      %v337 = vld [vmem:[%s335 + $0x8] sm:$0x7f]
      %v338 = vld [vmem:[%s335 + $0x10] sm:$0x7f]
      %v339 = vld [vmem:[%s335 + $0x18] sm:$0x7f]
      %v340 = vld [vmem:[%s335 + $0x20] sm:$0x7f]
      %v341 = vld [vmem:[%s335 + $0x28] sm:$0x7f]
      %v342 = vld [vmem:[%s335 + $0x30] sm:$0x7f]
      %v343 = vmax.f32 %v328, %v336
      %v344 = vmax.f32 %v329, %v337
      %v345 = vmax.f32 %v330, %v338
      %v346 = vmax.f32 %v331, %v339
      %v347 = vmax.f32 %v332, %v340
      %v348 = vmax.f32 %v333, %v341
      %v349 = vmax.f32 %v334, %v342
      %s350 = scalar_lea.vmem %s242, 8
      %v351 = vld [vmem:[%s350] sm:$0x7f]
      %v352 = vld [vmem:[%s350 + $0x8] sm:$0x7f]
      %v353 = vld [vmem:[%s350 + $0x10] sm:$0x7f]
      %v354 = vld [vmem:[%s350 + $0x18] sm:$0x7f]
      %v355 = vld [vmem:[%s350 + $0x20] sm:$0x7f]
      %v356 = vld [vmem:[%s350 + $0x28] sm:$0x7f]
      %v357 = vld [vmem:[%s350 + $0x30] sm:$0x7f]
      %v358 = vmax.f32 %v343, %v351
      %v359 = vmax.f32 %v344, %v352
      %v360 = vmax.f32 %v345, %v353
      %v361 = vmax.f32 %v346, %v354
      %v362 = vmax.f32 %v347, %v355
      %v363 = vmax.f32 %v348, %v356
      %v364 = vmax.f32 %v349, %v357
      %v365 = vld [vmem:[%s335 + $0x1] sm:$0x7f]
      %v366 = vld [vmem:[%s335 + $0x9] sm:$0x7f]
      %v367 = vld [vmem:[%s335 + $0x11] sm:$0x7f]
      %v368 = vld [vmem:[%s335 + $0x19] sm:$0x7f]
      %v369 = vld [vmem:[%s335 + $0x21] sm:$0x7f]
      %v370 = vld [vmem:[%s335 + $0x29] sm:$0x7f]
      %v371 = vld [vmem:[%s335 + $0x31] sm:$0x7f]
      %v372 = vmax.f32 %v358, %v365
      %v373 = vmax.f32 %v359, %v366
      %v374 = vmax.f32 %v360, %v367
      %v375 = vmax.f32 %v361, %v368
      %v376 = vmax.f32 %v362, %v369
      %v377 = vmax.f32 %v363, %v370
      %v378 = vmax.f32 %v364, %v371
      %vm379 = vcmask 30720
      %380 = vst.msk [vmem:[%s257] sm:$0x7f] %vm379, %v372
      %381 = vst.msk [vmem:[%s257 + $0x8] sm:$0x7f] %vm379, %v373
      %382 = vst.msk [vmem:[%s257 + $0x10] sm:$0x7f] %vm379, %v374
      %383 = vst.msk [vmem:[%s257 + $0x18] sm:$0x7f] %vm379, %v375
      %384 = vst.msk [vmem:[%s257 + $0x20] sm:$0x7f] %vm379, %v376
      %385 = vst.msk [vmem:[%s257 + $0x28] sm:$0x7f] %vm379, %v377
      %386 = vst.msk [vmem:[%s257 + $0x30] sm:$0x7f] %vm379, %v378
      %p387 = scmp.lt.s32.totalorder %s15, 1
      %s388 = scalar_select %p387, %s15, 1
      %s389 = smul.addr %s388, 7
      %s390 = smul.addr %s389, 8
      %s391 = scalar_lea.vmem %s4, %s390
      // Predicated region
      $region37: #{inception_b_forward.9} parent=35 // pred_check
        %p392 = pneg %p137
      $region38: #{inception_b_forward.9} parent=35 // pred_check_branch
        %394 = sbr.rel (%p392) target = $region40
      $region39: #{inception_b_forward.9} parent=35 // pred_region
        _
      $region40: #{inception_b_forward.9} parent=35 // pred_fallthru
        _
    $region36: #{inception_b_forward.9} parent=5 // pred_fallthru
      _
    %p395 = scmp.le.s32.totalorder 2, %s10
    // Predicated region
    $region41: #{inception_b_forward.9} parent=5 // pred_check
      %p396 = pneg %p395
    $region42: #{inception_b_forward.9} parent=5 // pred_check_branch
      %398 = sbr.rel (%p396) target = $region44
    $region43: #{inception_b_forward.9} parent=5 // pred_region
      %s399 = ssub.s32 %s10, 2
      // Predicated region
      $region45: #{inception_b_forward.9} parent=43 // pred_check
        %p400 = pneg %p143
      $region46: #{inception_b_forward.9} parent=43 // pred_check_branch
        %402 = sbr.rel (%p400) target = $region48
      $region47: #{inception_b_forward.9} parent=43 // pred_region
        %p403 = scmp.lt.s32.totalorder %s16, 1
        %s404 = scalar_select %p403, %s16, 1
        %s405 = smul.addr %s404, 7
        %s406 = smul.addr %s405, 8
        %s407 = scalar_lea.vmem %s4, %s406
      $region48: #{inception_b_forward.9} parent=43 // pred_fallthru
        _
    $region44: #{inception_b_forward.9} parent=5 // pred_fallthru
      _
  $region6: #{inception_b_forward.9} parent=0 // loop_footer
    %s14 = sadd.s32 1, %s10
  $region7: #{inception_b_forward.9} parent=0 // loop_footer_branch
    %9 = sbr.rel target = $region3
  $region8: #{inception_b_forward.9} parent=0 // loop_exit
    _

// kernel: inception_b_forward.6
$region0: #{inception_b_forward.6}
  #allocation0 [shape = 'u32[]', space=smem, size = 0x4, offset = 0x4, fixed_abs, tag = 'smem constant byte address 0x4 - core index']
  #allocation1 [shape = 'u32[72,128]{1,0:T(1,128)}', space=vmem, size = 0x9000, scoped, tag = 'internal scratch']
  %s0 = inlined_call_operand.vmem [shape: bf16[512,4], index: 0, kind: input, shape index: {}]
  %s1 = inlined_call_operand.vmem [shape: bf16[4,128], index: 1, kind: input, shape index: {}]
  %s2 = inlined_call_operand.vmem [shape: f32[1,128], index: 2, kind: input, shape index: {}]
  %s3 = inlined_call_operand.vmem [shape: bf16[512,128], index: 3, kind: output, shape index: {}]
  %s4 = sld [smem:[#allocation0]]
  $region22: #{inception_b_forward.6} parent=0
    _
  %s6 = ssub.s32 1, %s4
  %s7 = scalar_select 0, %s6, %s4
  // Predicated region
  $region2: #{inception_b_forward.6} parent=0 // pred_check
    _
  $region3: #{inception_b_forward.6} parent=0 // pred_check_branch
    %9 = sbr.rel (0) target = $region5
  $region4: #{inception_b_forward.6} parent=0 // pred_region
    _
  $region5: #{inception_b_forward.6} parent=0 // pred_fallthru
    _
  // Predicated region
  $region6: #{inception_b_forward.6} parent=0 // pred_check
    _
  $region7: #{inception_b_forward.6} parent=0 // pred_check_branch
    %11 = sbr.rel (0) target = $region9
  $region8: #{inception_b_forward.6} parent=0 // pred_region
    _
  $region9: #{inception_b_forward.6} parent=0 // pred_fallthru
    _
  // Predicated region
  $region10: #{inception_b_forward.6} parent=0 // pred_check
    _
  $region11: #{inception_b_forward.6} parent=0 // pred_check_branch
    %13 = sbr.rel (0) target = $region13
  $region12: #{inception_b_forward.6} parent=0 // pred_region
    _
  $region13: #{inception_b_forward.6} parent=0 // pred_fallthru
    _
  %v15 = vld [vmem:[%s0] sm:$0xf]
  %v16 = vld [vmem:[%s0 + $0x4] sm:$0xf]
  %v17 = vld [vmem:[%s0 + $0x8] sm:$0xf]
  %v18 = vld [vmem:[%s0 + $0xc] sm:$0xf]
  %v19 = vld [vmem:[%s0 + $0x10] sm:$0xf]
  %v20 = vld [vmem:[%s0 + $0x14] sm:$0xf]
  %v21 = vld [vmem:[%s0 + $0x18] sm:$0xf]
  %v22 = vld [vmem:[%s0 + $0x1c] sm:$0xf]
  %v23 = vld [vmem:[%s0 + $0x20] sm:$0xf]
  %v24 = vld [vmem:[%s0 + $0x24] sm:$0xf]
  %v25 = vld [vmem:[%s0 + $0x28] sm:$0xf]
  %v26 = vld [vmem:[%s0 + $0x2c] sm:$0xf]
  %v27 = vld [vmem:[%s0 + $0x30] sm:$0xf]
  %v28 = vld [vmem:[%s0 + $0x34] sm:$0xf]
  %v29 = vld [vmem:[%s0 + $0x38] sm:$0xf]
  %v30 = vld [vmem:[%s0 + $0x3c] sm:$0xf]
  %v31 = vld [vmem:[%s0 + $0x40] sm:$0xf]
  %v32 = vld [vmem:[%s0 + $0x44] sm:$0xf]
  %v33 = vld [vmem:[%s0 + $0x48] sm:$0xf]
  %v34 = vld [vmem:[%s0 + $0x4c] sm:$0xf]
  %v35 = vld [vmem:[%s0 + $0x50] sm:$0xf]
  %v36 = vld [vmem:[%s0 + $0x54] sm:$0xf]
  %v37 = vld [vmem:[%s0 + $0x58] sm:$0xf]
  %v38 = vld [vmem:[%s0 + $0x5c] sm:$0xf]
  %v39 = vld [vmem:[%s0 + $0x60] sm:$0xf]
  %v40 = vld [vmem:[%s0 + $0x64] sm:$0xf]
  %v41 = vld [vmem:[%s0 + $0x68] sm:$0xf]
  %v42 = vld [vmem:[%s0 + $0x6c] sm:$0xf]
  %v43 = vld [vmem:[%s0 + $0x70] sm:$0xf]
  %v44 = vld [vmem:[%s0 + $0x74] sm:$0xf]
  %v45 = vld [vmem:[%s0 + $0x78] sm:$0xf]
  %v46 = vld [vmem:[%s0 + $0x7c] sm:$0xf]
  %v47 = vld [vmem:[%s0 + $0x80] sm:$0xf]
  %v48 = vld [vmem:[%s0 + $0x84] sm:$0xf]
  %v49 = vld [vmem:[%s0 + $0x88] sm:$0xf]
  %v50 = vld [vmem:[%s0 + $0x8c] sm:$0xf]
  %v51 = vld [vmem:[%s0 + $0x90] sm:$0xf]
  %v52 = vld [vmem:[%s0 + $0x94] sm:$0xf]
  %v53 = vld [vmem:[%s0 + $0x98] sm:$0xf]
  %v54 = vld [vmem:[%s0 + $0x9c] sm:$0xf]
  %v55 = vld [vmem:[%s0 + $0xa0] sm:$0xf]
  %v56 = vld [vmem:[%s0 + $0xa4] sm:$0xf]
  %v57 = vld [vmem:[%s0 + $0xa8] sm:$0xf]
  %v58 = vld [vmem:[%s0 + $0xac] sm:$0xf]
  %v59 = vld [vmem:[%s0 + $0xb0] sm:$0xf]
  %v60 = vld [vmem:[%s0 + $0xb4] sm:$0xf]
  %v61 = vld [vmem:[%s0 + $0xb8] sm:$0xf]
  %v62 = vld [vmem:[%s0 + $0xbc] sm:$0xf]
  %v63 = vld [vmem:[%s0 + $0xc0] sm:$0xf]
  %v64 = vld [vmem:[%s0 + $0xc4] sm:$0xf]
  %v65 = vld [vmem:[%s0 + $0xc8] sm:$0xf]
  %v66 = vld [vmem:[%s0 + $0xcc] sm:$0xf]
  %v67 = vld [vmem:[%s0 + $0xd0] sm:$0xf]
  %v68 = vld [vmem:[%s0 + $0xd4] sm:$0xf]
  %v69 = vld [vmem:[%s0 + $0xd8] sm:$0xf]
  %v70 = vld [vmem:[%s0 + $0xdc] sm:$0xf]
  %v71 = vld [vmem:[%s0 + $0xe0] sm:$0xf]
  %v72 = vld [vmem:[%s0 + $0xe4] sm:$0xf]
  %v73 = vld [vmem:[%s0 + $0xe8] sm:$0xf]
  %v74 = vld [vmem:[%s0 + $0xec] sm:$0xf]
  %v75 = vld [vmem:[%s0 + $0xf0] sm:$0xf]
  %v76 = vld [vmem:[%s0 + $0xf4] sm:$0xf]
  %v77 = vld [vmem:[%s0 + $0xf8] sm:$0xf]
  %v78 = vld [vmem:[%s0 + $0xfc] sm:$0xf]
  %v79 = vld [vmem:[%s1] sm:$0x3]
  %v80 = vld [vmem:[%s2] sm:$0x1]
  %v82 = vperm.slane %v80, 0
  %v148 = vunpack.c.l.b16 %v15
  %v149 = vunpack.c.l.b16 %v16
  %v150 = vunpack.c.l.b16 %v17
  %v151 = vunpack.c.l.b16 %v18
  %v152 = vunpack.c.l.b16 %v19
  %v153 = vunpack.c.l.b16 %v20
  %v154 = vunpack.c.l.b16 %v21
  %v155 = vunpack.c.l.b16 %v22
  %v156 = vunpack.c.l.b16 %v23
  %v157 = vunpack.c.l.b16 %v24
  %v158 = vunpack.c.l.b16 %v25
  %v159 = vunpack.c.l.b16 %v26
  %v160 = vunpack.c.l.b16 %v27
  %v161 = vunpack.c.l.b16 %v28
  %v162 = vunpack.c.l.b16 %v29
  %v163 = vunpack.c.l.b16 %v30
  %v164 = vunpack.c.l.b16 %v31
  %v165 = vunpack.c.l.b16 %v32
  %v166 = vunpack.c.l.b16 %v33
  %v167 = vunpack.c.l.b16 %v34
  %v168 = vunpack.c.l.b16 %v35
  %v169 = vunpack.c.l.b16 %v36
  %v170 = vunpack.c.l.b16 %v37
  %v171 = vunpack.c.l.b16 %v38
  %v172 = vunpack.c.l.b16 %v39
  %v173 = vunpack.c.l.b16 %v40
  %v174 = vunpack.c.l.b16 %v41
  %v175 = vunpack.c.l.b16 %v42
  %v176 = vunpack.c.l.b16 %v43
  %v177 = vunpack.c.l.b16 %v44
  %v178 = vunpack.c.l.b16 %v45
  %v179 = vunpack.c.l.b16 %v46
  %v180 = vunpack.c.l.b16 %v47
  %v181 = vunpack.c.l.b16 %v48
  %v182 = vunpack.c.l.b16 %v49
  %v183 = vunpack.c.l.b16 %v50
  %v184 = vunpack.c.l.b16 %v51
  %v185 = vunpack.c.l.b16 %v52
  %v186 = vunpack.c.l.b16 %v53
  %v187 = vunpack.c.l.b16 %v54
  %v188 = vunpack.c.l.b16 %v55
  %v189 = vunpack.c.l.b16 %v56
  %v190 = vunpack.c.l.b16 %v57
  %v191 = vunpack.c.l.b16 %v58
  %v192 = vunpack.c.l.b16 %v59
  %v193 = vunpack.c.l.b16 %v60
  %v194 = vunpack.c.l.b16 %v61
  %v195 = vunpack.c.l.b16 %v62
  %v196 = vunpack.c.l.b16 %v63
  %v197 = vunpack.c.l.b16 %v64
  %v198 = vunpack.c.l.b16 %v65
  %v199 = vunpack.c.l.b16 %v66
  %v200 = vunpack.c.l.b16 %v67
  %v201 = vunpack.c.l.b16 %v68
  %v202 = vunpack.c.l.b16 %v69
  %v203 = vunpack.c.l.b16 %v70
  %v204 = vunpack.c.l.b16 %v71
  %v205 = vunpack.c.l.b16 %v72
  %v206 = vunpack.c.l.b16 %v73
  %v207 = vunpack.c.l.b16 %v74
  %v208 = vunpack.c.l.b16 %v75
  %v209 = vunpack.c.l.b16 %v76
  %v210 = vunpack.c.l.b16 %v77
  %v211 = vunpack.c.l.b16 %v78
  %v212 = vpack.c.b16 %v149, %v148
  %v213 = vpack.c.b16 %v151, %v150
  %v214 = vpack.c.b16 %v153, %v152
  %v215 = vpack.c.b16 %v155, %v154
  %v216 = vpack.c.b16 %v157, %v156
  %v217 = vpack.c.b16 %v159, %v158
  %v218 = vpack.c.b16 %v161, %v160
  %v219 = vpack.c.b16 %v163, %v162
  %v220 = vpack.c.b16 %v165, %v164
  %v221 = vpack.c.b16 %v167, %v166
  %v222 = vpack.c.b16 %v169, %v168
  %v223 = vpack.c.b16 %v171, %v170
  %v224 = vpack.c.b16 %v173, %v172
  %v225 = vpack.c.b16 %v175, %v174
  %v226 = vpack.c.b16 %v177, %v176
  %v227 = vpack.c.b16 %v179, %v178
  %v228 = vpack.c.b16 %v181, %v180
  %v229 = vpack.c.b16 %v183, %v182
  %v230 = vpack.c.b16 %v185, %v184
  %v231 = vpack.c.b16 %v187, %v186
  %v232 = vpack.c.b16 %v189, %v188
  %v233 = vpack.c.b16 %v191, %v190
  %v234 = vpack.c.b16 %v193, %v192
  %v235 = vpack.c.b16 %v195, %v194
  %v236 = vpack.c.b16 %v197, %v196
  %v237 = vpack.c.b16 %v199, %v198
  %v238 = vpack.c.b16 %v201, %v200
  %v239 = vpack.c.b16 %v203, %v202
  %v240 = vpack.c.b16 %v205, %v204
  %v241 = vpack.c.b16 %v207, %v206
  %v242 = vpack.c.b16 %v209, %v208
  %v243 = vpack.c.b16 %v211, %v210
  %vm244 = vcmask 31744
  %v246 = vsel %vm244, %v212, 0
  %v249 = vsel %vm244, %v213, 0
  %v252 = vsel %vm244, %v214, 0
  %v255 = vsel %vm244, %v215, 0
  %v258 = vsel %vm244, %v216, 0
  %v261 = vsel %vm244, %v217, 0
  %v264 = vsel %vm244, %v218, 0
  %v267 = vsel %vm244, %v219, 0
  %v270 = vsel %vm244, %v220, 0
  %v273 = vsel %vm244, %v221, 0
  %v276 = vsel %vm244, %v222, 0
  %v279 = vsel %vm244, %v223, 0
  %v282 = vsel %vm244, %v224, 0
  %v285 = vsel %vm244, %v225, 0
  %v288 = vsel %vm244, %v226, 0
  %v291 = vsel %vm244, %v227, 0
  %v294 = vsel %vm244, %v228, 0
  %v297 = vsel %vm244, %v229, 0
  %v300 = vsel %vm244, %v230, 0
  %v303 = vsel %vm244, %v231, 0
  %v306 = vsel %vm244, %v232, 0
  %v309 = vsel %vm244, %v233, 0
  %v312 = vsel %vm244, %v234, 0
  %v315 = vsel %vm244, %v235, 0
  %v318 = vsel %vm244, %v236, 0
  %v321 = vsel %vm244, %v237, 0
  %v324 = vsel %vm244, %v238, 0
  %v327 = vsel %vm244, %v239, 0
  %v330 = vsel %vm244, %v240, 0
  %v333 = vsel %vm244, %v241, 0
  %v336 = vsel %vm244, %v242, 0
  %v339 = vsel %vm244, %v243, 0
  %vm341 = vcmask 1041408
  %v343 = vsel %vm341, %v79, 0
  %345 = vmatpush.bf16.msra.mxu0 0
  %346 = vmatpush.bf16.msra.mxu0 0
  %347 = vmatpush.bf16.msra.mxu0 0
  %348 = vmatpush.bf16.msra.mxu0 0
  %349 = vmatpush.bf16.msra.mxu0 0
  %350 = vmatpush.bf16.msra.mxu0 0
  %351 = vmatpush.bf16.msra.mxu0 0
  %352 = vmatpush.bf16.msra.mxu0 %v343
  %353 = vmatmul.bf16.gmra.mxu0 %v246
  %v354 = vpop.f32.mrf.mxu0
  %v355 = vadd.f32 %v82, %v354
  %v356 = vpop.f32.mrf.mxu0
  %v357 = vadd.f32 %v82, %v356
  %358 = vmatmul.bf16.gmra.mxu0 %v249
  %v359 = vpop.f32.mrf.mxu0
  %v360 = vadd.f32 %v82, %v359
  %v361 = vpop.f32.mrf.mxu0
  %v362 = vadd.f32 %v82, %v361
  %363 = vmatmul.bf16.gmra.mxu0 %v252
  %v364 = vpop.f32.mrf.mxu0
  %v365 = vadd.f32 %v82, %v364
  %v366 = vpop.f32.mrf.mxu0
  %v367 = vadd.f32 %v82, %v366
  %368 = vmatmul.bf16.gmra.mxu0 %v255
  %v369 = vpop.f32.mrf.mxu0
  %v370 = vadd.f32 %v82, %v369
  %v371 = vpop.f32.mrf.mxu0
  %v372 = vadd.f32 %v82, %v371
  %373 = vmatmul.bf16.gmra.mxu0 %v258
  %v374 = vpop.f32.mrf.mxu0
  %v375 = vadd.f32 %v82, %v374
  %v376 = vpop.f32.mrf.mxu0
  %v377 = vadd.f32 %v82, %v376
  %378 = vmatmul.bf16.gmra.mxu0 %v261
  %v379 = vpop.f32.mrf.mxu0
  %v380 = vadd.f32 %v82, %v379
  %v381 = vpop.f32.mrf.mxu0
  %v382 = vadd.f32 %v82, %v381
  %383 = vmatmul.bf16.gmra.mxu0 %v264
  %v384 = vpop.f32.mrf.mxu0
  %v385 = vadd.f32 %v82, %v384
  %v386 = vpop.f32.mrf.mxu0
  %v387 = vadd.f32 %v82, %v386
  %388 = vmatmul.bf16.gmra.mxu0 %v267
  %v389 = vpop.f32.mrf.mxu0
  %v390 = vadd.f32 %v82, %v389
  %v391 = vpop.f32.mrf.mxu0
  %v392 = vadd.f32 %v82, %v391
  %393 = vmatmul.bf16.gmra.mxu0 %v270
  %v394 = vpop.f32.mrf.mxu0
  %v395 = vadd.f32 %v82, %v394
  %v396 = vpop.f32.mrf.mxu0
  %v397 = vadd.f32 %v82, %v396
  %398 = vmatmul.bf16.gmra.mxu0 %v273
  %v399 = vpop.f32.mrf.mxu0
  %v400 = vadd.f32 %v82, %v399
  %v401 = vpop.f32.mrf.mxu0
  %v402 = vadd.f32 %v82, %v401
  %403 = vmatmul.bf16.gmra.mxu0 %v276
  %v404 = vpop.f32.mrf.mxu0
  %v405 = vadd.f32 %v82, %v404
  %v406 = vpop.f32.mrf.mxu0
  %v407 = vadd.f32 %v82, %v406
  %408 = vmatmul.bf16.gmra.mxu0 %v279
  %v409 = vpop.f32.mrf.mxu0
  %v410 = vadd.f32 %v82, %v409
  %v411 = vpop.f32.mrf.mxu0
  %v412 = vadd.f32 %v82, %v411
  %413 = vmatmul.bf16.gmra.mxu0 %v282
  %v414 = vpop.f32.mrf.mxu0
  %v415 = vadd.f32 %v82, %v414
  %v416 = vpop.f32.mrf.mxu0
  %v417 = vadd.f32 %v82, %v416
  %418 = vmatmul.bf16.gmra.mxu0 %v285
  %v419 = vpop.f32.mrf.mxu0
  %v420 = vadd.f32 %v82, %v419
  %v421 = vpop.f32.mrf.mxu0
  %v422 = vadd.f32 %v82, %v421
  %423 = vmatmul.bf16.gmra.mxu0 %v288
  %v424 = vpop.f32.mrf.mxu0
  %v425 = vadd.f32 %v82, %v424
  %v426 = vpop.f32.mrf.mxu0
  %v427 = vadd.f32 %v82, %v426
  %428 = vmatmul.bf16.gmra.mxu0 %v291
  %v429 = vpop.f32.mrf.mxu0
  %v430 = vadd.f32 %v82, %v429
  %v431 = vpop.f32.mrf.mxu0
  %v432 = vadd.f32 %v82, %v431
  %433 = vmatmul.bf16.gmra.mxu0 %v294
  %v434 = vpop.f32.mrf.mxu0
  %v435 = vadd.f32 %v82, %v434
  %v436 = vpop.f32.mrf.mxu0
  %v437 = vadd.f32 %v82, %v436
  %438 = vmatmul.bf16.gmra.mxu0 %v297
  %v439 = vpop.f32.mrf.mxu0
  %v440 = vadd.f32 %v82, %v439
  %v441 = vpop.f32.mrf.mxu0
  %v442 = vadd.f32 %v82, %v441
  %443 = vmatmul.bf16.gmra.mxu0 %v300
  %v444 = vpop.f32.mrf.mxu0
  %v445 = vadd.f32 %v82, %v444
  %v446 = vpop.f32.mrf.mxu0
  %v447 = vadd.f32 %v82, %v446
  %448 = vmatmul.bf16.gmra.mxu0 %v303
  %v449 = vpop.f32.mrf.mxu0
  %v450 = vadd.f32 %v82, %v449
  %v451 = vpop.f32.mrf.mxu0
  %v452 = vadd.f32 %v82, %v451
  %453 = vmatmul.bf16.gmra.mxu0 %v306
  %v454 = vpop.f32.mrf.mxu0
  %v455 = vadd.f32 %v82, %v454
  %v456 = vpop.f32.mrf.mxu0
  %v457 = vadd.f32 %v82, %v456
  %458 = vmatmul.bf16.gmra.mxu0 %v309
  %v459 = vpop.f32.mrf.mxu0
  %v460 = vadd.f32 %v82, %v459
  %v461 = vpop.f32.mrf.mxu0
  %v462 = vadd.f32 %v82, %v461
  %463 = vmatmul.bf16.gmra.mxu0 %v312
  %v464 = vpop.f32.mrf.mxu0
  %v465 = vadd.f32 %v82, %v464
  %v466 = vpop.f32.mrf.mxu0
  %v467 = vadd.f32 %v82, %v466
  %468 = vmatmul.bf16.gmra.mxu0 %v315
  %v469 = vpop.f32.mrf.mxu0
  %v470 = vadd.f32 %v82, %v469
  %v471 = vpop.f32.mrf.mxu0
  %v472 = vadd.f32 %v82, %v471
  %473 = vmatmul.bf16.gmra.mxu0 %v318
  %v474 = vpop.f32.mrf.mxu0
  %v475 = vadd.f32 %v82, %v474
  %v476 = vpop.f32.mrf.mxu0
  %v477 = vadd.f32 %v82, %v476
  %478 = vmatmul.bf16.gmra.mxu0 %v321
  %v479 = vpop.f32.mrf.mxu0
  %v480 = vadd.f32 %v82, %v479
  %v481 = vpop.f32.mrf.mxu0
  %v482 = vadd.f32 %v82, %v481
  %483 = vmatmul.bf16.gmra.mxu0 %v324
  %v484 = vpop.f32.mrf.mxu0
  %v485 = vadd.f32 %v82, %v484
  %v486 = vpop.f32.mrf.mxu0
  %v487 = vadd.f32 %v82, %v486
  %488 = vmatmul.bf16.gmra.mxu0 %v327
  %v489 = vpop.f32.mrf.mxu0
  %v490 = vadd.f32 %v82, %v489
  %v491 = vpop.f32.mrf.mxu0
  %v492 = vadd.f32 %v82, %v491
  %493 = vmatmul.bf16.gmra.mxu0 %v330
  %v494 = vpop.f32.mrf.mxu0
  %v495 = vadd.f32 %v82, %v494
  %v496 = vpop.f32.mrf.mxu0
  %v497 = vadd.f32 %v82, %v496
  %498 = vmatmul.bf16.gmra.mxu0 %v333
  %v499 = vpop.f32.mrf.mxu0
  %v500 = vadd.f32 %v82, %v499
  %v501 = vpop.f32.mrf.mxu0
  %v502 = vadd.f32 %v82, %v501
  %503 = vmatmul.bf16.gmra.mxu0 %v336
  %v504 = vpop.f32.mrf.mxu0
  %v505 = vadd.f32 %v82, %v504
  %v506 = vpop.f32.mrf.mxu0
  %v507 = vadd.f32 %v82, %v506
  %508 = vmatmul.bf16.gmra.mxu0 %v339
  %v509 = vpop.f32.mrf.mxu0
  %v510 = vadd.f32 %v82, %v509
  %v511 = vpop.f32.mrf.mxu0
  %v512 = vadd.f32 %v82, %v511
  %513 = vdwg.mxu0
  %v514 = vmax.f32 %v355, 0.0
  %v515 = vmax.f32 %v357, 0.0
  %v516 = vmax.f32 %v360, 0.0
  %v517 = vmax.f32 %v362, 0.0
  %v518 = vmax.f32 %v365, 0.0
  %v519 = vmax.f32 %v367, 0.0
  %v520 = vmax.f32 %v370, 0.0
  %v521 = vmax.f32 %v372, 0.0
  %v522 = vmax.f32 %v375, 0.0
  %v523 = vmax.f32 %v377, 0.0
  %v524 = vmax.f32 %v380, 0.0
  %v525 = vmax.f32 %v382, 0.0
  %v526 = vmax.f32 %v385, 0.0
  %v527 = vmax.f32 %v387, 0.0
  %v528 = vmax.f32 %v390, 0.0
  %v529 = vmax.f32 %v392, 0.0
  %v530 = vmax.f32 %v395, 0.0
  %v531 = vmax.f32 %v397, 0.0
  %v532 = vmax.f32 %v400, 0.0
  %v533 = vmax.f32 %v402, 0.0
  %v534 = vmax.f32 %v405, 0.0
  %v535 = vmax.f32 %v407, 0.0
  %v536 = vmax.f32 %v410, 0.0
  %v537 = vmax.f32 %v412, 0.0
  %v538 = vmax.f32 %v415, 0.0
  %v539 = vmax.f32 %v417, 0.0
  %v540 = vmax.f32 %v420, 0.0
  %v541 = vmax.f32 %v422, 0.0
  %v542 = vmax.f32 %v425, 0.0
  %v543 = vmax.f32 %v427, 0.0
  %v544 = vmax.f32 %v430, 0.0
  %v545 = vmax.f32 %v432, 0.0
  %v546 = vmax.f32 %v435, 0.0
  %v547 = vmax.f32 %v437, 0.0
  %v548 = vmax.f32 %v440, 0.0
  %v549 = vmax.f32 %v442, 0.0
  %v550 = vmax.f32 %v445, 0.0
  %v551 = vmax.f32 %v447, 0.0
  %v552 = vmax.f32 %v450, 0.0
  %v553 = vmax.f32 %v452, 0.0
  %v554 = vmax.f32 %v455, 0.0
  %v555 = vmax.f32 %v457, 0.0
  %v556 = vmax.f32 %v460, 0.0
  %v557 = vmax.f32 %v462, 0.0
  %v558 = vmax.f32 %v465, 0.0
  %v559 = vmax.f32 %v467, 0.0
  %v560 = vmax.f32 %v470, 0.0
  %v561 = vmax.f32 %v472, 0.0
  %v562 = vmax.f32 %v475, 0.0
  %v563 = vmax.f32 %v477, 0.0
  %v564 = vmax.f32 %v480, 0.0
  %v565 = vmax.f32 %v482, 0.0
  %v566 = vmax.f32 %v485, 0.0
  %v567 = vmax.f32 %v487, 0.0
  %v568 = vmax.f32 %v490, 0.0
  %v569 = vmax.f32 %v492, 0.0
  %v570 = vmax.f32 %v495, 0.0
  %v571 = vmax.f32 %v497, 0.0
  %v572 = vmax.f32 %v500, 0.0
  %v573 = vmax.f32 %v502, 0.0
  %v574 = vmax.f32 %v505, 0.0
  %v575 = vmax.f32 %v507, 0.0
  %v576 = vmax.f32 %v510, 0.0
  %v577 = vmax.f32 %v512, 0.0
  %v578 = vpack.c.bf16 %v514, %v514
  %v579 = vpack.c.bf16 %v515, %v515
  %v580 = vpack.c.bf16 %v516, %v516
  %v581 = vpack.c.bf16 %v517, %v517
  %v582 = vpack.c.bf16 %v518, %v518
  %v583 = vpack.c.bf16 %v519, %v519
  %v584 = vpack.c.bf16 %v520, %v520
  %v585 = vpack.c.bf16 %v521, %v521
  %v586 = vpack.c.bf16 %v522, %v522
  %v587 = vpack.c.bf16 %v523, %v523
  %v588 = vpack.c.bf16 %v524, %v524
  %v589 = vpack.c.bf16 %v525, %v525
  %v590 = vpack.c.bf16 %v526, %v526
  %v591 = vpack.c.bf16 %v527, %v527
  %v592 = vpack.c.bf16 %v528, %v528
  %v593 = vpack.c.bf16 %v529, %v529
  %v594 = vpack.c.bf16 %v530, %v530
  %v595 = vpack.c.bf16 %v531, %v531
  %v596 = vpack.c.bf16 %v532, %v532
  %v597 = vpack.c.bf16 %v533, %v533
  %v598 = vpack.c.bf16 %v534, %v534
  %v599 = vpack.c.bf16 %v535, %v535
  %v600 = vpack.c.bf16 %v536, %v536
  %v601 = vpack.c.bf16 %v537, %v537
  %v602 = vpack.c.bf16 %v538, %v538
  %v603 = vpack.c.bf16 %v539, %v539
  %v604 = vpack.c.bf16 %v540, %v540
  %v605 = vpack.c.bf16 %v541, %v541
  %v606 = vpack.c.bf16 %v542, %v542
  %v607 = vpack.c.bf16 %v543, %v543
  %v608 = vpack.c.bf16 %v544, %v544
  %v609 = vpack.c.bf16 %v545, %v545
  %v610 = vpack.c.bf16 %v546, %v546
  %v611 = vpack.c.bf16 %v547, %v547
  %v612 = vpack.c.bf16 %v548, %v548
  %v613 = vpack.c.bf16 %v549, %v549
  %v614 = vpack.c.bf16 %v550, %v550
  %v615 = vpack.c.bf16 %v551, %v551
  %v616 = vpack.c.bf16 %v552, %v552
  %v617 = vpack.c.bf16 %v553, %v553
  %v618 = vpack.c.bf16 %v554, %v554
  %v619 = vpack.c.bf16 %v555, %v555
  %v620 = vpack.c.bf16 %v556, %v556
  %v621 = vpack.c.bf16 %v557, %v557
  %v622 = vpack.c.bf16 %v558, %v558
  %v623 = vpack.c.bf16 %v559, %v559
  %v624 = vpack.c.bf16 %v560, %v560
  %v625 = vpack.c.bf16 %v561, %v561
  %v626 = vpack.c.bf16 %v562, %v562
  %v627 = vpack.c.bf16 %v563, %v563
  %v628 = vpack.c.bf16 %v564, %v564
  %v629 = vpack.c.bf16 %v565, %v565
  %v630 = vpack.c.bf16 %v566, %v566
  %v631 = vpack.c.bf16 %v567, %v567
  %v632 = vpack.c.bf16 %v568, %v568
  %v633 = vpack.c.bf16 %v569, %v569
  %v634 = vpack.c.bf16 %v570, %v570
  %v635 = vpack.c.bf16 %v571, %v571
  %v636 = vpack.c.bf16 %v572, %v572
  %v637 = vpack.c.bf16 %v573, %v573
  %v638 = vpack.c.bf16 %v574, %v574
  %v639 = vpack.c.bf16 %v575, %v575
  %v640 = vpack.c.bf16 %v576, %v576
  %v641 = vpack.c.bf16 %v577, %v577
  %642 = vst [vmem:[%s3] sm:$0xf] %v578
  %643 = vst [vmem:[%s3 + $0x4] sm:$0xf] %v579
  %644 = vst [vmem:[%s3 + $0x8] sm:$0xf] %v580
  %645 = vst [vmem:[%s3 + $0xc] sm:$0xf] %v581
  %646 = vst [vmem:[%s3 + $0x10] sm:$0xf] %v582
  %647 = vst [vmem:[%s3 + $0x14] sm:$0xf] %v583
  %648 = vst [vmem:[%s3 + $0x18] sm:$0xf] %v584
  %649 = vst [vmem:[%s3 + $0x1c] sm:$0xf] %v585
  %650 = vst [vmem:[%s3 + $0x20] sm:$0xf] %v586
  %651 = vst [vmem:[%s3 + $0x24] sm:$0xf] %v587
  %652 = vst [vmem:[%s3 + $0x28] sm:$0xf] %v588
  %653 = vst [vmem:[%s3 + $0x2c] sm:$0xf] %v589
  %654 = vst [vmem:[%s3 + $0x30] sm:$0xf] %v590
  %655 = vst [vmem:[%s3 + $0x34] sm:$0xf] %v591
  %656 = vst [vmem:[%s3 + $0x38] sm:$0xf] %v592
  %657 = vst [vmem:[%s3 + $0x3c] sm:$0xf] %v593
  %658 = vst [vmem:[%s3 + $0x40] sm:$0xf] %v594
  %659 = vst [vmem:[%s3 + $0x44] sm:$0xf] %v595
  %660 = vst [vmem:[%s3 + $0x48] sm:$0xf] %v596
  %661 = vst [vmem:[%s3 + $0x4c] sm:$0xf] %v597
  %662 = vst [vmem:[%s3 + $0x50] sm:$0xf] %v598
  %663 = vst [vmem:[%s3 + $0x54] sm:$0xf] %v599
  %664 = vst [vmem:[%s3 + $0x58] sm:$0xf] %v600
  %665 = vst [vmem:[%s3 + $0x5c] sm:$0xf] %v601
  %666 = vst [vmem:[%s3 + $0x60] sm:$0xf] %v602
  %667 = vst [vmem:[%s3 + $0x64] sm:$0xf] %v603
  %668 = vst [vmem:[%s3 + $0x68] sm:$0xf] %v604
  %669 = vst [vmem:[%s3 + $0x6c] sm:$0xf] %v605
  %670 = vst [vmem:[%s3 + $0x70] sm:$0xf] %v606
  %671 = vst [vmem:[%s3 + $0x74] sm:$0xf] %v607
  %672 = vst [vmem:[%s3 + $0x78] sm:$0xf] %v608
  %673 = vst [vmem:[%s3 + $0x7c] sm:$0xf] %v609
  %674 = vst [vmem:[%s3 + $0x80] sm:$0xf] %v610
  %675 = vst [vmem:[%s3 + $0x84] sm:$0xf] %v611
  %676 = vst [vmem:[%s3 + $0x88] sm:$0xf] %v612
  %677 = vst [vmem:[%s3 + $0x8c] sm:$0xf] %v613
  %678 = vst [vmem:[%s3 + $0x90] sm:$0xf] %v614
  %679 = vst [vmem:[%s3 + $0x94] sm:$0xf] %v615
  %680 = vst [vmem:[%s3 + $0x98] sm:$0xf] %v616
  %681 = vst [vmem:[%s3 + $0x9c] sm:$0xf] %v617
  %682 = vst [vmem:[%s3 + $0xa0] sm:$0xf] %v618
  %683 = vst [vmem:[%s3 + $0xa4] sm:$0xf] %v619
  %684 = vst [vmem:[%s3 + $0xa8] sm:$0xf] %v620
  %685 = vst [vmem:[%s3 + $0xac] sm:$0xf] %v621
  %686 = vst [vmem:[%s3 + $0xb0] sm:$0xf] %v622
  %687 = vst [vmem:[%s3 + $0xb4] sm:$0xf] %v623
  %688 = vst [vmem:[%s3 + $0xb8] sm:$0xf] %v624
  %689 = vst [vmem:[%s3 + $0xbc] sm:$0xf] %v625
  %690 = vst [vmem:[%s3 + $0xc0] sm:$0xf] %v626
  %691 = vst [vmem:[%s3 + $0xc4] sm:$0xf] %v627
  %692 = vst [vmem:[%s3 + $0xc8] sm:$0xf] %v628
  %693 = vst [vmem:[%s3 + $0xcc] sm:$0xf] %v629
  %694 = vst [vmem:[%s3 + $0xd0] sm:$0xf] %v630
  %695 = vst [vmem:[%s3 + $0xd4] sm:$0xf] %v631
  %696 = vst [vmem:[%s3 + $0xd8] sm:$0xf] %v632
  %697 = vst [vmem:[%s3 + $0xdc] sm:$0xf] %v633
  %698 = vst [vmem:[%s3 + $0xe0] sm:$0xf] %v634
  %699 = vst [vmem:[%s3 + $0xe4] sm:$0xf] %v635
  %700 = vst [vmem:[%s3 + $0xe8] sm:$0xf] %v636
  %701 = vst [vmem:[%s3 + $0xec] sm:$0xf] %v637
  %702 = vst [vmem:[%s3 + $0xf0] sm:$0xf] %v638
  %703 = vst [vmem:[%s3 + $0xf4] sm:$0xf] %v639
  %704 = vst [vmem:[%s3 + $0xf8] sm:$0xf] %v640
  %705 = vst [vmem:[%s3 + $0xfc] sm:$0xf] %v641
  // Predicated region
  $region14: #{inception_b_forward.6} parent=0 // pred_check
    _
  $region15: #{inception_b_forward.6} parent=0 // pred_check_branch
    %707 = sbr.rel (0) target = $region17
  $region16: #{inception_b_forward.6} parent=0 // pred_region
    _
  $region17: #{inception_b_forward.6} parent=0 // pred_fallthru
    _
  // Predicated region
  $region18: #{inception_b_forward.6} parent=0 // pred_check
    _
  $region19: #{inception_b_forward.6} parent=0 // pred_check_branch
    %709 = sbr.rel (0) target = $region21
  $region20: #{inception_b_forward.6} parent=0 // pred_region
    _
  $region21: #{inception_b_forward.6} parent=0 // pred_fallthru
    _

// kernel: inception_b_forward.8
$region0: #{inception_b_forward.8}
  #allocation0 [shape = 'u32[]', space=smem, size = 0x4, offset = 0x4, fixed_abs, tag = 'smem constant byte address 0x4 - core index']
  #allocation1 [shape = 'u32[72,128]{1,0:T(1,128)}', space=vmem, size = 0x9000, scoped, tag = 'internal scratch']
  %s0 = inlined_call_operand.vmem [shape: bf16[2,8,17,96], index: 0, kind: input, shape index: {}]
  %s1 = inlined_call_operand.vmem [shape: bf16[2,8,17,96], index: 1, kind: input, shape index: {}]
  %s2 = inlined_call_operand.vmem [shape: bf16[2,8,17,96], index: 2, kind: input, shape index: {}]
  %s3 = inlined_call_operand.vmem [shape: bf16[2,8,17,96], index: 3, kind: input, shape index: {}]
  %s4 = inlined_call_operand.vmem [shape: bf16[9,96,128], index: 4, kind: input, shape index: {}]
  %s5 = inlined_call_operand.vmem [shape: f32[1,128], index: 5, kind: input, shape index: {}]
  %s6 = inlined_call_operand.vmem [shape: f32[2,112,128], index: 6, kind: output, shape index: {}]
  %s7 = sld [smem:[#allocation0]]
  $region57: #{inception_b_forward.8} parent=0
    _
  %s9 = ssub.s32 1, %s7
  %s10 = scalar_select 0, %s9, %s7
  loop: start=0, step=1, limit=4
  $region2: #{inception_b_forward.8} parent=0 // loop_pre_header
    _
  $region3: #{inception_b_forward.8} parent=0 // loop_header
    %s12 = sphi 0, %s16
    %p13 = scmp.ge.s32.totalorder %s12, 4
    %s22 = sphi 0, %s24
    %s25 = sphi 0, %s22
    %s26 = sphi 0, %s25
    %s42 = sphi 0, %s26
    %s48 = sphi 0, %s50
    %s51 = sphi 0, %s48
    %s52 = sphi 0, %s51
    %s68 = sphi 0, %s52
    %s74 = sphi 0, %s76
    %s77 = sphi 0, %s74
    %s78 = sphi 0, %s77
    %s94 = sphi 0, %s78
    %s100 = sphi 0, %s102
    %s103 = sphi 0, %s100
    %s104 = sphi 0, %s103
    %s120 = sphi 0, %s104
    %s124 = sphi 0, %s124
    %s126 = sphi 0, %s124
    %s127 = sphi 0, %s126
    %s141 = sphi 0, %s127
    %s145 = sphi 0, %s145
    %s147 = sphi 0, %s145
    %s148 = sphi 0, %s147
    %s162 = sphi 0, %s148
    %s168 = sphi 0, %s170
    %s171 = sphi 0, %s168
    %s172 = sphi 0, %s171
    %s188 = sphi 0, %s172
  $region4: #{inception_b_forward.8} parent=0 // loop_header_branch
    %15 = sbr.rel (%p13) target = $region8
  $region5: #{inception_b_forward.8} parent=0 // loop_body
    %s17 = ssub.s32 %s12, 1
    %s18 = ssub.s32 %s12, 2
    %s19 = sadd.s32 %s12, 1
    %s20 = ssub.s32 %s12, %s19
    %p21 = scmp.eq.s32.totalorder %s20, 0
    %s23 = sadd.s32 %s22, 1
    %s24 = scalar_select %p21, %s22, %s23
    %p27 = pneg %p21
    %p28 = scmp.eq.s32.totalorder %s12, 1
    %p29 = por %p27, %p28
    %p30 = scmp.ne.s32.totalorder %s22, %s25
    %p31 = scmp.eq.s32.totalorder %s12, 0
    %p32 = por %p30, %p31
    %p33 = scmp.ne.s32.totalorder %s22, %s25
    %p34 = scmp.eq.s32.totalorder %s17, 1
    %p35 = por %p33, %p34
    %p36 = scmp.ne.s32.totalorder %s25, %s26
    %p37 = scmp.eq.s32.totalorder %s17, 0
    %p38 = por %p36, %p37
    %p39 = scmp.ne.s32.totalorder %s25, %s26
    %p40 = scmp.eq.s32.totalorder %s18, 1
    %p41 = por %p39, %p40
    %p43 = scmp.ne.s32.totalorder %s26, %s42
    %p44 = scmp.eq.s32.totalorder %s18, 0
    %p45 = por %p43, %p44
    %s46 = ssub.s32 %s12, %s19
    %p47 = scmp.eq.s32.totalorder %s46, 0
    %s49 = sadd.s32 %s48, 1
    %s50 = scalar_select %p47, %s48, %s49
    %p53 = pneg %p47
    %p54 = scmp.eq.s32.totalorder %s12, 1
    %p55 = por %p53, %p54
    %p56 = scmp.ne.s32.totalorder %s48, %s51
    %p57 = scmp.eq.s32.totalorder %s12, 0
    %p58 = por %p56, %p57
    %p59 = scmp.ne.s32.totalorder %s48, %s51
    %p60 = scmp.eq.s32.totalorder %s17, 1
    %p61 = por %p59, %p60
    %p62 = scmp.ne.s32.totalorder %s51, %s52
    %p63 = scmp.eq.s32.totalorder %s17, 0
    %p64 = por %p62, %p63
    %p65 = scmp.ne.s32.totalorder %s51, %s52
    %p66 = scmp.eq.s32.totalorder %s18, 1
    %p67 = por %p65, %p66
    %p69 = scmp.ne.s32.totalorder %s52, %s68
    %p70 = scmp.eq.s32.totalorder %s18, 0
    %p71 = por %p69, %p70
    %s72 = ssub.s32 %s12, %s19
    %p73 = scmp.eq.s32.totalorder %s72, 0
    %s75 = sadd.s32 %s74, 1
    %s76 = scalar_select %p73, %s74, %s75
    %p79 = pneg %p73
    %p80 = scmp.eq.s32.totalorder %s12, 1
    %p81 = por %p79, %p80
    %p82 = scmp.ne.s32.totalorder %s74, %s77
    %p83 = scmp.eq.s32.totalorder %s12, 0
    %p84 = por %p82, %p83
    %p85 = scmp.ne.s32.totalorder %s74, %s77
    %p86 = scmp.eq.s32.totalorder %s17, 1
    %p87 = por %p85, %p86
    %p88 = scmp.ne.s32.totalorder %s77, %s78
    %p89 = scmp.eq.s32.totalorder %s17, 0
    %p90 = por %p88, %p89
    %p91 = scmp.ne.s32.totalorder %s77, %s78
    %p92 = scmp.eq.s32.totalorder %s18, 1
    %p93 = por %p91, %p92
    %p95 = scmp.ne.s32.totalorder %s78, %s94
    %p96 = scmp.eq.s32.totalorder %s18, 0
    %p97 = por %p95, %p96
    %s98 = ssub.s32 %s12, %s19
    %p99 = scmp.eq.s32.totalorder %s98, 0
    %s101 = sadd.s32 %s100, 1
    %s102 = scalar_select %p99, %s100, %s101
    %p105 = pneg %p99
    %p106 = scmp.eq.s32.totalorder %s12, 1
    %p107 = por %p105, %p106
    %p108 = scmp.ne.s32.totalorder %s100, %s103
    %p109 = scmp.eq.s32.totalorder %s12, 0
    %p110 = por %p108, %p109
    %p111 = scmp.ne.s32.totalorder %s100, %s103
    %p112 = scmp.eq.s32.totalorder %s17, 1
    %p113 = por %p111, %p112
    %p114 = scmp.ne.s32.totalorder %s103, %s104
    %p115 = scmp.eq.s32.totalorder %s17, 0
    %p116 = por %p114, %p115
    %p117 = scmp.ne.s32.totalorder %s103, %s104
    %p118 = scmp.eq.s32.totalorder %s18, 1
    %p119 = por %p117, %p118
    %p121 = scmp.ne.s32.totalorder %s104, %s120
    %p122 = scmp.eq.s32.totalorder %s18, 0
    %p123 = por %p121, %p122
    %s125 = sadd.s32 %s124, 1
    %p128 = scmp.eq.s32.totalorder %s12, 1
    %p129 = scmp.ne.s32.totalorder %s124, %s126
    %p130 = scmp.eq.s32.totalorder %s12, 0
    %p131 = por %p129, %p130
    %p132 = scmp.ne.s32.totalorder %s124, %s126
    %p133 = scmp.eq.s32.totalorder %s17, 1
    %p134 = por %p132, %p133
    %p135 = scmp.ne.s32.totalorder %s126, %s127
    %p136 = scmp.eq.s32.totalorder %s17, 0
    %p137 = por %p135, %p136
    %p138 = scmp.ne.s32.totalorder %s126, %s127
    %p139 = scmp.eq.s32.totalorder %s18, 1
    %p140 = por %p138, %p139
    %p142 = scmp.ne.s32.totalorder %s127, %s141
    %p143 = scmp.eq.s32.totalorder %s18, 0
    %p144 = por %p142, %p143
    %s146 = sadd.s32 %s145, 1
    %p149 = scmp.eq.s32.totalorder %s12, 1
    %p150 = scmp.ne.s32.totalorder %s145, %s147
    %p151 = scmp.eq.s32.totalorder %s12, 0
    %p152 = por %p150, %p151
    %p153 = scmp.ne.s32.totalorder %s145, %s147
    %p154 = scmp.eq.s32.totalorder %s17, 1
    %p155 = por %p153, %p154
    %p156 = scmp.ne.s32.totalorder %s147, %s148
    %p157 = scmp.eq.s32.totalorder %s17, 0
    %p158 = por %p156, %p157
    %p159 = scmp.ne.s32.totalorder %s147, %s148
    %p160 = scmp.eq.s32.totalorder %s18, 1
    %p161 = por %p159, %p160
    %p163 = scmp.ne.s32.totalorder %s148, %s162
    %p164 = scmp.eq.s32.totalorder %s18, 0
    %p165 = por %p163, %p164
    %s166 = ssub.s32 %s12, %s19
    %p167 = scmp.eq.s32.totalorder %s166, 0
    %s169 = sadd.s32 %s168, 1
    %s170 = scalar_select %p167, %s168, %s169
    %p173 = pneg %p167
    %p174 = scmp.eq.s32.totalorder %s12, 1
    %p175 = por %p173, %p174
    %p176 = scmp.ne.s32.totalorder %s168, %s171
    %p177 = scmp.eq.s32.totalorder %s12, 0
    %p178 = por %p176, %p177
    %p179 = scmp.ne.s32.totalorder %s168, %s171
    %p180 = scmp.eq.s32.totalorder %s17, 1
    %p181 = por %p179, %p180
    %p182 = scmp.ne.s32.totalorder %s171, %s172
    %p183 = scmp.eq.s32.totalorder %s17, 0
    %p184 = por %p182, %p183
    %p185 = scmp.ne.s32.totalorder %s171, %s172
    %p186 = scmp.eq.s32.totalorder %s18, 1
    %p187 = por %p185, %p186
    %p189 = scmp.ne.s32.totalorder %s172, %s188
    %p190 = scmp.eq.s32.totalorder %s18, 0
    %p191 = por %p189, %p190
    %p192 = scmp.le.s32.totalorder 1, %s12
    %p193 = scmp.lt.s32.totalorder %s12, 3
    %p194 = pnand %p192, %p193
    %p195 = pneg %p194
    // Predicated region
    $region9: #{inception_b_forward.8} parent=5 // pred_check
      _
    $region10: #{inception_b_forward.8} parent=5 // pred_check_branch
      %197 = sbr.rel (%p194) target = $region12
    $region11: #{inception_b_forward.8} parent=5 // pred_region
      %s198 = ssub.s32 %s12, 1
      // Predicated region
      $region13: #{inception_b_forward.8} parent=11 // pred_check
        %p199 = pneg %p137
      $region14: #{inception_b_forward.8} parent=11 // pred_check_branch
        %201 = sbr.rel (%p199) target = $region16
      $region15: #{inception_b_forward.8} parent=11 // pred_region
        _
      $region16: #{inception_b_forward.8} parent=11 // pred_fallthru
        _
      // Predicated region
      $region17: #{inception_b_forward.8} parent=11 // pred_check
        %p202 = pneg %p158
      $region18: #{inception_b_forward.8} parent=11 // pred_check_branch
        %204 = sbr.rel (%p202) target = $region20
      $region19: #{inception_b_forward.8} parent=11 // pred_region
        _
      $region20: #{inception_b_forward.8} parent=11 // pred_fallthru
        _
    $region12: #{inception_b_forward.8} parent=5 // pred_fallthru
      _
    %p205 = scmp.lt.s32.totalorder %s12, 2
    // Predicated region
    $region21: #{inception_b_forward.8} parent=5 // pred_check
      %p206 = pneg %p205
    $region22: #{inception_b_forward.8} parent=5 // pred_check_branch
      %208 = sbr.rel (%p206) target = $region24
    $region23: #{inception_b_forward.8} parent=5 // pred_region
      // Predicated region
      $region25: #{inception_b_forward.8} parent=23 // pred_check
        %p209 = pneg %p32
      $region26: #{inception_b_forward.8} parent=23 // pred_check_branch
        %211 = sbr.rel (%p209) target = $region28
      $region27: #{inception_b_forward.8} parent=23 // pred_region
        %p212 = scmp.lt.s32.totalorder %s12, 1
        %s213 = scalar_select %p212, %s12, 1
        %s214 = smul.addr %s213, 24
        %s215 = smul.addr %s214, 4
        %s216 = scalar_lea.vmem %s0, %s215
      $region28: #{inception_b_forward.8} parent=23 // pred_fallthru
        _
      // Predicated region
      $region29: #{inception_b_forward.8} parent=23 // pred_check
        %p217 = pneg %p58
      $region30: #{inception_b_forward.8} parent=23 // pred_check_branch
        %219 = sbr.rel (%p217) target = $region32
      $region31: #{inception_b_forward.8} parent=23 // pred_region
        %p220 = scmp.lt.s32.totalorder %s12, 1
        %s221 = scalar_select %p220, %s12, 1
        %s222 = smul.addr %s221, 24
        %s223 = smul.addr %s222, 4
        %s224 = scalar_lea.vmem %s1, %s223
      $region32: #{inception_b_forward.8} parent=23 // pred_fallthru
        _
      // Predicated region
      $region33: #{inception_b_forward.8} parent=23 // pred_check
        %p225 = pneg %p84
      $region34: #{inception_b_forward.8} parent=23 // pred_check_branch
        %227 = sbr.rel (%p225) target = $region36
      $region35: #{inception_b_forward.8} parent=23 // pred_region
        %p228 = scmp.lt.s32.totalorder %s12, 1
        %s229 = scalar_select %p228, %s12, 1
        %s230 = smul.addr %s229, 24
        %s231 = smul.addr %s230, 4
        %s232 = scalar_lea.vmem %s2, %s231
      $region36: #{inception_b_forward.8} parent=23 // pred_fallthru
        _
      // Predicated region
      $region37: #{inception_b_forward.8} parent=23 // pred_check
        %p233 = pneg %p110
      $region38: #{inception_b_forward.8} parent=23 // pred_check_branch
        %235 = sbr.rel (%p233) target = $region40
      $region39: #{inception_b_forward.8} parent=23 // pred_region
        %p236 = scmp.lt.s32.totalorder %s12, 1
        %s237 = scalar_select %p236, %s12, 1
        %s238 = smul.addr %s237, 24
        %s239 = smul.addr %s238, 4
        %s240 = scalar_lea.vmem %s3, %s239
      $region40: #{inception_b_forward.8} parent=23 // pred_fallthru
        _
    $region24: #{inception_b_forward.8} parent=5 // pred_fallthru
      _
    %p241 = scmp.le.s32.totalorder 1, %s12
    %p242 = scmp.lt.s32.totalorder %s12, 3
    %p243 = pnand %p241, %p242
    %p244 = pneg %p243
    // Predicated region
    $region41: #{inception_b_forward.8} parent=5 // pred_check
      _
    $region42: #{inception_b_forward.8} parent=5 // pred_check_branch
      %246 = sbr.rel (%p243) target = $region44
    $region43: #{inception_b_forward.8} parent=5 // pred_region
      %s247 = ssub.s32 %s12, 1
      %p248 = scmp.lt.s32.totalorder %s17, 1
      %s249 = scalar_select %p248, %s17, 1
      %s250 = smul.addr %s249, 24
      %s251 = smul.addr %s250, 4
      %s252 = scalar_lea.vmem %s0, %s251
      %p253 = pneg %p38
      %p254 = pneg %p35
      %p255 = scmp.lt.s32.totalorder %s17, 1
      %s256 = scalar_select %p255, %s17, 1
      %s257 = smul.addr %s256, 24
      %s258 = smul.addr %s257, 4
      %s259 = scalar_lea.vmem %s1, %s258
      %p260 = pneg %p64
      %p261 = pneg %p61
      %p262 = scmp.lt.s32.totalorder %s17, 1
      %s263 = scalar_select %p262, %s17, 1
      %s264 = smul.addr %s263, 24
      %s265 = smul.addr %s264, 4
      %s266 = scalar_lea.vmem %s2, %s265
      %p267 = pneg %p90
      %p268 = pneg %p87
      %p269 = scmp.lt.s32.totalorder %s17, 1
      %s270 = scalar_select %p269, %s17, 1
      %s271 = smul.addr %s270, 24
      %s272 = smul.addr %s271, 4
      %s273 = scalar_lea.vmem %s3, %s272
      %p274 = pneg %p116
      %p275 = pneg %p113
      %p276 = pneg %p137
      %p277 = pneg %p134
      %p278 = pneg %p158
      %p279 = pneg %p155
      %p280 = pneg %p184
      %p281 = pneg %p181
      %p282 = scmp.lt.s32.totalorder %s17, 1
      %s283 = scalar_select %p282, %s17, 1
      %s284 = smul.addr %s283, 14
      %s285 = smul.addr %s284, 8
      %s286 = scalar_lea.vmem %s6, %s285
      %p287 = scmp.lt.s32.totalorder %s17, 1
      %s288 = scalar_select %p287, %s17, 1
      %s289 = smul.addr %s288, 24
      %s290 = smul.addr %s289, 4
      %s291 = scalar_lea.vmem %s0, %s290
      %p292 = scmp.lt.s32.totalorder %s17, 1
      %s293 = scalar_select %p292, %s17, 1
      %s294 = smul.addr %s293, 24
      %s295 = smul.addr %s294, 4
      %s296 = scalar_lea.vmem %s1, %s295
      %p297 = scmp.lt.s32.totalorder %s17, 1
      %s298 = scalar_select %p297, %s17, 1
      %s299 = smul.addr %s298, 24
      %s300 = smul.addr %s299, 4
      %s301 = scalar_lea.vmem %s2, %s300
      %p302 = scmp.lt.s32.totalorder %s17, 1
      %s303 = scalar_select %p302, %s17, 1
      %s304 = smul.addr %s303, 24
      %s305 = smul.addr %s304, 4
      %s306 = scalar_lea.vmem %s3, %s305
      %p307 = scmp.lt.s32.totalorder %s17, 1
      %s308 = scalar_select %p307, %s17, 1
      %s309 = smul.addr %s308, 14
      %s310 = smul.addr %s309, 8
      %s311 = scalar_lea.vmem %s6, %s310
      %v313 = vld [vmem:[%s291] sm:$0xf]
      %v314 = vld [vmem:[%s291 + $0x4] sm:$0xf]
      %v315 = vld [vmem:[%s291 + $0xc] sm:$0xf]
      %v316 = vld [vmem:[%s291 + $0x10] sm:$0xf]
      %v317 = vld [vmem:[%s291 + $0x18] sm:$0xf]
      %v318 = vld [vmem:[%s291 + $0x1c] sm:$0xf]
      %v319 = vld [vmem:[%s291 + $0x24] sm:$0xf]
      %v320 = vld [vmem:[%s291 + $0x28] sm:$0xf]
      %v321 = vld [vmem:[%s291 + $0x30] sm:$0xf]
      %v322 = vld [vmem:[%s291 + $0x34] sm:$0xf]
      %v323 = vld [vmem:[%s291 + $0x3c] sm:$0xf]
      %v324 = vld [vmem:[%s291 + $0x40] sm:$0xf]
      %v325 = vld [vmem:[%s291 + $0x48] sm:$0xf]
      %v326 = vld [vmem:[%s291 + $0x4c] sm:$0xf]
      %v327 = vld [vmem:[%s4] sm:$0xf]
      %v328 = vld [vmem:[%s4 + $0x4] sm:$0xf]
      %v329 = vld [vmem:[%s4 + $0x8] sm:$0xf]
      %v330 = vld [vmem:[%s4 + $0xc] sm:$0xf]
      %v331 = vld [vmem:[%s4 + $0x10] sm:$0xf]
      %v332 = vld [vmem:[%s4 + $0x14] sm:$0xf]
      %v333 = vld [vmem:[%s4 + $0x18] sm:$0xf]
      %v334 = vld [vmem:[%s4 + $0x1c] sm:$0xf]
      %v335 = vld [vmem:[%s4 + $0x20] sm:$0xf]
      %v336 = vld [vmem:[%s4 + $0x24] sm:$0xf]
      %v337 = vld [vmem:[%s4 + $0x28] sm:$0xf]
      %v338 = vld [vmem:[%s4 + $0x2c] sm:$0xf]
      %v339 = vld [vmem:[%s296] sm:$0xf]
      %v340 = vld [vmem:[%s296 + $0x4] sm:$0xf]
      %v341 = vld [vmem:[%s296 + $0xc] sm:$0xf]
      %v342 = vld [vmem:[%s296 + $0x10] sm:$0xf]
      %v343 = vld [vmem:[%s296 + $0x18] sm:$0xf]
      %v344 = vld [vmem:[%s296 + $0x1c] sm:$0xf]
      %v345 = vld [vmem:[%s296 + $0x24] sm:$0xf]
      %v346 = vld [vmem:[%s296 + $0x28] sm:$0xf]
      %v347 = vld [vmem:[%s296 + $0x30] sm:$0xf]
      %v348 = vld [vmem:[%s296 + $0x34] sm:$0xf]
      %v349 = vld [vmem:[%s296 + $0x3c] sm:$0xf]
      %v350 = vld [vmem:[%s296 + $0x40] sm:$0xf]
      %v351 = vld [vmem:[%s296 + $0x48] sm:$0xf]
      %v352 = vld [vmem:[%s296 + $0x4c] sm:$0xf]
      %s353 = scalar_lea.vmem %s4, 48
      %v354 = vld [vmem:[%s353] sm:$0xf]
      %v355 = vld [vmem:[%s353 + $0x4] sm:$0xf]
      %v356 = vld [vmem:[%s353 + $0x8] sm:$0xf]
      %v357 = vld [vmem:[%s353 + $0xc] sm:$0xf]
      %v358 = vld [vmem:[%s353 + $0x10] sm:$0xf]
      %v359 = vld [vmem:[%s353 + $0x14] sm:$0xf]
      %v360 = vld [vmem:[%s353 + $0x18] sm:$0xf]
      %v361 = vld [vmem:[%s353 + $0x1c] sm:$0xf]
      %v362 = vld [vmem:[%s353 + $0x20] sm:$0xf]
      %v363 = vld [vmem:[%s353 + $0x24] sm:$0xf]
      %v364 = vld [vmem:[%s353 + $0x28] sm:$0xf]
      %v365 = vld [vmem:[%s353 + $0x2c] sm:$0xf]
      %v380 = vunpack.c.l.b16 %v339
      %v381 = vunpack.c.l.b16 %v340
      %v382 = vunpack.c.l.b16 %v341
      %v383 = vunpack.c.l.b16 %v342
      %v384 = vunpack.c.l.b16 %v343
      %v385 = vunpack.c.l.b16 %v344
      %v386 = vunpack.c.l.b16 %v345
      %v387 = vunpack.c.l.b16 %v346
      %v388 = vunpack.c.l.b16 %v347
      %v389 = vunpack.c.l.b16 %v348
      %v390 = vunpack.c.l.b16 %v349
      %v391 = vunpack.c.l.b16 %v350
      %v392 = vunpack.c.l.b16 %v351
      %v393 = vunpack.c.l.b16 %v352
      %v394 = vpack.c.b16 %v381, %v380
      %v395 = vpack.c.b16 %v383, %v382
      %v396 = vpack.c.b16 %v385, %v384
      %v397 = vpack.c.b16 %v387, %v386
      %v398 = vpack.c.b16 %v389, %v388
      %v399 = vpack.c.b16 %v391, %v390
      %v400 = vpack.c.b16 %v393, %v392
      %v413 = vunpack.c.l.b16 %v354
      %v414 = vunpack.c.l.b16 %v355
      %v415 = vunpack.c.l.b16 %v356
      %v416 = vunpack.c.l.b16 %v357
      %v417 = vunpack.c.l.b16 %v358
      %v418 = vunpack.c.l.b16 %v359
      %v419 = vunpack.c.l.b16 %v360
      %v420 = vunpack.c.l.b16 %v361
      %v421 = vunpack.c.l.b16 %v362
      %v422 = vunpack.c.l.b16 %v363
      %v423 = vunpack.c.l.b16 %v364
      %v424 = vunpack.c.l.b16 %v365
      %v425 = vpack.c.b16 %v414, %v413
      %v426 = vpack.c.b16 %v416, %v415
      %v427 = vpack.c.b16 %v418, %v417
      %v428 = vpack.c.b16 %v420, %v419
      %v429 = vpack.c.b16 %v422, %v421
      %v430 = vpack.c.b16 %v424, %v423
      %vm437 = vcmask 785408
      %v439 = vsel %vm437, %v394, 0
      %v442 = vsel %vm437, %v395, 0
      %v445 = vsel %vm437, %v396, 0
      %v448 = vsel %vm437, %v397, 0
      %v451 = vsel %vm437, %v398, 0
      %v454 = vsel %vm437, %v399, 0
      %v457 = vsel %vm437, %v400, 0
      %459 = vmatpush.bf16.msra.mxu0 0
      %460 = vmatpush.bf16.msra.mxu0 0
      %461 = vmatpush.bf16.msra.mxu0 %v430
      %462 = vmatpush.bf16.msra.mxu0 %v429
      %463 = vmatpush.bf16.msra.mxu0 %v428
      %464 = vmatpush.bf16.msra.mxu0 %v427
      %465 = vmatpush.bf16.msra.mxu0 %v426
      %466 = vmatpush.bf16.msra.mxu0 %v425
      %467 = vmatmul.bf16.gmra.mxu0 %v439
      %v468 = vpop.f32.mrf.mxu0
      %v469 = vadd.f32 0.0, %v468
      %v470 = vpop.f32.mrf.mxu0
      %v471 = vadd.f32 0.0, %v470
      %472 = vmatmul.bf16.gmra.mxu0 %v442
      %v473 = vpop.f32.mrf.mxu0
      %v474 = vadd.f32 0.0, %v473
      %v475 = vpop.f32.mrf.mxu0
      %v476 = vadd.f32 0.0, %v475
      %477 = vmatmul.bf16.gmra.mxu0 %v445
      %v478 = vpop.f32.mrf.mxu0
      %v479 = vadd.f32 0.0, %v478
      %v480 = vpop.f32.mrf.mxu0
      %v481 = vadd.f32 0.0, %v480
      %482 = vmatmul.bf16.gmra.mxu0 %v448
      %v483 = vpop.f32.mrf.mxu0
      %v484 = vadd.f32 0.0, %v483
      %v485 = vpop.f32.mrf.mxu0
      %v486 = vadd.f32 0.0, %v485
      %487 = vmatmul.bf16.gmra.mxu0 %v451
      %v488 = vpop.f32.mrf.mxu0
      %v489 = vadd.f32 0.0, %v488
      %v490 = vpop.f32.mrf.mxu0
      %v491 = vadd.f32 0.0, %v490
      %492 = vmatmul.bf16.gmra.mxu0 %v454
      %v493 = vpop.f32.mrf.mxu0
      %v494 = vadd.f32 0.0, %v493
      %v495 = vpop.f32.mrf.mxu0
      %v496 = vadd.f32 0.0, %v495
      %497 = vmatmul.bf16.gmra.mxu0 %v457
      %v498 = vpop.f32.mrf.mxu0
      %v499 = vadd.f32 0.0, %v498
      %v500 = vpop.f32.mrf.mxu0
      %v501 = vadd.f32 0.0, %v500
      %502 = vdwg.mxu0
      %v517 = vunpack.c.l.b16 %v313
      %v518 = vunpack.c.l.b16 %v314
      %v519 = vunpack.c.l.b16 %v315
      %v520 = vunpack.c.l.b16 %v316
      %v521 = vunpack.c.l.b16 %v317
      %v522 = vunpack.c.l.b16 %v318
      %v523 = vunpack.c.l.b16 %v319
      %v524 = vunpack.c.l.b16 %v320
      %v525 = vunpack.c.l.b16 %v321
      %v526 = vunpack.c.l.b16 %v322
      %v527 = vunpack.c.l.b16 %v323
      %v528 = vunpack.c.l.b16 %v324
      %v529 = vunpack.c.l.b16 %v325
      %v530 = vunpack.c.l.b16 %v326
      %v531 = vpack.c.b16 %v518, %v517
      %v532 = vpack.c.b16 %v520, %v519
      %v533 = vpack.c.b16 %v522, %v521
      %v534 = vpack.c.b16 %v524, %v523
      %v535 = vpack.c.b16 %v526, %v525
      %v536 = vpack.c.b16 %v528, %v527
      %v537 = vpack.c.b16 %v530, %v529
      %v550 = vunpack.c.l.b16 %v327
      %v551 = vunpack.c.l.b16 %v328
      %v552 = vunpack.c.l.b16 %v329
      %v553 = vunpack.c.l.b16 %v330
      %v554 = vunpack.c.l.b16 %v331
      %v555 = vunpack.c.l.b16 %v332
      %v556 = vunpack.c.l.b16 %v333
      %v557 = vunpack.c.l.b16 %v334
      %v558 = vunpack.c.l.b16 %v335
      %v559 = vunpack.c.l.b16 %v336
      %v560 = vunpack.c.l.b16 %v337
      %v561 = vunpack.c.l.b16 %v338
      %v562 = vpack.c.b16 %v551, %v550
      %v563 = vpack.c.b16 %v553, %v552
      %v564 = vpack.c.b16 %v555, %v554
      %v565 = vpack.c.b16 %v557, %v556
      %v566 = vpack.c.b16 %v559, %v558
      %v567 = vpack.c.b16 %v561, %v560
      %v575 = vsel %vm437, %v531, 0
      %v578 = vsel %vm437, %v532, 0
      %v581 = vsel %vm437, %v533, 0
      %v584 = vsel %vm437, %v534, 0
      %v587 = vsel %vm437, %v535, 0
      %v590 = vsel %vm437, %v536, 0
      %v593 = vsel %vm437, %v537, 0
      %595 = vmatpush.bf16.msra.mxu0 0
      %596 = vmatpush.bf16.msra.mxu0 0
      %597 = vmatpush.bf16.msra.mxu0 %v567
      %598 = vmatpush.bf16.msra.mxu0 %v566
      %599 = vmatpush.bf16.msra.mxu0 %v565
      %600 = vmatpush.bf16.msra.mxu0 %v564
      %601 = vmatpush.bf16.msra.mxu0 %v563
      %602 = vmatpush.bf16.msra.mxu0 %v562
      %603 = vmatmul.bf16.gmra.mxu0 %v575
      %v604 = vpop.f32.mrf.mxu0
      %v605 = vadd.f32 %v469, %v604
      %v606 = vpop.f32.mrf.mxu0
      %v607 = vadd.f32 %v471, %v606
      %608 = vmatmul.bf16.gmra.mxu0 %v578
      %v609 = vpop.f32.mrf.mxu0
      %v610 = vadd.f32 %v474, %v609
      %v611 = vpop.f32.mrf.mxu0
      %v612 = vadd.f32 %v476, %v611
      %613 = vmatmul.bf16.gmra.mxu0 %v581
      %v614 = vpop.f32.mrf.mxu0
      %v615 = vadd.f32 %v479, %v614
      %v616 = vpop.f32.mrf.mxu0
      %v617 = vadd.f32 %v481, %v616
      %618 = vmatmul.bf16.gmra.mxu0 %v584
      %v619 = vpop.f32.mrf.mxu0
      %v620 = vadd.f32 %v484, %v619
      %v621 = vpop.f32.mrf.mxu0
      %v622 = vadd.f32 %v486, %v621
      %623 = vmatmul.bf16.gmra.mxu0 %v587
      %v624 = vpop.f32.mrf.mxu0
      %v625 = vadd.f32 %v489, %v624
      %v626 = vpop.f32.mrf.mxu0
      %v627 = vadd.f32 %v491, %v626
      %628 = vmatmul.bf16.gmra.mxu0 %v590
      %v629 = vpop.f32.mrf.mxu0
      %v630 = vadd.f32 %v494, %v629
      %v631 = vpop.f32.mrf.mxu0
      %v632 = vadd.f32 %v496, %v631
      %633 = vmatmul.bf16.gmra.mxu0 %v593
      %v634 = vpop.f32.mrf.mxu0
      %v635 = vadd.f32 %v499, %v634
      %v636 = vpop.f32.mrf.mxu0
      %v637 = vadd.f32 %v501, %v636
      %638 = vdwg.mxu0
      %v639 = vld [vmem:[%s291] sm:$0xf]
      %v640 = vld [vmem:[%s291 + $0x4] sm:$0xf]
      %v641 = vld [vmem:[%s291 + $0x8] sm:$0x1]
      %v642 = vld [vmem:[%s291 + $0xc] sm:$0xf]
      %v643 = vld [vmem:[%s291 + $0x10] sm:$0xf]
      %v644 = vld [vmem:[%s291 + $0x14] sm:$0x1]
      %v645 = vld [vmem:[%s291 + $0x18] sm:$0xf]
      %v646 = vld [vmem:[%s291 + $0x1c] sm:$0xf]
      %v647 = vld [vmem:[%s291 + $0x20] sm:$0x1]
      %v648 = vld [vmem:[%s291 + $0x24] sm:$0xf]
      %v649 = vld [vmem:[%s291 + $0x28] sm:$0xf]
      %v650 = vld [vmem:[%s291 + $0x2c] sm:$0x1]
      %v651 = vld [vmem:[%s291 + $0x30] sm:$0xf]
      %v652 = vld [vmem:[%s291 + $0x34] sm:$0xf]
      %v653 = vld [vmem:[%s291 + $0x38] sm:$0x1]
      %v654 = vld [vmem:[%s291 + $0x3c] sm:$0xf]
      %v655 = vld [vmem:[%s291 + $0x40] sm:$0xf]
      %v656 = vld [vmem:[%s291 + $0x44] sm:$0x1]
      %v657 = vld [vmem:[%s291 + $0x48] sm:$0xf]
      %v658 = vld [vmem:[%s291 + $0x4c] sm:$0xf]
      %v659 = vld [vmem:[%s291 + $0x50] sm:$0x1]
      %vm660 = vsmask.f32 3328
      %vm661 = vsmask.f32 7440
      %vm662 = vmor %vm660, %vm661
      %v664 = vshrl.u32 %v639, 16
      %v666 = vrot.slane %v664, 4
      %v667 = vshll.u32 %v639, 16
      %v669 = vrot.slane %v667, 5
      %v670 = vor.u32 %v666, %v669
      %v671 = vrot.slane %v670, 4
      %v673 = vshll.u32 %v640, 16
      %v675 = vrot.slane %v673, 5
      %v676 = vsel %vm662, %v671, %v675
      %v677 = vshrl.u32 %v640, 16
      %v679 = vrot.slane %v677, 4
      %v680 = vor.u32 %v679, %v675
      %v681 = vrot.slane %v680, 4
      %v683 = vshll.u32 %v641, 16
      %v685 = vrot.slane %v683, 5
      %v686 = vsel %vm662, %v681, %v685
      %v688 = vshrl.u32 %v642, 16
      %v690 = vrot.slane %v688, 4
      %v691 = vshll.u32 %v642, 16
      %v693 = vrot.slane %v691, 5
      %v694 = vor.u32 %v690, %v693
      %v695 = vrot.slane %v694, 4
      %v697 = vshll.u32 %v643, 16
      %v699 = vrot.slane %v697, 5
      %v700 = vsel %vm662, %v695, %v699
      %v701 = vshrl.u32 %v643, 16
      %v703 = vrot.slane %v701, 4
      %v704 = vor.u32 %v703, %v699
      %v705 = vrot.slane %v704, 4
      %v707 = vshll.u32 %v644, 16
      %v709 = vrot.slane %v707, 5
      %v710 = vsel %vm662, %v705, %v709
      %v712 = vshrl.u32 %v645, 16
      %v714 = vrot.slane %v712, 4
      %v715 = vshll.u32 %v645, 16
      %v717 = vrot.slane %v715, 5
      %v718 = vor.u32 %v714, %v717
      %v719 = vrot.slane %v718, 4
      %v721 = vshll.u32 %v646, 16
      %v723 = vrot.slane %v721, 5
      %v724 = vsel %vm662, %v719, %v723
      %v725 = vshrl.u32 %v646, 16
      %v727 = vrot.slane %v725, 4
      %v728 = vor.u32 %v727, %v723
      %v729 = vrot.slane %v728, 4
      %v731 = vshll.u32 %v647, 16
      %v733 = vrot.slane %v731, 5
      %v734 = vsel %vm662, %v729, %v733
      %v736 = vshrl.u32 %v648, 16
      %v738 = vrot.slane %v736, 4
      %v739 = vshll.u32 %v648, 16
      %v741 = vrot.slane %v739, 5
      %v742 = vor.u32 %v738, %v741
      %v743 = vrot.slane %v742, 4
      %v745 = vshll.u32 %v649, 16
      %v747 = vrot.slane %v745, 5
      %v748 = vsel %vm662, %v743, %v747
      %v749 = vshrl.u32 %v649, 16
      %v751 = vrot.slane %v749, 4
      %v752 = vor.u32 %v751, %v747
      %v753 = vrot.slane %v752, 4
      %v755 = vshll.u32 %v650, 16
      %v757 = vrot.slane %v755, 5
      %v758 = vsel %vm662, %v753, %v757
      %v760 = vshrl.u32 %v651, 16
      %v762 = vrot.slane %v760, 4
      %v763 = vshll.u32 %v651, 16
      %v765 = vrot.slane %v763, 5
      %v766 = vor.u32 %v762, %v765
      %v767 = vrot.slane %v766, 4
      %v769 = vshll.u32 %v652, 16
      %v771 = vrot.slane %v769, 5
      %v772 = vsel %vm662, %v767, %v771
      %v773 = vshrl.u32 %v652, 16
      %v775 = vrot.slane %v773, 4
      %v776 = vor.u32 %v775, %v771
      %v777 = vrot.slane %v776, 4
      %v779 = vshll.u32 %v653, 16
      %v781 = vrot.slane %v779, 5
      %v782 = vsel %vm662, %v777, %v781
      %v784 = vshrl.u32 %v654, 16
      %v786 = vrot.slane %v784, 4
      %v787 = vshll.u32 %v654, 16
      %v789 = vrot.slane %v787, 5
      %v790 = vor.u32 %v786, %v789
      %v791 = vrot.slane %v790, 4
      %v793 = vshll.u32 %v655, 16
      %v795 = vrot.slane %v793, 5
      %v796 = vsel %vm662, %v791, %v795
      %v797 = vshrl.u32 %v655, 16
      %v799 = vrot.slane %v797, 4
      %v800 = vor.u32 %v799, %v795
      %v801 = vrot.slane %v800, 4
      %v803 = vshll.u32 %v656, 16
      %v805 = vrot.slane %v803, 5
      %v806 = vsel %vm662, %v801, %v805
      %v808 = vshrl.u32 %v657, 16
      %v810 = vrot.slane %v808, 4
      %v811 = vshll.u32 %v657, 16
      %v813 = vrot.slane %v811, 5
      %v814 = vor.u32 %v810, %v813
      %v815 = vrot.slane %v814, 4
      %v817 = vshll.u32 %v658, 16
      %v819 = vrot.slane %v817, 5
      %v820 = vsel %vm662, %v815, %v819
      %v821 = vshrl.u32 %v658, 16
      %v823 = vrot.slane %v821, 4
      %v824 = vor.u32 %v823, %v819
      %v825 = vrot.slane %v824, 4
      %v827 = vshll.u32 %v659, 16
      %v829 = vrot.slane %v827, 5
      %v830 = vsel %vm662, %v825, %v829
      %s831 = scalar_lea.vmem %s4, 96
      %v832 = vld [vmem:[%s831] sm:$0xf]
      %v833 = vld [vmem:[%s831 + $0x4] sm:$0xf]
      %v834 = vld [vmem:[%s831 + $0x8] sm:$0xf]
      %v835 = vld [vmem:[%s831 + $0xc] sm:$0xf]
      %v836 = vld [vmem:[%s831 + $0x10] sm:$0xf]
      %v837 = vld [vmem:[%s831 + $0x14] sm:$0xf]
      %v838 = vld [vmem:[%s831 + $0x18] sm:$0xf]
      %v839 = vld [vmem:[%s831 + $0x1c] sm:$0xf]
      %v840 = vld [vmem:[%s831 + $0x20] sm:$0xf]
      %v841 = vld [vmem:[%s831 + $0x24] sm:$0xf]
      %v842 = vld [vmem:[%s831 + $0x28] sm:$0xf]
      %v843 = vld [vmem:[%s831 + $0x2c] sm:$0xf]
      %v844 = vunpack.c.l.b16 %v676
      %v845 = vunpack.c.l.b16 %v686
      %v846 = vunpack.c.l.b16 %v700
      %v847 = vunpack.c.l.b16 %v710
      %v848 = vunpack.c.l.b16 %v724
      %v849 = vunpack.c.l.b16 %v734
      %v850 = vunpack.c.l.b16 %v748
      %v851 = vunpack.c.l.b16 %v758
      %v852 = vunpack.c.l.b16 %v772
      %v853 = vunpack.c.l.b16 %v782
      %v854 = vunpack.c.l.b16 %v796
      %v855 = vunpack.c.l.b16 %v806
      %v856 = vunpack.c.l.b16 %v820
      %v857 = vunpack.c.l.b16 %v830
      %v858 = vpack.c.b16 %v845, %v844
      %v859 = vpack.c.b16 %v847, %v846
      %v860 = vpack.c.b16 %v849, %v848
      %v861 = vpack.c.b16 %v851, %v850
      %v862 = vpack.c.b16 %v853, %v852
      %v863 = vpack.c.b16 %v855, %v854
      %v864 = vpack.c.b16 %v857, %v856
      %v877 = vunpack.c.l.b16 %v832
      %v878 = vunpack.c.l.b16 %v833
      %v879 = vunpack.c.l.b16 %v834
      %v880 = vunpack.c.l.b16 %v835
      %v881 = vunpack.c.l.b16 %v836
      %v882 = vunpack.c.l.b16 %v837
      %v883 = vunpack.c.l.b16 %v838
      %v884 = vunpack.c.l.b16 %v839
      %v885 = vunpack.c.l.b16 %v840
      %v886 = vunpack.c.l.b16 %v841
      %v887 = vunpack.c.l.b16 %v842
      %v888 = vunpack.c.l.b16 %v843
      %v889 = vpack.c.b16 %v878, %v877
      %v890 = vpack.c.b16 %v880, %v879
      %v891 = vpack.c.b16 %v882, %v881
      %v892 = vpack.c.b16 %v884, %v883
      %v893 = vpack.c.b16 %v886, %v885
      %v894 = vpack.c.b16 %v888, %v887
      %v902 = vsel %vm437, %v858, 0
      %v905 = vsel %vm437, %v859, 0
      %v908 = vsel %vm437, %v860, 0
      %v911 = vsel %vm437, %v861, 0
      %v914 = vsel %vm437, %v862, 0
      %v917 = vsel %vm437, %v863, 0
      %v920 = vsel %vm437, %v864, 0
      %922 = vmatpush.bf16.msra.mxu0 0
      %923 = vmatpush.bf16.msra.mxu0 0
      %924 = vmatpush.bf16.msra.mxu0 %v894
      %925 = vmatpush.bf16.msra.mxu0 %v893
      %926 = vmatpush.bf16.msra.mxu0 %v892
      %927 = vmatpush.bf16.msra.mxu0 %v891
      %928 = vmatpush.bf16.msra.mxu0 %v890
      %929 = vmatpush.bf16.msra.mxu0 %v889
      %930 = vmatmul.bf16.gmra.mxu0 %v902
      %v931 = vpop.f32.mrf.mxu0
      %v932 = vadd.f32 0.0, %v931
      %v933 = vpop.f32.mrf.mxu0
      %v934 = vadd.f32 0.0, %v933
      %935 = vmatmul.bf16.gmra.mxu0 %v905
      %v936 = vpop.f32.mrf.mxu0
      %v937 = vadd.f32 0.0, %v936
      %v938 = vpop.f32.mrf.mxu0
      %v939 = vadd.f32 0.0, %v938
      %940 = vmatmul.bf16.gmra.mxu0 %v908
      %v941 = vpop.f32.mrf.mxu0
      %v942 = vadd.f32 0.0, %v941
      %v943 = vpop.f32.mrf.mxu0
      %v944 = vadd.f32 0.0, %v943
      %945 = vmatmul.bf16.gmra.mxu0 %v911
      %v946 = vpop.f32.mrf.mxu0
      %v947 = vadd.f32 0.0, %v946
      %v948 = vpop.f32.mrf.mxu0
      %v949 = vadd.f32 0.0, %v948
      %950 = vmatmul.bf16.gmra.mxu0 %v914
      %v951 = vpop.f32.mrf.mxu0
      %v952 = vadd.f32 0.0, %v951
      %v953 = vpop.f32.mrf.mxu0
      %v954 = vadd.f32 0.0, %v953
      %955 = vmatmul.bf16.gmra.mxu0 %v917
      %v956 = vpop.f32.mrf.mxu0
      %v957 = vadd.f32 0.0, %v956
      %v958 = vpop.f32.mrf.mxu0
      %v959 = vadd.f32 0.0, %v958
      %960 = vmatmul.bf16.gmra.mxu0 %v920
      %v961 = vpop.f32.mrf.mxu0
      %v962 = vadd.f32 0.0, %v961
      %v963 = vpop.f32.mrf.mxu0
      %v964 = vadd.f32 0.0, %v963
      %965 = vdwg.mxu0
      %v966 = vadd.f32 %v605, %v932
      %v967 = vadd.f32 %v607, %v934
      %v968 = vadd.f32 %v610, %v937
      %v969 = vadd.f32 %v612, %v939
      %v970 = vadd.f32 %v615, %v942
      %v971 = vadd.f32 %v617, %v944
      %v972 = vadd.f32 %v620, %v947
      %v973 = vadd.f32 %v622, %v949
      %v974 = vadd.f32 %v625, %v952
      %v975 = vadd.f32 %v627, %v954
      %v976 = vadd.f32 %v630, %v957
      %v977 = vadd.f32 %v632, %v959
      %v978 = vadd.f32 %v635, %v962
      %v979 = vadd.f32 %v637, %v964
      %v980 = vld [vmem:[%s301] sm:$0xf]
      %v981 = vld [vmem:[%s301 + $0x4] sm:$0xf]
      %v982 = vld [vmem:[%s301 + $0xc] sm:$0xf]
      %v983 = vld [vmem:[%s301 + $0x10] sm:$0xf]
      %v984 = vld [vmem:[%s301 + $0x18] sm:$0xf]
      %v985 = vld [vmem:[%s301 + $0x1c] sm:$0xf]
      %v986 = vld [vmem:[%s301 + $0x24] sm:$0xf]
      %v987 = vld [vmem:[%s301 + $0x28] sm:$0xf]
      %v988 = vld [vmem:[%s301 + $0x30] sm:$0xf]
      %v989 = vld [vmem:[%s301 + $0x34] sm:$0xf]
      %v990 = vld [vmem:[%s301 + $0x3c] sm:$0xf]
      %v991 = vld [vmem:[%s301 + $0x40] sm:$0xf]
      %v992 = vld [vmem:[%s301 + $0x48] sm:$0xf]
      %v993 = vld [vmem:[%s301 + $0x4c] sm:$0xf]
      %s994 = scalar_lea.vmem %s4, 144
      %v995 = vld [vmem:[%s994] sm:$0xf]
      %v996 = vld [vmem:[%s994 + $0x4] sm:$0xf]
      %v997 = vld [vmem:[%s994 + $0x8] sm:$0xf]
      %v998 = vld [vmem:[%s994 + $0xc] sm:$0xf]
      %v999 = vld [vmem:[%s994 + $0x10] sm:$0xf]
      %v1000 = vld [vmem:[%s994 + $0x14] sm:$0xf]
      %v1001 = vld [vmem:[%s994 + $0x18] sm:$0xf]
      %v1002 = vld [vmem:[%s994 + $0x1c] sm:$0xf]
      %v1003 = vld [vmem:[%s994 + $0x20] sm:$0xf]
      %v1004 = vld [vmem:[%s994 + $0x24] sm:$0xf]
      %v1005 = vld [vmem:[%s994 + $0x28] sm:$0xf]
      %v1006 = vld [vmem:[%s994 + $0x2c] sm:$0xf]
      %v1021 = vunpack.c.l.b16 %v980
      %v1022 = vunpack.c.l.b16 %v981
      %v1023 = vunpack.c.l.b16 %v982
      %v1024 = vunpack.c.l.b16 %v983
      %v1025 = vunpack.c.l.b16 %v984
      %v1026 = vunpack.c.l.b16 %v985
      %v1027 = vunpack.c.l.b16 %v986
      %v1028 = vunpack.c.l.b16 %v987
      %v1029 = vunpack.c.l.b16 %v988
      %v1030 = vunpack.c.l.b16 %v989
      %v1031 = vunpack.c.l.b16 %v990
      %v1032 = vunpack.c.l.b16 %v991
      %v1033 = vunpack.c.l.b16 %v992
      %v1034 = vunpack.c.l.b16 %v993
      %v1035 = vpack.c.b16 %v1022, %v1021
      %v1036 = vpack.c.b16 %v1024, %v1023
      %v1037 = vpack.c.b16 %v1026, %v1025
      %v1038 = vpack.c.b16 %v1028, %v1027
      %v1039 = vpack.c.b16 %v1030, %v1029
      %v1040 = vpack.c.b16 %v1032, %v1031
      %v1041 = vpack.c.b16 %v1034, %v1033
      %v1054 = vunpack.c.l.b16 %v995
      %v1055 = vunpack.c.l.b16 %v996
      %v1056 = vunpack.c.l.b16 %v997
      %v1057 = vunpack.c.l.b16 %v998
      %v1058 = vunpack.c.l.b16 %v999
      %v1059 = vunpack.c.l.b16 %v1000
      %v1060 = vunpack.c.l.b16 %v1001
      %v1061 = vunpack.c.l.b16 %v1002
      %v1062 = vunpack.c.l.b16 %v1003
      %v1063 = vunpack.c.l.b16 %v1004
      %v1064 = vunpack.c.l.b16 %v1005
      %v1065 = vunpack.c.l.b16 %v1006
      %v1066 = vpack.c.b16 %v1055, %v1054
      %v1067 = vpack.c.b16 %v1057, %v1056
      %v1068 = vpack.c.b16 %v1059, %v1058
      %v1069 = vpack.c.b16 %v1061, %v1060
      %v1070 = vpack.c.b16 %v1063, %v1062
      %v1071 = vpack.c.b16 %v1065, %v1064
      %v1079 = vsel %vm437, %v1035, 0
      %v1082 = vsel %vm437, %v1036, 0
      %v1085 = vsel %vm437, %v1037, 0
      %v1088 = vsel %vm437, %v1038, 0
      %v1091 = vsel %vm437, %v1039, 0
      %v1094 = vsel %vm437, %v1040, 0
      %v1097 = vsel %vm437, %v1041, 0
      %1099 = vmatpush.bf16.msra.mxu0 0
      %1100 = vmatpush.bf16.msra.mxu0 0
      %1101 = vmatpush.bf16.msra.mxu0 %v1071
      %1102 = vmatpush.bf16.msra.mxu0 %v1070
      %1103 = vmatpush.bf16.msra.mxu0 %v1069
      %1104 = vmatpush.bf16.msra.mxu0 %v1068
      %1105 = vmatpush.bf16.msra.mxu0 %v1067
      %1106 = vmatpush.bf16.msra.mxu0 %v1066
      %1107 = vmatmul.bf16.gmra.mxu0 %v1079
      %v1108 = vpop.f32.mrf.mxu0
      %v1109 = vadd.f32 0.0, %v1108
      %v1110 = vpop.f32.mrf.mxu0
      %v1111 = vadd.f32 0.0, %v1110
      %1112 = vmatmul.bf16.gmra.mxu0 %v1082
      %v1113 = vpop.f32.mrf.mxu0
      %v1114 = vadd.f32 0.0, %v1113
      %v1115 = vpop.f32.mrf.mxu0
      %v1116 = vadd.f32 0.0, %v1115
      %1117 = vmatmul.bf16.gmra.mxu0 %v1085
      %v1118 = vpop.f32.mrf.mxu0
      %v1119 = vadd.f32 0.0, %v1118
      %v1120 = vpop.f32.mrf.mxu0
      %v1121 = vadd.f32 0.0, %v1120
      %1122 = vmatmul.bf16.gmra.mxu0 %v1088
      %v1123 = vpop.f32.mrf.mxu0
      %v1124 = vadd.f32 0.0, %v1123
      %v1125 = vpop.f32.mrf.mxu0
      %v1126 = vadd.f32 0.0, %v1125
      %1127 = vmatmul.bf16.gmra.mxu0 %v1091
      %v1128 = vpop.f32.mrf.mxu0
      %v1129 = vadd.f32 0.0, %v1128
      %v1130 = vpop.f32.mrf.mxu0
      %v1131 = vadd.f32 0.0, %v1130
      %1132 = vmatmul.bf16.gmra.mxu0 %v1094
      %v1133 = vpop.f32.mrf.mxu0
      %v1134 = vadd.f32 0.0, %v1133
      %v1135 = vpop.f32.mrf.mxu0
      %v1136 = vadd.f32 0.0, %v1135
      %1137 = vmatmul.bf16.gmra.mxu0 %v1097
      %v1138 = vpop.f32.mrf.mxu0
      %v1139 = vadd.f32 0.0, %v1138
      %v1140 = vpop.f32.mrf.mxu0
      %v1141 = vadd.f32 0.0, %v1140
      %1142 = vdwg.mxu0
      %v1143 = vadd.f32 %v966, %v1109
      %v1144 = vadd.f32 %v967, %v1111
      %v1145 = vadd.f32 %v968, %v1114
      %v1146 = vadd.f32 %v969, %v1116
      %v1147 = vadd.f32 %v970, %v1119
      %v1148 = vadd.f32 %v971, %v1121
      %v1149 = vadd.f32 %v972, %v1124
      %v1150 = vadd.f32 %v973, %v1126
      %v1151 = vadd.f32 %v974, %v1129
      %v1152 = vadd.f32 %v975, %v1131
      %v1153 = vadd.f32 %v976, %v1134
      %v1154 = vadd.f32 %v977, %v1136
      %v1155 = vadd.f32 %v978, %v1139
      %v1156 = vadd.f32 %v979, %v1141
      %v1157 = vld [vmem:[%s306] sm:$0xf]
      %v1158 = vld [vmem:[%s306 + $0x4] sm:$0xf]
      %v1159 = vld [vmem:[%s306 + $0xc] sm:$0xf]
      %v1160 = vld [vmem:[%s306 + $0x10] sm:$0xf]
      %v1161 = vld [vmem:[%s306 + $0x18] sm:$0xf]
      %v1162 = vld [vmem:[%s306 + $0x1c] sm:$0xf]
      %v1163 = vld [vmem:[%s306 + $0x24] sm:$0xf]
      %v1164 = vld [vmem:[%s306 + $0x28] sm:$0xf]
      %v1165 = vld [vmem:[%s306 + $0x30] sm:$0xf]
      %v1166 = vld [vmem:[%s306 + $0x34] sm:$0xf]
      %v1167 = vld [vmem:[%s306 + $0x3c] sm:$0xf]
      %v1168 = vld [vmem:[%s306 + $0x40] sm:$0xf]
      %v1169 = vld [vmem:[%s306 + $0x48] sm:$0xf]
      %v1170 = vld [vmem:[%s306 + $0x4c] sm:$0xf]
      %s1171 = scalar_lea.vmem %s4, 192
      %v1172 = vld [vmem:[%s1171] sm:$0xf]
      %v1173 = vld [vmem:[%s1171 + $0x4] sm:$0xf]
      %v1174 = vld [vmem:[%s1171 + $0x8] sm:$0xf]
      %v1175 = vld [vmem:[%s1171 + $0xc] sm:$0xf]
      %v1176 = vld [vmem:[%s1171 + $0x10] sm:$0xf]
      %v1177 = vld [vmem:[%s1171 + $0x14] sm:$0xf]
      %v1178 = vld [vmem:[%s1171 + $0x18] sm:$0xf]
      %v1179 = vld [vmem:[%s1171 + $0x1c] sm:$0xf]
      %v1180 = vld [vmem:[%s1171 + $0x20] sm:$0xf]
      %v1181 = vld [vmem:[%s1171 + $0x24] sm:$0xf]
      %v1182 = vld [vmem:[%s1171 + $0x28] sm:$0xf]
      %v1183 = vld [vmem:[%s1171 + $0x2c] sm:$0xf]
      %v1198 = vunpack.c.l.b16 %v1157
      %v1199 = vunpack.c.l.b16 %v1158
      %v1200 = vunpack.c.l.b16 %v1159
      %v1201 = vunpack.c.l.b16 %v1160
      %v1202 = vunpack.c.l.b16 %v1161
      %v1203 = vunpack.c.l.b16 %v1162
      %v1204 = vunpack.c.l.b16 %v1163
      %v1205 = vunpack.c.l.b16 %v1164
      %v1206 = vunpack.c.l.b16 %v1165
      %v1207 = vunpack.c.l.b16 %v1166
      %v1208 = vunpack.c.l.b16 %v1167
      %v1209 = vunpack.c.l.b16 %v1168
      %v1210 = vunpack.c.l.b16 %v1169
      %v1211 = vunpack.c.l.b16 %v1170
      %v1212 = vpack.c.b16 %v1199, %v1198
      %v1213 = vpack.c.b16 %v1201, %v1200
      %v1214 = vpack.c.b16 %v1203, %v1202
      %v1215 = vpack.c.b16 %v1205, %v1204
      %v1216 = vpack.c.b16 %v1207, %v1206
      %v1217 = vpack.c.b16 %v1209, %v1208
      %v1218 = vpack.c.b16 %v1211, %v1210
      %v1231 = vunpack.c.l.b16 %v1172
      %v1232 = vunpack.c.l.b16 %v1173
      %v1233 = vunpack.c.l.b16 %v1174
      %v1234 = vunpack.c.l.b16 %v1175
      %v1235 = vunpack.c.l.b16 %v1176
      %v1236 = vunpack.c.l.b16 %v1177
      %v1237 = vunpack.c.l.b16 %v1178
      %v1238 = vunpack.c.l.b16 %v1179
      %v1239 = vunpack.c.l.b16 %v1180
      %v1240 = vunpack.c.l.b16 %v1181
      %v1241 = vunpack.c.l.b16 %v1182
      %v1242 = vunpack.c.l.b16 %v1183
      %v1243 = vpack.c.b16 %v1232, %v1231
      %v1244 = vpack.c.b16 %v1234, %v1233
      %v1245 = vpack.c.b16 %v1236, %v1235
      %v1246 = vpack.c.b16 %v1238, %v1237
      %v1247 = vpack.c.b16 %v1240, %v1239
      %v1248 = vpack.c.b16 %v1242, %v1241
      %v1256 = vsel %vm437, %v1212, 0
      %v1259 = vsel %vm437, %v1213, 0
      %v1262 = vsel %vm437, %v1214, 0
      %v1265 = vsel %vm437, %v1215, 0
      %v1268 = vsel %vm437, %v1216, 0
      %v1271 = vsel %vm437, %v1217, 0
      %v1274 = vsel %vm437, %v1218, 0
      %1276 = vmatpush.bf16.msra.mxu0 0
      %1277 = vmatpush.bf16.msra.mxu0 0
      %1278 = vmatpush.bf16.msra.mxu0 %v1248
      %1279 = vmatpush.bf16.msra.mxu0 %v1247
      %1280 = vmatpush.bf16.msra.mxu0 %v1246
      %1281 = vmatpush.bf16.msra.mxu0 %v1245
      %1282 = vmatpush.bf16.msra.mxu0 %v1244
      %1283 = vmatpush.bf16.msra.mxu0 %v1243
      %1284 = vmatmul.bf16.gmra.mxu0 %v1256
      %v1285 = vpop.f32.mrf.mxu0
      %v1286 = vadd.f32 0.0, %v1285
      %v1287 = vpop.f32.mrf.mxu0
      %v1288 = vadd.f32 0.0, %v1287
      %1289 = vmatmul.bf16.gmra.mxu0 %v1259
      %v1290 = vpop.f32.mrf.mxu0
      %v1291 = vadd.f32 0.0, %v1290
      %v1292 = vpop.f32.mrf.mxu0
      %v1293 = vadd.f32 0.0, %v1292
      %1294 = vmatmul.bf16.gmra.mxu0 %v1262
      %v1295 = vpop.f32.mrf.mxu0
      %v1296 = vadd.f32 0.0, %v1295
      %v1297 = vpop.f32.mrf.mxu0
      %v1298 = vadd.f32 0.0, %v1297
      %1299 = vmatmul.bf16.gmra.mxu0 %v1265
      %v1300 = vpop.f32.mrf.mxu0
      %v1301 = vadd.f32 0.0, %v1300
      %v1302 = vpop.f32.mrf.mxu0
      %v1303 = vadd.f32 0.0, %v1302
      %1304 = vmatmul.bf16.gmra.mxu0 %v1268
      %v1305 = vpop.f32.mrf.mxu0
      %v1306 = vadd.f32 0.0, %v1305
      %v1307 = vpop.f32.mrf.mxu0
      %v1308 = vadd.f32 0.0, %v1307
      %1309 = vmatmul.bf16.gmra.mxu0 %v1271
      %v1310 = vpop.f32.mrf.mxu0
      %v1311 = vadd.f32 0.0, %v1310
      %v1312 = vpop.f32.mrf.mxu0
      %v1313 = vadd.f32 0.0, %v1312
      %1314 = vmatmul.bf16.gmra.mxu0 %v1274
      %v1315 = vpop.f32.mrf.mxu0
      %v1316 = vadd.f32 0.0, %v1315
      %v1317 = vpop.f32.mrf.mxu0
      %v1318 = vadd.f32 0.0, %v1317
      %1319 = vdwg.mxu0
      %v1320 = vadd.f32 %v1143, %v1286
      %v1321 = vadd.f32 %v1144, %v1288
      %v1322 = vadd.f32 %v1145, %v1291
      %v1323 = vadd.f32 %v1146, %v1293
      %v1324 = vadd.f32 %v1147, %v1296
      %v1325 = vadd.f32 %v1148, %v1298
      %v1326 = vadd.f32 %v1149, %v1301
      %v1327 = vadd.f32 %v1150, %v1303
      %v1328 = vadd.f32 %v1151, %v1306
      %v1329 = vadd.f32 %v1152, %v1308
      %v1330 = vadd.f32 %v1153, %v1311
      %v1331 = vadd.f32 %v1154, %v1313
      %v1332 = vadd.f32 %v1155, %v1316
      %v1333 = vadd.f32 %v1156, %v1318
      %v1334 = vld [vmem:[%s301] sm:$0xf]
      %v1335 = vld [vmem:[%s301 + $0x4] sm:$0xf]
      %v1336 = vld [vmem:[%s301 + $0x8] sm:$0x1]
      %v1337 = vld [vmem:[%s301 + $0xc] sm:$0xf]
      %v1338 = vld [vmem:[%s301 + $0x10] sm:$0xf]
      %v1339 = vld [vmem:[%s301 + $0x14] sm:$0x1]
      %v1340 = vld [vmem:[%s301 + $0x18] sm:$0xf]
      %v1341 = vld [vmem:[%s301 + $0x1c] sm:$0xf]
      %v1342 = vld [vmem:[%s301 + $0x20] sm:$0x1]
      %v1343 = vld [vmem:[%s301 + $0x24] sm:$0xf]
      %v1344 = vld [vmem:[%s301 + $0x28] sm:$0xf]
      %v1345 = vld [vmem:[%s301 + $0x2c] sm:$0x1]
      %v1346 = vld [vmem:[%s301 + $0x30] sm:$0xf]
      %v1347 = vld [vmem:[%s301 + $0x34] sm:$0xf]
      %v1348 = vld [vmem:[%s301 + $0x38] sm:$0x1]
      %v1349 = vld [vmem:[%s301 + $0x3c] sm:$0xf]
      %v1350 = vld [vmem:[%s301 + $0x40] sm:$0xf]
      %v1351 = vld [vmem:[%s301 + $0x44] sm:$0x1]
      %v1352 = vld [vmem:[%s301 + $0x48] sm:$0xf]
      %v1353 = vld [vmem:[%s301 + $0x4c] sm:$0xf]
      %v1354 = vld [vmem:[%s301 + $0x50] sm:$0x1]
      %v1356 = vshrl.u32 %v1334, 16
      %v1358 = vrot.slane %v1356, 4
      %v1359 = vshll.u32 %v1334, 16
      %v1361 = vrot.slane %v1359, 5
      %v1362 = vor.u32 %v1358, %v1361
      %v1363 = vrot.slane %v1362, 4
      %v1365 = vshll.u32 %v1335, 16
      %v1367 = vrot.slane %v1365, 5
      %v1368 = vsel %vm662, %v1363, %v1367
      %v1369 = vshrl.u32 %v1335, 16
      %v1371 = vrot.slane %v1369, 4
      %v1372 = vor.u32 %v1371, %v1367
      %v1373 = vrot.slane %v1372, 4
      %v1375 = vshll.u32 %v1336, 16
      %v1377 = vrot.slane %v1375, 5
      %v1378 = vsel %vm662, %v1373, %v1377
      %v1380 = vshrl.u32 %v1337, 16
      %v1382 = vrot.slane %v1380, 4
      %v1383 = vshll.u32 %v1337, 16
      %v1385 = vrot.slane %v1383, 5
      %v1386 = vor.u32 %v1382, %v1385
      %v1387 = vrot.slane %v1386, 4
      %v1389 = vshll.u32 %v1338, 16
      %v1391 = vrot.slane %v1389, 5
      %v1392 = vsel %vm662, %v1387, %v1391
      %v1393 = vshrl.u32 %v1338, 16
      %v1395 = vrot.slane %v1393, 4
      %v1396 = vor.u32 %v1395, %v1391
      %v1397 = vrot.slane %v1396, 4
      %v1399 = vshll.u32 %v1339, 16
      %v1401 = vrot.slane %v1399, 5
      %v1402 = vsel %vm662, %v1397, %v1401
      %v1404 = vshrl.u32 %v1340, 16
      %v1406 = vrot.slane %v1404, 4
      %v1407 = vshll.u32 %v1340, 16
      %v1409 = vrot.slane %v1407, 5
      %v1410 = vor.u32 %v1406, %v1409
      %v1411 = vrot.slane %v1410, 4
      %v1413 = vshll.u32 %v1341, 16
      %v1415 = vrot.slane %v1413, 5
      %v1416 = vsel %vm662, %v1411, %v1415
      %v1417 = vshrl.u32 %v1341, 16
      %v1419 = vrot.slane %v1417, 4
      %v1420 = vor.u32 %v1419, %v1415
      %v1421 = vrot.slane %v1420, 4
      %v1423 = vshll.u32 %v1342, 16
      %v1425 = vrot.slane %v1423, 5
      %v1426 = vsel %vm662, %v1421, %v1425
      %v1428 = vshrl.u32 %v1343, 16
      %v1430 = vrot.slane %v1428, 4
      %v1431 = vshll.u32 %v1343, 16
      %v1433 = vrot.slane %v1431, 5
      %v1434 = vor.u32 %v1430, %v1433
      %v1435 = vrot.slane %v1434, 4
      %v1437 = vshll.u32 %v1344, 16
      %v1439 = vrot.slane %v1437, 5
      %v1440 = vsel %vm662, %v1435, %v1439
      %v1441 = vshrl.u32 %v1344, 16
      %v1443 = vrot.slane %v1441, 4
      %v1444 = vor.u32 %v1443, %v1439
      %v1445 = vrot.slane %v1444, 4
      %v1447 = vshll.u32 %v1345, 16
      %v1449 = vrot.slane %v1447, 5
      %v1450 = vsel %vm662, %v1445, %v1449
      %v1452 = vshrl.u32 %v1346, 16
      %v1454 = vrot.slane %v1452, 4
      %v1455 = vshll.u32 %v1346, 16
      %v1457 = vrot.slane %v1455, 5
      %v1458 = vor.u32 %v1454, %v1457
      %v1459 = vrot.slane %v1458, 4
      %v1461 = vshll.u32 %v1347, 16
      %v1463 = vrot.slane %v1461, 5
      %v1464 = vsel %vm662, %v1459, %v1463
      %v1465 = vshrl.u32 %v1347, 16
      %v1467 = vrot.slane %v1465, 4
      %v1468 = vor.u32 %v1467, %v1463
      %v1469 = vrot.slane %v1468, 4
      %v1471 = vshll.u32 %v1348, 16
      %v1473 = vrot.slane %v1471, 5
      %v1474 = vsel %vm662, %v1469, %v1473
      %v1476 = vshrl.u32 %v1349, 16
      %v1478 = vrot.slane %v1476, 4
      %v1479 = vshll.u32 %v1349, 16
      %v1481 = vrot.slane %v1479, 5
      %v1482 = vor.u32 %v1478, %v1481
      %v1483 = vrot.slane %v1482, 4
      %v1485 = vshll.u32 %v1350, 16
      %v1487 = vrot.slane %v1485, 5
      %v1488 = vsel %vm662, %v1483, %v1487
      %v1489 = vshrl.u32 %v1350, 16
      %v1491 = vrot.slane %v1489, 4
      %v1492 = vor.u32 %v1491, %v1487
      %v1493 = vrot.slane %v1492, 4
      %v1495 = vshll.u32 %v1351, 16
      %v1497 = vrot.slane %v1495, 5
      %v1498 = vsel %vm662, %v1493, %v1497
      %v1500 = vshrl.u32 %v1352, 16
      %v1502 = vrot.slane %v1500, 4
      %v1503 = vshll.u32 %v1352, 16
      %v1505 = vrot.slane %v1503, 5
      %v1506 = vor.u32 %v1502, %v1505
      %v1507 = vrot.slane %v1506, 4
      %v1509 = vshll.u32 %v1353, 16
      %v1511 = vrot.slane %v1509, 5
      %v1512 = vsel %vm662, %v1507, %v1511
      %v1513 = vshrl.u32 %v1353, 16
      %v1515 = vrot.slane %v1513, 4
      %v1516 = vor.u32 %v1515, %v1511
      %v1517 = vrot.slane %v1516, 4
      %v1519 = vshll.u32 %v1354, 16
      %v1521 = vrot.slane %v1519, 5
      %v1522 = vsel %vm662, %v1517, %v1521
      %s1523 = scalar_lea.vmem %s4, 240
      %v1524 = vld [vmem:[%s1523] sm:$0xf]
      %v1525 = vld [vmem:[%s1523 + $0x4] sm:$0xf]
      %v1526 = vld [vmem:[%s1523 + $0x8] sm:$0xf]
      %v1527 = vld [vmem:[%s1523 + $0xc] sm:$0xf]
      %v1528 = vld [vmem:[%s1523 + $0x10] sm:$0xf]
      %v1529 = vld [vmem:[%s1523 + $0x14] sm:$0xf]
      %v1530 = vld [vmem:[%s1523 + $0x18] sm:$0xf]
      %v1531 = vld [vmem:[%s1523 + $0x1c] sm:$0xf]
      %v1532 = vld [vmem:[%s1523 + $0x20] sm:$0xf]
      %v1533 = vld [vmem:[%s1523 + $0x24] sm:$0xf]
      %v1534 = vld [vmem:[%s1523 + $0x28] sm:$0xf]
      %v1535 = vld [vmem:[%s1523 + $0x2c] sm:$0xf]
      %v1536 = vunpack.c.l.b16 %v1368
      %v1537 = vunpack.c.l.b16 %v1378
      %v1538 = vunpack.c.l.b16 %v1392
      %v1539 = vunpack.c.l.b16 %v1402
      %v1540 = vunpack.c.l.b16 %v1416
      %v1541 = vunpack.c.l.b16 %v1426
      %v1542 = vunpack.c.l.b16 %v1440
      %v1543 = vunpack.c.l.b16 %v1450
      %v1544 = vunpack.c.l.b16 %v1464
      %v1545 = vunpack.c.l.b16 %v1474
      %v1546 = vunpack.c.l.b16 %v1488
      %v1547 = vunpack.c.l.b16 %v1498
      %v1548 = vunpack.c.l.b16 %v1512
      %v1549 = vunpack.c.l.b16 %v1522
      %v1550 = vpack.c.b16 %v1537, %v1536
      %v1551 = vpack.c.b16 %v1539, %v1538
      %v1552 = vpack.c.b16 %v1541, %v1540
      %v1553 = vpack.c.b16 %v1543, %v1542
      %v1554 = vpack.c.b16 %v1545, %v1544
      %v1555 = vpack.c.b16 %v1547, %v1546
      %v1556 = vpack.c.b16 %v1549, %v1548
      %v1569 = vunpack.c.l.b16 %v1524
      %v1570 = vunpack.c.l.b16 %v1525
      %v1571 = vunpack.c.l.b16 %v1526
      %v1572 = vunpack.c.l.b16 %v1527
      %v1573 = vunpack.c.l.b16 %v1528
      %v1574 = vunpack.c.l.b16 %v1529
      %v1575 = vunpack.c.l.b16 %v1530
      %v1576 = vunpack.c.l.b16 %v1531
      %v1577 = vunpack.c.l.b16 %v1532
      %v1578 = vunpack.c.l.b16 %v1533
      %v1579 = vunpack.c.l.b16 %v1534
      %v1580 = vunpack.c.l.b16 %v1535
      %v1581 = vpack.c.b16 %v1570, %v1569
      %v1582 = vpack.c.b16 %v1572, %v1571
      %v1583 = vpack.c.b16 %v1574, %v1573
      %v1584 = vpack.c.b16 %v1576, %v1575
      %v1585 = vpack.c.b16 %v1578, %v1577
      %v1586 = vpack.c.b16 %v1580, %v1579
      %v1594 = vsel %vm437, %v1550, 0
      %v1597 = vsel %vm437, %v1551, 0
      %v1600 = vsel %vm437, %v1552, 0
      %v1603 = vsel %vm437, %v1553, 0
      %v1606 = vsel %vm437, %v1554, 0
      %v1609 = vsel %vm437, %v1555, 0
      %v1612 = vsel %vm437, %v1556, 0
      %1614 = vmatpush.bf16.msra.mxu0 0
      %1615 = vmatpush.bf16.msra.mxu0 0
      %1616 = vmatpush.bf16.msra.mxu0 %v1586
      %1617 = vmatpush.bf16.msra.mxu0 %v1585
      %1618 = vmatpush.bf16.msra.mxu0 %v1584
      %1619 = vmatpush.bf16.msra.mxu0 %v1583
      %1620 = vmatpush.bf16.msra.mxu0 %v1582
      %1621 = vmatpush.bf16.msra.mxu0 %v1581
      %1622 = vmatmul.bf16.gmra.mxu0 %v1594
      %v1623 = vpop.f32.mrf.mxu0
      %v1624 = vadd.f32 0.0, %v1623
      %v1625 = vpop.f32.mrf.mxu0
      %v1626 = vadd.f32 0.0, %v1625
      %1627 = vmatmul.bf16.gmra.mxu0 %v1597
      %v1628 = vpop.f32.mrf.mxu0
      %v1629 = vadd.f32 0.0, %v1628
      %v1630 = vpop.f32.mrf.mxu0
      %v1631 = vadd.f32 0.0, %v1630
      %1632 = vmatmul.bf16.gmra.mxu0 %v1600
      %v1633 = vpop.f32.mrf.mxu0
      %v1634 = vadd.f32 0.0, %v1633
      %v1635 = vpop.f32.mrf.mxu0
      %v1636 = vadd.f32 0.0, %v1635
      %1637 = vmatmul.bf16.gmra.mxu0 %v1603
      %v1638 = vpop.f32.mrf.mxu0
      %v1639 = vadd.f32 0.0, %v1638
      %v1640 = vpop.f32.mrf.mxu0
      %v1641 = vadd.f32 0.0, %v1640
      %1642 = vmatmul.bf16.gmra.mxu0 %v1606
      %v1643 = vpop.f32.mrf.mxu0
      %v1644 = vadd.f32 0.0, %v1643
      %v1645 = vpop.f32.mrf.mxu0
      %v1646 = vadd.f32 0.0, %v1645
      %1647 = vmatmul.bf16.gmra.mxu0 %v1609
      %v1648 = vpop.f32.mrf.mxu0
      %v1649 = vadd.f32 0.0, %v1648
      %v1650 = vpop.f32.mrf.mxu0
      %v1651 = vadd.f32 0.0, %v1650
      %1652 = vmatmul.bf16.gmra.mxu0 %v1612
      %v1653 = vpop.f32.mrf.mxu0
      %v1654 = vadd.f32 0.0, %v1653
      %v1655 = vpop.f32.mrf.mxu0
      %v1656 = vadd.f32 0.0, %v1655
      %1657 = vdwg.mxu0
      %v1658 = vadd.f32 %v1320, %v1624
      %v1659 = vadd.f32 %v1321, %v1626
      %v1660 = vadd.f32 %v1322, %v1629
      %v1661 = vadd.f32 %v1323, %v1631
      %v1662 = vadd.f32 %v1324, %v1634
      %v1663 = vadd.f32 %v1325, %v1636
      %v1664 = vadd.f32 %v1326, %v1639
      %v1665 = vadd.f32 %v1327, %v1641
      %v1666 = vadd.f32 %v1328, %v1644
      %v1667 = vadd.f32 %v1329, %v1646
      %v1668 = vadd.f32 %v1330, %v1649
      %v1669 = vadd.f32 %v1331, %v1651
      %v1670 = vadd.f32 %v1332, %v1654
      %v1671 = vadd.f32 %v1333, %v1656
      %s1672 = scalar_lea.vmem %s291, 12
      %v1673 = vld [vmem:[%s1672] sm:$0xf]
      %v1674 = vld [vmem:[%s1672 + $0x4] sm:$0xf]
      %v1675 = vld [vmem:[%s1672 + $0xc] sm:$0xf]
      %v1676 = vld [vmem:[%s1672 + $0x10] sm:$0xf]
      %v1677 = vld [vmem:[%s1672 + $0x18] sm:$0xf]
      %v1678 = vld [vmem:[%s1672 + $0x1c] sm:$0xf]
      %v1679 = vld [vmem:[%s1672 + $0x24] sm:$0xf]
      %v1680 = vld [vmem:[%s1672 + $0x28] sm:$0xf]
      %v1681 = vld [vmem:[%s1672 + $0x30] sm:$0xf]
      %v1682 = vld [vmem:[%s1672 + $0x34] sm:$0xf]
      %v1683 = vld [vmem:[%s1672 + $0x3c] sm:$0xf]
      %v1684 = vld [vmem:[%s1672 + $0x40] sm:$0xf]
      %v1685 = vld [vmem:[%s1672 + $0x48] sm:$0xf]
      %v1686 = vld [vmem:[%s1672 + $0x4c] sm:$0xf]
      %s1687 = scalar_lea.vmem %s4, 288
      %v1688 = vld [vmem:[%s1687] sm:$0xf]
      %v1689 = vld [vmem:[%s1687 + $0x4] sm:$0xf]
      %v1690 = vld [vmem:[%s1687 + $0x8] sm:$0xf]
      %v1691 = vld [vmem:[%s1687 + $0xc] sm:$0xf]
      %v1692 = vld [vmem:[%s1687 + $0x10] sm:$0xf]
      %v1693 = vld [vmem:[%s1687 + $0x14] sm:$0xf]
      %v1694 = vld [vmem:[%s1687 + $0x18] sm:$0xf]
      %v1695 = vld [vmem:[%s1687 + $0x1c] sm:$0xf]
      %v1696 = vld [vmem:[%s1687 + $0x20] sm:$0xf]
      %v1697 = vld [vmem:[%s1687 + $0x24] sm:$0xf]
      %v1698 = vld [vmem:[%s1687 + $0x28] sm:$0xf]
      %v1699 = vld [vmem:[%s1687 + $0x2c] sm:$0xf]
      %v1714 = vunpack.c.l.b16 %v1673
      %v1715 = vunpack.c.l.b16 %v1674
      %v1716 = vunpack.c.l.b16 %v1675
      %v1717 = vunpack.c.l.b16 %v1676
      %v1718 = vunpack.c.l.b16 %v1677
      %v1719 = vunpack.c.l.b16 %v1678
      %v1720 = vunpack.c.l.b16 %v1679
      %v1721 = vunpack.c.l.b16 %v1680
      %v1722 = vunpack.c.l.b16 %v1681
      %v1723 = vunpack.c.l.b16 %v1682
      %v1724 = vunpack.c.l.b16 %v1683
      %v1725 = vunpack.c.l.b16 %v1684
      %v1726 = vunpack.c.l.b16 %v1685
      %v1727 = vunpack.c.l.b16 %v1686
      %v1728 = vpack.c.b16 %v1715, %v1714
      %v1729 = vpack.c.b16 %v1717, %v1716
      %v1730 = vpack.c.b16 %v1719, %v1718
      %v1731 = vpack.c.b16 %v1721, %v1720
      %v1732 = vpack.c.b16 %v1723, %v1722
      %v1733 = vpack.c.b16 %v1725, %v1724
      %v1734 = vpack.c.b16 %v1727, %v1726
      %v1747 = vunpack.c.l.b16 %v1688
      %v1748 = vunpack.c.l.b16 %v1689
      %v1749 = vunpack.c.l.b16 %v1690
      %v1750 = vunpack.c.l.b16 %v1691
      %v1751 = vunpack.c.l.b16 %v1692
      %v1752 = vunpack.c.l.b16 %v1693
      %v1753 = vunpack.c.l.b16 %v1694
      %v1754 = vunpack.c.l.b16 %v1695
      %v1755 = vunpack.c.l.b16 %v1696
      %v1756 = vunpack.c.l.b16 %v1697
      %v1757 = vunpack.c.l.b16 %v1698
      %v1758 = vunpack.c.l.b16 %v1699
      %v1759 = vpack.c.b16 %v1748, %v1747
      %v1760 = vpack.c.b16 %v1750, %v1749
      %v1761 = vpack.c.b16 %v1752, %v1751
      %v1762 = vpack.c.b16 %v1754, %v1753
      %v1763 = vpack.c.b16 %v1756, %v1755
      %v1764 = vpack.c.b16 %v1758, %v1757
      %v1772 = vsel %vm437, %v1728, 0
      %v1775 = vsel %vm437, %v1729, 0
      %v1778 = vsel %vm437, %v1730, 0
      %v1781 = vsel %vm437, %v1731, 0
      %v1784 = vsel %vm437, %v1732, 0
      %v1787 = vsel %vm437, %v1733, 0
      %v1790 = vsel %vm437, %v1734, 0
      %1792 = vmatpush.bf16.msra.mxu0 0
      %1793 = vmatpush.bf16.msra.mxu0 0
      %1794 = vmatpush.bf16.msra.mxu0 %v1764
      %1795 = vmatpush.bf16.msra.mxu0 %v1763
      %1796 = vmatpush.bf16.msra.mxu0 %v1762
      %1797 = vmatpush.bf16.msra.mxu0 %v1761
      %1798 = vmatpush.bf16.msra.mxu0 %v1760
      %1799 = vmatpush.bf16.msra.mxu0 %v1759
      %1800 = vmatmul.bf16.gmra.mxu0 %v1772
      %v1801 = vpop.f32.mrf.mxu0
      %v1802 = vadd.f32 0.0, %v1801
      %v1803 = vpop.f32.mrf.mxu0
      %v1804 = vadd.f32 0.0, %v1803
      %1805 = vmatmul.bf16.gmra.mxu0 %v1775
      %v1806 = vpop.f32.mrf.mxu0
      %v1807 = vadd.f32 0.0, %v1806
      %v1808 = vpop.f32.mrf.mxu0
      %v1809 = vadd.f32 0.0, %v1808
      %1810 = vmatmul.bf16.gmra.mxu0 %v1778
      %v1811 = vpop.f32.mrf.mxu0
      %v1812 = vadd.f32 0.0, %v1811
      %v1813 = vpop.f32.mrf.mxu0
      %v1814 = vadd.f32 0.0, %v1813
      %1815 = vmatmul.bf16.gmra.mxu0 %v1781
      %v1816 = vpop.f32.mrf.mxu0
      %v1817 = vadd.f32 0.0, %v1816
      %v1818 = vpop.f32.mrf.mxu0
      %v1819 = vadd.f32 0.0, %v1818
      %1820 = vmatmul.bf16.gmra.mxu0 %v1784
      %v1821 = vpop.f32.mrf.mxu0
      %v1822 = vadd.f32 0.0, %v1821
      %v1823 = vpop.f32.mrf.mxu0
      %v1824 = vadd.f32 0.0, %v1823
      %1825 = vmatmul.bf16.gmra.mxu0 %v1787
      %v1826 = vpop.f32.mrf.mxu0
      %v1827 = vadd.f32 0.0, %v1826
      %v1828 = vpop.f32.mrf.mxu0
      %v1829 = vadd.f32 0.0, %v1828
      %1830 = vmatmul.bf16.gmra.mxu0 %v1790
      %v1831 = vpop.f32.mrf.mxu0
      %v1832 = vadd.f32 0.0, %v1831
      %v1833 = vpop.f32.mrf.mxu0
      %v1834 = vadd.f32 0.0, %v1833
      %1835 = vdwg.mxu0
      %v1836 = vadd.f32 %v1658, %v1802
      %v1837 = vadd.f32 %v1659, %v1804
      %v1838 = vadd.f32 %v1660, %v1807
      %v1839 = vadd.f32 %v1661, %v1809
      %v1840 = vadd.f32 %v1662, %v1812
      %v1841 = vadd.f32 %v1663, %v1814
      %v1842 = vadd.f32 %v1664, %v1817
      %v1843 = vadd.f32 %v1665, %v1819
      %v1844 = vadd.f32 %v1666, %v1822
      %v1845 = vadd.f32 %v1667, %v1824
      %v1846 = vadd.f32 %v1668, %v1827
      %v1847 = vadd.f32 %v1669, %v1829
      %v1848 = vadd.f32 %v1670, %v1832
      %v1849 = vadd.f32 %v1671, %v1834
      %s1850 = scalar_lea.vmem %s296, 12
      %v1851 = vld [vmem:[%s1850] sm:$0xf]
      %v1852 = vld [vmem:[%s1850 + $0x4] sm:$0xf]
      %v1853 = vld [vmem:[%s1850 + $0xc] sm:$0xf]
      %v1854 = vld [vmem:[%s1850 + $0x10] sm:$0xf]
      %v1855 = vld [vmem:[%s1850 + $0x18] sm:$0xf]
      %v1856 = vld [vmem:[%s1850 + $0x1c] sm:$0xf]
      %v1857 = vld [vmem:[%s1850 + $0x24] sm:$0xf]
      %v1858 = vld [vmem:[%s1850 + $0x28] sm:$0xf]
      %v1859 = vld [vmem:[%s1850 + $0x30] sm:$0xf]
      %v1860 = vld [vmem:[%s1850 + $0x34] sm:$0xf]
      %v1861 = vld [vmem:[%s1850 + $0x3c] sm:$0xf]
      %v1862 = vld [vmem:[%s1850 + $0x40] sm:$0xf]
      %v1863 = vld [vmem:[%s1850 + $0x48] sm:$0xf]
      %v1864 = vld [vmem:[%s1850 + $0x4c] sm:$0xf]
      %s1865 = scalar_lea.vmem %s4, 336
      %v1866 = vld [vmem:[%s1865] sm:$0xf]
      %v1867 = vld [vmem:[%s1865 + $0x4] sm:$0xf]
      %v1868 = vld [vmem:[%s1865 + $0x8] sm:$0xf]
      %v1869 = vld [vmem:[%s1865 + $0xc] sm:$0xf]
      %v1870 = vld [vmem:[%s1865 + $0x10] sm:$0xf]
      %v1871 = vld [vmem:[%s1865 + $0x14] sm:$0xf]
      %v1872 = vld [vmem:[%s1865 + $0x18] sm:$0xf]
      %v1873 = vld [vmem:[%s1865 + $0x1c] sm:$0xf]
      %v1874 = vld [vmem:[%s1865 + $0x20] sm:$0xf]
      %v1875 = vld [vmem:[%s1865 + $0x24] sm:$0xf]
      %v1876 = vld [vmem:[%s1865 + $0x28] sm:$0xf]
      %v1877 = vld [vmem:[%s1865 + $0x2c] sm:$0xf]
      %v1892 = vunpack.c.l.b16 %v1851
      %v1893 = vunpack.c.l.b16 %v1852
      %v1894 = vunpack.c.l.b16 %v1853
      %v1895 = vunpack.c.l.b16 %v1854
      %v1896 = vunpack.c.l.b16 %v1855
      %v1897 = vunpack.c.l.b16 %v1856
      %v1898 = vunpack.c.l.b16 %v1857
      %v1899 = vunpack.c.l.b16 %v1858
      %v1900 = vunpack.c.l.b16 %v1859
      %v1901 = vunpack.c.l.b16 %v1860
      %v1902 = vunpack.c.l.b16 %v1861
      %v1903 = vunpack.c.l.b16 %v1862
      %v1904 = vunpack.c.l.b16 %v1863
      %v1905 = vunpack.c.l.b16 %v1864
      %v1906 = vpack.c.b16 %v1893, %v1892
      %v1907 = vpack.c.b16 %v1895, %v1894
      %v1908 = vpack.c.b16 %v1897, %v1896
      %v1909 = vpack.c.b16 %v1899, %v1898
      %v1910 = vpack.c.b16 %v1901, %v1900
      %v1911 = vpack.c.b16 %v1903, %v1902
      %v1912 = vpack.c.b16 %v1905, %v1904
      %v1925 = vunpack.c.l.b16 %v1866
      %v1926 = vunpack.c.l.b16 %v1867
      %v1927 = vunpack.c.l.b16 %v1868
      %v1928 = vunpack.c.l.b16 %v1869
      %v1929 = vunpack.c.l.b16 %v1870
      %v1930 = vunpack.c.l.b16 %v1871
      %v1931 = vunpack.c.l.b16 %v1872
      %v1932 = vunpack.c.l.b16 %v1873
      %v1933 = vunpack.c.l.b16 %v1874
      %v1934 = vunpack.c.l.b16 %v1875
      %v1935 = vunpack.c.l.b16 %v1876
      %v1936 = vunpack.c.l.b16 %v1877
      %v1937 = vpack.c.b16 %v1926, %v1925
      %v1938 = vpack.c.b16 %v1928, %v1927
      %v1939 = vpack.c.b16 %v1930, %v1929
      %v1940 = vpack.c.b16 %v1932, %v1931
      %v1941 = vpack.c.b16 %v1934, %v1933
      %v1942 = vpack.c.b16 %v1936, %v1935
      %v1950 = vsel %vm437, %v1906, 0
      %v1953 = vsel %vm437, %v1907, 0
      %v1956 = vsel %vm437, %v1908, 0
      %v1959 = vsel %vm437, %v1909, 0
      %v1962 = vsel %vm437, %v1910, 0
      %v1965 = vsel %vm437, %v1911, 0
      %v1968 = vsel %vm437, %v1912, 0
      %1970 = vmatpush.bf16.msra.mxu0 0
      %1971 = vmatpush.bf16.msra.mxu0 0
      %1972 = vmatpush.bf16.msra.mxu0 %v1942
      %1973 = vmatpush.bf16.msra.mxu0 %v1941
      %1974 = vmatpush.bf16.msra.mxu0 %v1940
      %1975 = vmatpush.bf16.msra.mxu0 %v1939
      %1976 = vmatpush.bf16.msra.mxu0 %v1938
      %1977 = vmatpush.bf16.msra.mxu0 %v1937
      %1978 = vmatmul.bf16.gmra.mxu0 %v1950
      %v1979 = vpop.f32.mrf.mxu0
      %v1980 = vadd.f32 0.0, %v1979
      %v1981 = vpop.f32.mrf.mxu0
      %v1982 = vadd.f32 0.0, %v1981
      %1983 = vmatmul.bf16.gmra.mxu0 %v1953
      %v1984 = vpop.f32.mrf.mxu0
      %v1985 = vadd.f32 0.0, %v1984
      %v1986 = vpop.f32.mrf.mxu0
      %v1987 = vadd.f32 0.0, %v1986
      %1988 = vmatmul.bf16.gmra.mxu0 %v1956
      %v1989 = vpop.f32.mrf.mxu0
      %v1990 = vadd.f32 0.0, %v1989
      %v1991 = vpop.f32.mrf.mxu0
      %v1992 = vadd.f32 0.0, %v1991
      %1993 = vmatmul.bf16.gmra.mxu0 %v1959
      %v1994 = vpop.f32.mrf.mxu0
      %v1995 = vadd.f32 0.0, %v1994
      %v1996 = vpop.f32.mrf.mxu0
      %v1997 = vadd.f32 0.0, %v1996
      %1998 = vmatmul.bf16.gmra.mxu0 %v1962
      %v1999 = vpop.f32.mrf.mxu0
      %v2000 = vadd.f32 0.0, %v1999
      %v2001 = vpop.f32.mrf.mxu0
      %v2002 = vadd.f32 0.0, %v2001
      %2003 = vmatmul.bf16.gmra.mxu0 %v1965
      %v2004 = vpop.f32.mrf.mxu0
      %v2005 = vadd.f32 0.0, %v2004
      %v2006 = vpop.f32.mrf.mxu0
      %v2007 = vadd.f32 0.0, %v2006
      %2008 = vmatmul.bf16.gmra.mxu0 %v1968
      %v2009 = vpop.f32.mrf.mxu0
      %v2010 = vadd.f32 0.0, %v2009
      %v2011 = vpop.f32.mrf.mxu0
      %v2012 = vadd.f32 0.0, %v2011
      %2013 = vdwg.mxu0
      %v2014 = vadd.f32 %v1836, %v1980
      %v2015 = vadd.f32 %v1837, %v1982
      %v2016 = vadd.f32 %v1838, %v1985
      %v2017 = vadd.f32 %v1839, %v1987
      %v2018 = vadd.f32 %v1840, %v1990
      %v2019 = vadd.f32 %v1841, %v1992
      %v2020 = vadd.f32 %v1842, %v1995
      %v2021 = vadd.f32 %v1843, %v1997
      %v2022 = vadd.f32 %v1844, %v2000
      %v2023 = vadd.f32 %v1845, %v2002
      %v2024 = vadd.f32 %v1846, %v2005
      %v2025 = vadd.f32 %v1847, %v2007
      %v2026 = vadd.f32 %v1848, %v2010
      %v2027 = vadd.f32 %v1849, %v2012
      %v2028 = vld [vmem:[%s1672] sm:$0xf]
      %v2029 = vld [vmem:[%s1672 + $0x4] sm:$0xf]
      %v2030 = vld [vmem:[%s1672 + $0x8] sm:$0x1]
      %v2031 = vld [vmem:[%s1672 + $0xc] sm:$0xf]
      %v2032 = vld [vmem:[%s1672 + $0x10] sm:$0xf]
      %v2033 = vld [vmem:[%s1672 + $0x14] sm:$0x1]
      %v2034 = vld [vmem:[%s1672 + $0x18] sm:$0xf]
      %v2035 = vld [vmem:[%s1672 + $0x1c] sm:$0xf]
      %v2036 = vld [vmem:[%s1672 + $0x20] sm:$0x1]
      %v2037 = vld [vmem:[%s1672 + $0x24] sm:$0xf]
      %v2038 = vld [vmem:[%s1672 + $0x28] sm:$0xf]
      %v2039 = vld [vmem:[%s1672 + $0x2c] sm:$0x1]
      %v2040 = vld [vmem:[%s1672 + $0x30] sm:$0xf]
      %v2041 = vld [vmem:[%s1672 + $0x34] sm:$0xf]
      %v2042 = vld [vmem:[%s1672 + $0x38] sm:$0x1]
      %v2043 = vld [vmem:[%s1672 + $0x3c] sm:$0xf]
      %v2044 = vld [vmem:[%s1672 + $0x40] sm:$0xf]
      %v2045 = vld [vmem:[%s1672 + $0x44] sm:$0x1]
      %v2046 = vld [vmem:[%s1672 + $0x48] sm:$0xf]
      %v2047 = vld [vmem:[%s1672 + $0x4c] sm:$0xf]
      %v2048 = vld [vmem:[%s1672 + $0x50] sm:$0x1]
      %v2050 = vshrl.u32 %v2028, 16
      %v2052 = vrot.slane %v2050, 4
      %v2053 = vshll.u32 %v2028, 16
      %v2055 = vrot.slane %v2053, 5
      %v2056 = vor.u32 %v2052, %v2055
      %v2057 = vrot.slane %v2056, 4
      %v2059 = vshll.u32 %v2029, 16
      %v2061 = vrot.slane %v2059, 5
      %v2062 = vsel %vm662, %v2057, %v2061
      %v2063 = vshrl.u32 %v2029, 16
      %v2065 = vrot.slane %v2063, 4
      %v2066 = vor.u32 %v2065, %v2061
      %v2067 = vrot.slane %v2066, 4
      %v2069 = vshll.u32 %v2030, 16
      %v2071 = vrot.slane %v2069, 5
      %v2072 = vsel %vm662, %v2067, %v2071
      %v2074 = vshrl.u32 %v2031, 16
      %v2076 = vrot.slane %v2074, 4
      %v2077 = vshll.u32 %v2031, 16
      %v2079 = vrot.slane %v2077, 5
      %v2080 = vor.u32 %v2076, %v2079
      %v2081 = vrot.slane %v2080, 4
      %v2083 = vshll.u32 %v2032, 16
      %v2085 = vrot.slane %v2083, 5
      %v2086 = vsel %vm662, %v2081, %v2085
      %v2087 = vshrl.u32 %v2032, 16
      %v2089 = vrot.slane %v2087, 4
      %v2090 = vor.u32 %v2089, %v2085
      %v2091 = vrot.slane %v2090, 4
      %v2093 = vshll.u32 %v2033, 16
      %v2095 = vrot.slane %v2093, 5
      %v2096 = vsel %vm662, %v2091, %v2095
      %v2098 = vshrl.u32 %v2034, 16
      %v2100 = vrot.slane %v2098, 4
      %v2101 = vshll.u32 %v2034, 16
      %v2103 = vrot.slane %v2101, 5
      %v2104 = vor.u32 %v2100, %v2103
      %v2105 = vrot.slane %v2104, 4
      %v2107 = vshll.u32 %v2035, 16
      %v2109 = vrot.slane %v2107, 5
      %v2110 = vsel %vm662, %v2105, %v2109
      %v2111 = vshrl.u32 %v2035, 16
      %v2113 = vrot.slane %v2111, 4
      %v2114 = vor.u32 %v2113, %v2109
      %v2115 = vrot.slane %v2114, 4
      %v2117 = vshll.u32 %v2036, 16
      %v2119 = vrot.slane %v2117, 5
      %v2120 = vsel %vm662, %v2115, %v2119
      %v2122 = vshrl.u32 %v2037, 16
      %v2124 = vrot.slane %v2122, 4
      %v2125 = vshll.u32 %v2037, 16
      %v2127 = vrot.slane %v2125, 5
      %v2128 = vor.u32 %v2124, %v2127
      %v2129 = vrot.slane %v2128, 4
      %v2131 = vshll.u32 %v2038, 16
      %v2133 = vrot.slane %v2131, 5
      %v2134 = vsel %vm662, %v2129, %v2133
      %v2135 = vshrl.u32 %v2038, 16
      %v2137 = vrot.slane %v2135, 4
      %v2138 = vor.u32 %v2137, %v2133
      %v2139 = vrot.slane %v2138, 4
      %v2141 = vshll.u32 %v2039, 16
      %v2143 = vrot.slane %v2141, 5
      %v2144 = vsel %vm662, %v2139, %v2143
      %v2146 = vshrl.u32 %v2040, 16
      %v2148 = vrot.slane %v2146, 4
      %v2149 = vshll.u32 %v2040, 16
      %v2151 = vrot.slane %v2149, 5
      %v2152 = vor.u32 %v2148, %v2151
      %v2153 = vrot.slane %v2152, 4
      %v2155 = vshll.u32 %v2041, 16
      %v2157 = vrot.slane %v2155, 5
      %v2158 = vsel %vm662, %v2153, %v2157
      %v2159 = vshrl.u32 %v2041, 16
      %v2161 = vrot.slane %v2159, 4
      %v2162 = vor.u32 %v2161, %v2157
      %v2163 = vrot.slane %v2162, 4
      %v2165 = vshll.u32 %v2042, 16
      %v2167 = vrot.slane %v2165, 5
      %v2168 = vsel %vm662, %v2163, %v2167
      %v2170 = vshrl.u32 %v2043, 16
      %v2172 = vrot.slane %v2170, 4
      %v2173 = vshll.u32 %v2043, 16
      %v2175 = vrot.slane %v2173, 5
      %v2176 = vor.u32 %v2172, %v2175
      %v2177 = vrot.slane %v2176, 4
      %v2179 = vshll.u32 %v2044, 16
      %v2181 = vrot.slane %v2179, 5
      %v2182 = vsel %vm662, %v2177, %v2181
      %v2183 = vshrl.u32 %v2044, 16
      %v2185 = vrot.slane %v2183, 4
      %v2186 = vor.u32 %v2185, %v2181
      %v2187 = vrot.slane %v2186, 4
      %v2189 = vshll.u32 %v2045, 16
      %v2191 = vrot.slane %v2189, 5
      %v2192 = vsel %vm662, %v2187, %v2191
      %v2194 = vshrl.u32 %v2046, 16
      %v2196 = vrot.slane %v2194, 4
      %v2197 = vshll.u32 %v2046, 16
      %v2199 = vrot.slane %v2197, 5
      %v2200 = vor.u32 %v2196, %v2199
      %v2201 = vrot.slane %v2200, 4
      %v2203 = vshll.u32 %v2047, 16
      %v2205 = vrot.slane %v2203, 5
      %v2206 = vsel %vm662, %v2201, %v2205
      %v2207 = vshrl.u32 %v2047, 16
      %v2209 = vrot.slane %v2207, 4
      %v2210 = vor.u32 %v2209, %v2205
      %v2211 = vrot.slane %v2210, 4
      %v2213 = vshll.u32 %v2048, 16
      %v2215 = vrot.slane %v2213, 5
      %v2216 = vsel %vm662, %v2211, %v2215
      %s2217 = scalar_lea.vmem %s4, 384
      %v2218 = vld [vmem:[%s2217] sm:$0xf]
      %v2219 = vld [vmem:[%s2217 + $0x4] sm:$0xf]
      %v2220 = vld [vmem:[%s2217 + $0x8] sm:$0xf]
      %v2221 = vld [vmem:[%s2217 + $0xc] sm:$0xf]
      %v2222 = vld [vmem:[%s2217 + $0x10] sm:$0xf]
      %v2223 = vld [vmem:[%s2217 + $0x14] sm:$0xf]
      %v2224 = vld [vmem:[%s2217 + $0x18] sm:$0xf]
      %v2225 = vld [vmem:[%s2217 + $0x1c] sm:$0xf]
      %v2226 = vld [vmem:[%s2217 + $0x20] sm:$0xf]
      %v2227 = vld [vmem:[%s2217 + $0x24] sm:$0xf]
      %v2228 = vld [vmem:[%s2217 + $0x28] sm:$0xf]
      %v2229 = vld [vmem:[%s2217 + $0x2c] sm:$0xf]
      %v2230 = vunpack.c.l.b16 %v2062
      %v2231 = vunpack.c.l.b16 %v2072
      %v2232 = vunpack.c.l.b16 %v2086
      %v2233 = vunpack.c.l.b16 %v2096
      %v2234 = vunpack.c.l.b16 %v2110
      %v2235 = vunpack.c.l.b16 %v2120
      %v2236 = vunpack.c.l.b16 %v2134
      %v2237 = vunpack.c.l.b16 %v2144
      %v2238 = vunpack.c.l.b16 %v2158
      %v2239 = vunpack.c.l.b16 %v2168
      %v2240 = vunpack.c.l.b16 %v2182
      %v2241 = vunpack.c.l.b16 %v2192
      %v2242 = vunpack.c.l.b16 %v2206
      %v2243 = vunpack.c.l.b16 %v2216
      %v2244 = vpack.c.b16 %v2231, %v2230
      %v2245 = vpack.c.b16 %v2233, %v2232
      %v2246 = vpack.c.b16 %v2235, %v2234
      %v2247 = vpack.c.b16 %v2237, %v2236
      %v2248 = vpack.c.b16 %v2239, %v2238
      %v2249 = vpack.c.b16 %v2241, %v2240
      %v2250 = vpack.c.b16 %v2243, %v2242
      %v2263 = vunpack.c.l.b16 %v2218
      %v2264 = vunpack.c.l.b16 %v2219
      %v2265 = vunpack.c.l.b16 %v2220
      %v2266 = vunpack.c.l.b16 %v2221
      %v2267 = vunpack.c.l.b16 %v2222
      %v2268 = vunpack.c.l.b16 %v2223
      %v2269 = vunpack.c.l.b16 %v2224
      %v2270 = vunpack.c.l.b16 %v2225
      %v2271 = vunpack.c.l.b16 %v2226
      %v2272 = vunpack.c.l.b16 %v2227
      %v2273 = vunpack.c.l.b16 %v2228
      %v2274 = vunpack.c.l.b16 %v2229
      %v2275 = vpack.c.b16 %v2264, %v2263
      %v2276 = vpack.c.b16 %v2266, %v2265
      %v2277 = vpack.c.b16 %v2268, %v2267
      %v2278 = vpack.c.b16 %v2270, %v2269
      %v2279 = vpack.c.b16 %v2272, %v2271
      %v2280 = vpack.c.b16 %v2274, %v2273
      %v2288 = vsel %vm437, %v2244, 0
      %v2291 = vsel %vm437, %v2245, 0
      %v2294 = vsel %vm437, %v2246, 0
      %v2297 = vsel %vm437, %v2247, 0
      %v2300 = vsel %vm437, %v2248, 0
      %v2303 = vsel %vm437, %v2249, 0
      %v2306 = vsel %vm437, %v2250, 0
      %2308 = vmatpush.bf16.msra.mxu0 0
      %2309 = vmatpush.bf16.msra.mxu0 0
      %2310 = vmatpush.bf16.msra.mxu0 %v2280
      %2311 = vmatpush.bf16.msra.mxu0 %v2279
      %2312 = vmatpush.bf16.msra.mxu0 %v2278
      %2313 = vmatpush.bf16.msra.mxu0 %v2277
      %2314 = vmatpush.bf16.msra.mxu0 %v2276
      %2315 = vmatpush.bf16.msra.mxu0 %v2275
      %2316 = vmatmul.bf16.gmra.mxu0 %v2288
      %v2317 = vpop.f32.mrf.mxu0
      %v2318 = vadd.f32 0.0, %v2317
      %v2319 = vpop.f32.mrf.mxu0
      %v2320 = vadd.f32 0.0, %v2319
      %2321 = vmatmul.bf16.gmra.mxu0 %v2291
      %v2322 = vpop.f32.mrf.mxu0
      %v2323 = vadd.f32 0.0, %v2322
      %v2324 = vpop.f32.mrf.mxu0
      %v2325 = vadd.f32 0.0, %v2324
      %2326 = vmatmul.bf16.gmra.mxu0 %v2294
      %v2327 = vpop.f32.mrf.mxu0
      %v2328 = vadd.f32 0.0, %v2327
      %v2329 = vpop.f32.mrf.mxu0
      %v2330 = vadd.f32 0.0, %v2329
      %2331 = vmatmul.bf16.gmra.mxu0 %v2297
      %v2332 = vpop.f32.mrf.mxu0
      %v2333 = vadd.f32 0.0, %v2332
      %v2334 = vpop.f32.mrf.mxu0
      %v2335 = vadd.f32 0.0, %v2334
      %2336 = vmatmul.bf16.gmra.mxu0 %v2300
      %v2337 = vpop.f32.mrf.mxu0
      %v2338 = vadd.f32 0.0, %v2337
      %v2339 = vpop.f32.mrf.mxu0
      %v2340 = vadd.f32 0.0, %v2339
      %2341 = vmatmul.bf16.gmra.mxu0 %v2303
      %v2342 = vpop.f32.mrf.mxu0
      %v2343 = vadd.f32 0.0, %v2342
      %v2344 = vpop.f32.mrf.mxu0
      %v2345 = vadd.f32 0.0, %v2344
      %2346 = vmatmul.bf16.gmra.mxu0 %v2306
      %v2347 = vpop.f32.mrf.mxu0
      %v2348 = vadd.f32 0.0, %v2347
      %v2349 = vpop.f32.mrf.mxu0
      %v2350 = vadd.f32 0.0, %v2349
      %2351 = vdwg.mxu0
      %v2352 = vadd.f32 %v2014, %v2318
      %v2353 = vadd.f32 %v2015, %v2320
      %v2354 = vadd.f32 %v2016, %v2323
      %v2355 = vadd.f32 %v2017, %v2325
      %v2356 = vadd.f32 %v2018, %v2328
      %v2357 = vadd.f32 %v2019, %v2330
      %v2358 = vadd.f32 %v2020, %v2333
      %v2359 = vadd.f32 %v2021, %v2335
      %v2360 = vadd.f32 %v2022, %v2338
      %v2361 = vadd.f32 %v2023, %v2340
      %v2362 = vadd.f32 %v2024, %v2343
      %v2363 = vadd.f32 %v2025, %v2345
      %v2364 = vadd.f32 %v2026, %v2348
      %v2365 = vadd.f32 %v2027, %v2350
      %v2366 = vld [vmem:[%s5] sm:$0x1]
      %v2368 = vperm.slane %v2366, 0
      %v2370 = vadd.f32 %v2352, %v2368
      %v2371 = vadd.f32 %v2353, %v2368
      %v2372 = vadd.f32 %v2354, %v2368
      %v2373 = vadd.f32 %v2355, %v2368
      %v2374 = vadd.f32 %v2356, %v2368
      %v2375 = vadd.f32 %v2357, %v2368
      %v2376 = vadd.f32 %v2358, %v2368
      %v2377 = vadd.f32 %v2359, %v2368
      %v2378 = vadd.f32 %v2360, %v2368
      %v2379 = vadd.f32 %v2361, %v2368
      %v2380 = vadd.f32 %v2362, %v2368
      %v2381 = vadd.f32 %v2363, %v2368
      %v2382 = vadd.f32 %v2364, %v2368
      %v2383 = vadd.f32 %v2365, %v2368
      %v2384 = vmax.f32 %v2370, 0.0
      %v2385 = vmax.f32 %v2371, 0.0
      %v2386 = vmax.f32 %v2372, 0.0
      %v2387 = vmax.f32 %v2373, 0.0
      %v2388 = vmax.f32 %v2374, 0.0
      %v2389 = vmax.f32 %v2375, 0.0
      %v2390 = vmax.f32 %v2376, 0.0
      %v2391 = vmax.f32 %v2377, 0.0
      %v2392 = vmax.f32 %v2378, 0.0
      %v2393 = vmax.f32 %v2379, 0.0
      %v2394 = vmax.f32 %v2380, 0.0
      %v2395 = vmax.f32 %v2381, 0.0
      %v2396 = vmax.f32 %v2382, 0.0
      %v2397 = vmax.f32 %v2383, 0.0
      %2398 = vst [vmem:[%s311] sm:$0xff] %v2384
      %2399 = vst [vmem:[%s311 + $0x8] sm:$0xff] %v2385
      %2400 = vst [vmem:[%s311 + $0x10] sm:$0xff] %v2386
      %2401 = vst [vmem:[%s311 + $0x18] sm:$0xff] %v2387
      %2402 = vst [vmem:[%s311 + $0x20] sm:$0xff] %v2388
      %2403 = vst [vmem:[%s311 + $0x28] sm:$0xff] %v2389
      %2404 = vst [vmem:[%s311 + $0x30] sm:$0xff] %v2390
      %2405 = vst [vmem:[%s311 + $0x38] sm:$0xff] %v2391
      %2406 = vst [vmem:[%s311 + $0x40] sm:$0xff] %v2392
      %2407 = vst [vmem:[%s311 + $0x48] sm:$0xff] %v2393
      %2408 = vst [vmem:[%s311 + $0x50] sm:$0xff] %v2394
      %2409 = vst [vmem:[%s311 + $0x58] sm:$0xff] %v2395
      %2410 = vst [vmem:[%s311 + $0x60] sm:$0xff] %v2396
      %2411 = vst [vmem:[%s311 + $0x68] sm:$0xff] %v2397
      %p2412 = scmp.lt.s32.totalorder %s17, 1
      %s2413 = scalar_select %p2412, %s17, 1
      %s2414 = smul.addr %s2413, 14
      %s2415 = smul.addr %s2414, 8
      %s2416 = scalar_lea.vmem %s6, %s2415
      // Predicated region
      $region45: #{inception_b_forward.8} parent=43 // pred_check
        %p2417 = pneg %p181
      $region46: #{inception_b_forward.8} parent=43 // pred_check_branch
        %2419 = sbr.rel (%p2417) target = $region48
      $region47: #{inception_b_forward.8} parent=43 // pred_region
        _
      $region48: #{inception_b_forward.8} parent=43 // pred_fallthru
        _
    $region44: #{inception_b_forward.8} parent=5 // pred_fallthru
      _
    %p2420 = scmp.le.s32.totalorder 2, %s12
    // Predicated region
    $region49: #{inception_b_forward.8} parent=5 // pred_check
      %p2421 = pneg %p2420
    $region50: #{inception_b_forward.8} parent=5 // pred_check_branch
      %2423 = sbr.rel (%p2421) target = $region52
    $region51: #{inception_b_forward.8} parent=5 // pred_region
      %s2424 = ssub.s32 %s12, 2
      // Predicated region
      $region53: #{inception_b_forward.8} parent=51 // pred_check
        %p2425 = pneg %p187
      $region54: #{inception_b_forward.8} parent=51 // pred_check_branch
        %2427 = sbr.rel (%p2425) target = $region56
      $region55: #{inception_b_forward.8} parent=51 // pred_region
        %p2428 = scmp.lt.s32.totalorder %s18, 1
        %s2429 = scalar_select %p2428, %s18, 1
        %s2430 = smul.addr %s2429, 14
        %s2431 = smul.addr %s2430, 8
        %s2432 = scalar_lea.vmem %s6, %s2431
      $region56: #{inception_b_forward.8} parent=51 // pred_fallthru
        _
    $region52: #{inception_b_forward.8} parent=5 // pred_fallthru
      _
  $region6: #{inception_b_forward.8} parent=0 // loop_footer
    %s16 = sadd.s32 1, %s12
  $region7: #{inception_b_forward.8} parent=0 // loop_footer_branch
    %11 = sbr.rel target = $region3
  $region8: #{inception_b_forward.8} parent=0 // loop_exit
    _

// kernel: inception_b_forward.7
$region0: #{inception_b_forward.7}
  #allocation0 [shape = 'u32[]', space=smem, size = 0x4, offset = 0x4, fixed_abs, tag = 'smem constant byte address 0x4 - core index']
  #allocation1 [shape = 'u32[72,128]{1,0:T(1,128)}', space=vmem, size = 0x9000, scoped, tag = 'internal scratch']
  %s0 = inlined_call_operand.vmem [shape: bf16[2,18,18,64], index: 0, kind: input, shape index: {}]
  %s1 = inlined_call_operand.vmem [shape: bf16[9,64,128], index: 1, kind: input, shape index: {}]
  %s2 = inlined_call_operand.vmem [shape: f32[1,128], index: 2, kind: input, shape index: {}]
  %s3 = inlined_call_operand.vmem [shape: bf16[2,256,128], index: 3, kind: output, shape index: {}]
  %s4 = sld [smem:[#allocation0]]
  $region45: #{inception_b_forward.7} parent=0
    _
  %s6 = ssub.s32 1, %s4
  %s7 = scalar_select 0, %s6, %s4
  loop: start=0, step=1, limit=4
  $region2: #{inception_b_forward.7} parent=0 // loop_pre_header
    _
  $region3: #{inception_b_forward.7} parent=0 // loop_header
    %s9 = sphi 0, %s13
    %p10 = scmp.ge.s32.totalorder %s9, 4
    %s19 = sphi 0, %s21
    %s22 = sphi 0, %s19
    %s23 = sphi 0, %s22
    %s39 = sphi 0, %s23
    %s43 = sphi 0, %s43
    %s45 = sphi 0, %s43
    %s46 = sphi 0, %s45
    %s60 = sphi 0, %s46
    %s64 = sphi 0, %s64
    %s66 = sphi 0, %s64
    %s67 = sphi 0, %s66
    %s81 = sphi 0, %s67
    %s87 = sphi 0, %s89
    %s90 = sphi 0, %s87
    %s91 = sphi 0, %s90
    %s107 = sphi 0, %s91
  $region4: #{inception_b_forward.7} parent=0 // loop_header_branch
    %12 = sbr.rel (%p10) target = $region8
  $region5: #{inception_b_forward.7} parent=0 // loop_body
    %s14 = ssub.s32 %s9, 1
    %s15 = ssub.s32 %s9, 2
    %s16 = sadd.s32 %s9, 1
    %s17 = ssub.s32 %s9, %s16
    %p18 = scmp.eq.s32.totalorder %s17, 0
    %s20 = sadd.s32 %s19, 1
    %s21 = scalar_select %p18, %s19, %s20
    %p24 = pneg %p18
    %p25 = scmp.eq.s32.totalorder %s9, 1
    %p26 = por %p24, %p25
    %p27 = scmp.ne.s32.totalorder %s19, %s22
    %p28 = scmp.eq.s32.totalorder %s9, 0
    %p29 = por %p27, %p28
    %p30 = scmp.ne.s32.totalorder %s19, %s22
    %p31 = scmp.eq.s32.totalorder %s14, 1
    %p32 = por %p30, %p31
    %p33 = scmp.ne.s32.totalorder %s22, %s23
    %p34 = scmp.eq.s32.totalorder %s14, 0
    %p35 = por %p33, %p34
    %p36 = scmp.ne.s32.totalorder %s22, %s23
    %p37 = scmp.eq.s32.totalorder %s15, 1
    %p38 = por %p36, %p37
    %p40 = scmp.ne.s32.totalorder %s23, %s39
    %p41 = scmp.eq.s32.totalorder %s15, 0
    %p42 = por %p40, %p41
    %s44 = sadd.s32 %s43, 1
    %p47 = scmp.eq.s32.totalorder %s9, 1
    %p48 = scmp.ne.s32.totalorder %s43, %s45
    %p49 = scmp.eq.s32.totalorder %s9, 0
    %p50 = por %p48, %p49
    %p51 = scmp.ne.s32.totalorder %s43, %s45
    %p52 = scmp.eq.s32.totalorder %s14, 1
    %p53 = por %p51, %p52
    %p54 = scmp.ne.s32.totalorder %s45, %s46
    %p55 = scmp.eq.s32.totalorder %s14, 0
    %p56 = por %p54, %p55
    %p57 = scmp.ne.s32.totalorder %s45, %s46
    %p58 = scmp.eq.s32.totalorder %s15, 1
    %p59 = por %p57, %p58
    %p61 = scmp.ne.s32.totalorder %s46, %s60
    %p62 = scmp.eq.s32.totalorder %s15, 0
    %p63 = por %p61, %p62
    %s65 = sadd.s32 %s64, 1
    %p68 = scmp.eq.s32.totalorder %s9, 1
    %p69 = scmp.ne.s32.totalorder %s64, %s66
    %p70 = scmp.eq.s32.totalorder %s9, 0
    %p71 = por %p69, %p70
    %p72 = scmp.ne.s32.totalorder %s64, %s66
    %p73 = scmp.eq.s32.totalorder %s14, 1
    %p74 = por %p72, %p73
    %p75 = scmp.ne.s32.totalorder %s66, %s67
    %p76 = scmp.eq.s32.totalorder %s14, 0
    %p77 = por %p75, %p76
    %p78 = scmp.ne.s32.totalorder %s66, %s67
    %p79 = scmp.eq.s32.totalorder %s15, 1
    %p80 = por %p78, %p79
    %p82 = scmp.ne.s32.totalorder %s67, %s81
    %p83 = scmp.eq.s32.totalorder %s15, 0
    %p84 = por %p82, %p83
    %s85 = ssub.s32 %s9, %s16
    %p86 = scmp.eq.s32.totalorder %s85, 0
    %s88 = sadd.s32 %s87, 1
    %s89 = scalar_select %p86, %s87, %s88
    %p92 = pneg %p86
    %p93 = scmp.eq.s32.totalorder %s9, 1
    %p94 = por %p92, %p93
    %p95 = scmp.ne.s32.totalorder %s87, %s90
    %p96 = scmp.eq.s32.totalorder %s9, 0
    %p97 = por %p95, %p96
    %p98 = scmp.ne.s32.totalorder %s87, %s90
    %p99 = scmp.eq.s32.totalorder %s14, 1
    %p100 = por %p98, %p99
    %p101 = scmp.ne.s32.totalorder %s90, %s91
    %p102 = scmp.eq.s32.totalorder %s14, 0
    %p103 = por %p101, %p102
    %p104 = scmp.ne.s32.totalorder %s90, %s91
    %p105 = scmp.eq.s32.totalorder %s15, 1
    %p106 = por %p104, %p105
    %p108 = scmp.ne.s32.totalorder %s91, %s107
    %p109 = scmp.eq.s32.totalorder %s15, 0
    %p110 = por %p108, %p109
    %p111 = scmp.le.s32.totalorder 1, %s9
    %p112 = scmp.lt.s32.totalorder %s9, 3
    %p113 = pnand %p111, %p112
    %p114 = pneg %p113
    // Predicated region
    $region9: #{inception_b_forward.7} parent=5 // pred_check
      _
    $region10: #{inception_b_forward.7} parent=5 // pred_check_branch
      %116 = sbr.rel (%p113) target = $region12
    $region11: #{inception_b_forward.7} parent=5 // pred_region
      %s117 = ssub.s32 %s9, 1
      // Predicated region
      $region13: #{inception_b_forward.7} parent=11 // pred_check
        %p118 = pneg %p56
      $region14: #{inception_b_forward.7} parent=11 // pred_check_branch
        %120 = sbr.rel (%p118) target = $region16
      $region15: #{inception_b_forward.7} parent=11 // pred_region
        _
      $region16: #{inception_b_forward.7} parent=11 // pred_fallthru
        _
      // Predicated region
      $region17: #{inception_b_forward.7} parent=11 // pred_check
        %p121 = pneg %p77
      $region18: #{inception_b_forward.7} parent=11 // pred_check_branch
        %123 = sbr.rel (%p121) target = $region20
      $region19: #{inception_b_forward.7} parent=11 // pred_region
        _
      $region20: #{inception_b_forward.7} parent=11 // pred_fallthru
        _
    $region12: #{inception_b_forward.7} parent=5 // pred_fallthru
      _
    %p124 = scmp.lt.s32.totalorder %s9, 2
    // Predicated region
    $region21: #{inception_b_forward.7} parent=5 // pred_check
      %p125 = pneg %p124
    $region22: #{inception_b_forward.7} parent=5 // pred_check_branch
      %127 = sbr.rel (%p125) target = $region24
    $region23: #{inception_b_forward.7} parent=5 // pred_region
      // Predicated region
      $region25: #{inception_b_forward.7} parent=23 // pred_check
        %p128 = pneg %p29
      $region26: #{inception_b_forward.7} parent=23 // pred_check_branch
        %130 = sbr.rel (%p128) target = $region28
      $region27: #{inception_b_forward.7} parent=23 // pred_region
        %p131 = scmp.lt.s32.totalorder %s9, 1
        %s132 = scalar_select %p131, %s9, 1
        %s133 = smul.addr %s132, 54
        %s134 = smul.addr %s133, 4
        %s135 = scalar_lea.vmem %s0, %s134
      $region28: #{inception_b_forward.7} parent=23 // pred_fallthru
        _
    $region24: #{inception_b_forward.7} parent=5 // pred_fallthru
      _
    %p136 = scmp.le.s32.totalorder 1, %s9
    %p137 = scmp.lt.s32.totalorder %s9, 3
    %p138 = pnand %p136, %p137
    %p139 = pneg %p138
    // Predicated region
    $region29: #{inception_b_forward.7} parent=5 // pred_check
      _
    $region30: #{inception_b_forward.7} parent=5 // pred_check_branch
      %141 = sbr.rel (%p138) target = $region32
    $region31: #{inception_b_forward.7} parent=5 // pred_region
      %s142 = ssub.s32 %s9, 1
      %p143 = scmp.lt.s32.totalorder %s14, 1
      %s144 = scalar_select %p143, %s14, 1
      %s145 = smul.addr %s144, 54
      %s146 = smul.addr %s145, 4
      %s147 = scalar_lea.vmem %s0, %s146
      %p148 = pneg %p35
      %p149 = pneg %p32
      %p150 = pneg %p56
      %p151 = pneg %p53
      %p152 = pneg %p77
      %p153 = pneg %p74
      %p154 = pneg %p103
      %p155 = pneg %p100
      %p156 = scmp.lt.s32.totalorder %s14, 1
      %s157 = scalar_select %p156, %s14, 1
      %s158 = smul.addr %s157, 32
      %s159 = smul.addr %s158, 4
      %s160 = scalar_lea.vmem %s3, %s159
      %p161 = scmp.lt.s32.totalorder %s14, 1
      %s162 = scalar_select %p161, %s14, 1
      %s163 = smul.addr %s162, 54
      %s164 = smul.addr %s163, 4
      %s165 = scalar_lea.vmem %s0, %s164
      %p166 = scmp.lt.s32.totalorder %s14, 1
      %s167 = scalar_select %p166, %s14, 1
      %s168 = smul.addr %s167, 32
      %s169 = smul.addr %s168, 4
      %s170 = scalar_lea.vmem %s3, %s169
      %v172 = vld [vmem:[%s165] sm:$0xf]
      %v173 = vld [vmem:[%s165 + $0x4] sm:$0xf]
      %v174 = vld [vmem:[%s165 + $0xc] sm:$0xf]
      %v175 = vld [vmem:[%s165 + $0x10] sm:$0xf]
      %v176 = vld [vmem:[%s165 + $0x18] sm:$0xf]
      %v177 = vld [vmem:[%s165 + $0x1c] sm:$0xf]
      %v178 = vld [vmem:[%s165 + $0x24] sm:$0xf]
      %v179 = vld [vmem:[%s165 + $0x28] sm:$0xf]
      %v180 = vld [vmem:[%s165 + $0x30] sm:$0xf]
      %v181 = vld [vmem:[%s165 + $0x34] sm:$0xf]
      %v182 = vld [vmem:[%s165 + $0x3c] sm:$0xf]
      %v183 = vld [vmem:[%s165 + $0x40] sm:$0xf]
      %v184 = vld [vmem:[%s165 + $0x48] sm:$0xf]
      %v185 = vld [vmem:[%s165 + $0x4c] sm:$0xf]
      %v186 = vld [vmem:[%s165 + $0x54] sm:$0xf]
      %v187 = vld [vmem:[%s165 + $0x58] sm:$0xf]
      %v188 = vld [vmem:[%s165 + $0x60] sm:$0xf]
      %v189 = vld [vmem:[%s165 + $0x64] sm:$0xf]
      %v190 = vld [vmem:[%s165 + $0x6c] sm:$0xf]
      %v191 = vld [vmem:[%s165 + $0x70] sm:$0xf]
      %v192 = vld [vmem:[%s165 + $0x78] sm:$0xf]
      %v193 = vld [vmem:[%s165 + $0x7c] sm:$0xf]
      %v194 = vld [vmem:[%s165 + $0x84] sm:$0xf]
      %v195 = vld [vmem:[%s165 + $0x88] sm:$0xf]
      %v196 = vld [vmem:[%s165 + $0x90] sm:$0xf]
      %v197 = vld [vmem:[%s165 + $0x94] sm:$0xf]
      %v198 = vld [vmem:[%s165 + $0x9c] sm:$0xf]
      %v199 = vld [vmem:[%s165 + $0xa0] sm:$0xf]
      %v200 = vld [vmem:[%s165 + $0xa8] sm:$0xf]
      %v201 = vld [vmem:[%s165 + $0xac] sm:$0xf]
      %v202 = vld [vmem:[%s165 + $0xb4] sm:$0xf]
      %v203 = vld [vmem:[%s165 + $0xb8] sm:$0xf]
      %v204 = vld [vmem:[%s1] sm:$0xf]
      %v205 = vld [vmem:[%s1 + $0x4] sm:$0xf]
      %v206 = vld [vmem:[%s1 + $0x8] sm:$0xf]
      %v207 = vld [vmem:[%s1 + $0xc] sm:$0xf]
      %v208 = vld [vmem:[%s1 + $0x10] sm:$0xf]
      %v209 = vld [vmem:[%s1 + $0x14] sm:$0xf]
      %v210 = vld [vmem:[%s1 + $0x18] sm:$0xf]
      %v211 = vld [vmem:[%s1 + $0x1c] sm:$0xf]
      %v212 = vld [vmem:[%s165 + $0x8] sm:$0x1]
      %v213 = vld [vmem:[%s165 + $0x14] sm:$0x1]
      %v214 = vld [vmem:[%s165 + $0x20] sm:$0x1]
      %v215 = vld [vmem:[%s165 + $0x2c] sm:$0x1]
      %v216 = vld [vmem:[%s165 + $0x38] sm:$0x1]
      %v217 = vld [vmem:[%s165 + $0x44] sm:$0x1]
      %v218 = vld [vmem:[%s165 + $0x50] sm:$0x1]
      %v219 = vld [vmem:[%s165 + $0x5c] sm:$0x1]
      %v220 = vld [vmem:[%s165 + $0x68] sm:$0x1]
      %v221 = vld [vmem:[%s165 + $0x74] sm:$0x1]
      %v222 = vld [vmem:[%s165 + $0x80] sm:$0x1]
      %v223 = vld [vmem:[%s165 + $0x8c] sm:$0x1]
      %v224 = vld [vmem:[%s165 + $0x98] sm:$0x1]
      %v225 = vld [vmem:[%s165 + $0xa4] sm:$0x1]
      %v226 = vld [vmem:[%s165 + $0xb0] sm:$0x1]
      %v227 = vld [vmem:[%s165 + $0xbc] sm:$0x1]
      %vm228 = vsmask.f32 3328
      %vm229 = vsmask.f32 7440
      %vm230 = vmor %vm228, %vm229
      %v232 = vshrl.u32 %v172, 16
      %v234 = vrot.slane %v232, 4
      %v235 = vshll.u32 %v172, 16
      %v237 = vrot.slane %v235, 5
      %v238 = vor.u32 %v234, %v237
      %v239 = vrot.slane %v238, 4
      %v241 = vshll.u32 %v173, 16
      %v243 = vrot.slane %v241, 5
      %v244 = vsel %vm230, %v239, %v243
      %v245 = vshrl.u32 %v173, 16
      %v247 = vrot.slane %v245, 4
      %v248 = vor.u32 %v247, %v243
      %v249 = vrot.slane %v248, 4
      %v251 = vshll.u32 %v212, 16
      %v253 = vrot.slane %v251, 5
      %v254 = vsel %vm230, %v249, %v253
      %v256 = vshrl.u32 %v174, 16
      %v258 = vrot.slane %v256, 4
      %v259 = vshll.u32 %v174, 16
      %v261 = vrot.slane %v259, 5
      %v262 = vor.u32 %v258, %v261
      %v263 = vrot.slane %v262, 4
      %v265 = vshll.u32 %v175, 16
      %v267 = vrot.slane %v265, 5
      %v268 = vsel %vm230, %v263, %v267
      %v269 = vshrl.u32 %v175, 16
      %v271 = vrot.slane %v269, 4
      %v272 = vor.u32 %v271, %v267
      %v273 = vrot.slane %v272, 4
      %v275 = vshll.u32 %v213, 16
      %v277 = vrot.slane %v275, 5
      %v278 = vsel %vm230, %v273, %v277
      %v280 = vshrl.u32 %v176, 16
      %v282 = vrot.slane %v280, 4
      %v283 = vshll.u32 %v176, 16
      %v285 = vrot.slane %v283, 5
      %v286 = vor.u32 %v282, %v285
      %v287 = vrot.slane %v286, 4
      %v289 = vshll.u32 %v177, 16
      %v291 = vrot.slane %v289, 5
      %v292 = vsel %vm230, %v287, %v291
      %v293 = vshrl.u32 %v177, 16
      %v295 = vrot.slane %v293, 4
      %v296 = vor.u32 %v295, %v291
      %v297 = vrot.slane %v296, 4
      %v299 = vshll.u32 %v214, 16
      %v301 = vrot.slane %v299, 5
      %v302 = vsel %vm230, %v297, %v301
      %v304 = vshrl.u32 %v178, 16
      %v306 = vrot.slane %v304, 4
      %v307 = vshll.u32 %v178, 16
      %v309 = vrot.slane %v307, 5
      %v310 = vor.u32 %v306, %v309
      %v311 = vrot.slane %v310, 4
      %v313 = vshll.u32 %v179, 16
      %v315 = vrot.slane %v313, 5
      %v316 = vsel %vm230, %v311, %v315
      %v317 = vshrl.u32 %v179, 16
      %v319 = vrot.slane %v317, 4
      %v320 = vor.u32 %v319, %v315
      %v321 = vrot.slane %v320, 4
      %v323 = vshll.u32 %v215, 16
      %v325 = vrot.slane %v323, 5
      %v326 = vsel %vm230, %v321, %v325
      %v328 = vshrl.u32 %v180, 16
      %v330 = vrot.slane %v328, 4
      %v331 = vshll.u32 %v180, 16
      %v333 = vrot.slane %v331, 5
      %v334 = vor.u32 %v330, %v333
      %v335 = vrot.slane %v334, 4
      %v337 = vshll.u32 %v181, 16
      %v339 = vrot.slane %v337, 5
      %v340 = vsel %vm230, %v335, %v339
      %v341 = vshrl.u32 %v181, 16
      %v343 = vrot.slane %v341, 4
      %v344 = vor.u32 %v343, %v339
      %v345 = vrot.slane %v344, 4
      %v347 = vshll.u32 %v216, 16
      %v349 = vrot.slane %v347, 5
      %v350 = vsel %vm230, %v345, %v349
      %v352 = vshrl.u32 %v182, 16
      %v354 = vrot.slane %v352, 4
      %v355 = vshll.u32 %v182, 16
      %v357 = vrot.slane %v355, 5
      %v358 = vor.u32 %v354, %v357
      %v359 = vrot.slane %v358, 4
      %v361 = vshll.u32 %v183, 16
      %v363 = vrot.slane %v361, 5
      %v364 = vsel %vm230, %v359, %v363
      %v365 = vshrl.u32 %v183, 16
      %v367 = vrot.slane %v365, 4
      %v368 = vor.u32 %v367, %v363
      %v369 = vrot.slane %v368, 4
      %v371 = vshll.u32 %v217, 16
      %v373 = vrot.slane %v371, 5
      %v374 = vsel %vm230, %v369, %v373
      %v376 = vshrl.u32 %v184, 16
      %v378 = vrot.slane %v376, 4
      %v379 = vshll.u32 %v184, 16
      %v381 = vrot.slane %v379, 5
      %v382 = vor.u32 %v378, %v381
      %v383 = vrot.slane %v382, 4
      %v385 = vshll.u32 %v185, 16
      %v387 = vrot.slane %v385, 5
      %v388 = vsel %vm230, %v383, %v387
      %v389 = vshrl.u32 %v185, 16
      %v391 = vrot.slane %v389, 4
      %v392 = vor.u32 %v391, %v387
      %v393 = vrot.slane %v392, 4
      %v395 = vshll.u32 %v218, 16
      %v397 = vrot.slane %v395, 5
      %v398 = vsel %vm230, %v393, %v397
      %v400 = vshrl.u32 %v186, 16
      %v402 = vrot.slane %v400, 4
      %v403 = vshll.u32 %v186, 16
      %v405 = vrot.slane %v403, 5
      %v406 = vor.u32 %v402, %v405
      %v407 = vrot.slane %v406, 4
      %v409 = vshll.u32 %v187, 16
      %v411 = vrot.slane %v409, 5
      %v412 = vsel %vm230, %v407, %v411
      %v413 = vshrl.u32 %v187, 16
      %v415 = vrot.slane %v413, 4
      %v416 = vor.u32 %v415, %v411
      %v417 = vrot.slane %v416, 4
      %v419 = vshll.u32 %v219, 16
      %v421 = vrot.slane %v419, 5
      %v422 = vsel %vm230, %v417, %v421
      %v424 = vshrl.u32 %v188, 16
      %v426 = vrot.slane %v424, 4
      %v427 = vshll.u32 %v188, 16
      %v429 = vrot.slane %v427, 5
      %v430 = vor.u32 %v426, %v429
      %v431 = vrot.slane %v430, 4
      %v433 = vshll.u32 %v189, 16
      %v435 = vrot.slane %v433, 5
      %v436 = vsel %vm230, %v431, %v435
      %v437 = vshrl.u32 %v189, 16
      %v439 = vrot.slane %v437, 4
      %v440 = vor.u32 %v439, %v435
      %v441 = vrot.slane %v440, 4
      %v443 = vshll.u32 %v220, 16
      %v445 = vrot.slane %v443, 5
      %v446 = vsel %vm230, %v441, %v445
      %v448 = vshrl.u32 %v190, 16
      %v450 = vrot.slane %v448, 4
      %v451 = vshll.u32 %v190, 16
      %v453 = vrot.slane %v451, 5
      %v454 = vor.u32 %v450, %v453
      %v455 = vrot.slane %v454, 4
      %v457 = vshll.u32 %v191, 16
      %v459 = vrot.slane %v457, 5
      %v460 = vsel %vm230, %v455, %v459
      %v461 = vshrl.u32 %v191, 16
      %v463 = vrot.slane %v461, 4
      %v464 = vor.u32 %v463, %v459
      %v465 = vrot.slane %v464, 4
      %v467 = vshll.u32 %v221, 16
      %v469 = vrot.slane %v467, 5
      %v470 = vsel %vm230, %v465, %v469
      %v472 = vshrl.u32 %v192, 16
      %v474 = vrot.slane %v472, 4
      %v475 = vshll.u32 %v192, 16
      %v477 = vrot.slane %v475, 5
      %v478 = vor.u32 %v474, %v477
      %v479 = vrot.slane %v478, 4
      %v481 = vshll.u32 %v193, 16
      %v483 = vrot.slane %v481, 5
      %v484 = vsel %vm230, %v479, %v483
      %v485 = vshrl.u32 %v193, 16
      %v487 = vrot.slane %v485, 4
      %v488 = vor.u32 %v487, %v483
      %v489 = vrot.slane %v488, 4
      %v491 = vshll.u32 %v222, 16
      %v493 = vrot.slane %v491, 5
      %v494 = vsel %vm230, %v489, %v493
      %v496 = vshrl.u32 %v194, 16
      %v498 = vrot.slane %v496, 4
      %v499 = vshll.u32 %v194, 16
      %v501 = vrot.slane %v499, 5
      %v502 = vor.u32 %v498, %v501
      %v503 = vrot.slane %v502, 4
      %v505 = vshll.u32 %v195, 16
      %v507 = vrot.slane %v505, 5
      %v508 = vsel %vm230, %v503, %v507
      %v509 = vshrl.u32 %v195, 16
      %v511 = vrot.slane %v509, 4
      %v512 = vor.u32 %v511, %v507
      %v513 = vrot.slane %v512, 4
      %v515 = vshll.u32 %v223, 16
      %v517 = vrot.slane %v515, 5
      %v518 = vsel %vm230, %v513, %v517
      %v520 = vshrl.u32 %v196, 16
      %v522 = vrot.slane %v520, 4
      %v523 = vshll.u32 %v196, 16
      %v525 = vrot.slane %v523, 5
      %v526 = vor.u32 %v522, %v525
      %v527 = vrot.slane %v526, 4
      %v529 = vshll.u32 %v197, 16
      %v531 = vrot.slane %v529, 5
      %v532 = vsel %vm230, %v527, %v531
      %v533 = vshrl.u32 %v197, 16
      %v535 = vrot.slane %v533, 4
      %v536 = vor.u32 %v535, %v531
      %v537 = vrot.slane %v536, 4
      %v539 = vshll.u32 %v224, 16
      %v541 = vrot.slane %v539, 5
      %v542 = vsel %vm230, %v537, %v541
      %v544 = vshrl.u32 %v198, 16
      %v546 = vrot.slane %v544, 4
      %v547 = vshll.u32 %v198, 16
      %v549 = vrot.slane %v547, 5
      %v550 = vor.u32 %v546, %v549
      %v551 = vrot.slane %v550, 4
      %v553 = vshll.u32 %v199, 16
      %v555 = vrot.slane %v553, 5
      %v556 = vsel %vm230, %v551, %v555
      %v557 = vshrl.u32 %v199, 16
      %v559 = vrot.slane %v557, 4
      %v560 = vor.u32 %v559, %v555
      %v561 = vrot.slane %v560, 4
      %v563 = vshll.u32 %v225, 16
      %v565 = vrot.slane %v563, 5
      %v566 = vsel %vm230, %v561, %v565
      %v568 = vshrl.u32 %v200, 16
      %v570 = vrot.slane %v568, 4
      %v571 = vshll.u32 %v200, 16
      %v573 = vrot.slane %v571, 5
      %v574 = vor.u32 %v570, %v573
      %v575 = vrot.slane %v574, 4
      %v577 = vshll.u32 %v201, 16
      %v579 = vrot.slane %v577, 5
      %v580 = vsel %vm230, %v575, %v579
      %v581 = vshrl.u32 %v201, 16
      %v583 = vrot.slane %v581, 4
      %v584 = vor.u32 %v583, %v579
      %v585 = vrot.slane %v584, 4
      %v587 = vshll.u32 %v226, 16
      %v589 = vrot.slane %v587, 5
      %v590 = vsel %vm230, %v585, %v589
      %v592 = vshrl.u32 %v202, 16
      %v594 = vrot.slane %v592, 4
      %v595 = vshll.u32 %v202, 16
      %v597 = vrot.slane %v595, 5
      %v598 = vor.u32 %v594, %v597
      %v599 = vrot.slane %v598, 4
      %v601 = vshll.u32 %v203, 16
      %v603 = vrot.slane %v601, 5
      %v604 = vsel %vm230, %v599, %v603
      %v605 = vshrl.u32 %v203, 16
      %v607 = vrot.slane %v605, 4
      %v608 = vor.u32 %v607, %v603
      %v609 = vrot.slane %v608, 4
      %v611 = vshll.u32 %v227, 16
      %v613 = vrot.slane %v611, 5
      %v614 = vsel %vm230, %v609, %v613
      %s615 = scalar_lea.vmem %s1, 32
      %v616 = vld [vmem:[%s615] sm:$0xf]
      %v617 = vld [vmem:[%s615 + $0x4] sm:$0xf]
      %v618 = vld [vmem:[%s615 + $0x8] sm:$0xf]
      %v619 = vld [vmem:[%s615 + $0xc] sm:$0xf]
      %v620 = vld [vmem:[%s615 + $0x10] sm:$0xf]
      %v621 = vld [vmem:[%s615 + $0x14] sm:$0xf]
      %v622 = vld [vmem:[%s615 + $0x18] sm:$0xf]
      %v623 = vld [vmem:[%s615 + $0x1c] sm:$0xf]
      %v624 = vunpack.c.l.b16 %v244
      %v625 = vunpack.c.l.b16 %v254
      %v626 = vunpack.c.l.b16 %v268
      %v627 = vunpack.c.l.b16 %v278
      %v628 = vunpack.c.l.b16 %v292
      %v629 = vunpack.c.l.b16 %v302
      %v630 = vunpack.c.l.b16 %v316
      %v631 = vunpack.c.l.b16 %v326
      %v632 = vunpack.c.l.b16 %v340
      %v633 = vunpack.c.l.b16 %v350
      %v634 = vunpack.c.l.b16 %v364
      %v635 = vunpack.c.l.b16 %v374
      %v636 = vunpack.c.l.b16 %v388
      %v637 = vunpack.c.l.b16 %v398
      %v638 = vunpack.c.l.b16 %v412
      %v639 = vunpack.c.l.b16 %v422
      %v640 = vunpack.c.l.b16 %v436
      %v641 = vunpack.c.l.b16 %v446
      %v642 = vunpack.c.l.b16 %v460
      %v643 = vunpack.c.l.b16 %v470
      %v644 = vunpack.c.l.b16 %v484
      %v645 = vunpack.c.l.b16 %v494
      %v646 = vunpack.c.l.b16 %v508
      %v647 = vunpack.c.l.b16 %v518
      %v648 = vunpack.c.l.b16 %v532
      %v649 = vunpack.c.l.b16 %v542
      %v650 = vunpack.c.l.b16 %v556
      %v651 = vunpack.c.l.b16 %v566
      %v652 = vunpack.c.l.b16 %v580
      %v653 = vunpack.c.l.b16 %v590
      %v654 = vunpack.c.l.b16 %v604
      %v655 = vunpack.c.l.b16 %v614
      %v656 = vpack.c.b16 %v625, %v624
      %v657 = vpack.c.b16 %v627, %v626
      %v658 = vpack.c.b16 %v629, %v628
      %v659 = vpack.c.b16 %v631, %v630
      %v660 = vpack.c.b16 %v633, %v632
      %v661 = vpack.c.b16 %v635, %v634
      %v662 = vpack.c.b16 %v637, %v636
      %v663 = vpack.c.b16 %v639, %v638
      %v664 = vpack.c.b16 %v641, %v640
      %v665 = vpack.c.b16 %v643, %v642
      %v666 = vpack.c.b16 %v645, %v644
      %v667 = vpack.c.b16 %v647, %v646
      %v668 = vpack.c.b16 %v649, %v648
      %v669 = vpack.c.b16 %v651, %v650
      %v670 = vpack.c.b16 %v653, %v652
      %v671 = vpack.c.b16 %v655, %v654
      %v680 = vunpack.c.l.b16 %v616
      %v681 = vunpack.c.l.b16 %v617
      %v682 = vunpack.c.l.b16 %v618
      %v683 = vunpack.c.l.b16 %v619
      %v684 = vunpack.c.l.b16 %v620
      %v685 = vunpack.c.l.b16 %v621
      %v686 = vunpack.c.l.b16 %v622
      %v687 = vunpack.c.l.b16 %v623
      %v688 = vpack.c.b16 %v681, %v680
      %v689 = vpack.c.b16 %v683, %v682
      %v690 = vpack.c.b16 %v685, %v684
      %v691 = vpack.c.b16 %v687, %v686
      %vm696 = vcmask 523264
      %v698 = vsel %vm696, %v656, 0
      %v701 = vsel %vm696, %v657, 0
      %v704 = vsel %vm696, %v658, 0
      %v707 = vsel %vm696, %v659, 0
      %v710 = vsel %vm696, %v660, 0
      %v713 = vsel %vm696, %v661, 0
      %v716 = vsel %vm696, %v662, 0
      %v719 = vsel %vm696, %v663, 0
      %v722 = vsel %vm696, %v664, 0
      %v725 = vsel %vm696, %v665, 0
      %v728 = vsel %vm696, %v666, 0
      %v731 = vsel %vm696, %v667, 0
      %v734 = vsel %vm696, %v668, 0
      %v737 = vsel %vm696, %v669, 0
      %v740 = vsel %vm696, %v670, 0
      %v743 = vsel %vm696, %v671, 0
      %745 = vmatpush.bf16.msra.mxu0 0
      %746 = vmatpush.bf16.msra.mxu0 0
      %747 = vmatpush.bf16.msra.mxu0 0
      %748 = vmatpush.bf16.msra.mxu0 0
      %749 = vmatpush.bf16.msra.mxu0 %v691
      %750 = vmatpush.bf16.msra.mxu0 %v690
      %751 = vmatpush.bf16.msra.mxu0 %v689
      %752 = vmatpush.bf16.msra.mxu0 %v688
      %753 = vmatmul.bf16.gmra.mxu0 %v698
      %v754 = vpop.f32.mrf.mxu0
      %v755 = vadd.f32 0.0, %v754
      %v756 = vpop.f32.mrf.mxu0
      %v757 = vadd.f32 0.0, %v756
      %758 = vmatmul.bf16.gmra.mxu0 %v701
      %v759 = vpop.f32.mrf.mxu0
      %v760 = vadd.f32 0.0, %v759
      %v761 = vpop.f32.mrf.mxu0
      %v762 = vadd.f32 0.0, %v761
      %763 = vmatmul.bf16.gmra.mxu0 %v704
      %v764 = vpop.f32.mrf.mxu0
      %v765 = vadd.f32 0.0, %v764
      %v766 = vpop.f32.mrf.mxu0
      %v767 = vadd.f32 0.0, %v766
      %768 = vmatmul.bf16.gmra.mxu0 %v707
      %v769 = vpop.f32.mrf.mxu0
      %v770 = vadd.f32 0.0, %v769
      %v771 = vpop.f32.mrf.mxu0
      %v772 = vadd.f32 0.0, %v771
      %773 = vmatmul.bf16.gmra.mxu0 %v710
      %v774 = vpop.f32.mrf.mxu0
      %v775 = vadd.f32 0.0, %v774
      %v776 = vpop.f32.mrf.mxu0
      %v777 = vadd.f32 0.0, %v776
      %778 = vmatmul.bf16.gmra.mxu0 %v713
      %v779 = vpop.f32.mrf.mxu0
      %v780 = vadd.f32 0.0, %v779
      %v781 = vpop.f32.mrf.mxu0
      %v782 = vadd.f32 0.0, %v781
      %783 = vmatmul.bf16.gmra.mxu0 %v716
      %v784 = vpop.f32.mrf.mxu0
      %v785 = vadd.f32 0.0, %v784
      %v786 = vpop.f32.mrf.mxu0
      %v787 = vadd.f32 0.0, %v786
      %788 = vmatmul.bf16.gmra.mxu0 %v719
      %v789 = vpop.f32.mrf.mxu0
      %v790 = vadd.f32 0.0, %v789
      %v791 = vpop.f32.mrf.mxu0
      %v792 = vadd.f32 0.0, %v791
      %793 = vmatmul.bf16.gmra.mxu0 %v722
      %v794 = vpop.f32.mrf.mxu0
      %v795 = vadd.f32 0.0, %v794
      %v796 = vpop.f32.mrf.mxu0
      %v797 = vadd.f32 0.0, %v796
      %798 = vmatmul.bf16.gmra.mxu0 %v725
      %v799 = vpop.f32.mrf.mxu0
      %v800 = vadd.f32 0.0, %v799
      %v801 = vpop.f32.mrf.mxu0
      %v802 = vadd.f32 0.0, %v801
      %803 = vmatmul.bf16.gmra.mxu0 %v728
      %v804 = vpop.f32.mrf.mxu0
      %v805 = vadd.f32 0.0, %v804
      %v806 = vpop.f32.mrf.mxu0
      %v807 = vadd.f32 0.0, %v806
      %808 = vmatmul.bf16.gmra.mxu0 %v731
      %v809 = vpop.f32.mrf.mxu0
      %v810 = vadd.f32 0.0, %v809
      %v811 = vpop.f32.mrf.mxu0
      %v812 = vadd.f32 0.0, %v811
      %813 = vmatmul.bf16.gmra.mxu0 %v734
      %v814 = vpop.f32.mrf.mxu0
      %v815 = vadd.f32 0.0, %v814
      %v816 = vpop.f32.mrf.mxu0
      %v817 = vadd.f32 0.0, %v816
      %818 = vmatmul.bf16.gmra.mxu0 %v737
      %v819 = vpop.f32.mrf.mxu0
      %v820 = vadd.f32 0.0, %v819
      %v821 = vpop.f32.mrf.mxu0
      %v822 = vadd.f32 0.0, %v821
      %823 = vmatmul.bf16.gmra.mxu0 %v740
      %v824 = vpop.f32.mrf.mxu0
      %v825 = vadd.f32 0.0, %v824
      %v826 = vpop.f32.mrf.mxu0
      %v827 = vadd.f32 0.0, %v826
      %828 = vmatmul.bf16.gmra.mxu0 %v743
      %v829 = vpop.f32.mrf.mxu0
      %v830 = vadd.f32 0.0, %v829
      %v831 = vpop.f32.mrf.mxu0
      %v832 = vadd.f32 0.0, %v831
      %833 = vdwg.mxu0
      %v866 = vunpack.c.l.b16 %v172
      %v867 = vunpack.c.l.b16 %v173
      %v868 = vunpack.c.l.b16 %v174
      %v869 = vunpack.c.l.b16 %v175
      %v870 = vunpack.c.l.b16 %v176
      %v871 = vunpack.c.l.b16 %v177
      %v872 = vunpack.c.l.b16 %v178
      %v873 = vunpack.c.l.b16 %v179
      %v874 = vunpack.c.l.b16 %v180
      %v875 = vunpack.c.l.b16 %v181
      %v876 = vunpack.c.l.b16 %v182
      %v877 = vunpack.c.l.b16 %v183
      %v878 = vunpack.c.l.b16 %v184
      %v879 = vunpack.c.l.b16 %v185
      %v880 = vunpack.c.l.b16 %v186
      %v881 = vunpack.c.l.b16 %v187
      %v882 = vunpack.c.l.b16 %v188
      %v883 = vunpack.c.l.b16 %v189
      %v884 = vunpack.c.l.b16 %v190
      %v885 = vunpack.c.l.b16 %v191
      %v886 = vunpack.c.l.b16 %v192
      %v887 = vunpack.c.l.b16 %v193
      %v888 = vunpack.c.l.b16 %v194
      %v889 = vunpack.c.l.b16 %v195
      %v890 = vunpack.c.l.b16 %v196
      %v891 = vunpack.c.l.b16 %v197
      %v892 = vunpack.c.l.b16 %v198
      %v893 = vunpack.c.l.b16 %v199
      %v894 = vunpack.c.l.b16 %v200
      %v895 = vunpack.c.l.b16 %v201
      %v896 = vunpack.c.l.b16 %v202
      %v897 = vunpack.c.l.b16 %v203
      %v898 = vpack.c.b16 %v867, %v866
      %v899 = vpack.c.b16 %v869, %v868
      %v900 = vpack.c.b16 %v871, %v870
      %v901 = vpack.c.b16 %v873, %v872
      %v902 = vpack.c.b16 %v875, %v874
      %v903 = vpack.c.b16 %v877, %v876
      %v904 = vpack.c.b16 %v879, %v878
      %v905 = vpack.c.b16 %v881, %v880
      %v906 = vpack.c.b16 %v883, %v882
      %v907 = vpack.c.b16 %v885, %v884
      %v908 = vpack.c.b16 %v887, %v886
      %v909 = vpack.c.b16 %v889, %v888
      %v910 = vpack.c.b16 %v891, %v890
      %v911 = vpack.c.b16 %v893, %v892
      %v912 = vpack.c.b16 %v895, %v894
      %v913 = vpack.c.b16 %v897, %v896
      %v922 = vunpack.c.l.b16 %v204
      %v923 = vunpack.c.l.b16 %v205
      %v924 = vunpack.c.l.b16 %v206
      %v925 = vunpack.c.l.b16 %v207
      %v926 = vunpack.c.l.b16 %v208
      %v927 = vunpack.c.l.b16 %v209
      %v928 = vunpack.c.l.b16 %v210
      %v929 = vunpack.c.l.b16 %v211
      %v930 = vpack.c.b16 %v923, %v922
      %v931 = vpack.c.b16 %v925, %v924
      %v932 = vpack.c.b16 %v927, %v926
      %v933 = vpack.c.b16 %v929, %v928
      %v939 = vsel %vm696, %v898, 0
      %v942 = vsel %vm696, %v899, 0
      %v945 = vsel %vm696, %v900, 0
      %v948 = vsel %vm696, %v901, 0
      %v951 = vsel %vm696, %v902, 0
      %v954 = vsel %vm696, %v903, 0
      %v957 = vsel %vm696, %v904, 0
      %v960 = vsel %vm696, %v905, 0
      %v963 = vsel %vm696, %v906, 0
      %v966 = vsel %vm696, %v907, 0
      %v969 = vsel %vm696, %v908, 0
      %v972 = vsel %vm696, %v909, 0
      %v975 = vsel %vm696, %v910, 0
      %v978 = vsel %vm696, %v911, 0
      %v981 = vsel %vm696, %v912, 0
      %v984 = vsel %vm696, %v913, 0
      %986 = vmatpush.bf16.msra.mxu0 0
      %987 = vmatpush.bf16.msra.mxu0 0
      %988 = vmatpush.bf16.msra.mxu0 0
      %989 = vmatpush.bf16.msra.mxu0 0
      %990 = vmatpush.bf16.msra.mxu0 %v933
      %991 = vmatpush.bf16.msra.mxu0 %v932
      %992 = vmatpush.bf16.msra.mxu0 %v931
      %993 = vmatpush.bf16.msra.mxu0 %v930
      %994 = vmatmul.bf16.gmra.mxu0 %v939
      %v995 = vpop.f32.mrf.mxu0
      %v996 = vadd.f32 %v755, %v995
      %v997 = vpop.f32.mrf.mxu0
      %v998 = vadd.f32 %v757, %v997
      %999 = vmatmul.bf16.gmra.mxu0 %v942
      %v1000 = vpop.f32.mrf.mxu0
      %v1001 = vadd.f32 %v760, %v1000
      %v1002 = vpop.f32.mrf.mxu0
      %v1003 = vadd.f32 %v762, %v1002
      %1004 = vmatmul.bf16.gmra.mxu0 %v945
      %v1005 = vpop.f32.mrf.mxu0
      %v1006 = vadd.f32 %v765, %v1005
      %v1007 = vpop.f32.mrf.mxu0
      %v1008 = vadd.f32 %v767, %v1007
      %1009 = vmatmul.bf16.gmra.mxu0 %v948
      %v1010 = vpop.f32.mrf.mxu0
      %v1011 = vadd.f32 %v770, %v1010
      %v1012 = vpop.f32.mrf.mxu0
      %v1013 = vadd.f32 %v772, %v1012
      %1014 = vmatmul.bf16.gmra.mxu0 %v951
      %v1015 = vpop.f32.mrf.mxu0
      %v1016 = vadd.f32 %v775, %v1015
      %v1017 = vpop.f32.mrf.mxu0
      %v1018 = vadd.f32 %v777, %v1017
      %1019 = vmatmul.bf16.gmra.mxu0 %v954
      %v1020 = vpop.f32.mrf.mxu0
      %v1021 = vadd.f32 %v780, %v1020
      %v1022 = vpop.f32.mrf.mxu0
      %v1023 = vadd.f32 %v782, %v1022
      %1024 = vmatmul.bf16.gmra.mxu0 %v957
      %v1025 = vpop.f32.mrf.mxu0
      %v1026 = vadd.f32 %v785, %v1025
      %v1027 = vpop.f32.mrf.mxu0
      %v1028 = vadd.f32 %v787, %v1027
      %1029 = vmatmul.bf16.gmra.mxu0 %v960
      %v1030 = vpop.f32.mrf.mxu0
      %v1031 = vadd.f32 %v790, %v1030
      %v1032 = vpop.f32.mrf.mxu0
      %v1033 = vadd.f32 %v792, %v1032
      %1034 = vmatmul.bf16.gmra.mxu0 %v963
      %v1035 = vpop.f32.mrf.mxu0
      %v1036 = vadd.f32 %v795, %v1035
      %v1037 = vpop.f32.mrf.mxu0
      %v1038 = vadd.f32 %v797, %v1037
      %1039 = vmatmul.bf16.gmra.mxu0 %v966
      %v1040 = vpop.f32.mrf.mxu0
      %v1041 = vadd.f32 %v800, %v1040
      %v1042 = vpop.f32.mrf.mxu0
      %v1043 = vadd.f32 %v802, %v1042
      %1044 = vmatmul.bf16.gmra.mxu0 %v969
      %v1045 = vpop.f32.mrf.mxu0
      %v1046 = vadd.f32 %v805, %v1045
      %v1047 = vpop.f32.mrf.mxu0
      %v1048 = vadd.f32 %v807, %v1047
      %1049 = vmatmul.bf16.gmra.mxu0 %v972
      %v1050 = vpop.f32.mrf.mxu0
      %v1051 = vadd.f32 %v810, %v1050
      %v1052 = vpop.f32.mrf.mxu0
      %v1053 = vadd.f32 %v812, %v1052
      %1054 = vmatmul.bf16.gmra.mxu0 %v975
      %v1055 = vpop.f32.mrf.mxu0
      %v1056 = vadd.f32 %v815, %v1055
      %v1057 = vpop.f32.mrf.mxu0
      %v1058 = vadd.f32 %v817, %v1057
      %1059 = vmatmul.bf16.gmra.mxu0 %v978
      %v1060 = vpop.f32.mrf.mxu0
      %v1061 = vadd.f32 %v820, %v1060
      %v1062 = vpop.f32.mrf.mxu0
      %v1063 = vadd.f32 %v822, %v1062
      %1064 = vmatmul.bf16.gmra.mxu0 %v981
      %v1065 = vpop.f32.mrf.mxu0
      %v1066 = vadd.f32 %v825, %v1065
      %v1067 = vpop.f32.mrf.mxu0
      %v1068 = vadd.f32 %v827, %v1067
      %1069 = vmatmul.bf16.gmra.mxu0 %v984
      %v1070 = vpop.f32.mrf.mxu0
      %v1071 = vadd.f32 %v830, %v1070
      %v1072 = vpop.f32.mrf.mxu0
      %v1073 = vadd.f32 %v832, %v1072
      %1074 = vdwg.mxu0
      %v1075 = vld [vmem:[%s165] sm:$0xe]
      %v1076 = vld [vmem:[%s165 + $0xc] sm:$0xe]
      %v1077 = vld [vmem:[%s165 + $0x18] sm:$0xe]
      %v1078 = vld [vmem:[%s165 + $0x24] sm:$0xe]
      %v1079 = vld [vmem:[%s165 + $0x30] sm:$0xe]
      %v1080 = vld [vmem:[%s165 + $0x3c] sm:$0xe]
      %v1081 = vld [vmem:[%s165 + $0x48] sm:$0xe]
      %v1082 = vld [vmem:[%s165 + $0x54] sm:$0xe]
      %v1083 = vld [vmem:[%s165 + $0x60] sm:$0xe]
      %v1084 = vld [vmem:[%s165 + $0x6c] sm:$0xe]
      %v1085 = vld [vmem:[%s165 + $0x78] sm:$0xe]
      %v1086 = vld [vmem:[%s165 + $0x84] sm:$0xe]
      %v1087 = vld [vmem:[%s165 + $0x90] sm:$0xe]
      %v1088 = vld [vmem:[%s165 + $0x9c] sm:$0xe]
      %v1089 = vld [vmem:[%s165 + $0xa8] sm:$0xe]
      %v1090 = vld [vmem:[%s165 + $0xb4] sm:$0xe]
      %vm1123 = vcmask 1042432
      %vm1124 = vcmask 1046532
      %vm1125 = vmor %vm1123, %vm1124
      %v1126 = vrot.slane %v1075, 5
      %v1127 = vrot.slane %v1126, 4
      %v1128 = vrot.slane %v173, 5
      %v1129 = vsel %vm1125, %v1127, %v1128
      %v1130 = vrot.slane %v1128, 4
      %v1131 = vrot.slane %v212, 5
      %v1132 = vsel %vm1125, %v1130, %v1131
      %v1133 = vrot.slane %v1076, 5
      %v1134 = vrot.slane %v1133, 4
      %v1135 = vrot.slane %v175, 5
      %v1136 = vsel %vm1125, %v1134, %v1135
      %v1137 = vrot.slane %v1135, 4
      %v1138 = vrot.slane %v213, 5
      %v1139 = vsel %vm1125, %v1137, %v1138
      %v1140 = vrot.slane %v1077, 5
      %v1141 = vrot.slane %v1140, 4
      %v1142 = vrot.slane %v177, 5
      %v1143 = vsel %vm1125, %v1141, %v1142
      %v1144 = vrot.slane %v1142, 4
      %v1145 = vrot.slane %v214, 5
      %v1146 = vsel %vm1125, %v1144, %v1145
      %v1147 = vrot.slane %v1078, 5
      %v1148 = vrot.slane %v1147, 4
      %v1149 = vrot.slane %v179, 5
      %v1150 = vsel %vm1125, %v1148, %v1149
      %v1151 = vrot.slane %v1149, 4
      %v1152 = vrot.slane %v215, 5
      %v1153 = vsel %vm1125, %v1151, %v1152
      %v1154 = vrot.slane %v1079, 5
      %v1155 = vrot.slane %v1154, 4
      %v1156 = vrot.slane %v181, 5
      %v1157 = vsel %vm1125, %v1155, %v1156
      %v1158 = vrot.slane %v1156, 4
      %v1159 = vrot.slane %v216, 5
      %v1160 = vsel %vm1125, %v1158, %v1159
      %v1161 = vrot.slane %v1080, 5
      %v1162 = vrot.slane %v1161, 4
      %v1163 = vrot.slane %v183, 5
      %v1164 = vsel %vm1125, %v1162, %v1163
      %v1165 = vrot.slane %v1163, 4
      %v1166 = vrot.slane %v217, 5
      %v1167 = vsel %vm1125, %v1165, %v1166
      %v1168 = vrot.slane %v1081, 5
      %v1169 = vrot.slane %v1168, 4
      %v1170 = vrot.slane %v185, 5
      %v1171 = vsel %vm1125, %v1169, %v1170
      %v1172 = vrot.slane %v1170, 4
      %v1173 = vrot.slane %v218, 5
      %v1174 = vsel %vm1125, %v1172, %v1173
      %v1175 = vrot.slane %v1082, 5
      %v1176 = vrot.slane %v1175, 4
      %v1177 = vrot.slane %v187, 5
      %v1178 = vsel %vm1125, %v1176, %v1177
      %v1179 = vrot.slane %v1177, 4
      %v1180 = vrot.slane %v219, 5
      %v1181 = vsel %vm1125, %v1179, %v1180
      %v1182 = vrot.slane %v1083, 5
      %v1183 = vrot.slane %v1182, 4
      %v1184 = vrot.slane %v189, 5
      %v1185 = vsel %vm1125, %v1183, %v1184
      %v1186 = vrot.slane %v1184, 4
      %v1187 = vrot.slane %v220, 5
      %v1188 = vsel %vm1125, %v1186, %v1187
      %v1189 = vrot.slane %v1084, 5
      %v1190 = vrot.slane %v1189, 4
      %v1191 = vrot.slane %v191, 5
      %v1192 = vsel %vm1125, %v1190, %v1191
      %v1193 = vrot.slane %v1191, 4
      %v1194 = vrot.slane %v221, 5
      %v1195 = vsel %vm1125, %v1193, %v1194
      %v1196 = vrot.slane %v1085, 5
      %v1197 = vrot.slane %v1196, 4
      %v1198 = vrot.slane %v193, 5
      %v1199 = vsel %vm1125, %v1197, %v1198
      %v1200 = vrot.slane %v1198, 4
      %v1201 = vrot.slane %v222, 5
      %v1202 = vsel %vm1125, %v1200, %v1201
      %v1203 = vrot.slane %v1086, 5
      %v1204 = vrot.slane %v1203, 4
      %v1205 = vrot.slane %v195, 5
      %v1206 = vsel %vm1125, %v1204, %v1205
      %v1207 = vrot.slane %v1205, 4
      %v1208 = vrot.slane %v223, 5
      %v1209 = vsel %vm1125, %v1207, %v1208
      %v1210 = vrot.slane %v1087, 5
      %v1211 = vrot.slane %v1210, 4
      %v1212 = vrot.slane %v197, 5
      %v1213 = vsel %vm1125, %v1211, %v1212
      %v1214 = vrot.slane %v1212, 4
      %v1215 = vrot.slane %v224, 5
      %v1216 = vsel %vm1125, %v1214, %v1215
      %v1217 = vrot.slane %v1088, 5
      %v1218 = vrot.slane %v1217, 4
      %v1219 = vrot.slane %v199, 5
      %v1220 = vsel %vm1125, %v1218, %v1219
      %v1221 = vrot.slane %v1219, 4
      %v1222 = vrot.slane %v225, 5
      %v1223 = vsel %vm1125, %v1221, %v1222
      %v1224 = vrot.slane %v1089, 5
      %v1225 = vrot.slane %v1224, 4
      %v1226 = vrot.slane %v201, 5
      %v1227 = vsel %vm1125, %v1225, %v1226
      %v1228 = vrot.slane %v1226, 4
      %v1229 = vrot.slane %v226, 5
      %v1230 = vsel %vm1125, %v1228, %v1229
      %v1231 = vrot.slane %v1090, 5
      %v1232 = vrot.slane %v1231, 4
      %v1233 = vrot.slane %v203, 5
      %v1234 = vsel %vm1125, %v1232, %v1233
      %v1235 = vrot.slane %v1233, 4
      %v1236 = vrot.slane %v227, 5
      %v1237 = vsel %vm1125, %v1235, %v1236
      %s1238 = scalar_lea.vmem %s1, 64
      %v1239 = vld [vmem:[%s1238] sm:$0xf]
      %v1240 = vld [vmem:[%s1238 + $0x4] sm:$0xf]
      %v1241 = vld [vmem:[%s1238 + $0x8] sm:$0xf]
      %v1242 = vld [vmem:[%s1238 + $0xc] sm:$0xf]
      %v1243 = vld [vmem:[%s1238 + $0x10] sm:$0xf]
      %v1244 = vld [vmem:[%s1238 + $0x14] sm:$0xf]
      %v1245 = vld [vmem:[%s1238 + $0x18] sm:$0xf]
      %v1246 = vld [vmem:[%s1238 + $0x1c] sm:$0xf]
      %v1247 = vunpack.c.l.b16 %v1129
      %v1248 = vunpack.c.l.b16 %v1132
      %v1249 = vunpack.c.l.b16 %v1136
      %v1250 = vunpack.c.l.b16 %v1139
      %v1251 = vunpack.c.l.b16 %v1143
      %v1252 = vunpack.c.l.b16 %v1146
      %v1253 = vunpack.c.l.b16 %v1150
      %v1254 = vunpack.c.l.b16 %v1153
      %v1255 = vunpack.c.l.b16 %v1157
      %v1256 = vunpack.c.l.b16 %v1160
      %v1257 = vunpack.c.l.b16 %v1164
      %v1258 = vunpack.c.l.b16 %v1167
      %v1259 = vunpack.c.l.b16 %v1171
      %v1260 = vunpack.c.l.b16 %v1174
      %v1261 = vunpack.c.l.b16 %v1178
      %v1262 = vunpack.c.l.b16 %v1181
      %v1263 = vunpack.c.l.b16 %v1185
      %v1264 = vunpack.c.l.b16 %v1188
      %v1265 = vunpack.c.l.b16 %v1192
      %v1266 = vunpack.c.l.b16 %v1195
      %v1267 = vunpack.c.l.b16 %v1199
      %v1268 = vunpack.c.l.b16 %v1202
      %v1269 = vunpack.c.l.b16 %v1206
      %v1270 = vunpack.c.l.b16 %v1209
      %v1271 = vunpack.c.l.b16 %v1213
      %v1272 = vunpack.c.l.b16 %v1216
      %v1273 = vunpack.c.l.b16 %v1220
      %v1274 = vunpack.c.l.b16 %v1223
      %v1275 = vunpack.c.l.b16 %v1227
      %v1276 = vunpack.c.l.b16 %v1230
      %v1277 = vunpack.c.l.b16 %v1234
      %v1278 = vunpack.c.l.b16 %v1237
      %v1279 = vpack.c.b16 %v1248, %v1247
      %v1280 = vpack.c.b16 %v1250, %v1249
      %v1281 = vpack.c.b16 %v1252, %v1251
      %v1282 = vpack.c.b16 %v1254, %v1253
      %v1283 = vpack.c.b16 %v1256, %v1255
      %v1284 = vpack.c.b16 %v1258, %v1257
      %v1285 = vpack.c.b16 %v1260, %v1259
      %v1286 = vpack.c.b16 %v1262, %v1261
      %v1287 = vpack.c.b16 %v1264, %v1263
      %v1288 = vpack.c.b16 %v1266, %v1265
      %v1289 = vpack.c.b16 %v1268, %v1267
      %v1290 = vpack.c.b16 %v1270, %v1269
      %v1291 = vpack.c.b16 %v1272, %v1271
      %v1292 = vpack.c.b16 %v1274, %v1273
      %v1293 = vpack.c.b16 %v1276, %v1275
      %v1294 = vpack.c.b16 %v1278, %v1277
      %v1303 = vunpack.c.l.b16 %v1239
      %v1304 = vunpack.c.l.b16 %v1240
      %v1305 = vunpack.c.l.b16 %v1241
      %v1306 = vunpack.c.l.b16 %v1242
      %v1307 = vunpack.c.l.b16 %v1243
      %v1308 = vunpack.c.l.b16 %v1244
      %v1309 = vunpack.c.l.b16 %v1245
      %v1310 = vunpack.c.l.b16 %v1246
      %v1311 = vpack.c.b16 %v1304, %v1303
      %v1312 = vpack.c.b16 %v1306, %v1305
      %v1313 = vpack.c.b16 %v1308, %v1307
      %v1314 = vpack.c.b16 %v1310, %v1309
      %v1320 = vsel %vm696, %v1279, 0
      %v1323 = vsel %vm696, %v1280, 0
      %v1326 = vsel %vm696, %v1281, 0
      %v1329 = vsel %vm696, %v1282, 0
      %v1332 = vsel %vm696, %v1283, 0
      %v1335 = vsel %vm696, %v1284, 0
      %v1338 = vsel %vm696, %v1285, 0
      %v1341 = vsel %vm696, %v1286, 0
      %v1344 = vsel %vm696, %v1287, 0
      %v1347 = vsel %vm696, %v1288, 0
      %v1350 = vsel %vm696, %v1289, 0
      %v1353 = vsel %vm696, %v1290, 0
      %v1356 = vsel %vm696, %v1291, 0
      %v1359 = vsel %vm696, %v1292, 0
      %v1362 = vsel %vm696, %v1293, 0
      %v1365 = vsel %vm696, %v1294, 0
      %1367 = vmatpush.bf16.msra.mxu0 0
      %1368 = vmatpush.bf16.msra.mxu0 0
      %1369 = vmatpush.bf16.msra.mxu0 0
      %1370 = vmatpush.bf16.msra.mxu0 0
      %1371 = vmatpush.bf16.msra.mxu0 %v1314
      %1372 = vmatpush.bf16.msra.mxu0 %v1313
      %1373 = vmatpush.bf16.msra.mxu0 %v1312
      %1374 = vmatpush.bf16.msra.mxu0 %v1311
      %1375 = vmatmul.bf16.gmra.mxu0 %v1320
      %v1376 = vpop.f32.mrf.mxu0
      %v1377 = vadd.f32 0.0, %v1376
      %v1378 = vpop.f32.mrf.mxu0
      %v1379 = vadd.f32 0.0, %v1378
      %1380 = vmatmul.bf16.gmra.mxu0 %v1323
      %v1381 = vpop.f32.mrf.mxu0
      %v1382 = vadd.f32 0.0, %v1381
      %v1383 = vpop.f32.mrf.mxu0
      %v1384 = vadd.f32 0.0, %v1383
      %1385 = vmatmul.bf16.gmra.mxu0 %v1326
      %v1386 = vpop.f32.mrf.mxu0
      %v1387 = vadd.f32 0.0, %v1386
      %v1388 = vpop.f32.mrf.mxu0
      %v1389 = vadd.f32 0.0, %v1388
      %1390 = vmatmul.bf16.gmra.mxu0 %v1329
      %v1391 = vpop.f32.mrf.mxu0
      %v1392 = vadd.f32 0.0, %v1391
      %v1393 = vpop.f32.mrf.mxu0
      %v1394 = vadd.f32 0.0, %v1393
      %1395 = vmatmul.bf16.gmra.mxu0 %v1332
      %v1396 = vpop.f32.mrf.mxu0
      %v1397 = vadd.f32 0.0, %v1396
      %v1398 = vpop.f32.mrf.mxu0
      %v1399 = vadd.f32 0.0, %v1398
      %1400 = vmatmul.bf16.gmra.mxu0 %v1335
      %v1401 = vpop.f32.mrf.mxu0
      %v1402 = vadd.f32 0.0, %v1401
      %v1403 = vpop.f32.mrf.mxu0
      %v1404 = vadd.f32 0.0, %v1403
      %1405 = vmatmul.bf16.gmra.mxu0 %v1338
      %v1406 = vpop.f32.mrf.mxu0
      %v1407 = vadd.f32 0.0, %v1406
      %v1408 = vpop.f32.mrf.mxu0
      %v1409 = vadd.f32 0.0, %v1408
      %1410 = vmatmul.bf16.gmra.mxu0 %v1341
      %v1411 = vpop.f32.mrf.mxu0
      %v1412 = vadd.f32 0.0, %v1411
      %v1413 = vpop.f32.mrf.mxu0
      %v1414 = vadd.f32 0.0, %v1413
      %1415 = vmatmul.bf16.gmra.mxu0 %v1344
      %v1416 = vpop.f32.mrf.mxu0
      %v1417 = vadd.f32 0.0, %v1416
      %v1418 = vpop.f32.mrf.mxu0
      %v1419 = vadd.f32 0.0, %v1418
      %1420 = vmatmul.bf16.gmra.mxu0 %v1347
      %v1421 = vpop.f32.mrf.mxu0
      %v1422 = vadd.f32 0.0, %v1421
      %v1423 = vpop.f32.mrf.mxu0
      %v1424 = vadd.f32 0.0, %v1423
      %1425 = vmatmul.bf16.gmra.mxu0 %v1350
      %v1426 = vpop.f32.mrf.mxu0
      %v1427 = vadd.f32 0.0, %v1426
      %v1428 = vpop.f32.mrf.mxu0
      %v1429 = vadd.f32 0.0, %v1428
      %1430 = vmatmul.bf16.gmra.mxu0 %v1353
      %v1431 = vpop.f32.mrf.mxu0
      %v1432 = vadd.f32 0.0, %v1431
      %v1433 = vpop.f32.mrf.mxu0
      %v1434 = vadd.f32 0.0, %v1433
      %1435 = vmatmul.bf16.gmra.mxu0 %v1356
      %v1436 = vpop.f32.mrf.mxu0
      %v1437 = vadd.f32 0.0, %v1436
      %v1438 = vpop.f32.mrf.mxu0
      %v1439 = vadd.f32 0.0, %v1438
      %1440 = vmatmul.bf16.gmra.mxu0 %v1359
      %v1441 = vpop.f32.mrf.mxu0
      %v1442 = vadd.f32 0.0, %v1441
      %v1443 = vpop.f32.mrf.mxu0
      %v1444 = vadd.f32 0.0, %v1443
      %1445 = vmatmul.bf16.gmra.mxu0 %v1362
      %v1446 = vpop.f32.mrf.mxu0
      %v1447 = vadd.f32 0.0, %v1446
      %v1448 = vpop.f32.mrf.mxu0
      %v1449 = vadd.f32 0.0, %v1448
      %1450 = vmatmul.bf16.gmra.mxu0 %v1365
      %v1451 = vpop.f32.mrf.mxu0
      %v1452 = vadd.f32 0.0, %v1451
      %v1453 = vpop.f32.mrf.mxu0
      %v1454 = vadd.f32 0.0, %v1453
      %1455 = vdwg.mxu0
      %v1456 = vadd.f32 %v996, %v1377
      %v1457 = vadd.f32 %v998, %v1379
      %v1458 = vadd.f32 %v1001, %v1382
      %v1459 = vadd.f32 %v1003, %v1384
      %v1460 = vadd.f32 %v1006, %v1387
      %v1461 = vadd.f32 %v1008, %v1389
      %v1462 = vadd.f32 %v1011, %v1392
      %v1463 = vadd.f32 %v1013, %v1394
      %v1464 = vadd.f32 %v1016, %v1397
      %v1465 = vadd.f32 %v1018, %v1399
      %v1466 = vadd.f32 %v1021, %v1402
      %v1467 = vadd.f32 %v1023, %v1404
      %v1468 = vadd.f32 %v1026, %v1407
      %v1469 = vadd.f32 %v1028, %v1409
      %v1470 = vadd.f32 %v1031, %v1412
      %v1471 = vadd.f32 %v1033, %v1414
      %v1472 = vadd.f32 %v1036, %v1417
      %v1473 = vadd.f32 %v1038, %v1419
      %v1474 = vadd.f32 %v1041, %v1422
      %v1475 = vadd.f32 %v1043, %v1424
      %v1476 = vadd.f32 %v1046, %v1427
      %v1477 = vadd.f32 %v1048, %v1429
      %v1478 = vadd.f32 %v1051, %v1432
      %v1479 = vadd.f32 %v1053, %v1434
      %v1480 = vadd.f32 %v1056, %v1437
      %v1481 = vadd.f32 %v1058, %v1439
      %v1482 = vadd.f32 %v1061, %v1442
      %v1483 = vadd.f32 %v1063, %v1444
      %v1484 = vadd.f32 %v1066, %v1447
      %v1485 = vadd.f32 %v1068, %v1449
      %v1486 = vadd.f32 %v1071, %v1452
      %v1487 = vadd.f32 %v1073, %v1454
      %s1488 = scalar_lea.vmem %s165, 12
      %v1489 = vld [vmem:[%s1488] sm:$0xf]
      %v1490 = vld [vmem:[%s1488 + $0x4] sm:$0xf]
      %v1491 = vld [vmem:[%s1488 + $0xc] sm:$0xf]
      %v1492 = vld [vmem:[%s1488 + $0x10] sm:$0xf]
      %v1493 = vld [vmem:[%s1488 + $0x18] sm:$0xf]
      %v1494 = vld [vmem:[%s1488 + $0x1c] sm:$0xf]
      %v1495 = vld [vmem:[%s1488 + $0x24] sm:$0xf]
      %v1496 = vld [vmem:[%s1488 + $0x28] sm:$0xf]
      %v1497 = vld [vmem:[%s1488 + $0x30] sm:$0xf]
      %v1498 = vld [vmem:[%s1488 + $0x34] sm:$0xf]
      %v1499 = vld [vmem:[%s1488 + $0x3c] sm:$0xf]
      %v1500 = vld [vmem:[%s1488 + $0x40] sm:$0xf]
      %v1501 = vld [vmem:[%s1488 + $0x48] sm:$0xf]
      %v1502 = vld [vmem:[%s1488 + $0x4c] sm:$0xf]
      %v1503 = vld [vmem:[%s1488 + $0x54] sm:$0xf]
      %v1504 = vld [vmem:[%s1488 + $0x58] sm:$0xf]
      %v1505 = vld [vmem:[%s1488 + $0x60] sm:$0xf]
      %v1506 = vld [vmem:[%s1488 + $0x64] sm:$0xf]
      %v1507 = vld [vmem:[%s1488 + $0x6c] sm:$0xf]
      %v1508 = vld [vmem:[%s1488 + $0x70] sm:$0xf]
      %v1509 = vld [vmem:[%s1488 + $0x78] sm:$0xf]
      %v1510 = vld [vmem:[%s1488 + $0x7c] sm:$0xf]
      %v1511 = vld [vmem:[%s1488 + $0x84] sm:$0xf]
      %v1512 = vld [vmem:[%s1488 + $0x88] sm:$0xf]
      %v1513 = vld [vmem:[%s1488 + $0x90] sm:$0xf]
      %v1514 = vld [vmem:[%s1488 + $0x94] sm:$0xf]
      %v1515 = vld [vmem:[%s1488 + $0x9c] sm:$0xf]
      %v1516 = vld [vmem:[%s1488 + $0xa0] sm:$0xf]
      %v1517 = vld [vmem:[%s1488 + $0xa8] sm:$0xf]
      %v1518 = vld [vmem:[%s1488 + $0xac] sm:$0xf]
      %v1519 = vld [vmem:[%s1488 + $0xb4] sm:$0xf]
      %v1520 = vld [vmem:[%s1488 + $0xb8] sm:$0xf]
      %s1521 = scalar_lea.vmem %s1, 96
      %v1522 = vld [vmem:[%s1521] sm:$0xf]
      %v1523 = vld [vmem:[%s1521 + $0x4] sm:$0xf]
      %v1524 = vld [vmem:[%s1521 + $0x8] sm:$0xf]
      %v1525 = vld [vmem:[%s1521 + $0xc] sm:$0xf]
      %v1526 = vld [vmem:[%s1521 + $0x10] sm:$0xf]
      %v1527 = vld [vmem:[%s1521 + $0x14] sm:$0xf]
      %v1528 = vld [vmem:[%s1521 + $0x18] sm:$0xf]
      %v1529 = vld [vmem:[%s1521 + $0x1c] sm:$0xf]
      %v1562 = vunpack.c.l.b16 %v1489
      %v1563 = vunpack.c.l.b16 %v1490
      %v1564 = vunpack.c.l.b16 %v1491
      %v1565 = vunpack.c.l.b16 %v1492
      %v1566 = vunpack.c.l.b16 %v1493
      %v1567 = vunpack.c.l.b16 %v1494
      %v1568 = vunpack.c.l.b16 %v1495
      %v1569 = vunpack.c.l.b16 %v1496
      %v1570 = vunpack.c.l.b16 %v1497
      %v1571 = vunpack.c.l.b16 %v1498
      %v1572 = vunpack.c.l.b16 %v1499
      %v1573 = vunpack.c.l.b16 %v1500
      %v1574 = vunpack.c.l.b16 %v1501
      %v1575 = vunpack.c.l.b16 %v1502
      %v1576 = vunpack.c.l.b16 %v1503
      %v1577 = vunpack.c.l.b16 %v1504
      %v1578 = vunpack.c.l.b16 %v1505
      %v1579 = vunpack.c.l.b16 %v1506
      %v1580 = vunpack.c.l.b16 %v1507
      %v1581 = vunpack.c.l.b16 %v1508
      %v1582 = vunpack.c.l.b16 %v1509
      %v1583 = vunpack.c.l.b16 %v1510
      %v1584 = vunpack.c.l.b16 %v1511
      %v1585 = vunpack.c.l.b16 %v1512
      %v1586 = vunpack.c.l.b16 %v1513
      %v1587 = vunpack.c.l.b16 %v1514
      %v1588 = vunpack.c.l.b16 %v1515
      %v1589 = vunpack.c.l.b16 %v1516
      %v1590 = vunpack.c.l.b16 %v1517
      %v1591 = vunpack.c.l.b16 %v1518
      %v1592 = vunpack.c.l.b16 %v1519
      %v1593 = vunpack.c.l.b16 %v1520
      %v1594 = vpack.c.b16 %v1563, %v1562
      %v1595 = vpack.c.b16 %v1565, %v1564
      %v1596 = vpack.c.b16 %v1567, %v1566
      %v1597 = vpack.c.b16 %v1569, %v1568
      %v1598 = vpack.c.b16 %v1571, %v1570
      %v1599 = vpack.c.b16 %v1573, %v1572
      %v1600 = vpack.c.b16 %v1575, %v1574
      %v1601 = vpack.c.b16 %v1577, %v1576
      %v1602 = vpack.c.b16 %v1579, %v1578
      %v1603 = vpack.c.b16 %v1581, %v1580
      %v1604 = vpack.c.b16 %v1583, %v1582
      %v1605 = vpack.c.b16 %v1585, %v1584
      %v1606 = vpack.c.b16 %v1587, %v1586
      %v1607 = vpack.c.b16 %v1589, %v1588
      %v1608 = vpack.c.b16 %v1591, %v1590
      %v1609 = vpack.c.b16 %v1593, %v1592
      %v1618 = vunpack.c.l.b16 %v1522
      %v1619 = vunpack.c.l.b16 %v1523
      %v1620 = vunpack.c.l.b16 %v1524
      %v1621 = vunpack.c.l.b16 %v1525
      %v1622 = vunpack.c.l.b16 %v1526
      %v1623 = vunpack.c.l.b16 %v1527
      %v1624 = vunpack.c.l.b16 %v1528
      %v1625 = vunpack.c.l.b16 %v1529
      %v1626 = vpack.c.b16 %v1619, %v1618
      %v1627 = vpack.c.b16 %v1621, %v1620
      %v1628 = vpack.c.b16 %v1623, %v1622
      %v1629 = vpack.c.b16 %v1625, %v1624
      %v1635 = vsel %vm696, %v1594, 0
      %v1638 = vsel %vm696, %v1595, 0
      %v1641 = vsel %vm696, %v1596, 0
      %v1644 = vsel %vm696, %v1597, 0
      %v1647 = vsel %vm696, %v1598, 0
      %v1650 = vsel %vm696, %v1599, 0
      %v1653 = vsel %vm696, %v1600, 0
      %v1656 = vsel %vm696, %v1601, 0
      %v1659 = vsel %vm696, %v1602, 0
      %v1662 = vsel %vm696, %v1603, 0
      %v1665 = vsel %vm696, %v1604, 0
      %v1668 = vsel %vm696, %v1605, 0
      %v1671 = vsel %vm696, %v1606, 0
      %v1674 = vsel %vm696, %v1607, 0
      %v1677 = vsel %vm696, %v1608, 0
      %v1680 = vsel %vm696, %v1609, 0
      %1682 = vmatpush.bf16.msra.mxu0 0
      %1683 = vmatpush.bf16.msra.mxu0 0
      %1684 = vmatpush.bf16.msra.mxu0 0
      %1685 = vmatpush.bf16.msra.mxu0 0
      %1686 = vmatpush.bf16.msra.mxu0 %v1629
      %1687 = vmatpush.bf16.msra.mxu0 %v1628
      %1688 = vmatpush.bf16.msra.mxu0 %v1627
      %1689 = vmatpush.bf16.msra.mxu0 %v1626
      %1690 = vmatmul.bf16.gmra.mxu0 %v1635
      %v1691 = vpop.f32.mrf.mxu0
      %v1692 = vadd.f32 0.0, %v1691
      %v1693 = vpop.f32.mrf.mxu0
      %v1694 = vadd.f32 0.0, %v1693
      %1695 = vmatmul.bf16.gmra.mxu0 %v1638
      %v1696 = vpop.f32.mrf.mxu0
      %v1697 = vadd.f32 0.0, %v1696
      %v1698 = vpop.f32.mrf.mxu0
      %v1699 = vadd.f32 0.0, %v1698
      %1700 = vmatmul.bf16.gmra.mxu0 %v1641
      %v1701 = vpop.f32.mrf.mxu0
      %v1702 = vadd.f32 0.0, %v1701
      %v1703 = vpop.f32.mrf.mxu0
      %v1704 = vadd.f32 0.0, %v1703
      %1705 = vmatmul.bf16.gmra.mxu0 %v1644
      %v1706 = vpop.f32.mrf.mxu0
      %v1707 = vadd.f32 0.0, %v1706
      %v1708 = vpop.f32.mrf.mxu0
      %v1709 = vadd.f32 0.0, %v1708
      %1710 = vmatmul.bf16.gmra.mxu0 %v1647
      %v1711 = vpop.f32.mrf.mxu0
      %v1712 = vadd.f32 0.0, %v1711
      %v1713 = vpop.f32.mrf.mxu0
      %v1714 = vadd.f32 0.0, %v1713
      %1715 = vmatmul.bf16.gmra.mxu0 %v1650
      %v1716 = vpop.f32.mrf.mxu0
      %v1717 = vadd.f32 0.0, %v1716
      %v1718 = vpop.f32.mrf.mxu0
      %v1719 = vadd.f32 0.0, %v1718
      %1720 = vmatmul.bf16.gmra.mxu0 %v1653
      %v1721 = vpop.f32.mrf.mxu0
      %v1722 = vadd.f32 0.0, %v1721
      %v1723 = vpop.f32.mrf.mxu0
      %v1724 = vadd.f32 0.0, %v1723
      %1725 = vmatmul.bf16.gmra.mxu0 %v1656
      %v1726 = vpop.f32.mrf.mxu0
      %v1727 = vadd.f32 0.0, %v1726
      %v1728 = vpop.f32.mrf.mxu0
      %v1729 = vadd.f32 0.0, %v1728
      %1730 = vmatmul.bf16.gmra.mxu0 %v1659
      %v1731 = vpop.f32.mrf.mxu0
      %v1732 = vadd.f32 0.0, %v1731
      %v1733 = vpop.f32.mrf.mxu0
      %v1734 = vadd.f32 0.0, %v1733
      %1735 = vmatmul.bf16.gmra.mxu0 %v1662
      %v1736 = vpop.f32.mrf.mxu0
      %v1737 = vadd.f32 0.0, %v1736
      %v1738 = vpop.f32.mrf.mxu0
      %v1739 = vadd.f32 0.0, %v1738
      %1740 = vmatmul.bf16.gmra.mxu0 %v1665
      %v1741 = vpop.f32.mrf.mxu0
      %v1742 = vadd.f32 0.0, %v1741
      %v1743 = vpop.f32.mrf.mxu0
      %v1744 = vadd.f32 0.0, %v1743
      %1745 = vmatmul.bf16.gmra.mxu0 %v1668
      %v1746 = vpop.f32.mrf.mxu0
      %v1747 = vadd.f32 0.0, %v1746
      %v1748 = vpop.f32.mrf.mxu0
      %v1749 = vadd.f32 0.0, %v1748
      %1750 = vmatmul.bf16.gmra.mxu0 %v1671
      %v1751 = vpop.f32.mrf.mxu0
      %v1752 = vadd.f32 0.0, %v1751
      %v1753 = vpop.f32.mrf.mxu0
      %v1754 = vadd.f32 0.0, %v1753
      %1755 = vmatmul.bf16.gmra.mxu0 %v1674
      %v1756 = vpop.f32.mrf.mxu0
      %v1757 = vadd.f32 0.0, %v1756
      %v1758 = vpop.f32.mrf.mxu0
      %v1759 = vadd.f32 0.0, %v1758
      %1760 = vmatmul.bf16.gmra.mxu0 %v1677
      %v1761 = vpop.f32.mrf.mxu0
      %v1762 = vadd.f32 0.0, %v1761
      %v1763 = vpop.f32.mrf.mxu0
      %v1764 = vadd.f32 0.0, %v1763
      %1765 = vmatmul.bf16.gmra.mxu0 %v1680
      %v1766 = vpop.f32.mrf.mxu0
      %v1767 = vadd.f32 0.0, %v1766
      %v1768 = vpop.f32.mrf.mxu0
      %v1769 = vadd.f32 0.0, %v1768
      %1770 = vdwg.mxu0
      %v1771 = vadd.f32 %v1456, %v1692
      %v1772 = vadd.f32 %v1457, %v1694
      %v1773 = vadd.f32 %v1458, %v1697
      %v1774 = vadd.f32 %v1459, %v1699
      %v1775 = vadd.f32 %v1460, %v1702
      %v1776 = vadd.f32 %v1461, %v1704
      %v1777 = vadd.f32 %v1462, %v1707
      %v1778 = vadd.f32 %v1463, %v1709
      %v1779 = vadd.f32 %v1464, %v1712
      %v1780 = vadd.f32 %v1465, %v1714
      %v1781 = vadd.f32 %v1466, %v1717
      %v1782 = vadd.f32 %v1467, %v1719
      %v1783 = vadd.f32 %v1468, %v1722
      %v1784 = vadd.f32 %v1469, %v1724
      %v1785 = vadd.f32 %v1470, %v1727
      %v1786 = vadd.f32 %v1471, %v1729
      %v1787 = vadd.f32 %v1472, %v1732
      %v1788 = vadd.f32 %v1473, %v1734
      %v1789 = vadd.f32 %v1474, %v1737
      %v1790 = vadd.f32 %v1475, %v1739
      %v1791 = vadd.f32 %v1476, %v1742
      %v1792 = vadd.f32 %v1477, %v1744
      %v1793 = vadd.f32 %v1478, %v1747
      %v1794 = vadd.f32 %v1479, %v1749
      %v1795 = vadd.f32 %v1480, %v1752
      %v1796 = vadd.f32 %v1481, %v1754
      %v1797 = vadd.f32 %v1482, %v1757
      %v1798 = vadd.f32 %v1483, %v1759
      %v1799 = vadd.f32 %v1484, %v1762
      %v1800 = vadd.f32 %v1485, %v1764
      %v1801 = vadd.f32 %v1486, %v1767
      %v1802 = vadd.f32 %v1487, %v1769
      %v1803 = vld [vmem:[%s1488] sm:$0xf]
      %v1804 = vld [vmem:[%s1488 + $0x4] sm:$0xf]
      %v1805 = vld [vmem:[%s1488 + $0x8] sm:$0x1]
      %v1806 = vld [vmem:[%s1488 + $0xc] sm:$0xf]
      %v1807 = vld [vmem:[%s1488 + $0x10] sm:$0xf]
      %v1808 = vld [vmem:[%s1488 + $0x14] sm:$0x1]
      %v1809 = vld [vmem:[%s1488 + $0x18] sm:$0xf]
      %v1810 = vld [vmem:[%s1488 + $0x1c] sm:$0xf]
      %v1811 = vld [vmem:[%s1488 + $0x20] sm:$0x1]
      %v1812 = vld [vmem:[%s1488 + $0x24] sm:$0xf]
      %v1813 = vld [vmem:[%s1488 + $0x28] sm:$0xf]
      %v1814 = vld [vmem:[%s1488 + $0x2c] sm:$0x1]
      %v1815 = vld [vmem:[%s1488 + $0x30] sm:$0xf]
      %v1816 = vld [vmem:[%s1488 + $0x34] sm:$0xf]
      %v1817 = vld [vmem:[%s1488 + $0x38] sm:$0x1]
      %v1818 = vld [vmem:[%s1488 + $0x3c] sm:$0xf]
      %v1819 = vld [vmem:[%s1488 + $0x40] sm:$0xf]
      %v1820 = vld [vmem:[%s1488 + $0x44] sm:$0x1]
      %v1821 = vld [vmem:[%s1488 + $0x48] sm:$0xf]
      %v1822 = vld [vmem:[%s1488 + $0x4c] sm:$0xf]
      %v1823 = vld [vmem:[%s1488 + $0x50] sm:$0x1]
      %v1824 = vld [vmem:[%s1488 + $0x54] sm:$0xf]
      %v1825 = vld [vmem:[%s1488 + $0x58] sm:$0xf]
      %v1826 = vld [vmem:[%s1488 + $0x5c] sm:$0x1]
      %v1827 = vld [vmem:[%s1488 + $0x60] sm:$0xf]
      %v1828 = vld [vmem:[%s1488 + $0x64] sm:$0xf]
      %v1829 = vld [vmem:[%s1488 + $0x68] sm:$0x1]
      %v1830 = vld [vmem:[%s1488 + $0x6c] sm:$0xf]
      %v1831 = vld [vmem:[%s1488 + $0x70] sm:$0xf]
      %v1832 = vld [vmem:[%s1488 + $0x74] sm:$0x1]
      %v1833 = vld [vmem:[%s1488 + $0x78] sm:$0xf]
      %v1834 = vld [vmem:[%s1488 + $0x7c] sm:$0xf]
      %v1835 = vld [vmem:[%s1488 + $0x80] sm:$0x1]
      %v1836 = vld [vmem:[%s1488 + $0x84] sm:$0xf]
      %v1837 = vld [vmem:[%s1488 + $0x88] sm:$0xf]
      %v1838 = vld [vmem:[%s1488 + $0x8c] sm:$0x1]
      %v1839 = vld [vmem:[%s1488 + $0x90] sm:$0xf]
      %v1840 = vld [vmem:[%s1488 + $0x94] sm:$0xf]
      %v1841 = vld [vmem:[%s1488 + $0x98] sm:$0x1]
      %v1842 = vld [vmem:[%s1488 + $0x9c] sm:$0xf]
      %v1843 = vld [vmem:[%s1488 + $0xa0] sm:$0xf]
      %v1844 = vld [vmem:[%s1488 + $0xa4] sm:$0x1]
      %v1845 = vld [vmem:[%s1488 + $0xa8] sm:$0xf]
      %v1846 = vld [vmem:[%s1488 + $0xac] sm:$0xf]
      %v1847 = vld [vmem:[%s1488 + $0xb0] sm:$0x1]
      %v1848 = vld [vmem:[%s1488 + $0xb4] sm:$0xf]
      %v1849 = vld [vmem:[%s1488 + $0xb8] sm:$0xf]
      %v1850 = vld [vmem:[%s1488 + $0xbc] sm:$0x1]
      %v1852 = vshrl.u32 %v1803, 16
      %v1854 = vrot.slane %v1852, 4
      %v1855 = vshll.u32 %v1803, 16
      %v1857 = vrot.slane %v1855, 5
      %v1858 = vor.u32 %v1854, %v1857
      %v1859 = vrot.slane %v1858, 4
      %v1861 = vshll.u32 %v1804, 16
      %v1863 = vrot.slane %v1861, 5
      %v1864 = vsel %vm230, %v1859, %v1863
      %v1865 = vshrl.u32 %v1804, 16
      %v1867 = vrot.slane %v1865, 4
      %v1868 = vor.u32 %v1867, %v1863
      %v1869 = vrot.slane %v1868, 4
      %v1871 = vshll.u32 %v1805, 16
      %v1873 = vrot.slane %v1871, 5
      %v1874 = vsel %vm230, %v1869, %v1873
      %v1876 = vshrl.u32 %v1806, 16
      %v1878 = vrot.slane %v1876, 4
      %v1879 = vshll.u32 %v1806, 16
      %v1881 = vrot.slane %v1879, 5
      %v1882 = vor.u32 %v1878, %v1881
      %v1883 = vrot.slane %v1882, 4
      %v1885 = vshll.u32 %v1807, 16
      %v1887 = vrot.slane %v1885, 5
      %v1888 = vsel %vm230, %v1883, %v1887
      %v1889 = vshrl.u32 %v1807, 16
      %v1891 = vrot.slane %v1889, 4
      %v1892 = vor.u32 %v1891, %v1887
      %v1893 = vrot.slane %v1892, 4
      %v1895 = vshll.u32 %v1808, 16
      %v1897 = vrot.slane %v1895, 5
      %v1898 = vsel %vm230, %v1893, %v1897
      %v1900 = vshrl.u32 %v1809, 16
      %v1902 = vrot.slane %v1900, 4
      %v1903 = vshll.u32 %v1809, 16
      %v1905 = vrot.slane %v1903, 5
      %v1906 = vor.u32 %v1902, %v1905
      %v1907 = vrot.slane %v1906, 4
      %v1909 = vshll.u32 %v1810, 16
      %v1911 = vrot.slane %v1909, 5
      %v1912 = vsel %vm230, %v1907, %v1911
      %v1913 = vshrl.u32 %v1810, 16
      %v1915 = vrot.slane %v1913, 4
      %v1916 = vor.u32 %v1915, %v1911
      %v1917 = vrot.slane %v1916, 4
      %v1919 = vshll.u32 %v1811, 16
      %v1921 = vrot.slane %v1919, 5
      %v1922 = vsel %vm230, %v1917, %v1921
      %v1924 = vshrl.u32 %v1812, 16
      %v1926 = vrot.slane %v1924, 4
      %v1927 = vshll.u32 %v1812, 16
      %v1929 = vrot.slane %v1927, 5
      %v1930 = vor.u32 %v1926, %v1929
      %v1931 = vrot.slane %v1930, 4
      %v1933 = vshll.u32 %v1813, 16
      %v1935 = vrot.slane %v1933, 5
      %v1936 = vsel %vm230, %v1931, %v1935
      %v1937 = vshrl.u32 %v1813, 16
      %v1939 = vrot.slane %v1937, 4
      %v1940 = vor.u32 %v1939, %v1935
      %v1941 = vrot.slane %v1940, 4
      %v1943 = vshll.u32 %v1814, 16
      %v1945 = vrot.slane %v1943, 5
      %v1946 = vsel %vm230, %v1941, %v1945
      %v1948 = vshrl.u32 %v1815, 16
      %v1950 = vrot.slane %v1948, 4
      %v1951 = vshll.u32 %v1815, 16
      %v1953 = vrot.slane %v1951, 5
      %v1954 = vor.u32 %v1950, %v1953
      %v1955 = vrot.slane %v1954, 4
      %v1957 = vshll.u32 %v1816, 16
      %v1959 = vrot.slane %v1957, 5
      %v1960 = vsel %vm230, %v1955, %v1959
      %v1961 = vshrl.u32 %v1816, 16
      %v1963 = vrot.slane %v1961, 4
      %v1964 = vor.u32 %v1963, %v1959
      %v1965 = vrot.slane %v1964, 4
      %v1967 = vshll.u32 %v1817, 16
      %v1969 = vrot.slane %v1967, 5
      %v1970 = vsel %vm230, %v1965, %v1969
      %v1972 = vshrl.u32 %v1818, 16
      %v1974 = vrot.slane %v1972, 4
      %v1975 = vshll.u32 %v1818, 16
      %v1977 = vrot.slane %v1975, 5
      %v1978 = vor.u32 %v1974, %v1977
      %v1979 = vrot.slane %v1978, 4
      %v1981 = vshll.u32 %v1819, 16
      %v1983 = vrot.slane %v1981, 5
      %v1984 = vsel %vm230, %v1979, %v1983
      %v1985 = vshrl.u32 %v1819, 16
      %v1987 = vrot.slane %v1985, 4
      %v1988 = vor.u32 %v1987, %v1983
      %v1989 = vrot.slane %v1988, 4
      %v1991 = vshll.u32 %v1820, 16
      %v1993 = vrot.slane %v1991, 5
      %v1994 = vsel %vm230, %v1989, %v1993
      %v1996 = vshrl.u32 %v1821, 16
      %v1998 = vrot.slane %v1996, 4
      %v1999 = vshll.u32 %v1821, 16
      %v2001 = vrot.slane %v1999, 5
      %v2002 = vor.u32 %v1998, %v2001
      %v2003 = vrot.slane %v2002, 4
      %v2005 = vshll.u32 %v1822, 16
      %v2007 = vrot.slane %v2005, 5
      %v2008 = vsel %vm230, %v2003, %v2007
      %v2009 = vshrl.u32 %v1822, 16
      %v2011 = vrot.slane %v2009, 4
      %v2012 = vor.u32 %v2011, %v2007
      %v2013 = vrot.slane %v2012, 4
      %v2015 = vshll.u32 %v1823, 16
      %v2017 = vrot.slane %v2015, 5
      %v2018 = vsel %vm230, %v2013, %v2017
      %v2020 = vshrl.u32 %v1824, 16
      %v2022 = vrot.slane %v2020, 4
      %v2023 = vshll.u32 %v1824, 16
      %v2025 = vrot.slane %v2023, 5
      %v2026 = vor.u32 %v2022, %v2025
      %v2027 = vrot.slane %v2026, 4
      %v2029 = vshll.u32 %v1825, 16
      %v2031 = vrot.slane %v2029, 5
      %v2032 = vsel %vm230, %v2027, %v2031
      %v2033 = vshrl.u32 %v1825, 16
      %v2035 = vrot.slane %v2033, 4
      %v2036 = vor.u32 %v2035, %v2031
      %v2037 = vrot.slane %v2036, 4
      %v2039 = vshll.u32 %v1826, 16
      %v2041 = vrot.slane %v2039, 5
      %v2042 = vsel %vm230, %v2037, %v2041
      %v2044 = vshrl.u32 %v1827, 16
      %v2046 = vrot.slane %v2044, 4
      %v2047 = vshll.u32 %v1827, 16
      %v2049 = vrot.slane %v2047, 5
      %v2050 = vor.u32 %v2046, %v2049
      %v2051 = vrot.slane %v2050, 4
      %v2053 = vshll.u32 %v1828, 16
      %v2055 = vrot.slane %v2053, 5
      %v2056 = vsel %vm230, %v2051, %v2055
      %v2057 = vshrl.u32 %v1828, 16
      %v2059 = vrot.slane %v2057, 4
      %v2060 = vor.u32 %v2059, %v2055
      %v2061 = vrot.slane %v2060, 4
      %v2063 = vshll.u32 %v1829, 16
      %v2065 = vrot.slane %v2063, 5
      %v2066 = vsel %vm230, %v2061, %v2065
      %v2068 = vshrl.u32 %v1830, 16
      %v2070 = vrot.slane %v2068, 4
      %v2071 = vshll.u32 %v1830, 16
      %v2073 = vrot.slane %v2071, 5
      %v2074 = vor.u32 %v2070, %v2073
      %v2075 = vrot.slane %v2074, 4
      %v2077 = vshll.u32 %v1831, 16
      %v2079 = vrot.slane %v2077, 5
      %v2080 = vsel %vm230, %v2075, %v2079
      %v2081 = vshrl.u32 %v1831, 16
      %v2083 = vrot.slane %v2081, 4
      %v2084 = vor.u32 %v2083, %v2079
      %v2085 = vrot.slane %v2084, 4
      %v2087 = vshll.u32 %v1832, 16
      %v2089 = vrot.slane %v2087, 5
      %v2090 = vsel %vm230, %v2085, %v2089
      %v2092 = vshrl.u32 %v1833, 16
      %v2094 = vrot.slane %v2092, 4
      %v2095 = vshll.u32 %v1833, 16
      %v2097 = vrot.slane %v2095, 5
      %v2098 = vor.u32 %v2094, %v2097
      %v2099 = vrot.slane %v2098, 4
      %v2101 = vshll.u32 %v1834, 16
      %v2103 = vrot.slane %v2101, 5
      %v2104 = vsel %vm230, %v2099, %v2103
      %v2105 = vshrl.u32 %v1834, 16
      %v2107 = vrot.slane %v2105, 4
      %v2108 = vor.u32 %v2107, %v2103
      %v2109 = vrot.slane %v2108, 4
      %v2111 = vshll.u32 %v1835, 16
      %v2113 = vrot.slane %v2111, 5
      %v2114 = vsel %vm230, %v2109, %v2113
      %v2116 = vshrl.u32 %v1836, 16
      %v2118 = vrot.slane %v2116, 4
      %v2119 = vshll.u32 %v1836, 16
      %v2121 = vrot.slane %v2119, 5
      %v2122 = vor.u32 %v2118, %v2121
      %v2123 = vrot.slane %v2122, 4
      %v2125 = vshll.u32 %v1837, 16
      %v2127 = vrot.slane %v2125, 5
      %v2128 = vsel %vm230, %v2123, %v2127
      %v2129 = vshrl.u32 %v1837, 16
      %v2131 = vrot.slane %v2129, 4
      %v2132 = vor.u32 %v2131, %v2127
      %v2133 = vrot.slane %v2132, 4
      %v2135 = vshll.u32 %v1838, 16
      %v2137 = vrot.slane %v2135, 5
      %v2138 = vsel %vm230, %v2133, %v2137
      %v2140 = vshrl.u32 %v1839, 16
      %v2142 = vrot.slane %v2140, 4
      %v2143 = vshll.u32 %v1839, 16
      %v2145 = vrot.slane %v2143, 5
      %v2146 = vor.u32 %v2142, %v2145
      %v2147 = vrot.slane %v2146, 4
      %v2149 = vshll.u32 %v1840, 16
      %v2151 = vrot.slane %v2149, 5
      %v2152 = vsel %vm230, %v2147, %v2151
      %v2153 = vshrl.u32 %v1840, 16
      %v2155 = vrot.slane %v2153, 4
      %v2156 = vor.u32 %v2155, %v2151
      %v2157 = vrot.slane %v2156, 4
      %v2159 = vshll.u32 %v1841, 16
      %v2161 = vrot.slane %v2159, 5
      %v2162 = vsel %vm230, %v2157, %v2161
      %v2164 = vshrl.u32 %v1842, 16
      %v2166 = vrot.slane %v2164, 4
      %v2167 = vshll.u32 %v1842, 16
      %v2169 = vrot.slane %v2167, 5
      %v2170 = vor.u32 %v2166, %v2169
      %v2171 = vrot.slane %v2170, 4
      %v2173 = vshll.u32 %v1843, 16
      %v2175 = vrot.slane %v2173, 5
      %v2176 = vsel %vm230, %v2171, %v2175
      %v2177 = vshrl.u32 %v1843, 16
      %v2179 = vrot.slane %v2177, 4
      %v2180 = vor.u32 %v2179, %v2175
      %v2181 = vrot.slane %v2180, 4
      %v2183 = vshll.u32 %v1844, 16
      %v2185 = vrot.slane %v2183, 5
      %v2186 = vsel %vm230, %v2181, %v2185
      %v2188 = vshrl.u32 %v1845, 16
      %v2190 = vrot.slane %v2188, 4
      %v2191 = vshll.u32 %v1845, 16
      %v2193 = vrot.slane %v2191, 5
      %v2194 = vor.u32 %v2190, %v2193
      %v2195 = vrot.slane %v2194, 4
      %v2197 = vshll.u32 %v1846, 16
      %v2199 = vrot.slane %v2197, 5
      %v2200 = vsel %vm230, %v2195, %v2199
      %v2201 = vshrl.u32 %v1846, 16
      %v2203 = vrot.slane %v2201, 4
      %v2204 = vor.u32 %v2203, %v2199
      %v2205 = vrot.slane %v2204, 4
      %v2207 = vshll.u32 %v1847, 16
      %v2209 = vrot.slane %v2207, 5
      %v2210 = vsel %vm230, %v2205, %v2209
      %v2212 = vshrl.u32 %v1848, 16
      %v2214 = vrot.slane %v2212, 4
      %v2215 = vshll.u32 %v1848, 16
      %v2217 = vrot.slane %v2215, 5
      %v2218 = vor.u32 %v2214, %v2217
      %v2219 = vrot.slane %v2218, 4
      %v2221 = vshll.u32 %v1849, 16
      %v2223 = vrot.slane %v2221, 5
      %v2224 = vsel %vm230, %v2219, %v2223
      %v2225 = vshrl.u32 %v1849, 16
      %v2227 = vrot.slane %v2225, 4
      %v2228 = vor.u32 %v2227, %v2223
      %v2229 = vrot.slane %v2228, 4
      %v2231 = vshll.u32 %v1850, 16
      %v2233 = vrot.slane %v2231, 5
      %v2234 = vsel %vm230, %v2229, %v2233
      %s2235 = scalar_lea.vmem %s1, 128
      %v2236 = vld [vmem:[%s2235] sm:$0xf]
      %v2237 = vld [vmem:[%s2235 + $0x4] sm:$0xf]
      %v2238 = vld [vmem:[%s2235 + $0x8] sm:$0xf]
      %v2239 = vld [vmem:[%s2235 + $0xc] sm:$0xf]
      %v2240 = vld [vmem:[%s2235 + $0x10] sm:$0xf]
      %v2241 = vld [vmem:[%s2235 + $0x14] sm:$0xf]
      %v2242 = vld [vmem:[%s2235 + $0x18] sm:$0xf]
      %v2243 = vld [vmem:[%s2235 + $0x1c] sm:$0xf]
      %v2244 = vunpack.c.l.b16 %v1864
      %v2245 = vunpack.c.l.b16 %v1874
      %v2246 = vunpack.c.l.b16 %v1888
      %v2247 = vunpack.c.l.b16 %v1898
      %v2248 = vunpack.c.l.b16 %v1912
      %v2249 = vunpack.c.l.b16 %v1922
      %v2250 = vunpack.c.l.b16 %v1936
      %v2251 = vunpack.c.l.b16 %v1946
      %v2252 = vunpack.c.l.b16 %v1960
      %v2253 = vunpack.c.l.b16 %v1970
      %v2254 = vunpack.c.l.b16 %v1984
      %v2255 = vunpack.c.l.b16 %v1994
      %v2256 = vunpack.c.l.b16 %v2008
      %v2257 = vunpack.c.l.b16 %v2018
      %v2258 = vunpack.c.l.b16 %v2032
      %v2259 = vunpack.c.l.b16 %v2042
      %v2260 = vunpack.c.l.b16 %v2056
      %v2261 = vunpack.c.l.b16 %v2066
      %v2262 = vunpack.c.l.b16 %v2080
      %v2263 = vunpack.c.l.b16 %v2090
      %v2264 = vunpack.c.l.b16 %v2104
      %v2265 = vunpack.c.l.b16 %v2114
      %v2266 = vunpack.c.l.b16 %v2128
      %v2267 = vunpack.c.l.b16 %v2138
      %v2268 = vunpack.c.l.b16 %v2152
      %v2269 = vunpack.c.l.b16 %v2162
      %v2270 = vunpack.c.l.b16 %v2176
      %v2271 = vunpack.c.l.b16 %v2186
      %v2272 = vunpack.c.l.b16 %v2200
      %v2273 = vunpack.c.l.b16 %v2210
      %v2274 = vunpack.c.l.b16 %v2224
      %v2275 = vunpack.c.l.b16 %v2234
      %v2276 = vpack.c.b16 %v2245, %v2244
      %v2277 = vpack.c.b16 %v2247, %v2246
      %v2278 = vpack.c.b16 %v2249, %v2248
      %v2279 = vpack.c.b16 %v2251, %v2250
      %v2280 = vpack.c.b16 %v2253, %v2252
      %v2281 = vpack.c.b16 %v2255, %v2254
      %v2282 = vpack.c.b16 %v2257, %v2256
      %v2283 = vpack.c.b16 %v2259, %v2258
      %v2284 = vpack.c.b16 %v2261, %v2260
      %v2285 = vpack.c.b16 %v2263, %v2262
      %v2286 = vpack.c.b16 %v2265, %v2264
      %v2287 = vpack.c.b16 %v2267, %v2266
      %v2288 = vpack.c.b16 %v2269, %v2268
      %v2289 = vpack.c.b16 %v2271, %v2270
      %v2290 = vpack.c.b16 %v2273, %v2272
      %v2291 = vpack.c.b16 %v2275, %v2274
      %v2300 = vunpack.c.l.b16 %v2236
      %v2301 = vunpack.c.l.b16 %v2237
      %v2302 = vunpack.c.l.b16 %v2238
      %v2303 = vunpack.c.l.b16 %v2239
      %v2304 = vunpack.c.l.b16 %v2240
      %v2305 = vunpack.c.l.b16 %v2241
      %v2306 = vunpack.c.l.b16 %v2242
      %v2307 = vunpack.c.l.b16 %v2243
      %v2308 = vpack.c.b16 %v2301, %v2300
      %v2309 = vpack.c.b16 %v2303, %v2302
      %v2310 = vpack.c.b16 %v2305, %v2304
      %v2311 = vpack.c.b16 %v2307, %v2306
      %v2317 = vsel %vm696, %v2276, 0
      %v2320 = vsel %vm696, %v2277, 0
      %v2323 = vsel %vm696, %v2278, 0
      %v2326 = vsel %vm696, %v2279, 0
      %v2329 = vsel %vm696, %v2280, 0
      %v2332 = vsel %vm696, %v2281, 0
      %v2335 = vsel %vm696, %v2282, 0
      %v2338 = vsel %vm696, %v2283, 0
      %v2341 = vsel %vm696, %v2284, 0
      %v2344 = vsel %vm696, %v2285, 0
      %v2347 = vsel %vm696, %v2286, 0
      %v2350 = vsel %vm696, %v2287, 0
      %v2353 = vsel %vm696, %v2288, 0
      %v2356 = vsel %vm696, %v2289, 0
      %v2359 = vsel %vm696, %v2290, 0
      %v2362 = vsel %vm696, %v2291, 0
      %2364 = vmatpush.bf16.msra.mxu0 0
      %2365 = vmatpush.bf16.msra.mxu0 0
      %2366 = vmatpush.bf16.msra.mxu0 0
      %2367 = vmatpush.bf16.msra.mxu0 0
      %2368 = vmatpush.bf16.msra.mxu0 %v2311
      %2369 = vmatpush.bf16.msra.mxu0 %v2310
      %2370 = vmatpush.bf16.msra.mxu0 %v2309
      %2371 = vmatpush.bf16.msra.mxu0 %v2308
      %2372 = vmatmul.bf16.gmra.mxu0 %v2317
      %v2373 = vpop.f32.mrf.mxu0
      %v2374 = vadd.f32 0.0, %v2373
      %v2375 = vpop.f32.mrf.mxu0
      %v2376 = vadd.f32 0.0, %v2375
      %2377 = vmatmul.bf16.gmra.mxu0 %v2320
      %v2378 = vpop.f32.mrf.mxu0
      %v2379 = vadd.f32 0.0, %v2378
      %v2380 = vpop.f32.mrf.mxu0
      %v2381 = vadd.f32 0.0, %v2380
      %2382 = vmatmul.bf16.gmra.mxu0 %v2323
      %v2383 = vpop.f32.mrf.mxu0
      %v2384 = vadd.f32 0.0, %v2383
      %v2385 = vpop.f32.mrf.mxu0
      %v2386 = vadd.f32 0.0, %v2385
      %2387 = vmatmul.bf16.gmra.mxu0 %v2326
      %v2388 = vpop.f32.mrf.mxu0
      %v2389 = vadd.f32 0.0, %v2388
      %v2390 = vpop.f32.mrf.mxu0
      %v2391 = vadd.f32 0.0, %v2390
      %2392 = vmatmul.bf16.gmra.mxu0 %v2329
      %v2393 = vpop.f32.mrf.mxu0
      %v2394 = vadd.f32 0.0, %v2393
      %v2395 = vpop.f32.mrf.mxu0
      %v2396 = vadd.f32 0.0, %v2395
      %2397 = vmatmul.bf16.gmra.mxu0 %v2332
      %v2398 = vpop.f32.mrf.mxu0
      %v2399 = vadd.f32 0.0, %v2398
      %v2400 = vpop.f32.mrf.mxu0
      %v2401 = vadd.f32 0.0, %v2400
      %2402 = vmatmul.bf16.gmra.mxu0 %v2335
      %v2403 = vpop.f32.mrf.mxu0
      %v2404 = vadd.f32 0.0, %v2403
      %v2405 = vpop.f32.mrf.mxu0
      %v2406 = vadd.f32 0.0, %v2405
      %2407 = vmatmul.bf16.gmra.mxu0 %v2338
      %v2408 = vpop.f32.mrf.mxu0
      %v2409 = vadd.f32 0.0, %v2408
      %v2410 = vpop.f32.mrf.mxu0
      %v2411 = vadd.f32 0.0, %v2410
      %2412 = vmatmul.bf16.gmra.mxu0 %v2341
      %v2413 = vpop.f32.mrf.mxu0
      %v2414 = vadd.f32 0.0, %v2413
      %v2415 = vpop.f32.mrf.mxu0
      %v2416 = vadd.f32 0.0, %v2415
      %2417 = vmatmul.bf16.gmra.mxu0 %v2344
      %v2418 = vpop.f32.mrf.mxu0
      %v2419 = vadd.f32 0.0, %v2418
      %v2420 = vpop.f32.mrf.mxu0
      %v2421 = vadd.f32 0.0, %v2420
      %2422 = vmatmul.bf16.gmra.mxu0 %v2347
      %v2423 = vpop.f32.mrf.mxu0
      %v2424 = vadd.f32 0.0, %v2423
      %v2425 = vpop.f32.mrf.mxu0
      %v2426 = vadd.f32 0.0, %v2425
      %2427 = vmatmul.bf16.gmra.mxu0 %v2350
      %v2428 = vpop.f32.mrf.mxu0
      %v2429 = vadd.f32 0.0, %v2428
      %v2430 = vpop.f32.mrf.mxu0
      %v2431 = vadd.f32 0.0, %v2430
      %2432 = vmatmul.bf16.gmra.mxu0 %v2353
      %v2433 = vpop.f32.mrf.mxu0
      %v2434 = vadd.f32 0.0, %v2433
      %v2435 = vpop.f32.mrf.mxu0
      %v2436 = vadd.f32 0.0, %v2435
      %2437 = vmatmul.bf16.gmra.mxu0 %v2356
      %v2438 = vpop.f32.mrf.mxu0
      %v2439 = vadd.f32 0.0, %v2438
      %v2440 = vpop.f32.mrf.mxu0
      %v2441 = vadd.f32 0.0, %v2440
      %2442 = vmatmul.bf16.gmra.mxu0 %v2359
      %v2443 = vpop.f32.mrf.mxu0
      %v2444 = vadd.f32 0.0, %v2443
      %v2445 = vpop.f32.mrf.mxu0
      %v2446 = vadd.f32 0.0, %v2445
      %2447 = vmatmul.bf16.gmra.mxu0 %v2362
      %v2448 = vpop.f32.mrf.mxu0
      %v2449 = vadd.f32 0.0, %v2448
      %v2450 = vpop.f32.mrf.mxu0
      %v2451 = vadd.f32 0.0, %v2450
      %2452 = vdwg.mxu0
      %v2453 = vadd.f32 %v1771, %v2374
      %v2454 = vadd.f32 %v1772, %v2376
      %v2455 = vadd.f32 %v1773, %v2379
      %v2456 = vadd.f32 %v1774, %v2381
      %v2457 = vadd.f32 %v1775, %v2384
      %v2458 = vadd.f32 %v1776, %v2386
      %v2459 = vadd.f32 %v1777, %v2389
      %v2460 = vadd.f32 %v1778, %v2391
      %v2461 = vadd.f32 %v1779, %v2394
      %v2462 = vadd.f32 %v1780, %v2396
      %v2463 = vadd.f32 %v1781, %v2399
      %v2464 = vadd.f32 %v1782, %v2401
      %v2465 = vadd.f32 %v1783, %v2404
      %v2466 = vadd.f32 %v1784, %v2406
      %v2467 = vadd.f32 %v1785, %v2409
      %v2468 = vadd.f32 %v1786, %v2411
      %v2469 = vadd.f32 %v1787, %v2414
      %v2470 = vadd.f32 %v1788, %v2416
      %v2471 = vadd.f32 %v1789, %v2419
      %v2472 = vadd.f32 %v1790, %v2421
      %v2473 = vadd.f32 %v1791, %v2424
      %v2474 = vadd.f32 %v1792, %v2426
      %v2475 = vadd.f32 %v1793, %v2429
      %v2476 = vadd.f32 %v1794, %v2431
      %v2477 = vadd.f32 %v1795, %v2434
      %v2478 = vadd.f32 %v1796, %v2436
      %v2479 = vadd.f32 %v1797, %v2439
      %v2480 = vadd.f32 %v1798, %v2441
      %v2481 = vadd.f32 %v1799, %v2444
      %v2482 = vadd.f32 %v1800, %v2446
      %v2483 = vadd.f32 %v1801, %v2449
      %v2484 = vadd.f32 %v1802, %v2451
      %v2485 = vld [vmem:[%s1488] sm:$0xe]
      %v2486 = vld [vmem:[%s1488 + $0xc] sm:$0xe]
      %v2487 = vld [vmem:[%s1488 + $0x18] sm:$0xe]
      %v2488 = vld [vmem:[%s1488 + $0x24] sm:$0xe]
      %v2489 = vld [vmem:[%s1488 + $0x30] sm:$0xe]
      %v2490 = vld [vmem:[%s1488 + $0x3c] sm:$0xe]
      %v2491 = vld [vmem:[%s1488 + $0x48] sm:$0xe]
      %v2492 = vld [vmem:[%s1488 + $0x54] sm:$0xe]
      %v2493 = vld [vmem:[%s1488 + $0x60] sm:$0xe]
      %v2494 = vld [vmem:[%s1488 + $0x6c] sm:$0xe]
      %v2495 = vld [vmem:[%s1488 + $0x78] sm:$0xe]
      %v2496 = vld [vmem:[%s1488 + $0x84] sm:$0xe]
      %v2497 = vld [vmem:[%s1488 + $0x90] sm:$0xe]
      %v2498 = vld [vmem:[%s1488 + $0x9c] sm:$0xe]
      %v2499 = vld [vmem:[%s1488 + $0xa8] sm:$0xe]
      %v2500 = vld [vmem:[%s1488 + $0xb4] sm:$0xe]
      %v2549 = vrot.slane %v2485, 5
      %v2550 = vrot.slane %v2549, 4
      %v2551 = vrot.slane %v1804, 5
      %v2552 = vsel %vm1125, %v2550, %v2551
      %v2553 = vrot.slane %v2551, 4
      %v2554 = vrot.slane %v1805, 5
      %v2555 = vsel %vm1125, %v2553, %v2554
      %v2556 = vrot.slane %v2486, 5
      %v2557 = vrot.slane %v2556, 4
      %v2558 = vrot.slane %v1807, 5
      %v2559 = vsel %vm1125, %v2557, %v2558
      %v2560 = vrot.slane %v2558, 4
      %v2561 = vrot.slane %v1808, 5
      %v2562 = vsel %vm1125, %v2560, %v2561
      %v2563 = vrot.slane %v2487, 5
      %v2564 = vrot.slane %v2563, 4
      %v2565 = vrot.slane %v1810, 5
      %v2566 = vsel %vm1125, %v2564, %v2565
      %v2567 = vrot.slane %v2565, 4
      %v2568 = vrot.slane %v1811, 5
      %v2569 = vsel %vm1125, %v2567, %v2568
      %v2570 = vrot.slane %v2488, 5
      %v2571 = vrot.slane %v2570, 4
      %v2572 = vrot.slane %v1813, 5
      %v2573 = vsel %vm1125, %v2571, %v2572
      %v2574 = vrot.slane %v2572, 4
      %v2575 = vrot.slane %v1814, 5
      %v2576 = vsel %vm1125, %v2574, %v2575
      %v2577 = vrot.slane %v2489, 5
      %v2578 = vrot.slane %v2577, 4
      %v2579 = vrot.slane %v1816, 5
      %v2580 = vsel %vm1125, %v2578, %v2579
      %v2581 = vrot.slane %v2579, 4
      %v2582 = vrot.slane %v1817, 5
      %v2583 = vsel %vm1125, %v2581, %v2582
      %v2584 = vrot.slane %v2490, 5
      %v2585 = vrot.slane %v2584, 4
      %v2586 = vrot.slane %v1819, 5
      %v2587 = vsel %vm1125, %v2585, %v2586
      %v2588 = vrot.slane %v2586, 4
      %v2589 = vrot.slane %v1820, 5
      %v2590 = vsel %vm1125, %v2588, %v2589
      %v2591 = vrot.slane %v2491, 5
      %v2592 = vrot.slane %v2591, 4
      %v2593 = vrot.slane %v1822, 5
      %v2594 = vsel %vm1125, %v2592, %v2593
      %v2595 = vrot.slane %v2593, 4
      %v2596 = vrot.slane %v1823, 5
      %v2597 = vsel %vm1125, %v2595, %v2596
      %v2598 = vrot.slane %v2492, 5
      %v2599 = vrot.slane %v2598, 4
      %v2600 = vrot.slane %v1825, 5
      %v2601 = vsel %vm1125, %v2599, %v2600
      %v2602 = vrot.slane %v2600, 4
      %v2603 = vrot.slane %v1826, 5
      %v2604 = vsel %vm1125, %v2602, %v2603
      %v2605 = vrot.slane %v2493, 5
      %v2606 = vrot.slane %v2605, 4
      %v2607 = vrot.slane %v1828, 5
      %v2608 = vsel %vm1125, %v2606, %v2607
      %v2609 = vrot.slane %v2607, 4
      %v2610 = vrot.slane %v1829, 5
      %v2611 = vsel %vm1125, %v2609, %v2610
      %v2612 = vrot.slane %v2494, 5
      %v2613 = vrot.slane %v2612, 4
      %v2614 = vrot.slane %v1831, 5
      %v2615 = vsel %vm1125, %v2613, %v2614
      %v2616 = vrot.slane %v2614, 4
      %v2617 = vrot.slane %v1832, 5
      %v2618 = vsel %vm1125, %v2616, %v2617
      %v2619 = vrot.slane %v2495, 5
      %v2620 = vrot.slane %v2619, 4
      %v2621 = vrot.slane %v1834, 5
      %v2622 = vsel %vm1125, %v2620, %v2621
      %v2623 = vrot.slane %v2621, 4
      %v2624 = vrot.slane %v1835, 5
      %v2625 = vsel %vm1125, %v2623, %v2624
      %v2626 = vrot.slane %v2496, 5
      %v2627 = vrot.slane %v2626, 4
      %v2628 = vrot.slane %v1837, 5
      %v2629 = vsel %vm1125, %v2627, %v2628
      %v2630 = vrot.slane %v2628, 4
      %v2631 = vrot.slane %v1838, 5
      %v2632 = vsel %vm1125, %v2630, %v2631
      %v2633 = vrot.slane %v2497, 5
      %v2634 = vrot.slane %v2633, 4
      %v2635 = vrot.slane %v1840, 5
      %v2636 = vsel %vm1125, %v2634, %v2635
      %v2637 = vrot.slane %v2635, 4
      %v2638 = vrot.slane %v1841, 5
      %v2639 = vsel %vm1125, %v2637, %v2638
      %v2640 = vrot.slane %v2498, 5
      %v2641 = vrot.slane %v2640, 4
      %v2642 = vrot.slane %v1843, 5
      %v2643 = vsel %vm1125, %v2641, %v2642
      %v2644 = vrot.slane %v2642, 4
      %v2645 = vrot.slane %v1844, 5
      %v2646 = vsel %vm1125, %v2644, %v2645
      %v2647 = vrot.slane %v2499, 5
      %v2648 = vrot.slane %v2647, 4
      %v2649 = vrot.slane %v1846, 5
      %v2650 = vsel %vm1125, %v2648, %v2649
      %v2651 = vrot.slane %v2649, 4
      %v2652 = vrot.slane %v1847, 5
      %v2653 = vsel %vm1125, %v2651, %v2652
      %v2654 = vrot.slane %v2500, 5
      %v2655 = vrot.slane %v2654, 4
      %v2656 = vrot.slane %v1849, 5
      %v2657 = vsel %vm1125, %v2655, %v2656
      %v2658 = vrot.slane %v2656, 4
      %v2659 = vrot.slane %v1850, 5
      %v2660 = vsel %vm1125, %v2658, %v2659
      %s2661 = scalar_lea.vmem %s1, 160
      %v2662 = vld [vmem:[%s2661] sm:$0xf]
      %v2663 = vld [vmem:[%s2661 + $0x4] sm:$0xf]
      %v2664 = vld [vmem:[%s2661 + $0x8] sm:$0xf]
      %v2665 = vld [vmem:[%s2661 + $0xc] sm:$0xf]
      %v2666 = vld [vmem:[%s2661 + $0x10] sm:$0xf]
      %v2667 = vld [vmem:[%s2661 + $0x14] sm:$0xf]
      %v2668 = vld [vmem:[%s2661 + $0x18] sm:$0xf]
      %v2669 = vld [vmem:[%s2661 + $0x1c] sm:$0xf]
      %v2670 = vunpack.c.l.b16 %v2552
      %v2671 = vunpack.c.l.b16 %v2555
      %v2672 = vunpack.c.l.b16 %v2559
      %v2673 = vunpack.c.l.b16 %v2562
      %v2674 = vunpack.c.l.b16 %v2566
      %v2675 = vunpack.c.l.b16 %v2569
      %v2676 = vunpack.c.l.b16 %v2573
      %v2677 = vunpack.c.l.b16 %v2576
      %v2678 = vunpack.c.l.b16 %v2580
      %v2679 = vunpack.c.l.b16 %v2583
      %v2680 = vunpack.c.l.b16 %v2587
      %v2681 = vunpack.c.l.b16 %v2590
      %v2682 = vunpack.c.l.b16 %v2594
      %v2683 = vunpack.c.l.b16 %v2597
      %v2684 = vunpack.c.l.b16 %v2601
      %v2685 = vunpack.c.l.b16 %v2604
      %v2686 = vunpack.c.l.b16 %v2608
      %v2687 = vunpack.c.l.b16 %v2611
      %v2688 = vunpack.c.l.b16 %v2615
      %v2689 = vunpack.c.l.b16 %v2618
      %v2690 = vunpack.c.l.b16 %v2622
      %v2691 = vunpack.c.l.b16 %v2625
      %v2692 = vunpack.c.l.b16 %v2629
      %v2693 = vunpack.c.l.b16 %v2632
      %v2694 = vunpack.c.l.b16 %v2636
      %v2695 = vunpack.c.l.b16 %v2639
      %v2696 = vunpack.c.l.b16 %v2643
      %v2697 = vunpack.c.l.b16 %v2646
      %v2698 = vunpack.c.l.b16 %v2650
      %v2699 = vunpack.c.l.b16 %v2653
      %v2700 = vunpack.c.l.b16 %v2657
      %v2701 = vunpack.c.l.b16 %v2660
      %v2702 = vpack.c.b16 %v2671, %v2670
      %v2703 = vpack.c.b16 %v2673, %v2672
      %v2704 = vpack.c.b16 %v2675, %v2674
      %v2705 = vpack.c.b16 %v2677, %v2676
      %v2706 = vpack.c.b16 %v2679, %v2678
      %v2707 = vpack.c.b16 %v2681, %v2680
      %v2708 = vpack.c.b16 %v2683, %v2682
      %v2709 = vpack.c.b16 %v2685, %v2684
      %v2710 = vpack.c.b16 %v2687, %v2686
      %v2711 = vpack.c.b16 %v2689, %v2688
      %v2712 = vpack.c.b16 %v2691, %v2690
      %v2713 = vpack.c.b16 %v2693, %v2692
      %v2714 = vpack.c.b16 %v2695, %v2694
      %v2715 = vpack.c.b16 %v2697, %v2696
      %v2716 = vpack.c.b16 %v2699, %v2698
      %v2717 = vpack.c.b16 %v2701, %v2700
      %v2726 = vunpack.c.l.b16 %v2662
      %v2727 = vunpack.c.l.b16 %v2663
      %v2728 = vunpack.c.l.b16 %v2664
      %v2729 = vunpack.c.l.b16 %v2665
      %v2730 = vunpack.c.l.b16 %v2666
      %v2731 = vunpack.c.l.b16 %v2667
      %v2732 = vunpack.c.l.b16 %v2668
      %v2733 = vunpack.c.l.b16 %v2669
      %v2734 = vpack.c.b16 %v2727, %v2726
      %v2735 = vpack.c.b16 %v2729, %v2728
      %v2736 = vpack.c.b16 %v2731, %v2730
      %v2737 = vpack.c.b16 %v2733, %v2732
      %v2743 = vsel %vm696, %v2702, 0
      %v2746 = vsel %vm696, %v2703, 0
      %v2749 = vsel %vm696, %v2704, 0
      %v2752 = vsel %vm696, %v2705, 0
      %v2755 = vsel %vm696, %v2706, 0
      %v2758 = vsel %vm696, %v2707, 0
      %v2761 = vsel %vm696, %v2708, 0
      %v2764 = vsel %vm696, %v2709, 0
      %v2767 = vsel %vm696, %v2710, 0
      %v2770 = vsel %vm696, %v2711, 0
      %v2773 = vsel %vm696, %v2712, 0
      %v2776 = vsel %vm696, %v2713, 0
      %v2779 = vsel %vm696, %v2714, 0
      %v2782 = vsel %vm696, %v2715, 0
      %v2785 = vsel %vm696, %v2716, 0
      %v2788 = vsel %vm696, %v2717, 0
      %2790 = vmatpush.bf16.msra.mxu0 0
      %2791 = vmatpush.bf16.msra.mxu0 0
      %2792 = vmatpush.bf16.msra.mxu0 0
      %2793 = vmatpush.bf16.msra.mxu0 0
      %2794 = vmatpush.bf16.msra.mxu0 %v2737
      %2795 = vmatpush.bf16.msra.mxu0 %v2736
      %2796 = vmatpush.bf16.msra.mxu0 %v2735
      %2797 = vmatpush.bf16.msra.mxu0 %v2734
      %2798 = vmatmul.bf16.gmra.mxu0 %v2743
      %v2799 = vpop.f32.mrf.mxu0
      %v2800 = vadd.f32 0.0, %v2799
      %v2801 = vpop.f32.mrf.mxu0
      %v2802 = vadd.f32 0.0, %v2801
      %2803 = vmatmul.bf16.gmra.mxu0 %v2746
      %v2804 = vpop.f32.mrf.mxu0
      %v2805 = vadd.f32 0.0, %v2804
      %v2806 = vpop.f32.mrf.mxu0
      %v2807 = vadd.f32 0.0, %v2806
      %2808 = vmatmul.bf16.gmra.mxu0 %v2749
      %v2809 = vpop.f32.mrf.mxu0
      %v2810 = vadd.f32 0.0, %v2809
      %v2811 = vpop.f32.mrf.mxu0
      %v2812 = vadd.f32 0.0, %v2811
      %2813 = vmatmul.bf16.gmra.mxu0 %v2752
      %v2814 = vpop.f32.mrf.mxu0
      %v2815 = vadd.f32 0.0, %v2814
      %v2816 = vpop.f32.mrf.mxu0
      %v2817 = vadd.f32 0.0, %v2816
      %2818 = vmatmul.bf16.gmra.mxu0 %v2755
      %v2819 = vpop.f32.mrf.mxu0
      %v2820 = vadd.f32 0.0, %v2819
      %v2821 = vpop.f32.mrf.mxu0
      %v2822 = vadd.f32 0.0, %v2821
      %2823 = vmatmul.bf16.gmra.mxu0 %v2758
      %v2824 = vpop.f32.mrf.mxu0
      %v2825 = vadd.f32 0.0, %v2824
      %v2826 = vpop.f32.mrf.mxu0
      %v2827 = vadd.f32 0.0, %v2826
      %2828 = vmatmul.bf16.gmra.mxu0 %v2761
      %v2829 = vpop.f32.mrf.mxu0
      %v2830 = vadd.f32 0.0, %v2829
      %v2831 = vpop.f32.mrf.mxu0
      %v2832 = vadd.f32 0.0, %v2831
      %2833 = vmatmul.bf16.gmra.mxu0 %v2764
      %v2834 = vpop.f32.mrf.mxu0
      %v2835 = vadd.f32 0.0, %v2834
      %v2836 = vpop.f32.mrf.mxu0
      %v2837 = vadd.f32 0.0, %v2836
      %2838 = vmatmul.bf16.gmra.mxu0 %v2767
      %v2839 = vpop.f32.mrf.mxu0
      %v2840 = vadd.f32 0.0, %v2839
      %v2841 = vpop.f32.mrf.mxu0
      %v2842 = vadd.f32 0.0, %v2841
      %2843 = vmatmul.bf16.gmra.mxu0 %v2770
      %v2844 = vpop.f32.mrf.mxu0
      %v2845 = vadd.f32 0.0, %v2844
      %v2846 = vpop.f32.mrf.mxu0
      %v2847 = vadd.f32 0.0, %v2846
      %2848 = vmatmul.bf16.gmra.mxu0 %v2773
      %v2849 = vpop.f32.mrf.mxu0
      %v2850 = vadd.f32 0.0, %v2849
      %v2851 = vpop.f32.mrf.mxu0
      %v2852 = vadd.f32 0.0, %v2851
      %2853 = vmatmul.bf16.gmra.mxu0 %v2776
      %v2854 = vpop.f32.mrf.mxu0
      %v2855 = vadd.f32 0.0, %v2854
      %v2856 = vpop.f32.mrf.mxu0
      %v2857 = vadd.f32 0.0, %v2856
      %2858 = vmatmul.bf16.gmra.mxu0 %v2779
      %v2859 = vpop.f32.mrf.mxu0
      %v2860 = vadd.f32 0.0, %v2859
      %v2861 = vpop.f32.mrf.mxu0
      %v2862 = vadd.f32 0.0, %v2861
      %2863 = vmatmul.bf16.gmra.mxu0 %v2782
      %v2864 = vpop.f32.mrf.mxu0
      %v2865 = vadd.f32 0.0, %v2864
      %v2866 = vpop.f32.mrf.mxu0
      %v2867 = vadd.f32 0.0, %v2866
      %2868 = vmatmul.bf16.gmra.mxu0 %v2785
      %v2869 = vpop.f32.mrf.mxu0
      %v2870 = vadd.f32 0.0, %v2869
      %v2871 = vpop.f32.mrf.mxu0
      %v2872 = vadd.f32 0.0, %v2871
      %2873 = vmatmul.bf16.gmra.mxu0 %v2788
      %v2874 = vpop.f32.mrf.mxu0
      %v2875 = vadd.f32 0.0, %v2874
      %v2876 = vpop.f32.mrf.mxu0
      %v2877 = vadd.f32 0.0, %v2876
      %2878 = vdwg.mxu0
      %v2879 = vadd.f32 %v2453, %v2800
      %v2880 = vadd.f32 %v2454, %v2802
      %v2881 = vadd.f32 %v2455, %v2805
      %v2882 = vadd.f32 %v2456, %v2807
      %v2883 = vadd.f32 %v2457, %v2810
      %v2884 = vadd.f32 %v2458, %v2812
      %v2885 = vadd.f32 %v2459, %v2815
      %v2886 = vadd.f32 %v2460, %v2817
      %v2887 = vadd.f32 %v2461, %v2820
      %v2888 = vadd.f32 %v2462, %v2822
      %v2889 = vadd.f32 %v2463, %v2825
      %v2890 = vadd.f32 %v2464, %v2827
      %v2891 = vadd.f32 %v2465, %v2830
      %v2892 = vadd.f32 %v2466, %v2832
      %v2893 = vadd.f32 %v2467, %v2835
      %v2894 = vadd.f32 %v2468, %v2837
      %v2895 = vadd.f32 %v2469, %v2840
      %v2896 = vadd.f32 %v2470, %v2842
      %v2897 = vadd.f32 %v2471, %v2845
      %v2898 = vadd.f32 %v2472, %v2847
      %v2899 = vadd.f32 %v2473, %v2850
      %v2900 = vadd.f32 %v2474, %v2852
      %v2901 = vadd.f32 %v2475, %v2855
      %v2902 = vadd.f32 %v2476, %v2857
      %v2903 = vadd.f32 %v2477, %v2860
      %v2904 = vadd.f32 %v2478, %v2862
      %v2905 = vadd.f32 %v2479, %v2865
      %v2906 = vadd.f32 %v2480, %v2867
      %v2907 = vadd.f32 %v2481, %v2870
      %v2908 = vadd.f32 %v2482, %v2872
      %v2909 = vadd.f32 %v2483, %v2875
      %v2910 = vadd.f32 %v2484, %v2877
      %s2911 = scalar_lea.vmem %s165, 24
      %v2912 = vld [vmem:[%s2911] sm:$0xf]
      %v2913 = vld [vmem:[%s2911 + $0x4] sm:$0xf]
      %v2914 = vld [vmem:[%s2911 + $0xc] sm:$0xf]
      %v2915 = vld [vmem:[%s2911 + $0x10] sm:$0xf]
      %v2916 = vld [vmem:[%s2911 + $0x18] sm:$0xf]
      %v2917 = vld [vmem:[%s2911 + $0x1c] sm:$0xf]
      %v2918 = vld [vmem:[%s2911 + $0x24] sm:$0xf]
      %v2919 = vld [vmem:[%s2911 + $0x28] sm:$0xf]
      %v2920 = vld [vmem:[%s2911 + $0x30] sm:$0xf]
      %v2921 = vld [vmem:[%s2911 + $0x34] sm:$0xf]
      %v2922 = vld [vmem:[%s2911 + $0x3c] sm:$0xf]
      %v2923 = vld [vmem:[%s2911 + $0x40] sm:$0xf]
      %v2924 = vld [vmem:[%s2911 + $0x48] sm:$0xf]
      %v2925 = vld [vmem:[%s2911 + $0x4c] sm:$0xf]
      %v2926 = vld [vmem:[%s2911 + $0x54] sm:$0xf]
      %v2927 = vld [vmem:[%s2911 + $0x58] sm:$0xf]
      %v2928 = vld [vmem:[%s2911 + $0x60] sm:$0xf]
      %v2929 = vld [vmem:[%s2911 + $0x64] sm:$0xf]
      %v2930 = vld [vmem:[%s2911 + $0x6c] sm:$0xf]
      %v2931 = vld [vmem:[%s2911 + $0x70] sm:$0xf]
      %v2932 = vld [vmem:[%s2911 + $0x78] sm:$0xf]
      %v2933 = vld [vmem:[%s2911 + $0x7c] sm:$0xf]
      %v2934 = vld [vmem:[%s2911 + $0x84] sm:$0xf]
      %v2935 = vld [vmem:[%s2911 + $0x88] sm:$0xf]
      %v2936 = vld [vmem:[%s2911 + $0x90] sm:$0xf]
      %v2937 = vld [vmem:[%s2911 + $0x94] sm:$0xf]
      %v2938 = vld [vmem:[%s2911 + $0x9c] sm:$0xf]
      %v2939 = vld [vmem:[%s2911 + $0xa0] sm:$0xf]
      %v2940 = vld [vmem:[%s2911 + $0xa8] sm:$0xf]
      %v2941 = vld [vmem:[%s2911 + $0xac] sm:$0xf]
      %v2942 = vld [vmem:[%s2911 + $0xb4] sm:$0xf]
      %v2943 = vld [vmem:[%s2911 + $0xb8] sm:$0xf]
      %s2944 = scalar_lea.vmem %s1, 192
      %v2945 = vld [vmem:[%s2944] sm:$0xf]
      %v2946 = vld [vmem:[%s2944 + $0x4] sm:$0xf]
      %v2947 = vld [vmem:[%s2944 + $0x8] sm:$0xf]
      %v2948 = vld [vmem:[%s2944 + $0xc] sm:$0xf]
      %v2949 = vld [vmem:[%s2944 + $0x10] sm:$0xf]
      %v2950 = vld [vmem:[%s2944 + $0x14] sm:$0xf]
      %v2951 = vld [vmem:[%s2944 + $0x18] sm:$0xf]
      %v2952 = vld [vmem:[%s2944 + $0x1c] sm:$0xf]
      %v2985 = vunpack.c.l.b16 %v2912
      %v2986 = vunpack.c.l.b16 %v2913
      %v2987 = vunpack.c.l.b16 %v2914
      %v2988 = vunpack.c.l.b16 %v2915
      %v2989 = vunpack.c.l.b16 %v2916
      %v2990 = vunpack.c.l.b16 %v2917
      %v2991 = vunpack.c.l.b16 %v2918
      %v2992 = vunpack.c.l.b16 %v2919
      %v2993 = vunpack.c.l.b16 %v2920
      %v2994 = vunpack.c.l.b16 %v2921
      %v2995 = vunpack.c.l.b16 %v2922
      %v2996 = vunpack.c.l.b16 %v2923
      %v2997 = vunpack.c.l.b16 %v2924
      %v2998 = vunpack.c.l.b16 %v2925
      %v2999 = vunpack.c.l.b16 %v2926
      %v3000 = vunpack.c.l.b16 %v2927
      %v3001 = vunpack.c.l.b16 %v2928
      %v3002 = vunpack.c.l.b16 %v2929
      %v3003 = vunpack.c.l.b16 %v2930
      %v3004 = vunpack.c.l.b16 %v2931
      %v3005 = vunpack.c.l.b16 %v2932
      %v3006 = vunpack.c.l.b16 %v2933
      %v3007 = vunpack.c.l.b16 %v2934
      %v3008 = vunpack.c.l.b16 %v2935
      %v3009 = vunpack.c.l.b16 %v2936
      %v3010 = vunpack.c.l.b16 %v2937
      %v3011 = vunpack.c.l.b16 %v2938
      %v3012 = vunpack.c.l.b16 %v2939
      %v3013 = vunpack.c.l.b16 %v2940
      %v3014 = vunpack.c.l.b16 %v2941
      %v3015 = vunpack.c.l.b16 %v2942
      %v3016 = vunpack.c.l.b16 %v2943
      %v3017 = vpack.c.b16 %v2986, %v2985
      %v3018 = vpack.c.b16 %v2988, %v2987
      %v3019 = vpack.c.b16 %v2990, %v2989
      %v3020 = vpack.c.b16 %v2992, %v2991
      %v3021 = vpack.c.b16 %v2994, %v2993
      %v3022 = vpack.c.b16 %v2996, %v2995
      %v3023 = vpack.c.b16 %v2998, %v2997
      %v3024 = vpack.c.b16 %v3000, %v2999
      %v3025 = vpack.c.b16 %v3002, %v3001
      %v3026 = vpack.c.b16 %v3004, %v3003
      %v3027 = vpack.c.b16 %v3006, %v3005
      %v3028 = vpack.c.b16 %v3008, %v3007
      %v3029 = vpack.c.b16 %v3010, %v3009
      %v3030 = vpack.c.b16 %v3012, %v3011
      %v3031 = vpack.c.b16 %v3014, %v3013
      %v3032 = vpack.c.b16 %v3016, %v3015
      %v3041 = vunpack.c.l.b16 %v2945
      %v3042 = vunpack.c.l.b16 %v2946
      %v3043 = vunpack.c.l.b16 %v2947
      %v3044 = vunpack.c.l.b16 %v2948
      %v3045 = vunpack.c.l.b16 %v2949
      %v3046 = vunpack.c.l.b16 %v2950
      %v3047 = vunpack.c.l.b16 %v2951
      %v3048 = vunpack.c.l.b16 %v2952
      %v3049 = vpack.c.b16 %v3042, %v3041
      %v3050 = vpack.c.b16 %v3044, %v3043
      %v3051 = vpack.c.b16 %v3046, %v3045
      %v3052 = vpack.c.b16 %v3048, %v3047
      %v3058 = vsel %vm696, %v3017, 0
      %v3061 = vsel %vm696, %v3018, 0
      %v3064 = vsel %vm696, %v3019, 0
      %v3067 = vsel %vm696, %v3020, 0
      %v3070 = vsel %vm696, %v3021, 0
      %v3073 = vsel %vm696, %v3022, 0
      %v3076 = vsel %vm696, %v3023, 0
      %v3079 = vsel %vm696, %v3024, 0
      %v3082 = vsel %vm696, %v3025, 0
      %v3085 = vsel %vm696, %v3026, 0
      %v3088 = vsel %vm696, %v3027, 0
      %v3091 = vsel %vm696, %v3028, 0
      %v3094 = vsel %vm696, %v3029, 0
      %v3097 = vsel %vm696, %v3030, 0
      %v3100 = vsel %vm696, %v3031, 0
      %v3103 = vsel %vm696, %v3032, 0
      %3105 = vmatpush.bf16.msra.mxu0 0
      %3106 = vmatpush.bf16.msra.mxu0 0
      %3107 = vmatpush.bf16.msra.mxu0 0
      %3108 = vmatpush.bf16.msra.mxu0 0
      %3109 = vmatpush.bf16.msra.mxu0 %v3052
      %3110 = vmatpush.bf16.msra.mxu0 %v3051
      %3111 = vmatpush.bf16.msra.mxu0 %v3050
      %3112 = vmatpush.bf16.msra.mxu0 %v3049
      %3113 = vmatmul.bf16.gmra.mxu0 %v3058
      %v3114 = vpop.f32.mrf.mxu0
      %v3115 = vadd.f32 0.0, %v3114
      %v3116 = vpop.f32.mrf.mxu0
      %v3117 = vadd.f32 0.0, %v3116
      %3118 = vmatmul.bf16.gmra.mxu0 %v3061
      %v3119 = vpop.f32.mrf.mxu0
      %v3120 = vadd.f32 0.0, %v3119
      %v3121 = vpop.f32.mrf.mxu0
      %v3122 = vadd.f32 0.0, %v3121
      %3123 = vmatmul.bf16.gmra.mxu0 %v3064
      %v3124 = vpop.f32.mrf.mxu0
      %v3125 = vadd.f32 0.0, %v3124
      %v3126 = vpop.f32.mrf.mxu0
      %v3127 = vadd.f32 0.0, %v3126
      %3128 = vmatmul.bf16.gmra.mxu0 %v3067
      %v3129 = vpop.f32.mrf.mxu0
      %v3130 = vadd.f32 0.0, %v3129
      %v3131 = vpop.f32.mrf.mxu0
      %v3132 = vadd.f32 0.0, %v3131
      %3133 = vmatmul.bf16.gmra.mxu0 %v3070
      %v3134 = vpop.f32.mrf.mxu0
      %v3135 = vadd.f32 0.0, %v3134
      %v3136 = vpop.f32.mrf.mxu0
      %v3137 = vadd.f32 0.0, %v3136
      %3138 = vmatmul.bf16.gmra.mxu0 %v3073
      %v3139 = vpop.f32.mrf.mxu0
      %v3140 = vadd.f32 0.0, %v3139
      %v3141 = vpop.f32.mrf.mxu0
      %v3142 = vadd.f32 0.0, %v3141
      %3143 = vmatmul.bf16.gmra.mxu0 %v3076
      %v3144 = vpop.f32.mrf.mxu0
      %v3145 = vadd.f32 0.0, %v3144
      %v3146 = vpop.f32.mrf.mxu0
      %v3147 = vadd.f32 0.0, %v3146
      %3148 = vmatmul.bf16.gmra.mxu0 %v3079
      %v3149 = vpop.f32.mrf.mxu0
      %v3150 = vadd.f32 0.0, %v3149
      %v3151 = vpop.f32.mrf.mxu0
      %v3152 = vadd.f32 0.0, %v3151
      %3153 = vmatmul.bf16.gmra.mxu0 %v3082
      %v3154 = vpop.f32.mrf.mxu0
      %v3155 = vadd.f32 0.0, %v3154
      %v3156 = vpop.f32.mrf.mxu0
      %v3157 = vadd.f32 0.0, %v3156
      %3158 = vmatmul.bf16.gmra.mxu0 %v3085
      %v3159 = vpop.f32.mrf.mxu0
      %v3160 = vadd.f32 0.0, %v3159
      %v3161 = vpop.f32.mrf.mxu0
      %v3162 = vadd.f32 0.0, %v3161
      %3163 = vmatmul.bf16.gmra.mxu0 %v3088
      %v3164 = vpop.f32.mrf.mxu0
      %v3165 = vadd.f32 0.0, %v3164
      %v3166 = vpop.f32.mrf.mxu0
      %v3167 = vadd.f32 0.0, %v3166
      %3168 = vmatmul.bf16.gmra.mxu0 %v3091
      %v3169 = vpop.f32.mrf.mxu0
      %v3170 = vadd.f32 0.0, %v3169
      %v3171 = vpop.f32.mrf.mxu0
      %v3172 = vadd.f32 0.0, %v3171
      %3173 = vmatmul.bf16.gmra.mxu0 %v3094
      %v3174 = vpop.f32.mrf.mxu0
      %v3175 = vadd.f32 0.0, %v3174
      %v3176 = vpop.f32.mrf.mxu0
      %v3177 = vadd.f32 0.0, %v3176
      %3178 = vmatmul.bf16.gmra.mxu0 %v3097
      %v3179 = vpop.f32.mrf.mxu0
      %v3180 = vadd.f32 0.0, %v3179
      %v3181 = vpop.f32.mrf.mxu0
      %v3182 = vadd.f32 0.0, %v3181
      %3183 = vmatmul.bf16.gmra.mxu0 %v3100
      %v3184 = vpop.f32.mrf.mxu0
      %v3185 = vadd.f32 0.0, %v3184
      %v3186 = vpop.f32.mrf.mxu0
      %v3187 = vadd.f32 0.0, %v3186
      %3188 = vmatmul.bf16.gmra.mxu0 %v3103
      %v3189 = vpop.f32.mrf.mxu0
      %v3190 = vadd.f32 0.0, %v3189
      %v3191 = vpop.f32.mrf.mxu0
      %v3192 = vadd.f32 0.0, %v3191
      %3193 = vdwg.mxu0
      %v3194 = vadd.f32 %v2879, %v3115
      %v3195 = vadd.f32 %v2880, %v3117
      %v3196 = vadd.f32 %v2881, %v3120
      %v3197 = vadd.f32 %v2882, %v3122
      %v3198 = vadd.f32 %v2883, %v3125
      %v3199 = vadd.f32 %v2884, %v3127
      %v3200 = vadd.f32 %v2885, %v3130
      %v3201 = vadd.f32 %v2886, %v3132
      %v3202 = vadd.f32 %v2887, %v3135
      %v3203 = vadd.f32 %v2888, %v3137
      %v3204 = vadd.f32 %v2889, %v3140
      %v3205 = vadd.f32 %v2890, %v3142
      %v3206 = vadd.f32 %v2891, %v3145
      %v3207 = vadd.f32 %v2892, %v3147
      %v3208 = vadd.f32 %v2893, %v3150
      %v3209 = vadd.f32 %v2894, %v3152
      %v3210 = vadd.f32 %v2895, %v3155
      %v3211 = vadd.f32 %v2896, %v3157
      %v3212 = vadd.f32 %v2897, %v3160
      %v3213 = vadd.f32 %v2898, %v3162
      %v3214 = vadd.f32 %v2899, %v3165
      %v3215 = vadd.f32 %v2900, %v3167
      %v3216 = vadd.f32 %v2901, %v3170
      %v3217 = vadd.f32 %v2902, %v3172
      %v3218 = vadd.f32 %v2903, %v3175
      %v3219 = vadd.f32 %v2904, %v3177
      %v3220 = vadd.f32 %v2905, %v3180
      %v3221 = vadd.f32 %v2906, %v3182
      %v3222 = vadd.f32 %v2907, %v3185
      %v3223 = vadd.f32 %v2908, %v3187
      %v3224 = vadd.f32 %v2909, %v3190
      %v3225 = vadd.f32 %v2910, %v3192
      %v3226 = vld [vmem:[%s2911] sm:$0xf]
      %v3227 = vld [vmem:[%s2911 + $0x4] sm:$0xf]
      %v3228 = vld [vmem:[%s2911 + $0x8] sm:$0x1]
      %v3229 = vld [vmem:[%s2911 + $0xc] sm:$0xf]
      %v3230 = vld [vmem:[%s2911 + $0x10] sm:$0xf]
      %v3231 = vld [vmem:[%s2911 + $0x14] sm:$0x1]
      %v3232 = vld [vmem:[%s2911 + $0x18] sm:$0xf]
      %v3233 = vld [vmem:[%s2911 + $0x1c] sm:$0xf]
      %v3234 = vld [vmem:[%s2911 + $0x20] sm:$0x1]
      %v3235 = vld [vmem:[%s2911 + $0x24] sm:$0xf]
      %v3236 = vld [vmem:[%s2911 + $0x28] sm:$0xf]
      %v3237 = vld [vmem:[%s2911 + $0x2c] sm:$0x1]
      %v3238 = vld [vmem:[%s2911 + $0x30] sm:$0xf]
      %v3239 = vld [vmem:[%s2911 + $0x34] sm:$0xf]
      %v3240 = vld [vmem:[%s2911 + $0x38] sm:$0x1]
      %v3241 = vld [vmem:[%s2911 + $0x3c] sm:$0xf]
      %v3242 = vld [vmem:[%s2911 + $0x40] sm:$0xf]
      %v3243 = vld [vmem:[%s2911 + $0x44] sm:$0x1]
      %v3244 = vld [vmem:[%s2911 + $0x48] sm:$0xf]
      %v3245 = vld [vmem:[%s2911 + $0x4c] sm:$0xf]
      %v3246 = vld [vmem:[%s2911 + $0x50] sm:$0x1]
      %v3247 = vld [vmem:[%s2911 + $0x54] sm:$0xf]
      %v3248 = vld [vmem:[%s2911 + $0x58] sm:$0xf]
      %v3249 = vld [vmem:[%s2911 + $0x5c] sm:$0x1]
      %v3250 = vld [vmem:[%s2911 + $0x60] sm:$0xf]
      %v3251 = vld [vmem:[%s2911 + $0x64] sm:$0xf]
      %v3252 = vld [vmem:[%s2911 + $0x68] sm:$0x1]
      %v3253 = vld [vmem:[%s2911 + $0x6c] sm:$0xf]
      %v3254 = vld [vmem:[%s2911 + $0x70] sm:$0xf]
      %v3255 = vld [vmem:[%s2911 + $0x74] sm:$0x1]
      %v3256 = vld [vmem:[%s2911 + $0x78] sm:$0xf]
      %v3257 = vld [vmem:[%s2911 + $0x7c] sm:$0xf]
      %v3258 = vld [vmem:[%s2911 + $0x80] sm:$0x1]
      %v3259 = vld [vmem:[%s2911 + $0x84] sm:$0xf]
      %v3260 = vld [vmem:[%s2911 + $0x88] sm:$0xf]
      %v3261 = vld [vmem:[%s2911 + $0x8c] sm:$0x1]
      %v3262 = vld [vmem:[%s2911 + $0x90] sm:$0xf]
      %v3263 = vld [vmem:[%s2911 + $0x94] sm:$0xf]
      %v3264 = vld [vmem:[%s2911 + $0x98] sm:$0x1]
      %v3265 = vld [vmem:[%s2911 + $0x9c] sm:$0xf]
      %v3266 = vld [vmem:[%s2911 + $0xa0] sm:$0xf]
      %v3267 = vld [vmem:[%s2911 + $0xa4] sm:$0x1]
      %v3268 = vld [vmem:[%s2911 + $0xa8] sm:$0xf]
      %v3269 = vld [vmem:[%s2911 + $0xac] sm:$0xf]
      %v3270 = vld [vmem:[%s2911 + $0xb0] sm:$0x1]
      %v3271 = vld [vmem:[%s2911 + $0xb4] sm:$0xf]
      %v3272 = vld [vmem:[%s2911 + $0xb8] sm:$0xf]
      %v3273 = vld [vmem:[%s2911 + $0xbc] sm:$0x1]
      %v3275 = vshrl.u32 %v3226, 16
      %v3277 = vrot.slane %v3275, 4
      %v3278 = vshll.u32 %v3226, 16
      %v3280 = vrot.slane %v3278, 5
      %v3281 = vor.u32 %v3277, %v3280
      %v3282 = vrot.slane %v3281, 4
      %v3284 = vshll.u32 %v3227, 16
      %v3286 = vrot.slane %v3284, 5
      %v3287 = vsel %vm230, %v3282, %v3286
      %v3288 = vshrl.u32 %v3227, 16
      %v3290 = vrot.slane %v3288, 4
      %v3291 = vor.u32 %v3290, %v3286
      %v3292 = vrot.slane %v3291, 4
      %v3294 = vshll.u32 %v3228, 16
      %v3296 = vrot.slane %v3294, 5
      %v3297 = vsel %vm230, %v3292, %v3296
      %v3299 = vshrl.u32 %v3229, 16
      %v3301 = vrot.slane %v3299, 4
      %v3302 = vshll.u32 %v3229, 16
      %v3304 = vrot.slane %v3302, 5
      %v3305 = vor.u32 %v3301, %v3304
      %v3306 = vrot.slane %v3305, 4
      %v3308 = vshll.u32 %v3230, 16
      %v3310 = vrot.slane %v3308, 5
      %v3311 = vsel %vm230, %v3306, %v3310
      %v3312 = vshrl.u32 %v3230, 16
      %v3314 = vrot.slane %v3312, 4
      %v3315 = vor.u32 %v3314, %v3310
      %v3316 = vrot.slane %v3315, 4
      %v3318 = vshll.u32 %v3231, 16
      %v3320 = vrot.slane %v3318, 5
      %v3321 = vsel %vm230, %v3316, %v3320
      %v3323 = vshrl.u32 %v3232, 16
      %v3325 = vrot.slane %v3323, 4
      %v3326 = vshll.u32 %v3232, 16
      %v3328 = vrot.slane %v3326, 5
      %v3329 = vor.u32 %v3325, %v3328
      %v3330 = vrot.slane %v3329, 4
      %v3332 = vshll.u32 %v3233, 16
      %v3334 = vrot.slane %v3332, 5
      %v3335 = vsel %vm230, %v3330, %v3334
      %v3336 = vshrl.u32 %v3233, 16
      %v3338 = vrot.slane %v3336, 4
      %v3339 = vor.u32 %v3338, %v3334
      %v3340 = vrot.slane %v3339, 4
      %v3342 = vshll.u32 %v3234, 16
      %v3344 = vrot.slane %v3342, 5
      %v3345 = vsel %vm230, %v3340, %v3344
      %v3347 = vshrl.u32 %v3235, 16
      %v3349 = vrot.slane %v3347, 4
      %v3350 = vshll.u32 %v3235, 16
      %v3352 = vrot.slane %v3350, 5
      %v3353 = vor.u32 %v3349, %v3352
      %v3354 = vrot.slane %v3353, 4
      %v3356 = vshll.u32 %v3236, 16
      %v3358 = vrot.slane %v3356, 5
      %v3359 = vsel %vm230, %v3354, %v3358
      %v3360 = vshrl.u32 %v3236, 16
      %v3362 = vrot.slane %v3360, 4
      %v3363 = vor.u32 %v3362, %v3358
      %v3364 = vrot.slane %v3363, 4
      %v3366 = vshll.u32 %v3237, 16
      %v3368 = vrot.slane %v3366, 5
      %v3369 = vsel %vm230, %v3364, %v3368
      %v3371 = vshrl.u32 %v3238, 16
      %v3373 = vrot.slane %v3371, 4
      %v3374 = vshll.u32 %v3238, 16
      %v3376 = vrot.slane %v3374, 5
      %v3377 = vor.u32 %v3373, %v3376
      %v3378 = vrot.slane %v3377, 4
      %v3380 = vshll.u32 %v3239, 16
      %v3382 = vrot.slane %v3380, 5
      %v3383 = vsel %vm230, %v3378, %v3382
      %v3384 = vshrl.u32 %v3239, 16
      %v3386 = vrot.slane %v3384, 4
      %v3387 = vor.u32 %v3386, %v3382
      %v3388 = vrot.slane %v3387, 4
      %v3390 = vshll.u32 %v3240, 16
      %v3392 = vrot.slane %v3390, 5
      %v3393 = vsel %vm230, %v3388, %v3392
      %v3395 = vshrl.u32 %v3241, 16
      %v3397 = vrot.slane %v3395, 4
      %v3398 = vshll.u32 %v3241, 16
      %v3400 = vrot.slane %v3398, 5
      %v3401 = vor.u32 %v3397, %v3400
      %v3402 = vrot.slane %v3401, 4
      %v3404 = vshll.u32 %v3242, 16
      %v3406 = vrot.slane %v3404, 5
      %v3407 = vsel %vm230, %v3402, %v3406
      %v3408 = vshrl.u32 %v3242, 16
      %v3410 = vrot.slane %v3408, 4
      %v3411 = vor.u32 %v3410, %v3406
      %v3412 = vrot.slane %v3411, 4
      %v3414 = vshll.u32 %v3243, 16
      %v3416 = vrot.slane %v3414, 5
      %v3417 = vsel %vm230, %v3412, %v3416
      %v3419 = vshrl.u32 %v3244, 16
      %v3421 = vrot.slane %v3419, 4
      %v3422 = vshll.u32 %v3244, 16
      %v3424 = vrot.slane %v3422, 5
      %v3425 = vor.u32 %v3421, %v3424
      %v3426 = vrot.slane %v3425, 4
      %v3428 = vshll.u32 %v3245, 16
      %v3430 = vrot.slane %v3428, 5
      %v3431 = vsel %vm230, %v3426, %v3430
      %v3432 = vshrl.u32 %v3245, 16
      %v3434 = vrot.slane %v3432, 4
      %v3435 = vor.u32 %v3434, %v3430
      %v3436 = vrot.slane %v3435, 4
      %v3438 = vshll.u32 %v3246, 16
      %v3440 = vrot.slane %v3438, 5
      %v3441 = vsel %vm230, %v3436, %v3440
      %v3443 = vshrl.u32 %v3247, 16
      %v3445 = vrot.slane %v3443, 4
      %v3446 = vshll.u32 %v3247, 16
      %v3448 = vrot.slane %v3446, 5
      %v3449 = vor.u32 %v3445, %v3448
      %v3450 = vrot.slane %v3449, 4
      %v3452 = vshll.u32 %v3248, 16
      %v3454 = vrot.slane %v3452, 5
      %v3455 = vsel %vm230, %v3450, %v3454
      %v3456 = vshrl.u32 %v3248, 16
      %v3458 = vrot.slane %v3456, 4
      %v3459 = vor.u32 %v3458, %v3454
      %v3460 = vrot.slane %v3459, 4
      %v3462 = vshll.u32 %v3249, 16
      %v3464 = vrot.slane %v3462, 5
      %v3465 = vsel %vm230, %v3460, %v3464
      %v3467 = vshrl.u32 %v3250, 16
      %v3469 = vrot.slane %v3467, 4
      %v3470 = vshll.u32 %v3250, 16
      %v3472 = vrot.slane %v3470, 5
      %v3473 = vor.u32 %v3469, %v3472
      %v3474 = vrot.slane %v3473, 4
      %v3476 = vshll.u32 %v3251, 16
      %v3478 = vrot.slane %v3476, 5
      %v3479 = vsel %vm230, %v3474, %v3478
      %v3480 = vshrl.u32 %v3251, 16
      %v3482 = vrot.slane %v3480, 4
      %v3483 = vor.u32 %v3482, %v3478
      %v3484 = vrot.slane %v3483, 4
      %v3486 = vshll.u32 %v3252, 16
      %v3488 = vrot.slane %v3486, 5
      %v3489 = vsel %vm230, %v3484, %v3488
      %v3491 = vshrl.u32 %v3253, 16
      %v3493 = vrot.slane %v3491, 4
      %v3494 = vshll.u32 %v3253, 16
      %v3496 = vrot.slane %v3494, 5
      %v3497 = vor.u32 %v3493, %v3496
      %v3498 = vrot.slane %v3497, 4
      %v3500 = vshll.u32 %v3254, 16
      %v3502 = vrot.slane %v3500, 5
      %v3503 = vsel %vm230, %v3498, %v3502
      %v3504 = vshrl.u32 %v3254, 16
      %v3506 = vrot.slane %v3504, 4
      %v3507 = vor.u32 %v3506, %v3502
      %v3508 = vrot.slane %v3507, 4
      %v3510 = vshll.u32 %v3255, 16
      %v3512 = vrot.slane %v3510, 5
      %v3513 = vsel %vm230, %v3508, %v3512
      %v3515 = vshrl.u32 %v3256, 16
      %v3517 = vrot.slane %v3515, 4
      %v3518 = vshll.u32 %v3256, 16
      %v3520 = vrot.slane %v3518, 5
      %v3521 = vor.u32 %v3517, %v3520
      %v3522 = vrot.slane %v3521, 4
      %v3524 = vshll.u32 %v3257, 16
      %v3526 = vrot.slane %v3524, 5
      %v3527 = vsel %vm230, %v3522, %v3526
      %v3528 = vshrl.u32 %v3257, 16
      %v3530 = vrot.slane %v3528, 4
      %v3531 = vor.u32 %v3530, %v3526
      %v3532 = vrot.slane %v3531, 4
      %v3534 = vshll.u32 %v3258, 16
      %v3536 = vrot.slane %v3534, 5
      %v3537 = vsel %vm230, %v3532, %v3536
      %v3539 = vshrl.u32 %v3259, 16
      %v3541 = vrot.slane %v3539, 4
      %v3542 = vshll.u32 %v3259, 16
      %v3544 = vrot.slane %v3542, 5
      %v3545 = vor.u32 %v3541, %v3544
      %v3546 = vrot.slane %v3545, 4
      %v3548 = vshll.u32 %v3260, 16
      %v3550 = vrot.slane %v3548, 5
      %v3551 = vsel %vm230, %v3546, %v3550
      %v3552 = vshrl.u32 %v3260, 16
      %v3554 = vrot.slane %v3552, 4
      %v3555 = vor.u32 %v3554, %v3550
      %v3556 = vrot.slane %v3555, 4
      %v3558 = vshll.u32 %v3261, 16
      %v3560 = vrot.slane %v3558, 5
      %v3561 = vsel %vm230, %v3556, %v3560
      %v3563 = vshrl.u32 %v3262, 16
      %v3565 = vrot.slane %v3563, 4
      %v3566 = vshll.u32 %v3262, 16
      %v3568 = vrot.slane %v3566, 5
      %v3569 = vor.u32 %v3565, %v3568
      %v3570 = vrot.slane %v3569, 4
      %v3572 = vshll.u32 %v3263, 16
      %v3574 = vrot.slane %v3572, 5
      %v3575 = vsel %vm230, %v3570, %v3574
      %v3576 = vshrl.u32 %v3263, 16
      %v3578 = vrot.slane %v3576, 4
      %v3579 = vor.u32 %v3578, %v3574
      %v3580 = vrot.slane %v3579, 4
      %v3582 = vshll.u32 %v3264, 16
      %v3584 = vrot.slane %v3582, 5
      %v3585 = vsel %vm230, %v3580, %v3584
      %v3587 = vshrl.u32 %v3265, 16
      %v3589 = vrot.slane %v3587, 4
      %v3590 = vshll.u32 %v3265, 16
      %v3592 = vrot.slane %v3590, 5
      %v3593 = vor.u32 %v3589, %v3592
      %v3594 = vrot.slane %v3593, 4
      %v3596 = vshll.u32 %v3266, 16
      %v3598 = vrot.slane %v3596, 5
      %v3599 = vsel %vm230, %v3594, %v3598
      %v3600 = vshrl.u32 %v3266, 16
      %v3602 = vrot.slane %v3600, 4
      %v3603 = vor.u32 %v3602, %v3598
      %v3604 = vrot.slane %v3603, 4
      %v3606 = vshll.u32 %v3267, 16
      %v3608 = vrot.slane %v3606, 5
      %v3609 = vsel %vm230, %v3604, %v3608
      %v3611 = vshrl.u32 %v3268, 16
      %v3613 = vrot.slane %v3611, 4
      %v3614 = vshll.u32 %v3268, 16
      %v3616 = vrot.slane %v3614, 5
      %v3617 = vor.u32 %v3613, %v3616
      %v3618 = vrot.slane %v3617, 4
      %v3620 = vshll.u32 %v3269, 16
      %v3622 = vrot.slane %v3620, 5
      %v3623 = vsel %vm230, %v3618, %v3622
      %v3624 = vshrl.u32 %v3269, 16
      %v3626 = vrot.slane %v3624, 4
      %v3627 = vor.u32 %v3626, %v3622
      %v3628 = vrot.slane %v3627, 4
      %v3630 = vshll.u32 %v3270, 16
      %v3632 = vrot.slane %v3630, 5
      %v3633 = vsel %vm230, %v3628, %v3632
      %v3635 = vshrl.u32 %v3271, 16
      %v3637 = vrot.slane %v3635, 4
      %v3638 = vshll.u32 %v3271, 16
      %v3640 = vrot.slane %v3638, 5
      %v3641 = vor.u32 %v3637, %v3640
      %v3642 = vrot.slane %v3641, 4
      %v3644 = vshll.u32 %v3272, 16
      %v3646 = vrot.slane %v3644, 5
      %v3647 = vsel %vm230, %v3642, %v3646
      %v3648 = vshrl.u32 %v3272, 16
      %v3650 = vrot.slane %v3648, 4
      %v3651 = vor.u32 %v3650, %v3646
      %v3652 = vrot.slane %v3651, 4
      %v3654 = vshll.u32 %v3273, 16
      %v3656 = vrot.slane %v3654, 5
      %v3657 = vsel %vm230, %v3652, %v3656
      %s3658 = scalar_lea.vmem %s1, 224
      %v3659 = vld [vmem:[%s3658] sm:$0xf]
      %v3660 = vld [vmem:[%s3658 + $0x4] sm:$0xf]
      %v3661 = vld [vmem:[%s3658 + $0x8] sm:$0xf]
      %v3662 = vld [vmem:[%s3658 + $0xc] sm:$0xf]
      %v3663 = vld [vmem:[%s3658 + $0x10] sm:$0xf]
      %v3664 = vld [vmem:[%s3658 + $0x14] sm:$0xf]
      %v3665 = vld [vmem:[%s3658 + $0x18] sm:$0xf]
      %v3666 = vld [vmem:[%s3658 + $0x1c] sm:$0xf]
      %v3667 = vunpack.c.l.b16 %v3287
      %v3668 = vunpack.c.l.b16 %v3297
      %v3669 = vunpack.c.l.b16 %v3311
      %v3670 = vunpack.c.l.b16 %v3321
      %v3671 = vunpack.c.l.b16 %v3335
      %v3672 = vunpack.c.l.b16 %v3345
      %v3673 = vunpack.c.l.b16 %v3359
      %v3674 = vunpack.c.l.b16 %v3369
      %v3675 = vunpack.c.l.b16 %v3383
      %v3676 = vunpack.c.l.b16 %v3393
      %v3677 = vunpack.c.l.b16 %v3407
      %v3678 = vunpack.c.l.b16 %v3417
      %v3679 = vunpack.c.l.b16 %v3431
      %v3680 = vunpack.c.l.b16 %v3441
      %v3681 = vunpack.c.l.b16 %v3455
      %v3682 = vunpack.c.l.b16 %v3465
      %v3683 = vunpack.c.l.b16 %v3479
      %v3684 = vunpack.c.l.b16 %v3489
      %v3685 = vunpack.c.l.b16 %v3503
      %v3686 = vunpack.c.l.b16 %v3513
      %v3687 = vunpack.c.l.b16 %v3527
      %v3688 = vunpack.c.l.b16 %v3537
      %v3689 = vunpack.c.l.b16 %v3551
      %v3690 = vunpack.c.l.b16 %v3561
      %v3691 = vunpack.c.l.b16 %v3575
      %v3692 = vunpack.c.l.b16 %v3585
      %v3693 = vunpack.c.l.b16 %v3599
      %v3694 = vunpack.c.l.b16 %v3609
      %v3695 = vunpack.c.l.b16 %v3623
      %v3696 = vunpack.c.l.b16 %v3633
      %v3697 = vunpack.c.l.b16 %v3647
      %v3698 = vunpack.c.l.b16 %v3657
      %v3699 = vpack.c.b16 %v3668, %v3667
      %v3700 = vpack.c.b16 %v3670, %v3669
      %v3701 = vpack.c.b16 %v3672, %v3671
      %v3702 = vpack.c.b16 %v3674, %v3673
      %v3703 = vpack.c.b16 %v3676, %v3675
      %v3704 = vpack.c.b16 %v3678, %v3677
      %v3705 = vpack.c.b16 %v3680, %v3679
      %v3706 = vpack.c.b16 %v3682, %v3681
      %v3707 = vpack.c.b16 %v3684, %v3683
      %v3708 = vpack.c.b16 %v3686, %v3685
      %v3709 = vpack.c.b16 %v3688, %v3687
      %v3710 = vpack.c.b16 %v3690, %v3689
      %v3711 = vpack.c.b16 %v3692, %v3691
      %v3712 = vpack.c.b16 %v3694, %v3693
      %v3713 = vpack.c.b16 %v3696, %v3695
      %v3714 = vpack.c.b16 %v3698, %v3697
      %v3723 = vunpack.c.l.b16 %v3659
      %v3724 = vunpack.c.l.b16 %v3660
      %v3725 = vunpack.c.l.b16 %v3661
      %v3726 = vunpack.c.l.b16 %v3662
      %v3727 = vunpack.c.l.b16 %v3663
      %v3728 = vunpack.c.l.b16 %v3664
      %v3729 = vunpack.c.l.b16 %v3665
      %v3730 = vunpack.c.l.b16 %v3666
      %v3731 = vpack.c.b16 %v3724, %v3723
      %v3732 = vpack.c.b16 %v3726, %v3725
      %v3733 = vpack.c.b16 %v3728, %v3727
      %v3734 = vpack.c.b16 %v3730, %v3729
      %v3740 = vsel %vm696, %v3699, 0
      %v3743 = vsel %vm696, %v3700, 0
      %v3746 = vsel %vm696, %v3701, 0
      %v3749 = vsel %vm696, %v3702, 0
      %v3752 = vsel %vm696, %v3703, 0
      %v3755 = vsel %vm696, %v3704, 0
      %v3758 = vsel %vm696, %v3705, 0
      %v3761 = vsel %vm696, %v3706, 0
      %v3764 = vsel %vm696, %v3707, 0
      %v3767 = vsel %vm696, %v3708, 0
      %v3770 = vsel %vm696, %v3709, 0
      %v3773 = vsel %vm696, %v3710, 0
      %v3776 = vsel %vm696, %v3711, 0
      %v3779 = vsel %vm696, %v3712, 0
      %v3782 = vsel %vm696, %v3713, 0
      %v3785 = vsel %vm696, %v3714, 0
      %3787 = vmatpush.bf16.msra.mxu0 0
      %3788 = vmatpush.bf16.msra.mxu0 0
      %3789 = vmatpush.bf16.msra.mxu0 0
      %3790 = vmatpush.bf16.msra.mxu0 0
      %3791 = vmatpush.bf16.msra.mxu0 %v3734
      %3792 = vmatpush.bf16.msra.mxu0 %v3733
      %3793 = vmatpush.bf16.msra.mxu0 %v3732
      %3794 = vmatpush.bf16.msra.mxu0 %v3731
      %3795 = vmatmul.bf16.gmra.mxu0 %v3740
      %v3796 = vpop.f32.mrf.mxu0
      %v3797 = vadd.f32 0.0, %v3796
      %v3798 = vpop.f32.mrf.mxu0
      %v3799 = vadd.f32 0.0, %v3798
      %3800 = vmatmul.bf16.gmra.mxu0 %v3743
      %v3801 = vpop.f32.mrf.mxu0
      %v3802 = vadd.f32 0.0, %v3801
      %v3803 = vpop.f32.mrf.mxu0
      %v3804 = vadd.f32 0.0, %v3803
      %3805 = vmatmul.bf16.gmra.mxu0 %v3746
      %v3806 = vpop.f32.mrf.mxu0
      %v3807 = vadd.f32 0.0, %v3806
      %v3808 = vpop.f32.mrf.mxu0
      %v3809 = vadd.f32 0.0, %v3808
      %3810 = vmatmul.bf16.gmra.mxu0 %v3749
      %v3811 = vpop.f32.mrf.mxu0
      %v3812 = vadd.f32 0.0, %v3811
      %v3813 = vpop.f32.mrf.mxu0
      %v3814 = vadd.f32 0.0, %v3813
      %3815 = vmatmul.bf16.gmra.mxu0 %v3752
      %v3816 = vpop.f32.mrf.mxu0
      %v3817 = vadd.f32 0.0, %v3816
      %v3818 = vpop.f32.mrf.mxu0
      %v3819 = vadd.f32 0.0, %v3818
      %3820 = vmatmul.bf16.gmra.mxu0 %v3755
      %v3821 = vpop.f32.mrf.mxu0
      %v3822 = vadd.f32 0.0, %v3821
      %v3823 = vpop.f32.mrf.mxu0
      %v3824 = vadd.f32 0.0, %v3823
      %3825 = vmatmul.bf16.gmra.mxu0 %v3758
      %v3826 = vpop.f32.mrf.mxu0
      %v3827 = vadd.f32 0.0, %v3826
      %v3828 = vpop.f32.mrf.mxu0
      %v3829 = vadd.f32 0.0, %v3828
      %3830 = vmatmul.bf16.gmra.mxu0 %v3761
      %v3831 = vpop.f32.mrf.mxu0
      %v3832 = vadd.f32 0.0, %v3831
      %v3833 = vpop.f32.mrf.mxu0
      %v3834 = vadd.f32 0.0, %v3833
      %3835 = vmatmul.bf16.gmra.mxu0 %v3764
      %v3836 = vpop.f32.mrf.mxu0
      %v3837 = vadd.f32 0.0, %v3836
      %v3838 = vpop.f32.mrf.mxu0
      %v3839 = vadd.f32 0.0, %v3838
      %3840 = vmatmul.bf16.gmra.mxu0 %v3767
      %v3841 = vpop.f32.mrf.mxu0
      %v3842 = vadd.f32 0.0, %v3841
      %v3843 = vpop.f32.mrf.mxu0
      %v3844 = vadd.f32 0.0, %v3843
      %3845 = vmatmul.bf16.gmra.mxu0 %v3770
      %v3846 = vpop.f32.mrf.mxu0
      %v3847 = vadd.f32 0.0, %v3846
      %v3848 = vpop.f32.mrf.mxu0
      %v3849 = vadd.f32 0.0, %v3848
      %3850 = vmatmul.bf16.gmra.mxu0 %v3773
      %v3851 = vpop.f32.mrf.mxu0
      %v3852 = vadd.f32 0.0, %v3851
      %v3853 = vpop.f32.mrf.mxu0
      %v3854 = vadd.f32 0.0, %v3853
      %3855 = vmatmul.bf16.gmra.mxu0 %v3776
      %v3856 = vpop.f32.mrf.mxu0
      %v3857 = vadd.f32 0.0, %v3856
      %v3858 = vpop.f32.mrf.mxu0
      %v3859 = vadd.f32 0.0, %v3858
      %3860 = vmatmul.bf16.gmra.mxu0 %v3779
      %v3861 = vpop.f32.mrf.mxu0
      %v3862 = vadd.f32 0.0, %v3861
      %v3863 = vpop.f32.mrf.mxu0
      %v3864 = vadd.f32 0.0, %v3863
      %3865 = vmatmul.bf16.gmra.mxu0 %v3782
      %v3866 = vpop.f32.mrf.mxu0
      %v3867 = vadd.f32 0.0, %v3866
      %v3868 = vpop.f32.mrf.mxu0
      %v3869 = vadd.f32 0.0, %v3868
      %3870 = vmatmul.bf16.gmra.mxu0 %v3785
      %v3871 = vpop.f32.mrf.mxu0
      %v3872 = vadd.f32 0.0, %v3871
      %v3873 = vpop.f32.mrf.mxu0
      %v3874 = vadd.f32 0.0, %v3873
      %3875 = vdwg.mxu0
      %v3876 = vadd.f32 %v3194, %v3797
      %v3877 = vadd.f32 %v3195, %v3799
      %v3878 = vadd.f32 %v3196, %v3802
      %v3879 = vadd.f32 %v3197, %v3804
      %v3880 = vadd.f32 %v3198, %v3807
      %v3881 = vadd.f32 %v3199, %v3809
      %v3882 = vadd.f32 %v3200, %v3812
      %v3883 = vadd.f32 %v3201, %v3814
      %v3884 = vadd.f32 %v3202, %v3817
      %v3885 = vadd.f32 %v3203, %v3819
      %v3886 = vadd.f32 %v3204, %v3822
      %v3887 = vadd.f32 %v3205, %v3824
      %v3888 = vadd.f32 %v3206, %v3827
      %v3889 = vadd.f32 %v3207, %v3829
      %v3890 = vadd.f32 %v3208, %v3832
      %v3891 = vadd.f32 %v3209, %v3834
      %v3892 = vadd.f32 %v3210, %v3837
      %v3893 = vadd.f32 %v3211, %v3839
      %v3894 = vadd.f32 %v3212, %v3842
      %v3895 = vadd.f32 %v3213, %v3844
      %v3896 = vadd.f32 %v3214, %v3847
      %v3897 = vadd.f32 %v3215, %v3849
      %v3898 = vadd.f32 %v3216, %v3852
      %v3899 = vadd.f32 %v3217, %v3854
      %v3900 = vadd.f32 %v3218, %v3857
      %v3901 = vadd.f32 %v3219, %v3859
      %v3902 = vadd.f32 %v3220, %v3862
      %v3903 = vadd.f32 %v3221, %v3864
      %v3904 = vadd.f32 %v3222, %v3867
      %v3905 = vadd.f32 %v3223, %v3869
      %v3906 = vadd.f32 %v3224, %v3872
      %v3907 = vadd.f32 %v3225, %v3874
      %v3908 = vld [vmem:[%s2911] sm:$0xe]
      %v3909 = vld [vmem:[%s2911 + $0xc] sm:$0xe]
      %v3910 = vld [vmem:[%s2911 + $0x18] sm:$0xe]
      %v3911 = vld [vmem:[%s2911 + $0x24] sm:$0xe]
      %v3912 = vld [vmem:[%s2911 + $0x30] sm:$0xe]
      %v3913 = vld [vmem:[%s2911 + $0x3c] sm:$0xe]
      %v3914 = vld [vmem:[%s2911 + $0x48] sm:$0xe]
      %v3915 = vld [vmem:[%s2911 + $0x54] sm:$0xe]
      %v3916 = vld [vmem:[%s2911 + $0x60] sm:$0xe]
      %v3917 = vld [vmem:[%s2911 + $0x6c] sm:$0xe]
      %v3918 = vld [vmem:[%s2911 + $0x78] sm:$0xe]
      %v3919 = vld [vmem:[%s2911 + $0x84] sm:$0xe]
      %v3920 = vld [vmem:[%s2911 + $0x90] sm:$0xe]
      %v3921 = vld [vmem:[%s2911 + $0x9c] sm:$0xe]
      %v3922 = vld [vmem:[%s2911 + $0xa8] sm:$0xe]
      %v3923 = vld [vmem:[%s2911 + $0xb4] sm:$0xe]
      %v3972 = vrot.slane %v3908, 5
      %v3973 = vrot.slane %v3972, 4
      %v3974 = vrot.slane %v3227, 5
      %v3975 = vsel %vm1125, %v3973, %v3974
      %v3976 = vrot.slane %v3974, 4
      %v3977 = vrot.slane %v3228, 5
      %v3978 = vsel %vm1125, %v3976, %v3977
      %v3979 = vrot.slane %v3909, 5
      %v3980 = vrot.slane %v3979, 4
      %v3981 = vrot.slane %v3230, 5
      %v3982 = vsel %vm1125, %v3980, %v3981
      %v3983 = vrot.slane %v3981, 4
      %v3984 = vrot.slane %v3231, 5
      %v3985 = vsel %vm1125, %v3983, %v3984
      %v3986 = vrot.slane %v3910, 5
      %v3987 = vrot.slane %v3986, 4
      %v3988 = vrot.slane %v3233, 5
      %v3989 = vsel %vm1125, %v3987, %v3988
      %v3990 = vrot.slane %v3988, 4
      %v3991 = vrot.slane %v3234, 5
      %v3992 = vsel %vm1125, %v3990, %v3991
      %v3993 = vrot.slane %v3911, 5
      %v3994 = vrot.slane %v3993, 4
      %v3995 = vrot.slane %v3236, 5
      %v3996 = vsel %vm1125, %v3994, %v3995
      %v3997 = vrot.slane %v3995, 4
      %v3998 = vrot.slane %v3237, 5
      %v3999 = vsel %vm1125, %v3997, %v3998
      %v4000 = vrot.slane %v3912, 5
      %v4001 = vrot.slane %v4000, 4
      %v4002 = vrot.slane %v3239, 5
      %v4003 = vsel %vm1125, %v4001, %v4002
      %v4004 = vrot.slane %v4002, 4
      %v4005 = vrot.slane %v3240, 5
      %v4006 = vsel %vm1125, %v4004, %v4005
      %v4007 = vrot.slane %v3913, 5
      %v4008 = vrot.slane %v4007, 4
      %v4009 = vrot.slane %v3242, 5
      %v4010 = vsel %vm1125, %v4008, %v4009
      %v4011 = vrot.slane %v4009, 4
      %v4012 = vrot.slane %v3243, 5
      %v4013 = vsel %vm1125, %v4011, %v4012
      %v4014 = vrot.slane %v3914, 5
      %v4015 = vrot.slane %v4014, 4
      %v4016 = vrot.slane %v3245, 5
      %v4017 = vsel %vm1125, %v4015, %v4016
      %v4018 = vrot.slane %v4016, 4
      %v4019 = vrot.slane %v3246, 5
      %v4020 = vsel %vm1125, %v4018, %v4019
      %v4021 = vrot.slane %v3915, 5
      %v4022 = vrot.slane %v4021, 4
      %v4023 = vrot.slane %v3248, 5
      %v4024 = vsel %vm1125, %v4022, %v4023
      %v4025 = vrot.slane %v4023, 4
      %v4026 = vrot.slane %v3249, 5
      %v4027 = vsel %vm1125, %v4025, %v4026
      %v4028 = vrot.slane %v3916, 5
      %v4029 = vrot.slane %v4028, 4
      %v4030 = vrot.slane %v3251, 5
      %v4031 = vsel %vm1125, %v4029, %v4030
      %v4032 = vrot.slane %v4030, 4
      %v4033 = vrot.slane %v3252, 5
      %v4034 = vsel %vm1125, %v4032, %v4033
      %v4035 = vrot.slane %v3917, 5
      %v4036 = vrot.slane %v4035, 4
      %v4037 = vrot.slane %v3254, 5
      %v4038 = vsel %vm1125, %v4036, %v4037
      %v4039 = vrot.slane %v4037, 4
      %v4040 = vrot.slane %v3255, 5
      %v4041 = vsel %vm1125, %v4039, %v4040
      %v4042 = vrot.slane %v3918, 5
      %v4043 = vrot.slane %v4042, 4
      %v4044 = vrot.slane %v3257, 5
      %v4045 = vsel %vm1125, %v4043, %v4044
      %v4046 = vrot.slane %v4044, 4
      %v4047 = vrot.slane %v3258, 5
      %v4048 = vsel %vm1125, %v4046, %v4047
      %v4049 = vrot.slane %v3919, 5
      %v4050 = vrot.slane %v4049, 4
      %v4051 = vrot.slane %v3260, 5
      %v4052 = vsel %vm1125, %v4050, %v4051
      %v4053 = vrot.slane %v4051, 4
      %v4054 = vrot.slane %v3261, 5
      %v4055 = vsel %vm1125, %v4053, %v4054
      %v4056 = vrot.slane %v3920, 5
      %v4057 = vrot.slane %v4056, 4
      %v4058 = vrot.slane %v3263, 5
      %v4059 = vsel %vm1125, %v4057, %v4058
      %v4060 = vrot.slane %v4058, 4
      %v4061 = vrot.slane %v3264, 5
      %v4062 = vsel %vm1125, %v4060, %v4061
      %v4063 = vrot.slane %v3921, 5
      %v4064 = vrot.slane %v4063, 4
      %v4065 = vrot.slane %v3266, 5
      %v4066 = vsel %vm1125, %v4064, %v4065
      %v4067 = vrot.slane %v4065, 4
      %v4068 = vrot.slane %v3267, 5
      %v4069 = vsel %vm1125, %v4067, %v4068
      %v4070 = vrot.slane %v3922, 5
      %v4071 = vrot.slane %v4070, 4
      %v4072 = vrot.slane %v3269, 5
      %v4073 = vsel %vm1125, %v4071, %v4072
      %v4074 = vrot.slane %v4072, 4
      %v4075 = vrot.slane %v3270, 5
      %v4076 = vsel %vm1125, %v4074, %v4075
      %v4077 = vrot.slane %v3923, 5
      %v4078 = vrot.slane %v4077, 4
      %v4079 = vrot.slane %v3272, 5
      %v4080 = vsel %vm1125, %v4078, %v4079
      %v4081 = vrot.slane %v4079, 4
      %v4082 = vrot.slane %v3273, 5
      %v4083 = vsel %vm1125, %v4081, %v4082
      %s4084 = scalar_lea.vmem %s1, 256
      %v4085 = vld [vmem:[%s4084] sm:$0xf]
      %v4086 = vld [vmem:[%s4084 + $0x4] sm:$0xf]
      %v4087 = vld [vmem:[%s4084 + $0x8] sm:$0xf]
      %v4088 = vld [vmem:[%s4084 + $0xc] sm:$0xf]
      %v4089 = vld [vmem:[%s4084 + $0x10] sm:$0xf]
      %v4090 = vld [vmem:[%s4084 + $0x14] sm:$0xf]
      %v4091 = vld [vmem:[%s4084 + $0x18] sm:$0xf]
      %v4092 = vld [vmem:[%s4084 + $0x1c] sm:$0xf]
      %v4093 = vunpack.c.l.b16 %v3975
      %v4094 = vunpack.c.l.b16 %v3978
      %v4095 = vunpack.c.l.b16 %v3982
      %v4096 = vunpack.c.l.b16 %v3985
      %v4097 = vunpack.c.l.b16 %v3989
      %v4098 = vunpack.c.l.b16 %v3992
      %v4099 = vunpack.c.l.b16 %v3996
      %v4100 = vunpack.c.l.b16 %v3999
      %v4101 = vunpack.c.l.b16 %v4003
      %v4102 = vunpack.c.l.b16 %v4006
      %v4103 = vunpack.c.l.b16 %v4010
      %v4104 = vunpack.c.l.b16 %v4013
      %v4105 = vunpack.c.l.b16 %v4017
      %v4106 = vunpack.c.l.b16 %v4020
      %v4107 = vunpack.c.l.b16 %v4024
      %v4108 = vunpack.c.l.b16 %v4027
      %v4109 = vunpack.c.l.b16 %v4031
      %v4110 = vunpack.c.l.b16 %v4034
      %v4111 = vunpack.c.l.b16 %v4038
      %v4112 = vunpack.c.l.b16 %v4041
      %v4113 = vunpack.c.l.b16 %v4045
      %v4114 = vunpack.c.l.b16 %v4048
      %v4115 = vunpack.c.l.b16 %v4052
      %v4116 = vunpack.c.l.b16 %v4055
      %v4117 = vunpack.c.l.b16 %v4059
      %v4118 = vunpack.c.l.b16 %v4062
      %v4119 = vunpack.c.l.b16 %v4066
      %v4120 = vunpack.c.l.b16 %v4069
      %v4121 = vunpack.c.l.b16 %v4073
      %v4122 = vunpack.c.l.b16 %v4076
      %v4123 = vunpack.c.l.b16 %v4080
      %v4124 = vunpack.c.l.b16 %v4083
      %v4125 = vpack.c.b16 %v4094, %v4093
      %v4126 = vpack.c.b16 %v4096, %v4095
      %v4127 = vpack.c.b16 %v4098, %v4097
      %v4128 = vpack.c.b16 %v4100, %v4099
      %v4129 = vpack.c.b16 %v4102, %v4101
      %v4130 = vpack.c.b16 %v4104, %v4103
      %v4131 = vpack.c.b16 %v4106, %v4105
      %v4132 = vpack.c.b16 %v4108, %v4107
      %v4133 = vpack.c.b16 %v4110, %v4109
      %v4134 = vpack.c.b16 %v4112, %v4111
      %v4135 = vpack.c.b16 %v4114, %v4113
      %v4136 = vpack.c.b16 %v4116, %v4115
      %v4137 = vpack.c.b16 %v4118, %v4117
      %v4138 = vpack.c.b16 %v4120, %v4119
      %v4139 = vpack.c.b16 %v4122, %v4121
      %v4140 = vpack.c.b16 %v4124, %v4123
      %v4149 = vunpack.c.l.b16 %v4085
      %v4150 = vunpack.c.l.b16 %v4086
      %v4151 = vunpack.c.l.b16 %v4087
      %v4152 = vunpack.c.l.b16 %v4088
      %v4153 = vunpack.c.l.b16 %v4089
      %v4154 = vunpack.c.l.b16 %v4090
      %v4155 = vunpack.c.l.b16 %v4091
      %v4156 = vunpack.c.l.b16 %v4092
      %v4157 = vpack.c.b16 %v4150, %v4149
      %v4158 = vpack.c.b16 %v4152, %v4151
      %v4159 = vpack.c.b16 %v4154, %v4153
      %v4160 = vpack.c.b16 %v4156, %v4155
      %v4166 = vsel %vm696, %v4125, 0
      %v4169 = vsel %vm696, %v4126, 0
      %v4172 = vsel %vm696, %v4127, 0
      %v4175 = vsel %vm696, %v4128, 0
      %v4178 = vsel %vm696, %v4129, 0
      %v4181 = vsel %vm696, %v4130, 0
      %v4184 = vsel %vm696, %v4131, 0
      %v4187 = vsel %vm696, %v4132, 0
      %v4190 = vsel %vm696, %v4133, 0
      %v4193 = vsel %vm696, %v4134, 0
      %v4196 = vsel %vm696, %v4135, 0
      %v4199 = vsel %vm696, %v4136, 0
      %v4202 = vsel %vm696, %v4137, 0
      %v4205 = vsel %vm696, %v4138, 0
      %v4208 = vsel %vm696, %v4139, 0
      %v4211 = vsel %vm696, %v4140, 0
      %4213 = vmatpush.bf16.msra.mxu0 0
      %4214 = vmatpush.bf16.msra.mxu0 0
      %4215 = vmatpush.bf16.msra.mxu0 0
      %4216 = vmatpush.bf16.msra.mxu0 0
      %4217 = vmatpush.bf16.msra.mxu0 %v4160
      %4218 = vmatpush.bf16.msra.mxu0 %v4159
      %4219 = vmatpush.bf16.msra.mxu0 %v4158
      %4220 = vmatpush.bf16.msra.mxu0 %v4157
      %4221 = vmatmul.bf16.gmra.mxu0 %v4166
      %v4222 = vpop.f32.mrf.mxu0
      %v4223 = vadd.f32 0.0, %v4222
      %v4224 = vpop.f32.mrf.mxu0
      %v4225 = vadd.f32 0.0, %v4224
      %4226 = vmatmul.bf16.gmra.mxu0 %v4169
      %v4227 = vpop.f32.mrf.mxu0
      %v4228 = vadd.f32 0.0, %v4227
      %v4229 = vpop.f32.mrf.mxu0
      %v4230 = vadd.f32 0.0, %v4229
      %4231 = vmatmul.bf16.gmra.mxu0 %v4172
      %v4232 = vpop.f32.mrf.mxu0
      %v4233 = vadd.f32 0.0, %v4232
      %v4234 = vpop.f32.mrf.mxu0
      %v4235 = vadd.f32 0.0, %v4234
      %4236 = vmatmul.bf16.gmra.mxu0 %v4175
      %v4237 = vpop.f32.mrf.mxu0
      %v4238 = vadd.f32 0.0, %v4237
      %v4239 = vpop.f32.mrf.mxu0
      %v4240 = vadd.f32 0.0, %v4239
      %4241 = vmatmul.bf16.gmra.mxu0 %v4178
      %v4242 = vpop.f32.mrf.mxu0
      %v4243 = vadd.f32 0.0, %v4242
      %v4244 = vpop.f32.mrf.mxu0
      %v4245 = vadd.f32 0.0, %v4244
      %4246 = vmatmul.bf16.gmra.mxu0 %v4181
      %v4247 = vpop.f32.mrf.mxu0
      %v4248 = vadd.f32 0.0, %v4247
      %v4249 = vpop.f32.mrf.mxu0
      %v4250 = vadd.f32 0.0, %v4249
      %4251 = vmatmul.bf16.gmra.mxu0 %v4184
      %v4252 = vpop.f32.mrf.mxu0
      %v4253 = vadd.f32 0.0, %v4252
      %v4254 = vpop.f32.mrf.mxu0
      %v4255 = vadd.f32 0.0, %v4254
      %4256 = vmatmul.bf16.gmra.mxu0 %v4187
      %v4257 = vpop.f32.mrf.mxu0
      %v4258 = vadd.f32 0.0, %v4257
      %v4259 = vpop.f32.mrf.mxu0
      %v4260 = vadd.f32 0.0, %v4259
      %4261 = vmatmul.bf16.gmra.mxu0 %v4190
      %v4262 = vpop.f32.mrf.mxu0
      %v4263 = vadd.f32 0.0, %v4262
      %v4264 = vpop.f32.mrf.mxu0
      %v4265 = vadd.f32 0.0, %v4264
      %4266 = vmatmul.bf16.gmra.mxu0 %v4193
      %v4267 = vpop.f32.mrf.mxu0
      %v4268 = vadd.f32 0.0, %v4267
      %v4269 = vpop.f32.mrf.mxu0
      %v4270 = vadd.f32 0.0, %v4269
      %4271 = vmatmul.bf16.gmra.mxu0 %v4196
      %v4272 = vpop.f32.mrf.mxu0
      %v4273 = vadd.f32 0.0, %v4272
      %v4274 = vpop.f32.mrf.mxu0
      %v4275 = vadd.f32 0.0, %v4274
      %4276 = vmatmul.bf16.gmra.mxu0 %v4199
      %v4277 = vpop.f32.mrf.mxu0
      %v4278 = vadd.f32 0.0, %v4277
      %v4279 = vpop.f32.mrf.mxu0
      %v4280 = vadd.f32 0.0, %v4279
      %4281 = vmatmul.bf16.gmra.mxu0 %v4202
      %v4282 = vpop.f32.mrf.mxu0
      %v4283 = vadd.f32 0.0, %v4282
      %v4284 = vpop.f32.mrf.mxu0
      %v4285 = vadd.f32 0.0, %v4284
      %4286 = vmatmul.bf16.gmra.mxu0 %v4205
      %v4287 = vpop.f32.mrf.mxu0
      %v4288 = vadd.f32 0.0, %v4287
      %v4289 = vpop.f32.mrf.mxu0
      %v4290 = vadd.f32 0.0, %v4289
      %4291 = vmatmul.bf16.gmra.mxu0 %v4208
      %v4292 = vpop.f32.mrf.mxu0
      %v4293 = vadd.f32 0.0, %v4292
      %v4294 = vpop.f32.mrf.mxu0
      %v4295 = vadd.f32 0.0, %v4294
      %4296 = vmatmul.bf16.gmra.mxu0 %v4211
      %v4297 = vpop.f32.mrf.mxu0
      %v4298 = vadd.f32 0.0, %v4297
      %v4299 = vpop.f32.mrf.mxu0
      %v4300 = vadd.f32 0.0, %v4299
      %4301 = vdwg.mxu0
      %v4302 = vadd.f32 %v3876, %v4223
      %v4303 = vadd.f32 %v3877, %v4225
      %v4304 = vadd.f32 %v3878, %v4228
      %v4305 = vadd.f32 %v3879, %v4230
      %v4306 = vadd.f32 %v3880, %v4233
      %v4307 = vadd.f32 %v3881, %v4235
      %v4308 = vadd.f32 %v3882, %v4238
      %v4309 = vadd.f32 %v3883, %v4240
      %v4310 = vadd.f32 %v3884, %v4243
      %v4311 = vadd.f32 %v3885, %v4245
      %v4312 = vadd.f32 %v3886, %v4248
      %v4313 = vadd.f32 %v3887, %v4250
      %v4314 = vadd.f32 %v3888, %v4253
      %v4315 = vadd.f32 %v3889, %v4255
      %v4316 = vadd.f32 %v3890, %v4258
      %v4317 = vadd.f32 %v3891, %v4260
      %v4318 = vadd.f32 %v3892, %v4263
      %v4319 = vadd.f32 %v3893, %v4265
      %v4320 = vadd.f32 %v3894, %v4268
      %v4321 = vadd.f32 %v3895, %v4270
      %v4322 = vadd.f32 %v3896, %v4273
      %v4323 = vadd.f32 %v3897, %v4275
      %v4324 = vadd.f32 %v3898, %v4278
      %v4325 = vadd.f32 %v3899, %v4280
      %v4326 = vadd.f32 %v3900, %v4283
      %v4327 = vadd.f32 %v3901, %v4285
      %v4328 = vadd.f32 %v3902, %v4288
      %v4329 = vadd.f32 %v3903, %v4290
      %v4330 = vadd.f32 %v3904, %v4293
      %v4331 = vadd.f32 %v3905, %v4295
      %v4332 = vadd.f32 %v3906, %v4298
      %v4333 = vadd.f32 %v3907, %v4300
      %v4334 = vld [vmem:[%s2] sm:$0x1]
      %v4336 = vperm.slane %v4334, 0
      %v4338 = vadd.f32 %v4302, %v4336
      %v4339 = vadd.f32 %v4303, %v4336
      %v4340 = vadd.f32 %v4304, %v4336
      %v4341 = vadd.f32 %v4305, %v4336
      %v4342 = vadd.f32 %v4306, %v4336
      %v4343 = vadd.f32 %v4307, %v4336
      %v4344 = vadd.f32 %v4308, %v4336
      %v4345 = vadd.f32 %v4309, %v4336
      %v4346 = vadd.f32 %v4310, %v4336
      %v4347 = vadd.f32 %v4311, %v4336
      %v4348 = vadd.f32 %v4312, %v4336
      %v4349 = vadd.f32 %v4313, %v4336
      %v4350 = vadd.f32 %v4314, %v4336
      %v4351 = vadd.f32 %v4315, %v4336
      %v4352 = vadd.f32 %v4316, %v4336
      %v4353 = vadd.f32 %v4317, %v4336
      %v4354 = vadd.f32 %v4318, %v4336
      %v4355 = vadd.f32 %v4319, %v4336
      %v4356 = vadd.f32 %v4320, %v4336
      %v4357 = vadd.f32 %v4321, %v4336
      %v4358 = vadd.f32 %v4322, %v4336
      %v4359 = vadd.f32 %v4323, %v4336
      %v4360 = vadd.f32 %v4324, %v4336
      %v4361 = vadd.f32 %v4325, %v4336
      %v4362 = vadd.f32 %v4326, %v4336
      %v4363 = vadd.f32 %v4327, %v4336
      %v4364 = vadd.f32 %v4328, %v4336
      %v4365 = vadd.f32 %v4329, %v4336
      %v4366 = vadd.f32 %v4330, %v4336
      %v4367 = vadd.f32 %v4331, %v4336
      %v4368 = vadd.f32 %v4332, %v4336
      %v4369 = vadd.f32 %v4333, %v4336
      %v4370 = vmax.f32 %v4338, 0.0
      %v4371 = vmax.f32 %v4339, 0.0
      %v4372 = vmax.f32 %v4340, 0.0
      %v4373 = vmax.f32 %v4341, 0.0
      %v4374 = vmax.f32 %v4342, 0.0
      %v4375 = vmax.f32 %v4343, 0.0
      %v4376 = vmax.f32 %v4344, 0.0
      %v4377 = vmax.f32 %v4345, 0.0
      %v4378 = vmax.f32 %v4346, 0.0
      %v4379 = vmax.f32 %v4347, 0.0
      %v4380 = vmax.f32 %v4348, 0.0
      %v4381 = vmax.f32 %v4349, 0.0
      %v4382 = vmax.f32 %v4350, 0.0
      %v4383 = vmax.f32 %v4351, 0.0
      %v4384 = vmax.f32 %v4352, 0.0
      %v4385 = vmax.f32 %v4353, 0.0
      %v4386 = vmax.f32 %v4354, 0.0
      %v4387 = vmax.f32 %v4355, 0.0
      %v4388 = vmax.f32 %v4356, 0.0
      %v4389 = vmax.f32 %v4357, 0.0
      %v4390 = vmax.f32 %v4358, 0.0
      %v4391 = vmax.f32 %v4359, 0.0
      %v4392 = vmax.f32 %v4360, 0.0
      %v4393 = vmax.f32 %v4361, 0.0
      %v4394 = vmax.f32 %v4362, 0.0
      %v4395 = vmax.f32 %v4363, 0.0
      %v4396 = vmax.f32 %v4364, 0.0
      %v4397 = vmax.f32 %v4365, 0.0
      %v4398 = vmax.f32 %v4366, 0.0
      %v4399 = vmax.f32 %v4367, 0.0
      %v4400 = vmax.f32 %v4368, 0.0
      %v4401 = vmax.f32 %v4369, 0.0
      %v4402 = vpack.c.bf16 %v4370, %v4370
      %v4403 = vpack.c.bf16 %v4371, %v4371
      %v4404 = vpack.c.bf16 %v4372, %v4372
      %v4405 = vpack.c.bf16 %v4373, %v4373
      %v4406 = vpack.c.bf16 %v4374, %v4374
      %v4407 = vpack.c.bf16 %v4375, %v4375
      %v4408 = vpack.c.bf16 %v4376, %v4376
      %v4409 = vpack.c.bf16 %v4377, %v4377
      %v4410 = vpack.c.bf16 %v4378, %v4378
      %v4411 = vpack.c.bf16 %v4379, %v4379
      %v4412 = vpack.c.bf16 %v4380, %v4380
      %v4413 = vpack.c.bf16 %v4381, %v4381
      %v4414 = vpack.c.bf16 %v4382, %v4382
      %v4415 = vpack.c.bf16 %v4383, %v4383
      %v4416 = vpack.c.bf16 %v4384, %v4384
      %v4417 = vpack.c.bf16 %v4385, %v4385
      %v4418 = vpack.c.bf16 %v4386, %v4386
      %v4419 = vpack.c.bf16 %v4387, %v4387
      %v4420 = vpack.c.bf16 %v4388, %v4388
      %v4421 = vpack.c.bf16 %v4389, %v4389
      %v4422 = vpack.c.bf16 %v4390, %v4390
      %v4423 = vpack.c.bf16 %v4391, %v4391
      %v4424 = vpack.c.bf16 %v4392, %v4392
      %v4425 = vpack.c.bf16 %v4393, %v4393
      %v4426 = vpack.c.bf16 %v4394, %v4394
      %v4427 = vpack.c.bf16 %v4395, %v4395
      %v4428 = vpack.c.bf16 %v4396, %v4396
      %v4429 = vpack.c.bf16 %v4397, %v4397
      %v4430 = vpack.c.bf16 %v4398, %v4398
      %v4431 = vpack.c.bf16 %v4399, %v4399
      %v4432 = vpack.c.bf16 %v4400, %v4400
      %v4433 = vpack.c.bf16 %v4401, %v4401
      %4434 = vst [vmem:[%s170] sm:$0xf] %v4402
      %4435 = vst [vmem:[%s170 + $0x4] sm:$0xf] %v4403
      %4436 = vst [vmem:[%s170 + $0x8] sm:$0xf] %v4404
      %4437 = vst [vmem:[%s170 + $0xc] sm:$0xf] %v4405
      %4438 = vst [vmem:[%s170 + $0x10] sm:$0xf] %v4406
      %4439 = vst [vmem:[%s170 + $0x14] sm:$0xf] %v4407
      %4440 = vst [vmem:[%s170 + $0x18] sm:$0xf] %v4408
      %4441 = vst [vmem:[%s170 + $0x1c] sm:$0xf] %v4409
      %4442 = vst [vmem:[%s170 + $0x20] sm:$0xf] %v4410
      %4443 = vst [vmem:[%s170 + $0x24] sm:$0xf] %v4411
      %4444 = vst [vmem:[%s170 + $0x28] sm:$0xf] %v4412
      %4445 = vst [vmem:[%s170 + $0x2c] sm:$0xf] %v4413
      %4446 = vst [vmem:[%s170 + $0x30] sm:$0xf] %v4414
      %4447 = vst [vmem:[%s170 + $0x34] sm:$0xf] %v4415
      %4448 = vst [vmem:[%s170 + $0x38] sm:$0xf] %v4416
      %4449 = vst [vmem:[%s170 + $0x3c] sm:$0xf] %v4417
      %4450 = vst [vmem:[%s170 + $0x40] sm:$0xf] %v4418
      %4451 = vst [vmem:[%s170 + $0x44] sm:$0xf] %v4419
      %4452 = vst [vmem:[%s170 + $0x48] sm:$0xf] %v4420
      %4453 = vst [vmem:[%s170 + $0x4c] sm:$0xf] %v4421
      %4454 = vst [vmem:[%s170 + $0x50] sm:$0xf] %v4422
      %4455 = vst [vmem:[%s170 + $0x54] sm:$0xf] %v4423
      %4456 = vst [vmem:[%s170 + $0x58] sm:$0xf] %v4424
      %4457 = vst [vmem:[%s170 + $0x5c] sm:$0xf] %v4425
      %4458 = vst [vmem:[%s170 + $0x60] sm:$0xf] %v4426
      %4459 = vst [vmem:[%s170 + $0x64] sm:$0xf] %v4427
      %4460 = vst [vmem:[%s170 + $0x68] sm:$0xf] %v4428
      %4461 = vst [vmem:[%s170 + $0x6c] sm:$0xf] %v4429
      %4462 = vst [vmem:[%s170 + $0x70] sm:$0xf] %v4430
      %4463 = vst [vmem:[%s170 + $0x74] sm:$0xf] %v4431
      %4464 = vst [vmem:[%s170 + $0x78] sm:$0xf] %v4432
      %4465 = vst [vmem:[%s170 + $0x7c] sm:$0xf] %v4433
      %p4466 = scmp.lt.s32.totalorder %s14, 1
      %s4467 = scalar_select %p4466, %s14, 1
      %s4468 = smul.addr %s4467, 32
      %s4469 = smul.addr %s4468, 4
      %s4470 = scalar_lea.vmem %s3, %s4469
      // Predicated region
      $region33: #{inception_b_forward.7} parent=31 // pred_check
        %p4471 = pneg %p100
      $region34: #{inception_b_forward.7} parent=31 // pred_check_branch
        %4473 = sbr.rel (%p4471) target = $region36
      $region35: #{inception_b_forward.7} parent=31 // pred_region
        _
      $region36: #{inception_b_forward.7} parent=31 // pred_fallthru
        _
    $region32: #{inception_b_forward.7} parent=5 // pred_fallthru
      _
    %p4474 = scmp.le.s32.totalorder 2, %s9
    // Predicated region
    $region37: #{inception_b_forward.7} parent=5 // pred_check
      %p4475 = pneg %p4474
    $region38: #{inception_b_forward.7} parent=5 // pred_check_branch
      %4477 = sbr.rel (%p4475) target = $region40
    $region39: #{inception_b_forward.7} parent=5 // pred_region
      %s4478 = ssub.s32 %s9, 2
      // Predicated region
      $region41: #{inception_b_forward.7} parent=39 // pred_check
        %p4479 = pneg %p106
      $region42: #{inception_b_forward.7} parent=39 // pred_check_branch
        %4481 = sbr.rel (%p4479) target = $region44
      $region43: #{inception_b_forward.7} parent=39 // pred_region
        %p4482 = scmp.lt.s32.totalorder %s15, 1
        %s4483 = scalar_select %p4482, %s15, 1
        %s4484 = smul.addr %s4483, 32
        %s4485 = smul.addr %s4484, 4
        %s4486 = scalar_lea.vmem %s3, %s4485
      $region44: #{inception_b_forward.7} parent=39 // pred_fallthru
        _
    $region40: #{inception_b_forward.7} parent=5 // pred_fallthru
      _
  $region6: #{inception_b_forward.7} parent=0 // loop_footer
    %s13 = sadd.s32 1, %s9
  $region7: #{inception_b_forward.7} parent=0 // loop_footer_branch
    %8 = sbr.rel target = $region3
  $region8: #{inception_b_forward.7} parent=0 // loop_exit
    _

// kernel: inception_b_forward.5
$region0: #{inception_b_forward.5}
  #allocation0 [shape = 'u32[]', space=smem, size = 0x4, offset = 0x4, fixed_abs, tag = 'smem constant byte address 0x4 - core index']
  #allocation1 [shape = 'u32[72,128]{1,0:T(1,128)}', space=vmem, size = 0x9000, scoped, tag = 'internal scratch']
  %s0 = inlined_call_operand.vmem [shape: bf16[2,8,17,4], index: 0, kind: input, shape index: {}]
  %s1 = inlined_call_operand.vmem [shape: bf16[2,8,17,4], index: 1, kind: input, shape index: {}]
  %s2 = inlined_call_operand.vmem [shape: bf16[2,8,17,4], index: 2, kind: input, shape index: {}]
  %s3 = inlined_call_operand.vmem [shape: bf16[2,8,17,4], index: 3, kind: input, shape index: {}]
  %s4 = inlined_call_operand.vmem [shape: bf16[9,4,384], index: 4, kind: input, shape index: {}]
  %s5 = inlined_call_operand.vmem [shape: f32[1,384], index: 5, kind: input, shape index: {}]
  %s6 = inlined_call_operand.vmem [shape: f32[2,112,384], index: 6, kind: output, shape index: {}]
  %s7 = sld [smem:[#allocation0]]
  $region57: #{inception_b_forward.5} parent=0
    _
  %s9 = ssub.s32 1, %s7
  %s10 = scalar_select 0, %s9, %s7
  loop: start=0, step=1, limit=4
  $region2: #{inception_b_forward.5} parent=0 // loop_pre_header
    _
  $region3: #{inception_b_forward.5} parent=0 // loop_header
    %s12 = sphi 0, %s16
    %p13 = scmp.ge.s32.totalorder %s12, 4
    %s22 = sphi 0, %s24
    %s25 = sphi 0, %s22
    %s26 = sphi 0, %s25
    %s42 = sphi 0, %s26
    %s48 = sphi 0, %s50
    %s51 = sphi 0, %s48
    %s52 = sphi 0, %s51
    %s68 = sphi 0, %s52
    %s74 = sphi 0, %s76
    %s77 = sphi 0, %s74
    %s78 = sphi 0, %s77
    %s94 = sphi 0, %s78
    %s100 = sphi 0, %s102
    %s103 = sphi 0, %s100
    %s104 = sphi 0, %s103
    %s120 = sphi 0, %s104
    %s124 = sphi 0, %s124
    %s126 = sphi 0, %s124
    %s127 = sphi 0, %s126
    %s141 = sphi 0, %s127
    %s145 = sphi 0, %s145
    %s147 = sphi 0, %s145
    %s148 = sphi 0, %s147
    %s162 = sphi 0, %s148
    %s168 = sphi 0, %s170
    %s171 = sphi 0, %s168
    %s172 = sphi 0, %s171
    %s188 = sphi 0, %s172
  $region4: #{inception_b_forward.5} parent=0 // loop_header_branch
    %15 = sbr.rel (%p13) target = $region8
  $region5: #{inception_b_forward.5} parent=0 // loop_body
    %s17 = ssub.s32 %s12, 1
    %s18 = ssub.s32 %s12, 2
    %s19 = sadd.s32 %s12, 1
    %s20 = ssub.s32 %s12, %s19
    %p21 = scmp.eq.s32.totalorder %s20, 0
    %s23 = sadd.s32 %s22, 1
    %s24 = scalar_select %p21, %s22, %s23
    %p27 = pneg %p21
    %p28 = scmp.eq.s32.totalorder %s12, 1
    %p29 = por %p27, %p28
    %p30 = scmp.ne.s32.totalorder %s22, %s25
    %p31 = scmp.eq.s32.totalorder %s12, 0
    %p32 = por %p30, %p31
    %p33 = scmp.ne.s32.totalorder %s22, %s25
    %p34 = scmp.eq.s32.totalorder %s17, 1
    %p35 = por %p33, %p34
    %p36 = scmp.ne.s32.totalorder %s25, %s26
    %p37 = scmp.eq.s32.totalorder %s17, 0
    %p38 = por %p36, %p37
    %p39 = scmp.ne.s32.totalorder %s25, %s26
    %p40 = scmp.eq.s32.totalorder %s18, 1
    %p41 = por %p39, %p40
    %p43 = scmp.ne.s32.totalorder %s26, %s42
    %p44 = scmp.eq.s32.totalorder %s18, 0
    %p45 = por %p43, %p44
    %s46 = ssub.s32 %s12, %s19
    %p47 = scmp.eq.s32.totalorder %s46, 0
    %s49 = sadd.s32 %s48, 1
    %s50 = scalar_select %p47, %s48, %s49
    %p53 = pneg %p47
    %p54 = scmp.eq.s32.totalorder %s12, 1
    %p55 = por %p53, %p54
    %p56 = scmp.ne.s32.totalorder %s48, %s51
    %p57 = scmp.eq.s32.totalorder %s12, 0
    %p58 = por %p56, %p57
    %p59 = scmp.ne.s32.totalorder %s48, %s51
    %p60 = scmp.eq.s32.totalorder %s17, 1
    %p61 = por %p59, %p60
    %p62 = scmp.ne.s32.totalorder %s51, %s52
    %p63 = scmp.eq.s32.totalorder %s17, 0
    %p64 = por %p62, %p63
    %p65 = scmp.ne.s32.totalorder %s51, %s52
    %p66 = scmp.eq.s32.totalorder %s18, 1
    %p67 = por %p65, %p66
    %p69 = scmp.ne.s32.totalorder %s52, %s68
    %p70 = scmp.eq.s32.totalorder %s18, 0
    %p71 = por %p69, %p70
    %s72 = ssub.s32 %s12, %s19
    %p73 = scmp.eq.s32.totalorder %s72, 0
    %s75 = sadd.s32 %s74, 1
    %s76 = scalar_select %p73, %s74, %s75
    %p79 = pneg %p73
    %p80 = scmp.eq.s32.totalorder %s12, 1
    %p81 = por %p79, %p80
    %p82 = scmp.ne.s32.totalorder %s74, %s77
    %p83 = scmp.eq.s32.totalorder %s12, 0
    %p84 = por %p82, %p83
    %p85 = scmp.ne.s32.totalorder %s74, %s77
    %p86 = scmp.eq.s32.totalorder %s17, 1
    %p87 = por %p85, %p86
    %p88 = scmp.ne.s32.totalorder %s77, %s78
    %p89 = scmp.eq.s32.totalorder %s17, 0
    %p90 = por %p88, %p89
    %p91 = scmp.ne.s32.totalorder %s77, %s78
    %p92 = scmp.eq.s32.totalorder %s18, 1
    %p93 = por %p91, %p92
    %p95 = scmp.ne.s32.totalorder %s78, %s94
    %p96 = scmp.eq.s32.totalorder %s18, 0
    %p97 = por %p95, %p96
    %s98 = ssub.s32 %s12, %s19
    %p99 = scmp.eq.s32.totalorder %s98, 0
    %s101 = sadd.s32 %s100, 1
    %s102 = scalar_select %p99, %s100, %s101
    %p105 = pneg %p99
    %p106 = scmp.eq.s32.totalorder %s12, 1
    %p107 = por %p105, %p106
    %p108 = scmp.ne.s32.totalorder %s100, %s103
    %p109 = scmp.eq.s32.totalorder %s12, 0
    %p110 = por %p108, %p109
    %p111 = scmp.ne.s32.totalorder %s100, %s103
    %p112 = scmp.eq.s32.totalorder %s17, 1
    %p113 = por %p111, %p112
    %p114 = scmp.ne.s32.totalorder %s103, %s104
    %p115 = scmp.eq.s32.totalorder %s17, 0
    %p116 = por %p114, %p115
    %p117 = scmp.ne.s32.totalorder %s103, %s104
    %p118 = scmp.eq.s32.totalorder %s18, 1
    %p119 = por %p117, %p118
    %p121 = scmp.ne.s32.totalorder %s104, %s120
    %p122 = scmp.eq.s32.totalorder %s18, 0
    %p123 = por %p121, %p122
    %s125 = sadd.s32 %s124, 1
    %p128 = scmp.eq.s32.totalorder %s12, 1
    %p129 = scmp.ne.s32.totalorder %s124, %s126
    %p130 = scmp.eq.s32.totalorder %s12, 0
    %p131 = por %p129, %p130
    %p132 = scmp.ne.s32.totalorder %s124, %s126
    %p133 = scmp.eq.s32.totalorder %s17, 1
    %p134 = por %p132, %p133
    %p135 = scmp.ne.s32.totalorder %s126, %s127
    %p136 = scmp.eq.s32.totalorder %s17, 0
    %p137 = por %p135, %p136
    %p138 = scmp.ne.s32.totalorder %s126, %s127
    %p139 = scmp.eq.s32.totalorder %s18, 1
    %p140 = por %p138, %p139
    %p142 = scmp.ne.s32.totalorder %s127, %s141
    %p143 = scmp.eq.s32.totalorder %s18, 0
    %p144 = por %p142, %p143
    %s146 = sadd.s32 %s145, 1
    %p149 = scmp.eq.s32.totalorder %s12, 1
    %p150 = scmp.ne.s32.totalorder %s145, %s147
    %p151 = scmp.eq.s32.totalorder %s12, 0
    %p152 = por %p150, %p151
    %p153 = scmp.ne.s32.totalorder %s145, %s147
    %p154 = scmp.eq.s32.totalorder %s17, 1
    %p155 = por %p153, %p154
    %p156 = scmp.ne.s32.totalorder %s147, %s148
    %p157 = scmp.eq.s32.totalorder %s17, 0
    %p158 = por %p156, %p157
    %p159 = scmp.ne.s32.totalorder %s147, %s148
    %p160 = scmp.eq.s32.totalorder %s18, 1
    %p161 = por %p159, %p160
    %p163 = scmp.ne.s32.totalorder %s148, %s162
    %p164 = scmp.eq.s32.totalorder %s18, 0
    %p165 = por %p163, %p164
    %s166 = ssub.s32 %s12, %s19
    %p167 = scmp.eq.s32.totalorder %s166, 0
    %s169 = sadd.s32 %s168, 1
    %s170 = scalar_select %p167, %s168, %s169
    %p173 = pneg %p167
    %p174 = scmp.eq.s32.totalorder %s12, 1
    %p175 = por %p173, %p174
    %p176 = scmp.ne.s32.totalorder %s168, %s171
    %p177 = scmp.eq.s32.totalorder %s12, 0
    %p178 = por %p176, %p177
    %p179 = scmp.ne.s32.totalorder %s168, %s171
    %p180 = scmp.eq.s32.totalorder %s17, 1
    %p181 = por %p179, %p180
    %p182 = scmp.ne.s32.totalorder %s171, %s172
    %p183 = scmp.eq.s32.totalorder %s17, 0
    %p184 = por %p182, %p183
    %p185 = scmp.ne.s32.totalorder %s171, %s172
    %p186 = scmp.eq.s32.totalorder %s18, 1
    %p187 = por %p185, %p186
    %p189 = scmp.ne.s32.totalorder %s172, %s188
    %p190 = scmp.eq.s32.totalorder %s18, 0
    %p191 = por %p189, %p190
    %p192 = scmp.le.s32.totalorder 1, %s12
    %p193 = scmp.lt.s32.totalorder %s12, 3
    %p194 = pnand %p192, %p193
    %p195 = pneg %p194
    // Predicated region
    $region9: #{inception_b_forward.5} parent=5 // pred_check
      _
    $region10: #{inception_b_forward.5} parent=5 // pred_check_branch
      %197 = sbr.rel (%p194) target = $region12
    $region11: #{inception_b_forward.5} parent=5 // pred_region
      %s198 = ssub.s32 %s12, 1
      // Predicated region
      $region13: #{inception_b_forward.5} parent=11 // pred_check
        %p199 = pneg %p137
      $region14: #{inception_b_forward.5} parent=11 // pred_check_branch
        %201 = sbr.rel (%p199) target = $region16
      $region15: #{inception_b_forward.5} parent=11 // pred_region
        _
      $region16: #{inception_b_forward.5} parent=11 // pred_fallthru
        _
      // Predicated region
      $region17: #{inception_b_forward.5} parent=11 // pred_check
        %p202 = pneg %p158
      $region18: #{inception_b_forward.5} parent=11 // pred_check_branch
        %204 = sbr.rel (%p202) target = $region20
      $region19: #{inception_b_forward.5} parent=11 // pred_region
        _
      $region20: #{inception_b_forward.5} parent=11 // pred_fallthru
        _
    $region12: #{inception_b_forward.5} parent=5 // pred_fallthru
      _
    %p205 = scmp.lt.s32.totalorder %s12, 2
    // Predicated region
    $region21: #{inception_b_forward.5} parent=5 // pred_check
      %p206 = pneg %p205
    $region22: #{inception_b_forward.5} parent=5 // pred_check_branch
      %208 = sbr.rel (%p206) target = $region24
    $region23: #{inception_b_forward.5} parent=5 // pred_region
      // Predicated region
      $region25: #{inception_b_forward.5} parent=23 // pred_check
        %p209 = pneg %p32
      $region26: #{inception_b_forward.5} parent=23 // pred_check_branch
        %211 = sbr.rel (%p209) target = $region28
      $region27: #{inception_b_forward.5} parent=23 // pred_region
        %p212 = scmp.lt.s32.totalorder %s12, 1
        %s213 = scalar_select %p212, %s12, 1
        %s214 = smul.addr %s213, 24
        %s215 = smul.addr %s214, 4
        %s216 = scalar_lea.vmem %s0, %s215
      $region28: #{inception_b_forward.5} parent=23 // pred_fallthru
        _
      // Predicated region
      $region29: #{inception_b_forward.5} parent=23 // pred_check
        %p217 = pneg %p58
      $region30: #{inception_b_forward.5} parent=23 // pred_check_branch
        %219 = sbr.rel (%p217) target = $region32
      $region31: #{inception_b_forward.5} parent=23 // pred_region
        %p220 = scmp.lt.s32.totalorder %s12, 1
        %s221 = scalar_select %p220, %s12, 1
        %s222 = smul.addr %s221, 24
        %s223 = smul.addr %s222, 4
        %s224 = scalar_lea.vmem %s1, %s223
      $region32: #{inception_b_forward.5} parent=23 // pred_fallthru
        _
      // Predicated region
      $region33: #{inception_b_forward.5} parent=23 // pred_check
        %p225 = pneg %p84
      $region34: #{inception_b_forward.5} parent=23 // pred_check_branch
        %227 = sbr.rel (%p225) target = $region36
      $region35: #{inception_b_forward.5} parent=23 // pred_region
        %p228 = scmp.lt.s32.totalorder %s12, 1
        %s229 = scalar_select %p228, %s12, 1
        %s230 = smul.addr %s229, 24
        %s231 = smul.addr %s230, 4
        %s232 = scalar_lea.vmem %s2, %s231
      $region36: #{inception_b_forward.5} parent=23 // pred_fallthru
        _
      // Predicated region
      $region37: #{inception_b_forward.5} parent=23 // pred_check
        %p233 = pneg %p110
      $region38: #{inception_b_forward.5} parent=23 // pred_check_branch
        %235 = sbr.rel (%p233) target = $region40
      $region39: #{inception_b_forward.5} parent=23 // pred_region
        %p236 = scmp.lt.s32.totalorder %s12, 1
        %s237 = scalar_select %p236, %s12, 1
        %s238 = smul.addr %s237, 24
        %s239 = smul.addr %s238, 4
        %s240 = scalar_lea.vmem %s3, %s239
      $region40: #{inception_b_forward.5} parent=23 // pred_fallthru
        _
    $region24: #{inception_b_forward.5} parent=5 // pred_fallthru
      _
    %p241 = scmp.le.s32.totalorder 1, %s12
    %p242 = scmp.lt.s32.totalorder %s12, 3
    %p243 = pnand %p241, %p242
    %p244 = pneg %p243
    // Predicated region
    $region41: #{inception_b_forward.5} parent=5 // pred_check
      _
    $region42: #{inception_b_forward.5} parent=5 // pred_check_branch
      %246 = sbr.rel (%p243) target = $region44
    $region43: #{inception_b_forward.5} parent=5 // pred_region
      %s247 = ssub.s32 %s12, 1
      %p248 = scmp.lt.s32.totalorder %s17, 1
      %s249 = scalar_select %p248, %s17, 1
      %s250 = smul.addr %s249, 24
      %s251 = smul.addr %s250, 4
      %s252 = scalar_lea.vmem %s0, %s251
      %p253 = pneg %p38
      %p254 = pneg %p35
      %p255 = scmp.lt.s32.totalorder %s17, 1
      %s256 = scalar_select %p255, %s17, 1
      %s257 = smul.addr %s256, 24
      %s258 = smul.addr %s257, 4
      %s259 = scalar_lea.vmem %s1, %s258
      %p260 = pneg %p64
      %p261 = pneg %p61
      %p262 = scmp.lt.s32.totalorder %s17, 1
      %s263 = scalar_select %p262, %s17, 1
      %s264 = smul.addr %s263, 24
      %s265 = smul.addr %s264, 4
      %s266 = scalar_lea.vmem %s2, %s265
      %p267 = pneg %p90
      %p268 = pneg %p87
      %p269 = scmp.lt.s32.totalorder %s17, 1
      %s270 = scalar_select %p269, %s17, 1
      %s271 = smul.addr %s270, 24
      %s272 = smul.addr %s271, 4
      %s273 = scalar_lea.vmem %s3, %s272
      %p274 = pneg %p116
      %p275 = pneg %p113
      %p276 = pneg %p137
      %p277 = pneg %p134
      %p278 = pneg %p158
      %p279 = pneg %p155
      %p280 = pneg %p184
      %p281 = pneg %p181
      %p282 = scmp.lt.s32.totalorder %s17, 1
      %s283 = scalar_select %p282, %s17, 1
      %s284 = smul.addr %s283, 42
      %s285 = smul.addr %s284, 8
      %s286 = scalar_lea.vmem %s6, %s285
      %p287 = scmp.lt.s32.totalorder %s17, 1
      %s288 = scalar_select %p287, %s17, 1
      %s289 = smul.addr %s288, 24
      %s290 = smul.addr %s289, 4
      %s291 = scalar_lea.vmem %s0, %s290
      %p292 = scmp.lt.s32.totalorder %s17, 1
      %s293 = scalar_select %p292, %s17, 1
      %s294 = smul.addr %s293, 24
      %s295 = smul.addr %s294, 4
      %s296 = scalar_lea.vmem %s1, %s295
      %p297 = scmp.lt.s32.totalorder %s17, 1
      %s298 = scalar_select %p297, %s17, 1
      %s299 = smul.addr %s298, 24
      %s300 = smul.addr %s299, 4
      %s301 = scalar_lea.vmem %s2, %s300
      %p302 = scmp.lt.s32.totalorder %s17, 1
      %s303 = scalar_select %p302, %s17, 1
      %s304 = smul.addr %s303, 24
      %s305 = smul.addr %s304, 4
      %s306 = scalar_lea.vmem %s3, %s305
      %p307 = scmp.lt.s32.totalorder %s17, 1
      %s308 = scalar_select %p307, %s17, 1
      %s309 = smul.addr %s308, 42
      %s310 = smul.addr %s309, 8
      %s311 = scalar_lea.vmem %s6, %s310
      %v313 = vld [vmem:[%s291] sm:$0xf]
      %v314 = vld [vmem:[%s291 + $0x4] sm:$0xf]
      %v315 = vld [vmem:[%s291 + $0xc] sm:$0xf]
      %v316 = vld [vmem:[%s291 + $0x10] sm:$0xf]
      %v317 = vld [vmem:[%s291 + $0x18] sm:$0xf]
      %v318 = vld [vmem:[%s291 + $0x1c] sm:$0xf]
      %v319 = vld [vmem:[%s291 + $0x24] sm:$0xf]
      %v320 = vld [vmem:[%s291 + $0x28] sm:$0xf]
      %v321 = vld [vmem:[%s291 + $0x30] sm:$0xf]
      %v322 = vld [vmem:[%s291 + $0x34] sm:$0xf]
      %v323 = vld [vmem:[%s291 + $0x3c] sm:$0xf]
      %v324 = vld [vmem:[%s291 + $0x40] sm:$0xf]
      %v325 = vld [vmem:[%s291 + $0x48] sm:$0xf]
      %v326 = vld [vmem:[%s291 + $0x4c] sm:$0xf]
      %v327 = vld [vmem:[%s4] sm:$0x3f]
      %v328 = vld [vmem:[%s296] sm:$0xf]
      %v329 = vld [vmem:[%s296 + $0x4] sm:$0xf]
      %v330 = vld [vmem:[%s296 + $0xc] sm:$0xf]
      %v331 = vld [vmem:[%s296 + $0x10] sm:$0xf]
      %v332 = vld [vmem:[%s296 + $0x18] sm:$0xf]
      %v333 = vld [vmem:[%s296 + $0x1c] sm:$0xf]
      %v334 = vld [vmem:[%s296 + $0x24] sm:$0xf]
      %v335 = vld [vmem:[%s296 + $0x28] sm:$0xf]
      %v336 = vld [vmem:[%s296 + $0x30] sm:$0xf]
      %v337 = vld [vmem:[%s296 + $0x34] sm:$0xf]
      %v338 = vld [vmem:[%s296 + $0x3c] sm:$0xf]
      %v339 = vld [vmem:[%s296 + $0x40] sm:$0xf]
      %v340 = vld [vmem:[%s296 + $0x48] sm:$0xf]
      %v341 = vld [vmem:[%s296 + $0x4c] sm:$0xf]
      %s342 = scalar_lea.vmem %s4, 6
      %v343 = vld [vmem:[%s342] sm:$0x3f]
      %v358 = vunpack.c.l.b16 %v328
      %v359 = vunpack.c.l.b16 %v329
      %v360 = vunpack.c.l.b16 %v330
      %v361 = vunpack.c.l.b16 %v331
      %v362 = vunpack.c.l.b16 %v332
      %v363 = vunpack.c.l.b16 %v333
      %v364 = vunpack.c.l.b16 %v334
      %v365 = vunpack.c.l.b16 %v335
      %v366 = vunpack.c.l.b16 %v336
      %v367 = vunpack.c.l.b16 %v337
      %v368 = vunpack.c.l.b16 %v338
      %v369 = vunpack.c.l.b16 %v339
      %v370 = vunpack.c.l.b16 %v340
      %v371 = vunpack.c.l.b16 %v341
      %v372 = vpack.c.b16 %v359, %v358
      %v373 = vpack.c.b16 %v361, %v360
      %v374 = vpack.c.b16 %v363, %v362
      %v375 = vpack.c.b16 %v365, %v364
      %v376 = vpack.c.b16 %v367, %v366
      %v377 = vpack.c.b16 %v369, %v368
      %v378 = vpack.c.b16 %v371, %v370
      %380 = vst [vmem:[#allocation1] ss:$4 sm:$0xff] %v343
      %v381 = vld.sshfl [vmem:[#allocation1] sm:$0xff pattern:$0x73625140]
      %v382 = vld.sshfl [vmem:[#allocation1 + $0x8] sm:$0xff pattern:$0x73625140]
      %v383 = vld.sshfl [vmem:[#allocation1 + $0x10] sm:$0xff pattern:$0x73625140]
      %vm384 = vcmask 31744
      %v386 = vsel %vm384, %v372, 0
      %v389 = vsel %vm384, %v373, 0
      %v392 = vsel %vm384, %v374, 0
      %v395 = vsel %vm384, %v375, 0
      %v398 = vsel %vm384, %v376, 0
      %v401 = vsel %vm384, %v377, 0
      %v404 = vsel %vm384, %v378, 0
      %vm406 = vcmask 1041408
      %v407 = vsel %vm406, %v381, 0
      %v409 = vsel %vm406, %v382, 0
      %v411 = vsel %vm406, %v383, 0
      %413 = vmatpush.bf16.msra.mxu0 0
      %414 = vmatpush.bf16.msra.mxu0 0
      %415 = vmatpush.bf16.msra.mxu0 0
      %416 = vmatpush.bf16.msra.mxu0 0
      %417 = vmatpush.bf16.msra.mxu0 0
      %418 = vmatpush.bf16.msra.mxu0 0
      %419 = vmatpush.bf16.msra.mxu0 0
      %420 = vmatpush.bf16.msra.mxu0 %v407
      %421 = vmatmul.bf16.gmra.mxu0 %v386
      %v422 = vpop.f32.mrf.mxu0
      %v423 = vadd.f32 0.0, %v422
      %v424 = vpop.f32.mrf.mxu0
      %v425 = vadd.f32 0.0, %v424
      %426 = vmatmul.bf16.gmra.mxu0 %v389
      %v427 = vpop.f32.mrf.mxu0
      %v428 = vadd.f32 0.0, %v427
      %v429 = vpop.f32.mrf.mxu0
      %v430 = vadd.f32 0.0, %v429
      %431 = vmatmul.bf16.gmra.mxu0 %v392
      %v432 = vpop.f32.mrf.mxu0
      %v433 = vadd.f32 0.0, %v432
      %v434 = vpop.f32.mrf.mxu0
      %v435 = vadd.f32 0.0, %v434
      %436 = vmatmul.bf16.gmra.mxu0 %v395
      %v437 = vpop.f32.mrf.mxu0
      %v438 = vadd.f32 0.0, %v437
      %v439 = vpop.f32.mrf.mxu0
      %v440 = vadd.f32 0.0, %v439
      %441 = vmatmul.bf16.gmra.mxu0 %v398
      %v442 = vpop.f32.mrf.mxu0
      %v443 = vadd.f32 0.0, %v442
      %v444 = vpop.f32.mrf.mxu0
      %v445 = vadd.f32 0.0, %v444
      %446 = vmatmul.bf16.gmra.mxu0 %v401
      %v447 = vpop.f32.mrf.mxu0
      %v448 = vadd.f32 0.0, %v447
      %v449 = vpop.f32.mrf.mxu0
      %v450 = vadd.f32 0.0, %v449
      %451 = vmatmul.bf16.gmra.mxu0 %v404
      %v452 = vpop.f32.mrf.mxu0
      %v453 = vadd.f32 0.0, %v452
      %v454 = vpop.f32.mrf.mxu0
      %v455 = vadd.f32 0.0, %v454
      %456 = vdwg.mxu0
      %457 = vmatpush.bf16.msra.mxu0 0
      %458 = vmatpush.bf16.msra.mxu0 0
      %459 = vmatpush.bf16.msra.mxu0 0
      %460 = vmatpush.bf16.msra.mxu0 0
      %461 = vmatpush.bf16.msra.mxu0 0
      %462 = vmatpush.bf16.msra.mxu0 0
      %463 = vmatpush.bf16.msra.mxu0 0
      %464 = vmatpush.bf16.msra.mxu0 %v409
      %465 = vmatmul.bf16.gmra.mxu0 %v386
      %v466 = vpop.f32.mrf.mxu0
      %v467 = vadd.f32 0.0, %v466
      %v468 = vpop.f32.mrf.mxu0
      %v469 = vadd.f32 0.0, %v468
      %470 = vmatmul.bf16.gmra.mxu0 %v389
      %v471 = vpop.f32.mrf.mxu0
      %v472 = vadd.f32 0.0, %v471
      %v473 = vpop.f32.mrf.mxu0
      %v474 = vadd.f32 0.0, %v473
      %475 = vmatmul.bf16.gmra.mxu0 %v392
      %v476 = vpop.f32.mrf.mxu0
      %v477 = vadd.f32 0.0, %v476
      %v478 = vpop.f32.mrf.mxu0
      %v479 = vadd.f32 0.0, %v478
      %480 = vmatmul.bf16.gmra.mxu0 %v395
      %v481 = vpop.f32.mrf.mxu0
      %v482 = vadd.f32 0.0, %v481
      %v483 = vpop.f32.mrf.mxu0
      %v484 = vadd.f32 0.0, %v483
      %485 = vmatmul.bf16.gmra.mxu0 %v398
      %v486 = vpop.f32.mrf.mxu0
      %v487 = vadd.f32 0.0, %v486
      %v488 = vpop.f32.mrf.mxu0
      %v489 = vadd.f32 0.0, %v488
      %490 = vmatmul.bf16.gmra.mxu0 %v401
      %v491 = vpop.f32.mrf.mxu0
      %v492 = vadd.f32 0.0, %v491
      %v493 = vpop.f32.mrf.mxu0
      %v494 = vadd.f32 0.0, %v493
      %495 = vmatmul.bf16.gmra.mxu0 %v404
      %v496 = vpop.f32.mrf.mxu0
      %v497 = vadd.f32 0.0, %v496
      %v498 = vpop.f32.mrf.mxu0
      %v499 = vadd.f32 0.0, %v498
      %500 = vdwg.mxu0
      %501 = vmatpush.bf16.msra.mxu0 0
      %502 = vmatpush.bf16.msra.mxu0 0
      %503 = vmatpush.bf16.msra.mxu0 0
      %504 = vmatpush.bf16.msra.mxu0 0
      %505 = vmatpush.bf16.msra.mxu0 0
      %506 = vmatpush.bf16.msra.mxu0 0
      %507 = vmatpush.bf16.msra.mxu0 0
      %508 = vmatpush.bf16.msra.mxu0 %v411
      %509 = vmatmul.bf16.gmra.mxu0 %v386
      %v510 = vpop.f32.mrf.mxu0
      %v511 = vadd.f32 0.0, %v510
      %v512 = vpop.f32.mrf.mxu0
      %v513 = vadd.f32 0.0, %v512
      %514 = vmatmul.bf16.gmra.mxu0 %v389
      %v515 = vpop.f32.mrf.mxu0
      %v516 = vadd.f32 0.0, %v515
      %v517 = vpop.f32.mrf.mxu0
      %v518 = vadd.f32 0.0, %v517
      %519 = vmatmul.bf16.gmra.mxu0 %v392
      %v520 = vpop.f32.mrf.mxu0
      %v521 = vadd.f32 0.0, %v520
      %v522 = vpop.f32.mrf.mxu0
      %v523 = vadd.f32 0.0, %v522
      %524 = vmatmul.bf16.gmra.mxu0 %v395
      %v525 = vpop.f32.mrf.mxu0
      %v526 = vadd.f32 0.0, %v525
      %v527 = vpop.f32.mrf.mxu0
      %v528 = vadd.f32 0.0, %v527
      %529 = vmatmul.bf16.gmra.mxu0 %v398
      %v530 = vpop.f32.mrf.mxu0
      %v531 = vadd.f32 0.0, %v530
      %v532 = vpop.f32.mrf.mxu0
      %v533 = vadd.f32 0.0, %v532
      %534 = vmatmul.bf16.gmra.mxu0 %v401
      %v535 = vpop.f32.mrf.mxu0
      %v536 = vadd.f32 0.0, %v535
      %v537 = vpop.f32.mrf.mxu0
      %v538 = vadd.f32 0.0, %v537
      %539 = vmatmul.bf16.gmra.mxu0 %v404
      %v540 = vpop.f32.mrf.mxu0
      %v541 = vadd.f32 0.0, %v540
      %v542 = vpop.f32.mrf.mxu0
      %v543 = vadd.f32 0.0, %v542
      %544 = vdwg.mxu0
      %v559 = vunpack.c.l.b16 %v313
      %v560 = vunpack.c.l.b16 %v314
      %v561 = vunpack.c.l.b16 %v315
      %v562 = vunpack.c.l.b16 %v316
      %v563 = vunpack.c.l.b16 %v317
      %v564 = vunpack.c.l.b16 %v318
      %v565 = vunpack.c.l.b16 %v319
      %v566 = vunpack.c.l.b16 %v320
      %v567 = vunpack.c.l.b16 %v321
      %v568 = vunpack.c.l.b16 %v322
      %v569 = vunpack.c.l.b16 %v323
      %v570 = vunpack.c.l.b16 %v324
      %v571 = vunpack.c.l.b16 %v325
      %v572 = vunpack.c.l.b16 %v326
      %v573 = vpack.c.b16 %v560, %v559
      %v574 = vpack.c.b16 %v562, %v561
      %v575 = vpack.c.b16 %v564, %v563
      %v576 = vpack.c.b16 %v566, %v565
      %v577 = vpack.c.b16 %v568, %v567
      %v578 = vpack.c.b16 %v570, %v569
      %v579 = vpack.c.b16 %v572, %v571
      %581 = vst [vmem:[#allocation1] ss:$4 sm:$0xff] %v327
      %v582 = vld.sshfl [vmem:[#allocation1] sm:$0xff pattern:$0x73625140]
      %v583 = vld.sshfl [vmem:[#allocation1 + $0x8] sm:$0xff pattern:$0x73625140]
      %v584 = vld.sshfl [vmem:[#allocation1 + $0x10] sm:$0xff pattern:$0x73625140]
      %v586 = vsel %vm384, %v573, 0
      %v589 = vsel %vm384, %v574, 0
      %v592 = vsel %vm384, %v575, 0
      %v595 = vsel %vm384, %v576, 0
      %v598 = vsel %vm384, %v577, 0
      %v601 = vsel %vm384, %v578, 0
      %v604 = vsel %vm384, %v579, 0
      %v606 = vsel %vm406, %v582, 0
      %v608 = vsel %vm406, %v583, 0
      %v610 = vsel %vm406, %v584, 0
      %612 = vmatpush.bf16.msra.mxu0 0
      %613 = vmatpush.bf16.msra.mxu0 0
      %614 = vmatpush.bf16.msra.mxu0 0
      %615 = vmatpush.bf16.msra.mxu0 0
      %616 = vmatpush.bf16.msra.mxu0 0
      %617 = vmatpush.bf16.msra.mxu0 0
      %618 = vmatpush.bf16.msra.mxu0 0
      %619 = vmatpush.bf16.msra.mxu0 %v606
      %620 = vmatmul.bf16.gmra.mxu0 %v586
      %v621 = vpop.f32.mrf.mxu0
      %v622 = vadd.f32 %v423, %v621
      %v623 = vpop.f32.mrf.mxu0
      %v624 = vadd.f32 %v425, %v623
      %625 = vmatmul.bf16.gmra.mxu0 %v589
      %v626 = vpop.f32.mrf.mxu0
      %v627 = vadd.f32 %v428, %v626
      %v628 = vpop.f32.mrf.mxu0
      %v629 = vadd.f32 %v430, %v628
      %630 = vmatmul.bf16.gmra.mxu0 %v592
      %v631 = vpop.f32.mrf.mxu0
      %v632 = vadd.f32 %v433, %v631
      %v633 = vpop.f32.mrf.mxu0
      %v634 = vadd.f32 %v435, %v633
      %635 = vmatmul.bf16.gmra.mxu0 %v595
      %v636 = vpop.f32.mrf.mxu0
      %v637 = vadd.f32 %v438, %v636
      %v638 = vpop.f32.mrf.mxu0
      %v639 = vadd.f32 %v440, %v638
      %640 = vmatmul.bf16.gmra.mxu0 %v598
      %v641 = vpop.f32.mrf.mxu0
      %v642 = vadd.f32 %v443, %v641
      %v643 = vpop.f32.mrf.mxu0
      %v644 = vadd.f32 %v445, %v643
      %645 = vmatmul.bf16.gmra.mxu0 %v601
      %v646 = vpop.f32.mrf.mxu0
      %v647 = vadd.f32 %v448, %v646
      %v648 = vpop.f32.mrf.mxu0
      %v649 = vadd.f32 %v450, %v648
      %650 = vmatmul.bf16.gmra.mxu0 %v604
      %v651 = vpop.f32.mrf.mxu0
      %v652 = vadd.f32 %v453, %v651
      %v653 = vpop.f32.mrf.mxu0
      %v654 = vadd.f32 %v455, %v653
      %655 = vdwg.mxu0
      %656 = vmatpush.bf16.msra.mxu0 0
      %657 = vmatpush.bf16.msra.mxu0 0
      %658 = vmatpush.bf16.msra.mxu0 0
      %659 = vmatpush.bf16.msra.mxu0 0
      %660 = vmatpush.bf16.msra.mxu0 0
      %661 = vmatpush.bf16.msra.mxu0 0
      %662 = vmatpush.bf16.msra.mxu0 0
      %663 = vmatpush.bf16.msra.mxu0 %v608
      %664 = vmatmul.bf16.gmra.mxu0 %v586
      %v665 = vpop.f32.mrf.mxu0
      %v666 = vadd.f32 %v467, %v665
      %v667 = vpop.f32.mrf.mxu0
      %v668 = vadd.f32 %v469, %v667
      %669 = vmatmul.bf16.gmra.mxu0 %v589
      %v670 = vpop.f32.mrf.mxu0
      %v671 = vadd.f32 %v472, %v670
      %v672 = vpop.f32.mrf.mxu0
      %v673 = vadd.f32 %v474, %v672
      %674 = vmatmul.bf16.gmra.mxu0 %v592
      %v675 = vpop.f32.mrf.mxu0
      %v676 = vadd.f32 %v477, %v675
      %v677 = vpop.f32.mrf.mxu0
      %v678 = vadd.f32 %v479, %v677
      %679 = vmatmul.bf16.gmra.mxu0 %v595
      %v680 = vpop.f32.mrf.mxu0
      %v681 = vadd.f32 %v482, %v680
      %v682 = vpop.f32.mrf.mxu0
      %v683 = vadd.f32 %v484, %v682
      %684 = vmatmul.bf16.gmra.mxu0 %v598
      %v685 = vpop.f32.mrf.mxu0
      %v686 = vadd.f32 %v487, %v685
      %v687 = vpop.f32.mrf.mxu0
      %v688 = vadd.f32 %v489, %v687
      %689 = vmatmul.bf16.gmra.mxu0 %v601
      %v690 = vpop.f32.mrf.mxu0
      %v691 = vadd.f32 %v492, %v690
      %v692 = vpop.f32.mrf.mxu0
      %v693 = vadd.f32 %v494, %v692
      %694 = vmatmul.bf16.gmra.mxu0 %v604
      %v695 = vpop.f32.mrf.mxu0
      %v696 = vadd.f32 %v497, %v695
      %v697 = vpop.f32.mrf.mxu0
      %v698 = vadd.f32 %v499, %v697
      %699 = vdwg.mxu0
      %700 = vmatpush.bf16.msra.mxu0 0
      %701 = vmatpush.bf16.msra.mxu0 0
      %702 = vmatpush.bf16.msra.mxu0 0
      %703 = vmatpush.bf16.msra.mxu0 0
      %704 = vmatpush.bf16.msra.mxu0 0
      %705 = vmatpush.bf16.msra.mxu0 0
      %706 = vmatpush.bf16.msra.mxu0 0
      %707 = vmatpush.bf16.msra.mxu0 %v610
      %708 = vmatmul.bf16.gmra.mxu0 %v586
      %v709 = vpop.f32.mrf.mxu0
      %v710 = vadd.f32 %v511, %v709
      %v711 = vpop.f32.mrf.mxu0
      %v712 = vadd.f32 %v513, %v711
      %713 = vmatmul.bf16.gmra.mxu0 %v589
      %v714 = vpop.f32.mrf.mxu0
      %v715 = vadd.f32 %v516, %v714
      %v716 = vpop.f32.mrf.mxu0
      %v717 = vadd.f32 %v518, %v716
      %718 = vmatmul.bf16.gmra.mxu0 %v592
      %v719 = vpop.f32.mrf.mxu0
      %v720 = vadd.f32 %v521, %v719
      %v721 = vpop.f32.mrf.mxu0
      %v722 = vadd.f32 %v523, %v721
      %723 = vmatmul.bf16.gmra.mxu0 %v595
      %v724 = vpop.f32.mrf.mxu0
      %v725 = vadd.f32 %v526, %v724
      %v726 = vpop.f32.mrf.mxu0
      %v727 = vadd.f32 %v528, %v726
      %728 = vmatmul.bf16.gmra.mxu0 %v598
      %v729 = vpop.f32.mrf.mxu0
      %v730 = vadd.f32 %v531, %v729
      %v731 = vpop.f32.mrf.mxu0
      %v732 = vadd.f32 %v533, %v731
      %733 = vmatmul.bf16.gmra.mxu0 %v601
      %v734 = vpop.f32.mrf.mxu0
      %v735 = vadd.f32 %v536, %v734
      %v736 = vpop.f32.mrf.mxu0
      %v737 = vadd.f32 %v538, %v736
      %738 = vmatmul.bf16.gmra.mxu0 %v604
      %v739 = vpop.f32.mrf.mxu0
      %v740 = vadd.f32 %v541, %v739
      %v741 = vpop.f32.mrf.mxu0
      %v742 = vadd.f32 %v543, %v741
      %743 = vdwg.mxu0
      %v744 = vld [vmem:[%s291] sm:$0xf]
      %v745 = vld [vmem:[%s291 + $0x4] sm:$0xf]
      %v746 = vld [vmem:[%s291 + $0x8] sm:$0x1]
      %v747 = vld [vmem:[%s291 + $0xc] sm:$0xf]
      %v748 = vld [vmem:[%s291 + $0x10] sm:$0xf]
      %v749 = vld [vmem:[%s291 + $0x14] sm:$0x1]
      %v750 = vld [vmem:[%s291 + $0x18] sm:$0xf]
      %v751 = vld [vmem:[%s291 + $0x1c] sm:$0xf]
      %v752 = vld [vmem:[%s291 + $0x20] sm:$0x1]
      %v753 = vld [vmem:[%s291 + $0x24] sm:$0xf]
      %v754 = vld [vmem:[%s291 + $0x28] sm:$0xf]
      %v755 = vld [vmem:[%s291 + $0x2c] sm:$0x1]
      %v756 = vld [vmem:[%s291 + $0x30] sm:$0xf]
      %v757 = vld [vmem:[%s291 + $0x34] sm:$0xf]
      %v758 = vld [vmem:[%s291 + $0x38] sm:$0x1]
      %v759 = vld [vmem:[%s291 + $0x3c] sm:$0xf]
      %v760 = vld [vmem:[%s291 + $0x40] sm:$0xf]
      %v761 = vld [vmem:[%s291 + $0x44] sm:$0x1]
      %v762 = vld [vmem:[%s291 + $0x48] sm:$0xf]
      %v763 = vld [vmem:[%s291 + $0x4c] sm:$0xf]
      %v764 = vld [vmem:[%s291 + $0x50] sm:$0x1]
      %vm765 = vsmask.f32 3328
      %vm766 = vsmask.f32 7440
      %vm767 = vmor %vm765, %vm766
      %v769 = vshrl.u32 %v744, 16
      %v771 = vrot.slane %v769, 4
      %v772 = vshll.u32 %v744, 16
      %v774 = vrot.slane %v772, 5
      %v775 = vor.u32 %v771, %v774
      %v776 = vrot.slane %v775, 4
      %v778 = vshll.u32 %v745, 16
      %v780 = vrot.slane %v778, 5
      %v781 = vsel %vm767, %v776, %v780
      %v782 = vshrl.u32 %v745, 16
      %v784 = vrot.slane %v782, 4
      %v785 = vor.u32 %v784, %v780
      %v786 = vrot.slane %v785, 4
      %v788 = vshll.u32 %v746, 16
      %v790 = vrot.slane %v788, 5
      %v791 = vsel %vm767, %v786, %v790
      %v793 = vshrl.u32 %v747, 16
      %v795 = vrot.slane %v793, 4
      %v796 = vshll.u32 %v747, 16
      %v798 = vrot.slane %v796, 5
      %v799 = vor.u32 %v795, %v798
      %v800 = vrot.slane %v799, 4
      %v802 = vshll.u32 %v748, 16
      %v804 = vrot.slane %v802, 5
      %v805 = vsel %vm767, %v800, %v804
      %v806 = vshrl.u32 %v748, 16
      %v808 = vrot.slane %v806, 4
      %v809 = vor.u32 %v808, %v804
      %v810 = vrot.slane %v809, 4
      %v812 = vshll.u32 %v749, 16
      %v814 = vrot.slane %v812, 5
      %v815 = vsel %vm767, %v810, %v814
      %v817 = vshrl.u32 %v750, 16
      %v819 = vrot.slane %v817, 4
      %v820 = vshll.u32 %v750, 16
      %v822 = vrot.slane %v820, 5
      %v823 = vor.u32 %v819, %v822
      %v824 = vrot.slane %v823, 4
      %v826 = vshll.u32 %v751, 16
      %v828 = vrot.slane %v826, 5
      %v829 = vsel %vm767, %v824, %v828
      %v830 = vshrl.u32 %v751, 16
      %v832 = vrot.slane %v830, 4
      %v833 = vor.u32 %v832, %v828
      %v834 = vrot.slane %v833, 4
      %v836 = vshll.u32 %v752, 16
      %v838 = vrot.slane %v836, 5
      %v839 = vsel %vm767, %v834, %v838
      %v841 = vshrl.u32 %v753, 16
      %v843 = vrot.slane %v841, 4
      %v844 = vshll.u32 %v753, 16
      %v846 = vrot.slane %v844, 5
      %v847 = vor.u32 %v843, %v846
      %v848 = vrot.slane %v847, 4
      %v850 = vshll.u32 %v754, 16
      %v852 = vrot.slane %v850, 5
      %v853 = vsel %vm767, %v848, %v852
      %v854 = vshrl.u32 %v754, 16
      %v856 = vrot.slane %v854, 4
      %v857 = vor.u32 %v856, %v852
      %v858 = vrot.slane %v857, 4
      %v860 = vshll.u32 %v755, 16
      %v862 = vrot.slane %v860, 5
      %v863 = vsel %vm767, %v858, %v862
      %v865 = vshrl.u32 %v756, 16
      %v867 = vrot.slane %v865, 4
      %v868 = vshll.u32 %v756, 16
      %v870 = vrot.slane %v868, 5
      %v871 = vor.u32 %v867, %v870
      %v872 = vrot.slane %v871, 4
      %v874 = vshll.u32 %v757, 16
      %v876 = vrot.slane %v874, 5
      %v877 = vsel %vm767, %v872, %v876
      %v878 = vshrl.u32 %v757, 16
      %v880 = vrot.slane %v878, 4
      %v881 = vor.u32 %v880, %v876
      %v882 = vrot.slane %v881, 4
      %v884 = vshll.u32 %v758, 16
      %v886 = vrot.slane %v884, 5
      %v887 = vsel %vm767, %v882, %v886
      %v889 = vshrl.u32 %v759, 16
      %v891 = vrot.slane %v889, 4
      %v892 = vshll.u32 %v759, 16
      %v894 = vrot.slane %v892, 5
      %v895 = vor.u32 %v891, %v894
      %v896 = vrot.slane %v895, 4
      %v898 = vshll.u32 %v760, 16
      %v900 = vrot.slane %v898, 5
      %v901 = vsel %vm767, %v896, %v900
      %v902 = vshrl.u32 %v760, 16
      %v904 = vrot.slane %v902, 4
      %v905 = vor.u32 %v904, %v900
      %v906 = vrot.slane %v905, 4
      %v908 = vshll.u32 %v761, 16
      %v910 = vrot.slane %v908, 5
      %v911 = vsel %vm767, %v906, %v910
      %v913 = vshrl.u32 %v762, 16
      %v915 = vrot.slane %v913, 4
      %v916 = vshll.u32 %v762, 16
      %v918 = vrot.slane %v916, 5
      %v919 = vor.u32 %v915, %v918
      %v920 = vrot.slane %v919, 4
      %v922 = vshll.u32 %v763, 16
      %v924 = vrot.slane %v922, 5
      %v925 = vsel %vm767, %v920, %v924
      %v926 = vshrl.u32 %v763, 16
      %v928 = vrot.slane %v926, 4
      %v929 = vor.u32 %v928, %v924
      %v930 = vrot.slane %v929, 4
      %v932 = vshll.u32 %v764, 16
      %v934 = vrot.slane %v932, 5
      %v935 = vsel %vm767, %v930, %v934
      %s936 = scalar_lea.vmem %s4, 12
      %v937 = vld [vmem:[%s936] sm:$0x3f]
      %v938 = vunpack.c.l.b16 %v781
      %v939 = vunpack.c.l.b16 %v791
      %v940 = vunpack.c.l.b16 %v805
      %v941 = vunpack.c.l.b16 %v815
      %v942 = vunpack.c.l.b16 %v829
      %v943 = vunpack.c.l.b16 %v839
      %v944 = vunpack.c.l.b16 %v853
      %v945 = vunpack.c.l.b16 %v863
      %v946 = vunpack.c.l.b16 %v877
      %v947 = vunpack.c.l.b16 %v887
      %v948 = vunpack.c.l.b16 %v901
      %v949 = vunpack.c.l.b16 %v911
      %v950 = vunpack.c.l.b16 %v925
      %v951 = vunpack.c.l.b16 %v935
      %v952 = vpack.c.b16 %v939, %v938
      %v953 = vpack.c.b16 %v941, %v940
      %v954 = vpack.c.b16 %v943, %v942
      %v955 = vpack.c.b16 %v945, %v944
      %v956 = vpack.c.b16 %v947, %v946
      %v957 = vpack.c.b16 %v949, %v948
      %v958 = vpack.c.b16 %v951, %v950
      %960 = vst [vmem:[#allocation1] ss:$4 sm:$0xff] %v937
      %v961 = vld.sshfl [vmem:[#allocation1] sm:$0xff pattern:$0x73625140]
      %v962 = vld.sshfl [vmem:[#allocation1 + $0x8] sm:$0xff pattern:$0x73625140]
      %v963 = vld.sshfl [vmem:[#allocation1 + $0x10] sm:$0xff pattern:$0x73625140]
      %v965 = vsel %vm384, %v952, 0
      %v968 = vsel %vm384, %v953, 0
      %v971 = vsel %vm384, %v954, 0
      %v974 = vsel %vm384, %v955, 0
      %v977 = vsel %vm384, %v956, 0
      %v980 = vsel %vm384, %v957, 0
      %v983 = vsel %vm384, %v958, 0
      %v985 = vsel %vm406, %v961, 0
      %v987 = vsel %vm406, %v962, 0
      %v989 = vsel %vm406, %v963, 0
      %991 = vmatpush.bf16.msra.mxu0 0
      %992 = vmatpush.bf16.msra.mxu0 0
      %993 = vmatpush.bf16.msra.mxu0 0
      %994 = vmatpush.bf16.msra.mxu0 0
      %995 = vmatpush.bf16.msra.mxu0 0
      %996 = vmatpush.bf16.msra.mxu0 0
      %997 = vmatpush.bf16.msra.mxu0 0
      %998 = vmatpush.bf16.msra.mxu0 %v985
      %999 = vmatmul.bf16.gmra.mxu0 %v965
      %v1000 = vpop.f32.mrf.mxu0
      %v1001 = vadd.f32 0.0, %v1000
      %v1002 = vpop.f32.mrf.mxu0
      %v1003 = vadd.f32 0.0, %v1002
      %1004 = vmatmul.bf16.gmra.mxu0 %v968
      %v1005 = vpop.f32.mrf.mxu0
      %v1006 = vadd.f32 0.0, %v1005
      %v1007 = vpop.f32.mrf.mxu0
      %v1008 = vadd.f32 0.0, %v1007
      %1009 = vmatmul.bf16.gmra.mxu0 %v971
      %v1010 = vpop.f32.mrf.mxu0
      %v1011 = vadd.f32 0.0, %v1010
      %v1012 = vpop.f32.mrf.mxu0
      %v1013 = vadd.f32 0.0, %v1012
      %1014 = vmatmul.bf16.gmra.mxu0 %v974
      %v1015 = vpop.f32.mrf.mxu0
      %v1016 = vadd.f32 0.0, %v1015
      %v1017 = vpop.f32.mrf.mxu0
      %v1018 = vadd.f32 0.0, %v1017
      %1019 = vmatmul.bf16.gmra.mxu0 %v977
      %v1020 = vpop.f32.mrf.mxu0
      %v1021 = vadd.f32 0.0, %v1020
      %v1022 = vpop.f32.mrf.mxu0
      %v1023 = vadd.f32 0.0, %v1022
      %1024 = vmatmul.bf16.gmra.mxu0 %v980
      %v1025 = vpop.f32.mrf.mxu0
      %v1026 = vadd.f32 0.0, %v1025
      %v1027 = vpop.f32.mrf.mxu0
      %v1028 = vadd.f32 0.0, %v1027
      %1029 = vmatmul.bf16.gmra.mxu0 %v983
      %v1030 = vpop.f32.mrf.mxu0
      %v1031 = vadd.f32 0.0, %v1030
      %v1032 = vpop.f32.mrf.mxu0
      %v1033 = vadd.f32 0.0, %v1032
      %1034 = vdwg.mxu0
      %1035 = vmatpush.bf16.msra.mxu0 0
      %1036 = vmatpush.bf16.msra.mxu0 0
      %1037 = vmatpush.bf16.msra.mxu0 0
      %1038 = vmatpush.bf16.msra.mxu0 0
      %1039 = vmatpush.bf16.msra.mxu0 0
      %1040 = vmatpush.bf16.msra.mxu0 0
      %1041 = vmatpush.bf16.msra.mxu0 0
      %1042 = vmatpush.bf16.msra.mxu0 %v987
      %1043 = vmatmul.bf16.gmra.mxu0 %v965
      %v1044 = vpop.f32.mrf.mxu0
      %v1045 = vadd.f32 0.0, %v1044
      %v1046 = vpop.f32.mrf.mxu0
      %v1047 = vadd.f32 0.0, %v1046
      %1048 = vmatmul.bf16.gmra.mxu0 %v968
      %v1049 = vpop.f32.mrf.mxu0
      %v1050 = vadd.f32 0.0, %v1049
      %v1051 = vpop.f32.mrf.mxu0
      %v1052 = vadd.f32 0.0, %v1051
      %1053 = vmatmul.bf16.gmra.mxu0 %v971
      %v1054 = vpop.f32.mrf.mxu0
      %v1055 = vadd.f32 0.0, %v1054
      %v1056 = vpop.f32.mrf.mxu0
      %v1057 = vadd.f32 0.0, %v1056
      %1058 = vmatmul.bf16.gmra.mxu0 %v974
      %v1059 = vpop.f32.mrf.mxu0
      %v1060 = vadd.f32 0.0, %v1059
      %v1061 = vpop.f32.mrf.mxu0
      %v1062 = vadd.f32 0.0, %v1061
      %1063 = vmatmul.bf16.gmra.mxu0 %v977
      %v1064 = vpop.f32.mrf.mxu0
      %v1065 = vadd.f32 0.0, %v1064
      %v1066 = vpop.f32.mrf.mxu0
      %v1067 = vadd.f32 0.0, %v1066
      %1068 = vmatmul.bf16.gmra.mxu0 %v980
      %v1069 = vpop.f32.mrf.mxu0
      %v1070 = vadd.f32 0.0, %v1069
      %v1071 = vpop.f32.mrf.mxu0
      %v1072 = vadd.f32 0.0, %v1071
      %1073 = vmatmul.bf16.gmra.mxu0 %v983
      %v1074 = vpop.f32.mrf.mxu0
      %v1075 = vadd.f32 0.0, %v1074
      %v1076 = vpop.f32.mrf.mxu0
      %v1077 = vadd.f32 0.0, %v1076
      %1078 = vdwg.mxu0
      %1079 = vmatpush.bf16.msra.mxu0 0
      %1080 = vmatpush.bf16.msra.mxu0 0
      %1081 = vmatpush.bf16.msra.mxu0 0
      %1082 = vmatpush.bf16.msra.mxu0 0
      %1083 = vmatpush.bf16.msra.mxu0 0
      %1084 = vmatpush.bf16.msra.mxu0 0
      %1085 = vmatpush.bf16.msra.mxu0 0
      %1086 = vmatpush.bf16.msra.mxu0 %v989
      %1087 = vmatmul.bf16.gmra.mxu0 %v965
      %v1088 = vpop.f32.mrf.mxu0
      %v1089 = vadd.f32 0.0, %v1088
      %v1090 = vpop.f32.mrf.mxu0
      %v1091 = vadd.f32 0.0, %v1090
      %1092 = vmatmul.bf16.gmra.mxu0 %v968
      %v1093 = vpop.f32.mrf.mxu0
      %v1094 = vadd.f32 0.0, %v1093
      %v1095 = vpop.f32.mrf.mxu0
      %v1096 = vadd.f32 0.0, %v1095
      %1097 = vmatmul.bf16.gmra.mxu0 %v971
      %v1098 = vpop.f32.mrf.mxu0
      %v1099 = vadd.f32 0.0, %v1098
      %v1100 = vpop.f32.mrf.mxu0
      %v1101 = vadd.f32 0.0, %v1100
      %1102 = vmatmul.bf16.gmra.mxu0 %v974
      %v1103 = vpop.f32.mrf.mxu0
      %v1104 = vadd.f32 0.0, %v1103
      %v1105 = vpop.f32.mrf.mxu0
      %v1106 = vadd.f32 0.0, %v1105
      %1107 = vmatmul.bf16.gmra.mxu0 %v977
      %v1108 = vpop.f32.mrf.mxu0
      %v1109 = vadd.f32 0.0, %v1108
      %v1110 = vpop.f32.mrf.mxu0
      %v1111 = vadd.f32 0.0, %v1110
      %1112 = vmatmul.bf16.gmra.mxu0 %v980
      %v1113 = vpop.f32.mrf.mxu0
      %v1114 = vadd.f32 0.0, %v1113
      %v1115 = vpop.f32.mrf.mxu0
      %v1116 = vadd.f32 0.0, %v1115
      %1117 = vmatmul.bf16.gmra.mxu0 %v983
      %v1118 = vpop.f32.mrf.mxu0
      %v1119 = vadd.f32 0.0, %v1118
      %v1120 = vpop.f32.mrf.mxu0
      %v1121 = vadd.f32 0.0, %v1120
      %1122 = vdwg.mxu0
      %v1123 = vadd.f32 %v622, %v1001
      %v1124 = vadd.f32 %v666, %v1045
      %v1125 = vadd.f32 %v710, %v1089
      %v1126 = vadd.f32 %v624, %v1003
      %v1127 = vadd.f32 %v668, %v1047
      %v1128 = vadd.f32 %v712, %v1091
      %v1129 = vadd.f32 %v627, %v1006
      %v1130 = vadd.f32 %v671, %v1050
      %v1131 = vadd.f32 %v715, %v1094
      %v1132 = vadd.f32 %v629, %v1008
      %v1133 = vadd.f32 %v673, %v1052
      %v1134 = vadd.f32 %v717, %v1096
      %v1135 = vadd.f32 %v632, %v1011
      %v1136 = vadd.f32 %v676, %v1055
      %v1137 = vadd.f32 %v720, %v1099
      %v1138 = vadd.f32 %v634, %v1013
      %v1139 = vadd.f32 %v678, %v1057
      %v1140 = vadd.f32 %v722, %v1101
      %v1141 = vadd.f32 %v637, %v1016
      %v1142 = vadd.f32 %v681, %v1060
      %v1143 = vadd.f32 %v725, %v1104
      %v1144 = vadd.f32 %v639, %v1018
      %v1145 = vadd.f32 %v683, %v1062
      %v1146 = vadd.f32 %v727, %v1106
      %v1147 = vadd.f32 %v642, %v1021
      %v1148 = vadd.f32 %v686, %v1065
      %v1149 = vadd.f32 %v730, %v1109
      %v1150 = vadd.f32 %v644, %v1023
      %v1151 = vadd.f32 %v688, %v1067
      %v1152 = vadd.f32 %v732, %v1111
      %v1153 = vadd.f32 %v647, %v1026
      %v1154 = vadd.f32 %v691, %v1070
      %v1155 = vadd.f32 %v735, %v1114
      %v1156 = vadd.f32 %v649, %v1028
      %v1157 = vadd.f32 %v693, %v1072
      %v1158 = vadd.f32 %v737, %v1116
      %v1159 = vadd.f32 %v652, %v1031
      %v1160 = vadd.f32 %v696, %v1075
      %v1161 = vadd.f32 %v740, %v1119
      %v1162 = vadd.f32 %v654, %v1033
      %v1163 = vadd.f32 %v698, %v1077
      %v1164 = vadd.f32 %v742, %v1121
      %v1165 = vld [vmem:[%s301] sm:$0xf]
      %v1166 = vld [vmem:[%s301 + $0x4] sm:$0xf]
      %v1167 = vld [vmem:[%s301 + $0xc] sm:$0xf]
      %v1168 = vld [vmem:[%s301 + $0x10] sm:$0xf]
      %v1169 = vld [vmem:[%s301 + $0x18] sm:$0xf]
      %v1170 = vld [vmem:[%s301 + $0x1c] sm:$0xf]
      %v1171 = vld [vmem:[%s301 + $0x24] sm:$0xf]
      %v1172 = vld [vmem:[%s301 + $0x28] sm:$0xf]
      %v1173 = vld [vmem:[%s301 + $0x30] sm:$0xf]
      %v1174 = vld [vmem:[%s301 + $0x34] sm:$0xf]
      %v1175 = vld [vmem:[%s301 + $0x3c] sm:$0xf]
      %v1176 = vld [vmem:[%s301 + $0x40] sm:$0xf]
      %v1177 = vld [vmem:[%s301 + $0x48] sm:$0xf]
      %v1178 = vld [vmem:[%s301 + $0x4c] sm:$0xf]
      %s1179 = scalar_lea.vmem %s4, 18
      %v1180 = vld [vmem:[%s1179] sm:$0x3f]
      %v1195 = vunpack.c.l.b16 %v1165
      %v1196 = vunpack.c.l.b16 %v1166
      %v1197 = vunpack.c.l.b16 %v1167
      %v1198 = vunpack.c.l.b16 %v1168
      %v1199 = vunpack.c.l.b16 %v1169
      %v1200 = vunpack.c.l.b16 %v1170
      %v1201 = vunpack.c.l.b16 %v1171
      %v1202 = vunpack.c.l.b16 %v1172
      %v1203 = vunpack.c.l.b16 %v1173
      %v1204 = vunpack.c.l.b16 %v1174
      %v1205 = vunpack.c.l.b16 %v1175
      %v1206 = vunpack.c.l.b16 %v1176
      %v1207 = vunpack.c.l.b16 %v1177
      %v1208 = vunpack.c.l.b16 %v1178
      %v1209 = vpack.c.b16 %v1196, %v1195
      %v1210 = vpack.c.b16 %v1198, %v1197
      %v1211 = vpack.c.b16 %v1200, %v1199
      %v1212 = vpack.c.b16 %v1202, %v1201
      %v1213 = vpack.c.b16 %v1204, %v1203
      %v1214 = vpack.c.b16 %v1206, %v1205
      %v1215 = vpack.c.b16 %v1208, %v1207
      %1217 = vst [vmem:[#allocation1] ss:$4 sm:$0xff] %v1180
      %v1218 = vld.sshfl [vmem:[#allocation1] sm:$0xff pattern:$0x73625140]
      %v1219 = vld.sshfl [vmem:[#allocation1 + $0x8] sm:$0xff pattern:$0x73625140]
      %v1220 = vld.sshfl [vmem:[#allocation1 + $0x10] sm:$0xff pattern:$0x73625140]
      %v1222 = vsel %vm384, %v1209, 0
      %v1225 = vsel %vm384, %v1210, 0
      %v1228 = vsel %vm384, %v1211, 0
      %v1231 = vsel %vm384, %v1212, 0
      %v1234 = vsel %vm384, %v1213, 0
      %v1237 = vsel %vm384, %v1214, 0
      %v1240 = vsel %vm384, %v1215, 0
      %v1242 = vsel %vm406, %v1218, 0
      %v1244 = vsel %vm406, %v1219, 0
      %v1246 = vsel %vm406, %v1220, 0
      %1248 = vmatpush.bf16.msra.mxu0 0
      %1249 = vmatpush.bf16.msra.mxu0 0
      %1250 = vmatpush.bf16.msra.mxu0 0
      %1251 = vmatpush.bf16.msra.mxu0 0
      %1252 = vmatpush.bf16.msra.mxu0 0
      %1253 = vmatpush.bf16.msra.mxu0 0
      %1254 = vmatpush.bf16.msra.mxu0 0
      %1255 = vmatpush.bf16.msra.mxu0 %v1242
      %1256 = vmatmul.bf16.gmra.mxu0 %v1222
      %v1257 = vpop.f32.mrf.mxu0
      %v1258 = vadd.f32 0.0, %v1257
      %v1259 = vpop.f32.mrf.mxu0
      %v1260 = vadd.f32 0.0, %v1259
      %1261 = vmatmul.bf16.gmra.mxu0 %v1225
      %v1262 = vpop.f32.mrf.mxu0
      %v1263 = vadd.f32 0.0, %v1262
      %v1264 = vpop.f32.mrf.mxu0
      %v1265 = vadd.f32 0.0, %v1264
      %1266 = vmatmul.bf16.gmra.mxu0 %v1228
      %v1267 = vpop.f32.mrf.mxu0
      %v1268 = vadd.f32 0.0, %v1267
      %v1269 = vpop.f32.mrf.mxu0
      %v1270 = vadd.f32 0.0, %v1269
      %1271 = vmatmul.bf16.gmra.mxu0 %v1231
      %v1272 = vpop.f32.mrf.mxu0
      %v1273 = vadd.f32 0.0, %v1272
      %v1274 = vpop.f32.mrf.mxu0
      %v1275 = vadd.f32 0.0, %v1274
      %1276 = vmatmul.bf16.gmra.mxu0 %v1234
      %v1277 = vpop.f32.mrf.mxu0
      %v1278 = vadd.f32 0.0, %v1277
      %v1279 = vpop.f32.mrf.mxu0
      %v1280 = vadd.f32 0.0, %v1279
      %1281 = vmatmul.bf16.gmra.mxu0 %v1237
      %v1282 = vpop.f32.mrf.mxu0
      %v1283 = vadd.f32 0.0, %v1282
      %v1284 = vpop.f32.mrf.mxu0
      %v1285 = vadd.f32 0.0, %v1284
      %1286 = vmatmul.bf16.gmra.mxu0 %v1240
      %v1287 = vpop.f32.mrf.mxu0
      %v1288 = vadd.f32 0.0, %v1287
      %v1289 = vpop.f32.mrf.mxu0
      %v1290 = vadd.f32 0.0, %v1289
      %1291 = vdwg.mxu0
      %1292 = vmatpush.bf16.msra.mxu0 0
      %1293 = vmatpush.bf16.msra.mxu0 0
      %1294 = vmatpush.bf16.msra.mxu0 0
      %1295 = vmatpush.bf16.msra.mxu0 0
      %1296 = vmatpush.bf16.msra.mxu0 0
      %1297 = vmatpush.bf16.msra.mxu0 0
      %1298 = vmatpush.bf16.msra.mxu0 0
      %1299 = vmatpush.bf16.msra.mxu0 %v1244
      %1300 = vmatmul.bf16.gmra.mxu0 %v1222
      %v1301 = vpop.f32.mrf.mxu0
      %v1302 = vadd.f32 0.0, %v1301
      %v1303 = vpop.f32.mrf.mxu0
      %v1304 = vadd.f32 0.0, %v1303
      %1305 = vmatmul.bf16.gmra.mxu0 %v1225
      %v1306 = vpop.f32.mrf.mxu0
      %v1307 = vadd.f32 0.0, %v1306
      %v1308 = vpop.f32.mrf.mxu0
      %v1309 = vadd.f32 0.0, %v1308
      %1310 = vmatmul.bf16.gmra.mxu0 %v1228
      %v1311 = vpop.f32.mrf.mxu0
      %v1312 = vadd.f32 0.0, %v1311
      %v1313 = vpop.f32.mrf.mxu0
      %v1314 = vadd.f32 0.0, %v1313
      %1315 = vmatmul.bf16.gmra.mxu0 %v1231
      %v1316 = vpop.f32.mrf.mxu0
      %v1317 = vadd.f32 0.0, %v1316
      %v1318 = vpop.f32.mrf.mxu0
      %v1319 = vadd.f32 0.0, %v1318
      %1320 = vmatmul.bf16.gmra.mxu0 %v1234
      %v1321 = vpop.f32.mrf.mxu0
      %v1322 = vadd.f32 0.0, %v1321
      %v1323 = vpop.f32.mrf.mxu0
      %v1324 = vadd.f32 0.0, %v1323
      %1325 = vmatmul.bf16.gmra.mxu0 %v1237
      %v1326 = vpop.f32.mrf.mxu0
      %v1327 = vadd.f32 0.0, %v1326
      %v1328 = vpop.f32.mrf.mxu0
      %v1329 = vadd.f32 0.0, %v1328
      %1330 = vmatmul.bf16.gmra.mxu0 %v1240
      %v1331 = vpop.f32.mrf.mxu0
      %v1332 = vadd.f32 0.0, %v1331
      %v1333 = vpop.f32.mrf.mxu0
      %v1334 = vadd.f32 0.0, %v1333
      %1335 = vdwg.mxu0
      %1336 = vmatpush.bf16.msra.mxu0 0
      %1337 = vmatpush.bf16.msra.mxu0 0
      %1338 = vmatpush.bf16.msra.mxu0 0
      %1339 = vmatpush.bf16.msra.mxu0 0
      %1340 = vmatpush.bf16.msra.mxu0 0
      %1341 = vmatpush.bf16.msra.mxu0 0
      %1342 = vmatpush.bf16.msra.mxu0 0
      %1343 = vmatpush.bf16.msra.mxu0 %v1246
      %1344 = vmatmul.bf16.gmra.mxu0 %v1222
      %v1345 = vpop.f32.mrf.mxu0
      %v1346 = vadd.f32 0.0, %v1345
      %v1347 = vpop.f32.mrf.mxu0
      %v1348 = vadd.f32 0.0, %v1347
      %1349 = vmatmul.bf16.gmra.mxu0 %v1225
      %v1350 = vpop.f32.mrf.mxu0
      %v1351 = vadd.f32 0.0, %v1350
      %v1352 = vpop.f32.mrf.mxu0
      %v1353 = vadd.f32 0.0, %v1352
      %1354 = vmatmul.bf16.gmra.mxu0 %v1228
      %v1355 = vpop.f32.mrf.mxu0
      %v1356 = vadd.f32 0.0, %v1355
      %v1357 = vpop.f32.mrf.mxu0
      %v1358 = vadd.f32 0.0, %v1357
      %1359 = vmatmul.bf16.gmra.mxu0 %v1231
      %v1360 = vpop.f32.mrf.mxu0
      %v1361 = vadd.f32 0.0, %v1360
      %v1362 = vpop.f32.mrf.mxu0
      %v1363 = vadd.f32 0.0, %v1362
      %1364 = vmatmul.bf16.gmra.mxu0 %v1234
      %v1365 = vpop.f32.mrf.mxu0
      %v1366 = vadd.f32 0.0, %v1365
      %v1367 = vpop.f32.mrf.mxu0
      %v1368 = vadd.f32 0.0, %v1367
      %1369 = vmatmul.bf16.gmra.mxu0 %v1237
      %v1370 = vpop.f32.mrf.mxu0
      %v1371 = vadd.f32 0.0, %v1370
      %v1372 = vpop.f32.mrf.mxu0
      %v1373 = vadd.f32 0.0, %v1372
      %1374 = vmatmul.bf16.gmra.mxu0 %v1240
      %v1375 = vpop.f32.mrf.mxu0
      %v1376 = vadd.f32 0.0, %v1375
      %v1377 = vpop.f32.mrf.mxu0
      %v1378 = vadd.f32 0.0, %v1377
      %1379 = vdwg.mxu0
      %v1380 = vadd.f32 %v1123, %v1258
      %v1381 = vadd.f32 %v1124, %v1302
      %v1382 = vadd.f32 %v1125, %v1346
      %v1383 = vadd.f32 %v1126, %v1260
      %v1384 = vadd.f32 %v1127, %v1304
      %v1385 = vadd.f32 %v1128, %v1348
      %v1386 = vadd.f32 %v1129, %v1263
      %v1387 = vadd.f32 %v1130, %v1307
      %v1388 = vadd.f32 %v1131, %v1351
      %v1389 = vadd.f32 %v1132, %v1265
      %v1390 = vadd.f32 %v1133, %v1309
      %v1391 = vadd.f32 %v1134, %v1353
      %v1392 = vadd.f32 %v1135, %v1268
      %v1393 = vadd.f32 %v1136, %v1312
      %v1394 = vadd.f32 %v1137, %v1356
      %v1395 = vadd.f32 %v1138, %v1270
      %v1396 = vadd.f32 %v1139, %v1314
      %v1397 = vadd.f32 %v1140, %v1358
      %v1398 = vadd.f32 %v1141, %v1273
      %v1399 = vadd.f32 %v1142, %v1317
      %v1400 = vadd.f32 %v1143, %v1361
      %v1401 = vadd.f32 %v1144, %v1275
      %v1402 = vadd.f32 %v1145, %v1319
      %v1403 = vadd.f32 %v1146, %v1363
      %v1404 = vadd.f32 %v1147, %v1278
      %v1405 = vadd.f32 %v1148, %v1322
      %v1406 = vadd.f32 %v1149, %v1366
      %v1407 = vadd.f32 %v1150, %v1280
      %v1408 = vadd.f32 %v1151, %v1324
      %v1409 = vadd.f32 %v1152, %v1368
      %v1410 = vadd.f32 %v1153, %v1283
      %v1411 = vadd.f32 %v1154, %v1327
      %v1412 = vadd.f32 %v1155, %v1371
      %v1413 = vadd.f32 %v1156, %v1285
      %v1414 = vadd.f32 %v1157, %v1329
      %v1415 = vadd.f32 %v1158, %v1373
      %v1416 = vadd.f32 %v1159, %v1288
      %v1417 = vadd.f32 %v1160, %v1332
      %v1418 = vadd.f32 %v1161, %v1376
      %v1419 = vadd.f32 %v1162, %v1290
      %v1420 = vadd.f32 %v1163, %v1334
      %v1421 = vadd.f32 %v1164, %v1378
      %v1422 = vld [vmem:[%s306] sm:$0xf]
      %v1423 = vld [vmem:[%s306 + $0x4] sm:$0xf]
      %v1424 = vld [vmem:[%s306 + $0xc] sm:$0xf]
      %v1425 = vld [vmem:[%s306 + $0x10] sm:$0xf]
      %v1426 = vld [vmem:[%s306 + $0x18] sm:$0xf]
      %v1427 = vld [vmem:[%s306 + $0x1c] sm:$0xf]
      %v1428 = vld [vmem:[%s306 + $0x24] sm:$0xf]
      %v1429 = vld [vmem:[%s306 + $0x28] sm:$0xf]
      %v1430 = vld [vmem:[%s306 + $0x30] sm:$0xf]
      %v1431 = vld [vmem:[%s306 + $0x34] sm:$0xf]
      %v1432 = vld [vmem:[%s306 + $0x3c] sm:$0xf]
      %v1433 = vld [vmem:[%s306 + $0x40] sm:$0xf]
      %v1434 = vld [vmem:[%s306 + $0x48] sm:$0xf]
      %v1435 = vld [vmem:[%s306 + $0x4c] sm:$0xf]
      %s1436 = scalar_lea.vmem %s4, 24
      %v1437 = vld [vmem:[%s1436] sm:$0x3f]
      %v1452 = vunpack.c.l.b16 %v1422
      %v1453 = vunpack.c.l.b16 %v1423
      %v1454 = vunpack.c.l.b16 %v1424
      %v1455 = vunpack.c.l.b16 %v1425
      %v1456 = vunpack.c.l.b16 %v1426
      %v1457 = vunpack.c.l.b16 %v1427
      %v1458 = vunpack.c.l.b16 %v1428
      %v1459 = vunpack.c.l.b16 %v1429
      %v1460 = vunpack.c.l.b16 %v1430
      %v1461 = vunpack.c.l.b16 %v1431
      %v1462 = vunpack.c.l.b16 %v1432
      %v1463 = vunpack.c.l.b16 %v1433
      %v1464 = vunpack.c.l.b16 %v1434
      %v1465 = vunpack.c.l.b16 %v1435
      %v1466 = vpack.c.b16 %v1453, %v1452
      %v1467 = vpack.c.b16 %v1455, %v1454
      %v1468 = vpack.c.b16 %v1457, %v1456
      %v1469 = vpack.c.b16 %v1459, %v1458
      %v1470 = vpack.c.b16 %v1461, %v1460
      %v1471 = vpack.c.b16 %v1463, %v1462
      %v1472 = vpack.c.b16 %v1465, %v1464
      %1474 = vst [vmem:[#allocation1] ss:$4 sm:$0xff] %v1437
      %v1475 = vld.sshfl [vmem:[#allocation1] sm:$0xff pattern:$0x73625140]
      %v1476 = vld.sshfl [vmem:[#allocation1 + $0x8] sm:$0xff pattern:$0x73625140]
      %v1477 = vld.sshfl [vmem:[#allocation1 + $0x10] sm:$0xff pattern:$0x73625140]
      %v1479 = vsel %vm384, %v1466, 0
      %v1482 = vsel %vm384, %v1467, 0
      %v1485 = vsel %vm384, %v1468, 0
      %v1488 = vsel %vm384, %v1469, 0
      %v1491 = vsel %vm384, %v1470, 0
      %v1494 = vsel %vm384, %v1471, 0
      %v1497 = vsel %vm384, %v1472, 0
      %v1499 = vsel %vm406, %v1475, 0
      %v1501 = vsel %vm406, %v1476, 0
      %v1503 = vsel %vm406, %v1477, 0
      %1505 = vmatpush.bf16.msra.mxu0 0
      %1506 = vmatpush.bf16.msra.mxu0 0
      %1507 = vmatpush.bf16.msra.mxu0 0
      %1508 = vmatpush.bf16.msra.mxu0 0
      %1509 = vmatpush.bf16.msra.mxu0 0
      %1510 = vmatpush.bf16.msra.mxu0 0
      %1511 = vmatpush.bf16.msra.mxu0 0
      %1512 = vmatpush.bf16.msra.mxu0 %v1499
      %1513 = vmatmul.bf16.gmra.mxu0 %v1479
      %v1514 = vpop.f32.mrf.mxu0
      %v1515 = vadd.f32 0.0, %v1514
      %v1516 = vpop.f32.mrf.mxu0
      %v1517 = vadd.f32 0.0, %v1516
      %1518 = vmatmul.bf16.gmra.mxu0 %v1482
      %v1519 = vpop.f32.mrf.mxu0
      %v1520 = vadd.f32 0.0, %v1519
      %v1521 = vpop.f32.mrf.mxu0
      %v1522 = vadd.f32 0.0, %v1521
      %1523 = vmatmul.bf16.gmra.mxu0 %v1485
      %v1524 = vpop.f32.mrf.mxu0
      %v1525 = vadd.f32 0.0, %v1524
      %v1526 = vpop.f32.mrf.mxu0
      %v1527 = vadd.f32 0.0, %v1526
      %1528 = vmatmul.bf16.gmra.mxu0 %v1488
      %v1529 = vpop.f32.mrf.mxu0
      %v1530 = vadd.f32 0.0, %v1529
      %v1531 = vpop.f32.mrf.mxu0
      %v1532 = vadd.f32 0.0, %v1531
      %1533 = vmatmul.bf16.gmra.mxu0 %v1491
      %v1534 = vpop.f32.mrf.mxu0
      %v1535 = vadd.f32 0.0, %v1534
      %v1536 = vpop.f32.mrf.mxu0
      %v1537 = vadd.f32 0.0, %v1536
      %1538 = vmatmul.bf16.gmra.mxu0 %v1494
      %v1539 = vpop.f32.mrf.mxu0
      %v1540 = vadd.f32 0.0, %v1539
      %v1541 = vpop.f32.mrf.mxu0
      %v1542 = vadd.f32 0.0, %v1541
      %1543 = vmatmul.bf16.gmra.mxu0 %v1497
      %v1544 = vpop.f32.mrf.mxu0
      %v1545 = vadd.f32 0.0, %v1544
      %v1546 = vpop.f32.mrf.mxu0
      %v1547 = vadd.f32 0.0, %v1546
      %1548 = vdwg.mxu0
      %1549 = vmatpush.bf16.msra.mxu0 0
      %1550 = vmatpush.bf16.msra.mxu0 0
      %1551 = vmatpush.bf16.msra.mxu0 0
      %1552 = vmatpush.bf16.msra.mxu0 0
      %1553 = vmatpush.bf16.msra.mxu0 0
      %1554 = vmatpush.bf16.msra.mxu0 0
      %1555 = vmatpush.bf16.msra.mxu0 0
      %1556 = vmatpush.bf16.msra.mxu0 %v1501
      %1557 = vmatmul.bf16.gmra.mxu0 %v1479
      %v1558 = vpop.f32.mrf.mxu0
      %v1559 = vadd.f32 0.0, %v1558
      %v1560 = vpop.f32.mrf.mxu0
      %v1561 = vadd.f32 0.0, %v1560
      %1562 = vmatmul.bf16.gmra.mxu0 %v1482
      %v1563 = vpop.f32.mrf.mxu0
      %v1564 = vadd.f32 0.0, %v1563
      %v1565 = vpop.f32.mrf.mxu0
      %v1566 = vadd.f32 0.0, %v1565
      %1567 = vmatmul.bf16.gmra.mxu0 %v1485
      %v1568 = vpop.f32.mrf.mxu0
      %v1569 = vadd.f32 0.0, %v1568
      %v1570 = vpop.f32.mrf.mxu0
      %v1571 = vadd.f32 0.0, %v1570
      %1572 = vmatmul.bf16.gmra.mxu0 %v1488
      %v1573 = vpop.f32.mrf.mxu0
      %v1574 = vadd.f32 0.0, %v1573
      %v1575 = vpop.f32.mrf.mxu0
      %v1576 = vadd.f32 0.0, %v1575
      %1577 = vmatmul.bf16.gmra.mxu0 %v1491
      %v1578 = vpop.f32.mrf.mxu0
      %v1579 = vadd.f32 0.0, %v1578
      %v1580 = vpop.f32.mrf.mxu0
      %v1581 = vadd.f32 0.0, %v1580
      %1582 = vmatmul.bf16.gmra.mxu0 %v1494
      %v1583 = vpop.f32.mrf.mxu0
      %v1584 = vadd.f32 0.0, %v1583
      %v1585 = vpop.f32.mrf.mxu0
      %v1586 = vadd.f32 0.0, %v1585
      %1587 = vmatmul.bf16.gmra.mxu0 %v1497
      %v1588 = vpop.f32.mrf.mxu0
      %v1589 = vadd.f32 0.0, %v1588
      %v1590 = vpop.f32.mrf.mxu0
      %v1591 = vadd.f32 0.0, %v1590
      %1592 = vdwg.mxu0
      %1593 = vmatpush.bf16.msra.mxu0 0
      %1594 = vmatpush.bf16.msra.mxu0 0
      %1595 = vmatpush.bf16.msra.mxu0 0
      %1596 = vmatpush.bf16.msra.mxu0 0
      %1597 = vmatpush.bf16.msra.mxu0 0
      %1598 = vmatpush.bf16.msra.mxu0 0
      %1599 = vmatpush.bf16.msra.mxu0 0
      %1600 = vmatpush.bf16.msra.mxu0 %v1503
      %1601 = vmatmul.bf16.gmra.mxu0 %v1479
      %v1602 = vpop.f32.mrf.mxu0
      %v1603 = vadd.f32 0.0, %v1602
      %v1604 = vpop.f32.mrf.mxu0
      %v1605 = vadd.f32 0.0, %v1604
      %1606 = vmatmul.bf16.gmra.mxu0 %v1482
      %v1607 = vpop.f32.mrf.mxu0
      %v1608 = vadd.f32 0.0, %v1607
      %v1609 = vpop.f32.mrf.mxu0
      %v1610 = vadd.f32 0.0, %v1609
      %1611 = vmatmul.bf16.gmra.mxu0 %v1485
      %v1612 = vpop.f32.mrf.mxu0
      %v1613 = vadd.f32 0.0, %v1612
      %v1614 = vpop.f32.mrf.mxu0
      %v1615 = vadd.f32 0.0, %v1614
      %1616 = vmatmul.bf16.gmra.mxu0 %v1488
      %v1617 = vpop.f32.mrf.mxu0
      %v1618 = vadd.f32 0.0, %v1617
      %v1619 = vpop.f32.mrf.mxu0
      %v1620 = vadd.f32 0.0, %v1619
      %1621 = vmatmul.bf16.gmra.mxu0 %v1491
      %v1622 = vpop.f32.mrf.mxu0
      %v1623 = vadd.f32 0.0, %v1622
      %v1624 = vpop.f32.mrf.mxu0
      %v1625 = vadd.f32 0.0, %v1624
      %1626 = vmatmul.bf16.gmra.mxu0 %v1494
      %v1627 = vpop.f32.mrf.mxu0
      %v1628 = vadd.f32 0.0, %v1627
      %v1629 = vpop.f32.mrf.mxu0
      %v1630 = vadd.f32 0.0, %v1629
      %1631 = vmatmul.bf16.gmra.mxu0 %v1497
      %v1632 = vpop.f32.mrf.mxu0
      %v1633 = vadd.f32 0.0, %v1632
      %v1634 = vpop.f32.mrf.mxu0
      %v1635 = vadd.f32 0.0, %v1634
      %1636 = vdwg.mxu0
      %v1637 = vadd.f32 %v1380, %v1515
      %v1638 = vadd.f32 %v1381, %v1559
      %v1639 = vadd.f32 %v1382, %v1603
      %v1640 = vadd.f32 %v1383, %v1517
      %v1641 = vadd.f32 %v1384, %v1561
      %v1642 = vadd.f32 %v1385, %v1605
      %v1643 = vadd.f32 %v1386, %v1520
      %v1644 = vadd.f32 %v1387, %v1564
      %v1645 = vadd.f32 %v1388, %v1608
      %v1646 = vadd.f32 %v1389, %v1522
      %v1647 = vadd.f32 %v1390, %v1566
      %v1648 = vadd.f32 %v1391, %v1610
      %v1649 = vadd.f32 %v1392, %v1525
      %v1650 = vadd.f32 %v1393, %v1569
      %v1651 = vadd.f32 %v1394, %v1613
      %v1652 = vadd.f32 %v1395, %v1527
      %v1653 = vadd.f32 %v1396, %v1571
      %v1654 = vadd.f32 %v1397, %v1615
      %v1655 = vadd.f32 %v1398, %v1530
      %v1656 = vadd.f32 %v1399, %v1574
      %v1657 = vadd.f32 %v1400, %v1618
      %v1658 = vadd.f32 %v1401, %v1532
      %v1659 = vadd.f32 %v1402, %v1576
      %v1660 = vadd.f32 %v1403, %v1620
      %v1661 = vadd.f32 %v1404, %v1535
      %v1662 = vadd.f32 %v1405, %v1579
      %v1663 = vadd.f32 %v1406, %v1623
      %v1664 = vadd.f32 %v1407, %v1537
      %v1665 = vadd.f32 %v1408, %v1581
      %v1666 = vadd.f32 %v1409, %v1625
      %v1667 = vadd.f32 %v1410, %v1540
      %v1668 = vadd.f32 %v1411, %v1584
      %v1669 = vadd.f32 %v1412, %v1628
      %v1670 = vadd.f32 %v1413, %v1542
      %v1671 = vadd.f32 %v1414, %v1586
      %v1672 = vadd.f32 %v1415, %v1630
      %v1673 = vadd.f32 %v1416, %v1545
      %v1674 = vadd.f32 %v1417, %v1589
      %v1675 = vadd.f32 %v1418, %v1633
      %v1676 = vadd.f32 %v1419, %v1547
      %v1677 = vadd.f32 %v1420, %v1591
      %v1678 = vadd.f32 %v1421, %v1635
      %v1679 = vld [vmem:[%s301] sm:$0xf]
      %v1680 = vld [vmem:[%s301 + $0x4] sm:$0xf]
      %v1681 = vld [vmem:[%s301 + $0x8] sm:$0x1]
      %v1682 = vld [vmem:[%s301 + $0xc] sm:$0xf]
      %v1683 = vld [vmem:[%s301 + $0x10] sm:$0xf]
      %v1684 = vld [vmem:[%s301 + $0x14] sm:$0x1]
      %v1685 = vld [vmem:[%s301 + $0x18] sm:$0xf]
      %v1686 = vld [vmem:[%s301 + $0x1c] sm:$0xf]
      %v1687 = vld [vmem:[%s301 + $0x20] sm:$0x1]
      %v1688 = vld [vmem:[%s301 + $0x24] sm:$0xf]
      %v1689 = vld [vmem:[%s301 + $0x28] sm:$0xf]
      %v1690 = vld [vmem:[%s301 + $0x2c] sm:$0x1]
      %v1691 = vld [vmem:[%s301 + $0x30] sm:$0xf]
      %v1692 = vld [vmem:[%s301 + $0x34] sm:$0xf]
      %v1693 = vld [vmem:[%s301 + $0x38] sm:$0x1]
      %v1694 = vld [vmem:[%s301 + $0x3c] sm:$0xf]
      %v1695 = vld [vmem:[%s301 + $0x40] sm:$0xf]
      %v1696 = vld [vmem:[%s301 + $0x44] sm:$0x1]
      %v1697 = vld [vmem:[%s301 + $0x48] sm:$0xf]
      %v1698 = vld [vmem:[%s301 + $0x4c] sm:$0xf]
      %v1699 = vld [vmem:[%s301 + $0x50] sm:$0x1]
      %v1701 = vshrl.u32 %v1679, 16
      %v1703 = vrot.slane %v1701, 4
      %v1704 = vshll.u32 %v1679, 16
      %v1706 = vrot.slane %v1704, 5
      %v1707 = vor.u32 %v1703, %v1706
      %v1708 = vrot.slane %v1707, 4
      %v1710 = vshll.u32 %v1680, 16
      %v1712 = vrot.slane %v1710, 5
      %v1713 = vsel %vm767, %v1708, %v1712
      %v1714 = vshrl.u32 %v1680, 16
      %v1716 = vrot.slane %v1714, 4
      %v1717 = vor.u32 %v1716, %v1712
      %v1718 = vrot.slane %v1717, 4
      %v1720 = vshll.u32 %v1681, 16
      %v1722 = vrot.slane %v1720, 5
      %v1723 = vsel %vm767, %v1718, %v1722
      %v1725 = vshrl.u32 %v1682, 16
      %v1727 = vrot.slane %v1725, 4
      %v1728 = vshll.u32 %v1682, 16
      %v1730 = vrot.slane %v1728, 5
      %v1731 = vor.u32 %v1727, %v1730
      %v1732 = vrot.slane %v1731, 4
      %v1734 = vshll.u32 %v1683, 16
      %v1736 = vrot.slane %v1734, 5
      %v1737 = vsel %vm767, %v1732, %v1736
      %v1738 = vshrl.u32 %v1683, 16
      %v1740 = vrot.slane %v1738, 4
      %v1741 = vor.u32 %v1740, %v1736
      %v1742 = vrot.slane %v1741, 4
      %v1744 = vshll.u32 %v1684, 16
      %v1746 = vrot.slane %v1744, 5
      %v1747 = vsel %vm767, %v1742, %v1746
      %v1749 = vshrl.u32 %v1685, 16
      %v1751 = vrot.slane %v1749, 4
      %v1752 = vshll.u32 %v1685, 16
      %v1754 = vrot.slane %v1752, 5
      %v1755 = vor.u32 %v1751, %v1754
      %v1756 = vrot.slane %v1755, 4
      %v1758 = vshll.u32 %v1686, 16
      %v1760 = vrot.slane %v1758, 5
      %v1761 = vsel %vm767, %v1756, %v1760
      %v1762 = vshrl.u32 %v1686, 16
      %v1764 = vrot.slane %v1762, 4
      %v1765 = vor.u32 %v1764, %v1760
      %v1766 = vrot.slane %v1765, 4
      %v1768 = vshll.u32 %v1687, 16
      %v1770 = vrot.slane %v1768, 5
      %v1771 = vsel %vm767, %v1766, %v1770
      %v1773 = vshrl.u32 %v1688, 16
      %v1775 = vrot.slane %v1773, 4
      %v1776 = vshll.u32 %v1688, 16
      %v1778 = vrot.slane %v1776, 5
      %v1779 = vor.u32 %v1775, %v1778
      %v1780 = vrot.slane %v1779, 4
      %v1782 = vshll.u32 %v1689, 16
      %v1784 = vrot.slane %v1782, 5
      %v1785 = vsel %vm767, %v1780, %v1784
      %v1786 = vshrl.u32 %v1689, 16
      %v1788 = vrot.slane %v1786, 4
      %v1789 = vor.u32 %v1788, %v1784
      %v1790 = vrot.slane %v1789, 4
      %v1792 = vshll.u32 %v1690, 16
      %v1794 = vrot.slane %v1792, 5
      %v1795 = vsel %vm767, %v1790, %v1794
      %v1797 = vshrl.u32 %v1691, 16
      %v1799 = vrot.slane %v1797, 4
      %v1800 = vshll.u32 %v1691, 16
      %v1802 = vrot.slane %v1800, 5
      %v1803 = vor.u32 %v1799, %v1802
      %v1804 = vrot.slane %v1803, 4
      %v1806 = vshll.u32 %v1692, 16
      %v1808 = vrot.slane %v1806, 5
      %v1809 = vsel %vm767, %v1804, %v1808
      %v1810 = vshrl.u32 %v1692, 16
      %v1812 = vrot.slane %v1810, 4
      %v1813 = vor.u32 %v1812, %v1808
      %v1814 = vrot.slane %v1813, 4
      %v1816 = vshll.u32 %v1693, 16
      %v1818 = vrot.slane %v1816, 5
      %v1819 = vsel %vm767, %v1814, %v1818
      %v1821 = vshrl.u32 %v1694, 16
      %v1823 = vrot.slane %v1821, 4
      %v1824 = vshll.u32 %v1694, 16
      %v1826 = vrot.slane %v1824, 5
      %v1827 = vor.u32 %v1823, %v1826
      %v1828 = vrot.slane %v1827, 4
      %v1830 = vshll.u32 %v1695, 16
      %v1832 = vrot.slane %v1830, 5
      %v1833 = vsel %vm767, %v1828, %v1832
      %v1834 = vshrl.u32 %v1695, 16
      %v1836 = vrot.slane %v1834, 4
      %v1837 = vor.u32 %v1836, %v1832
      %v1838 = vrot.slane %v1837, 4
      %v1840 = vshll.u32 %v1696, 16
      %v1842 = vrot.slane %v1840, 5
      %v1843 = vsel %vm767, %v1838, %v1842
      %v1845 = vshrl.u32 %v1697, 16
      %v1847 = vrot.slane %v1845, 4
      %v1848 = vshll.u32 %v1697, 16
      %v1850 = vrot.slane %v1848, 5
      %v1851 = vor.u32 %v1847, %v1850
      %v1852 = vrot.slane %v1851, 4
      %v1854 = vshll.u32 %v1698, 16
      %v1856 = vrot.slane %v1854, 5
      %v1857 = vsel %vm767, %v1852, %v1856
      %v1858 = vshrl.u32 %v1698, 16
      %v1860 = vrot.slane %v1858, 4
      %v1861 = vor.u32 %v1860, %v1856
      %v1862 = vrot.slane %v1861, 4
      %v1864 = vshll.u32 %v1699, 16
      %v1866 = vrot.slane %v1864, 5
      %v1867 = vsel %vm767, %v1862, %v1866
      %s1868 = scalar_lea.vmem %s4, 30
      %v1869 = vld [vmem:[%s1868] sm:$0x3f]
      %v1870 = vunpack.c.l.b16 %v1713
      %v1871 = vunpack.c.l.b16 %v1723
      %v1872 = vunpack.c.l.b16 %v1737
      %v1873 = vunpack.c.l.b16 %v1747
      %v1874 = vunpack.c.l.b16 %v1761
      %v1875 = vunpack.c.l.b16 %v1771
      %v1876 = vunpack.c.l.b16 %v1785
      %v1877 = vunpack.c.l.b16 %v1795
      %v1878 = vunpack.c.l.b16 %v1809
      %v1879 = vunpack.c.l.b16 %v1819
      %v1880 = vunpack.c.l.b16 %v1833
      %v1881 = vunpack.c.l.b16 %v1843
      %v1882 = vunpack.c.l.b16 %v1857
      %v1883 = vunpack.c.l.b16 %v1867
      %v1884 = vpack.c.b16 %v1871, %v1870
      %v1885 = vpack.c.b16 %v1873, %v1872
      %v1886 = vpack.c.b16 %v1875, %v1874
      %v1887 = vpack.c.b16 %v1877, %v1876
      %v1888 = vpack.c.b16 %v1879, %v1878
      %v1889 = vpack.c.b16 %v1881, %v1880
      %v1890 = vpack.c.b16 %v1883, %v1882
      %1892 = vst [vmem:[#allocation1] ss:$4 sm:$0xff] %v1869
      %v1893 = vld.sshfl [vmem:[#allocation1] sm:$0xff pattern:$0x73625140]
      %v1894 = vld.sshfl [vmem:[#allocation1 + $0x8] sm:$0xff pattern:$0x73625140]
      %v1895 = vld.sshfl [vmem:[#allocation1 + $0x10] sm:$0xff pattern:$0x73625140]
      %v1897 = vsel %vm384, %v1884, 0
      %v1900 = vsel %vm384, %v1885, 0
      %v1903 = vsel %vm384, %v1886, 0
      %v1906 = vsel %vm384, %v1887, 0
      %v1909 = vsel %vm384, %v1888, 0
      %v1912 = vsel %vm384, %v1889, 0
      %v1915 = vsel %vm384, %v1890, 0
      %v1917 = vsel %vm406, %v1893, 0
      %v1919 = vsel %vm406, %v1894, 0
      %v1921 = vsel %vm406, %v1895, 0
      %1923 = vmatpush.bf16.msra.mxu0 0
      %1924 = vmatpush.bf16.msra.mxu0 0
      %1925 = vmatpush.bf16.msra.mxu0 0
      %1926 = vmatpush.bf16.msra.mxu0 0
      %1927 = vmatpush.bf16.msra.mxu0 0
      %1928 = vmatpush.bf16.msra.mxu0 0
      %1929 = vmatpush.bf16.msra.mxu0 0
      %1930 = vmatpush.bf16.msra.mxu0 %v1917
      %1931 = vmatmul.bf16.gmra.mxu0 %v1897
      %v1932 = vpop.f32.mrf.mxu0
      %v1933 = vadd.f32 0.0, %v1932
      %v1934 = vpop.f32.mrf.mxu0
      %v1935 = vadd.f32 0.0, %v1934
      %1936 = vmatmul.bf16.gmra.mxu0 %v1900
      %v1937 = vpop.f32.mrf.mxu0
      %v1938 = vadd.f32 0.0, %v1937
      %v1939 = vpop.f32.mrf.mxu0
      %v1940 = vadd.f32 0.0, %v1939
      %1941 = vmatmul.bf16.gmra.mxu0 %v1903
      %v1942 = vpop.f32.mrf.mxu0
      %v1943 = vadd.f32 0.0, %v1942
      %v1944 = vpop.f32.mrf.mxu0
      %v1945 = vadd.f32 0.0, %v1944
      %1946 = vmatmul.bf16.gmra.mxu0 %v1906
      %v1947 = vpop.f32.mrf.mxu0
      %v1948 = vadd.f32 0.0, %v1947
      %v1949 = vpop.f32.mrf.mxu0
      %v1950 = vadd.f32 0.0, %v1949
      %1951 = vmatmul.bf16.gmra.mxu0 %v1909
      %v1952 = vpop.f32.mrf.mxu0
      %v1953 = vadd.f32 0.0, %v1952
      %v1954 = vpop.f32.mrf.mxu0
      %v1955 = vadd.f32 0.0, %v1954
      %1956 = vmatmul.bf16.gmra.mxu0 %v1912
      %v1957 = vpop.f32.mrf.mxu0
      %v1958 = vadd.f32 0.0, %v1957
      %v1959 = vpop.f32.mrf.mxu0
      %v1960 = vadd.f32 0.0, %v1959
      %1961 = vmatmul.bf16.gmra.mxu0 %v1915
      %v1962 = vpop.f32.mrf.mxu0
      %v1963 = vadd.f32 0.0, %v1962
      %v1964 = vpop.f32.mrf.mxu0
      %v1965 = vadd.f32 0.0, %v1964
      %1966 = vdwg.mxu0
      %1967 = vmatpush.bf16.msra.mxu0 0
      %1968 = vmatpush.bf16.msra.mxu0 0
      %1969 = vmatpush.bf16.msra.mxu0 0
      %1970 = vmatpush.bf16.msra.mxu0 0
      %1971 = vmatpush.bf16.msra.mxu0 0
      %1972 = vmatpush.bf16.msra.mxu0 0
      %1973 = vmatpush.bf16.msra.mxu0 0
      %1974 = vmatpush.bf16.msra.mxu0 %v1919
      %1975 = vmatmul.bf16.gmra.mxu0 %v1897
      %v1976 = vpop.f32.mrf.mxu0
      %v1977 = vadd.f32 0.0, %v1976
      %v1978 = vpop.f32.mrf.mxu0
      %v1979 = vadd.f32 0.0, %v1978
      %1980 = vmatmul.bf16.gmra.mxu0 %v1900
      %v1981 = vpop.f32.mrf.mxu0
      %v1982 = vadd.f32 0.0, %v1981
      %v1983 = vpop.f32.mrf.mxu0
      %v1984 = vadd.f32 0.0, %v1983
      %1985 = vmatmul.bf16.gmra.mxu0 %v1903
      %v1986 = vpop.f32.mrf.mxu0
      %v1987 = vadd.f32 0.0, %v1986
      %v1988 = vpop.f32.mrf.mxu0
      %v1989 = vadd.f32 0.0, %v1988
      %1990 = vmatmul.bf16.gmra.mxu0 %v1906
      %v1991 = vpop.f32.mrf.mxu0
      %v1992 = vadd.f32 0.0, %v1991
      %v1993 = vpop.f32.mrf.mxu0
      %v1994 = vadd.f32 0.0, %v1993
      %1995 = vmatmul.bf16.gmra.mxu0 %v1909
      %v1996 = vpop.f32.mrf.mxu0
      %v1997 = vadd.f32 0.0, %v1996
      %v1998 = vpop.f32.mrf.mxu0
      %v1999 = vadd.f32 0.0, %v1998
      %2000 = vmatmul.bf16.gmra.mxu0 %v1912
      %v2001 = vpop.f32.mrf.mxu0
      %v2002 = vadd.f32 0.0, %v2001
      %v2003 = vpop.f32.mrf.mxu0
      %v2004 = vadd.f32 0.0, %v2003
      %2005 = vmatmul.bf16.gmra.mxu0 %v1915
      %v2006 = vpop.f32.mrf.mxu0
      %v2007 = vadd.f32 0.0, %v2006
      %v2008 = vpop.f32.mrf.mxu0
      %v2009 = vadd.f32 0.0, %v2008
      %2010 = vdwg.mxu0
      %2011 = vmatpush.bf16.msra.mxu0 0
      %2012 = vmatpush.bf16.msra.mxu0 0
      %2013 = vmatpush.bf16.msra.mxu0 0
      %2014 = vmatpush.bf16.msra.mxu0 0
      %2015 = vmatpush.bf16.msra.mxu0 0
      %2016 = vmatpush.bf16.msra.mxu0 0
      %2017 = vmatpush.bf16.msra.mxu0 0
      %2018 = vmatpush.bf16.msra.mxu0 %v1921
      %2019 = vmatmul.bf16.gmra.mxu0 %v1897
      %v2020 = vpop.f32.mrf.mxu0
      %v2021 = vadd.f32 0.0, %v2020
      %v2022 = vpop.f32.mrf.mxu0
      %v2023 = vadd.f32 0.0, %v2022
      %2024 = vmatmul.bf16.gmra.mxu0 %v1900
      %v2025 = vpop.f32.mrf.mxu0
      %v2026 = vadd.f32 0.0, %v2025
      %v2027 = vpop.f32.mrf.mxu0
      %v2028 = vadd.f32 0.0, %v2027
      %2029 = vmatmul.bf16.gmra.mxu0 %v1903
      %v2030 = vpop.f32.mrf.mxu0
      %v2031 = vadd.f32 0.0, %v2030
      %v2032 = vpop.f32.mrf.mxu0
      %v2033 = vadd.f32 0.0, %v2032
      %2034 = vmatmul.bf16.gmra.mxu0 %v1906
      %v2035 = vpop.f32.mrf.mxu0
      %v2036 = vadd.f32 0.0, %v2035
      %v2037 = vpop.f32.mrf.mxu0
      %v2038 = vadd.f32 0.0, %v2037
      %2039 = vmatmul.bf16.gmra.mxu0 %v1909
      %v2040 = vpop.f32.mrf.mxu0
      %v2041 = vadd.f32 0.0, %v2040
      %v2042 = vpop.f32.mrf.mxu0
      %v2043 = vadd.f32 0.0, %v2042
      %2044 = vmatmul.bf16.gmra.mxu0 %v1912
      %v2045 = vpop.f32.mrf.mxu0
      %v2046 = vadd.f32 0.0, %v2045
      %v2047 = vpop.f32.mrf.mxu0
      %v2048 = vadd.f32 0.0, %v2047
      %2049 = vmatmul.bf16.gmra.mxu0 %v1915
      %v2050 = vpop.f32.mrf.mxu0
      %v2051 = vadd.f32 0.0, %v2050
      %v2052 = vpop.f32.mrf.mxu0
      %v2053 = vadd.f32 0.0, %v2052
      %2054 = vdwg.mxu0
      %v2055 = vadd.f32 %v1637, %v1933
      %v2056 = vadd.f32 %v1638, %v1977
      %v2057 = vadd.f32 %v1639, %v2021
      %v2058 = vadd.f32 %v1640, %v1935
      %v2059 = vadd.f32 %v1641, %v1979
      %v2060 = vadd.f32 %v1642, %v2023
      %v2061 = vadd.f32 %v1643, %v1938
      %v2062 = vadd.f32 %v1644, %v1982
      %v2063 = vadd.f32 %v1645, %v2026
      %v2064 = vadd.f32 %v1646, %v1940
      %v2065 = vadd.f32 %v1647, %v1984
      %v2066 = vadd.f32 %v1648, %v2028
      %v2067 = vadd.f32 %v1649, %v1943
      %v2068 = vadd.f32 %v1650, %v1987
      %v2069 = vadd.f32 %v1651, %v2031
      %v2070 = vadd.f32 %v1652, %v1945
      %v2071 = vadd.f32 %v1653, %v1989
      %v2072 = vadd.f32 %v1654, %v2033
      %v2073 = vadd.f32 %v1655, %v1948
      %v2074 = vadd.f32 %v1656, %v1992
      %v2075 = vadd.f32 %v1657, %v2036
      %v2076 = vadd.f32 %v1658, %v1950
      %v2077 = vadd.f32 %v1659, %v1994
      %v2078 = vadd.f32 %v1660, %v2038
      %v2079 = vadd.f32 %v1661, %v1953
      %v2080 = vadd.f32 %v1662, %v1997
      %v2081 = vadd.f32 %v1663, %v2041
      %v2082 = vadd.f32 %v1664, %v1955
      %v2083 = vadd.f32 %v1665, %v1999
      %v2084 = vadd.f32 %v1666, %v2043
      %v2085 = vadd.f32 %v1667, %v1958
      %v2086 = vadd.f32 %v1668, %v2002
      %v2087 = vadd.f32 %v1669, %v2046
      %v2088 = vadd.f32 %v1670, %v1960
      %v2089 = vadd.f32 %v1671, %v2004
      %v2090 = vadd.f32 %v1672, %v2048
      %v2091 = vadd.f32 %v1673, %v1963
      %v2092 = vadd.f32 %v1674, %v2007
      %v2093 = vadd.f32 %v1675, %v2051
      %v2094 = vadd.f32 %v1676, %v1965
      %v2095 = vadd.f32 %v1677, %v2009
      %v2096 = vadd.f32 %v1678, %v2053
      %s2097 = scalar_lea.vmem %s291, 12
      %v2098 = vld [vmem:[%s2097] sm:$0xf]
      %v2099 = vld [vmem:[%s2097 + $0x4] sm:$0xf]
      %v2100 = vld [vmem:[%s2097 + $0xc] sm:$0xf]
      %v2101 = vld [vmem:[%s2097 + $0x10] sm:$0xf]
      %v2102 = vld [vmem:[%s2097 + $0x18] sm:$0xf]
      %v2103 = vld [vmem:[%s2097 + $0x1c] sm:$0xf]
      %v2104 = vld [vmem:[%s2097 + $0x24] sm:$0xf]
      %v2105 = vld [vmem:[%s2097 + $0x28] sm:$0xf]
      %v2106 = vld [vmem:[%s2097 + $0x30] sm:$0xf]
      %v2107 = vld [vmem:[%s2097 + $0x34] sm:$0xf]
      %v2108 = vld [vmem:[%s2097 + $0x3c] sm:$0xf]
      %v2109 = vld [vmem:[%s2097 + $0x40] sm:$0xf]
      %v2110 = vld [vmem:[%s2097 + $0x48] sm:$0xf]
      %v2111 = vld [vmem:[%s2097 + $0x4c] sm:$0xf]
      %s2112 = scalar_lea.vmem %s4, 36
      %v2113 = vld [vmem:[%s2112] sm:$0x3f]
      %v2128 = vunpack.c.l.b16 %v2098
      %v2129 = vunpack.c.l.b16 %v2099
      %v2130 = vunpack.c.l.b16 %v2100
      %v2131 = vunpack.c.l.b16 %v2101
      %v2132 = vunpack.c.l.b16 %v2102
      %v2133 = vunpack.c.l.b16 %v2103
      %v2134 = vunpack.c.l.b16 %v2104
      %v2135 = vunpack.c.l.b16 %v2105
      %v2136 = vunpack.c.l.b16 %v2106
      %v2137 = vunpack.c.l.b16 %v2107
      %v2138 = vunpack.c.l.b16 %v2108
      %v2139 = vunpack.c.l.b16 %v2109
      %v2140 = vunpack.c.l.b16 %v2110
      %v2141 = vunpack.c.l.b16 %v2111
      %v2142 = vpack.c.b16 %v2129, %v2128
      %v2143 = vpack.c.b16 %v2131, %v2130
      %v2144 = vpack.c.b16 %v2133, %v2132
      %v2145 = vpack.c.b16 %v2135, %v2134
      %v2146 = vpack.c.b16 %v2137, %v2136
      %v2147 = vpack.c.b16 %v2139, %v2138
      %v2148 = vpack.c.b16 %v2141, %v2140
      %2150 = vst [vmem:[#allocation1] ss:$4 sm:$0xff] %v2113
      %v2151 = vld.sshfl [vmem:[#allocation1] sm:$0xff pattern:$0x73625140]
      %v2152 = vld.sshfl [vmem:[#allocation1 + $0x8] sm:$0xff pattern:$0x73625140]
      %v2153 = vld.sshfl [vmem:[#allocation1 + $0x10] sm:$0xff pattern:$0x73625140]
      %v2155 = vsel %vm384, %v2142, 0
      %v2158 = vsel %vm384, %v2143, 0
      %v2161 = vsel %vm384, %v2144, 0
      %v2164 = vsel %vm384, %v2145, 0
      %v2167 = vsel %vm384, %v2146, 0
      %v2170 = vsel %vm384, %v2147, 0
      %v2173 = vsel %vm384, %v2148, 0
      %v2175 = vsel %vm406, %v2151, 0
      %v2177 = vsel %vm406, %v2152, 0
      %v2179 = vsel %vm406, %v2153, 0
      %2181 = vmatpush.bf16.msra.mxu0 0
      %2182 = vmatpush.bf16.msra.mxu0 0
      %2183 = vmatpush.bf16.msra.mxu0 0
      %2184 = vmatpush.bf16.msra.mxu0 0
      %2185 = vmatpush.bf16.msra.mxu0 0
      %2186 = vmatpush.bf16.msra.mxu0 0
      %2187 = vmatpush.bf16.msra.mxu0 0
      %2188 = vmatpush.bf16.msra.mxu0 %v2175
      %2189 = vmatmul.bf16.gmra.mxu0 %v2155
      %v2190 = vpop.f32.mrf.mxu0
      %v2191 = vadd.f32 0.0, %v2190
      %v2192 = vpop.f32.mrf.mxu0
      %v2193 = vadd.f32 0.0, %v2192
      %2194 = vmatmul.bf16.gmra.mxu0 %v2158
      %v2195 = vpop.f32.mrf.mxu0
      %v2196 = vadd.f32 0.0, %v2195
      %v2197 = vpop.f32.mrf.mxu0
      %v2198 = vadd.f32 0.0, %v2197
      %2199 = vmatmul.bf16.gmra.mxu0 %v2161
      %v2200 = vpop.f32.mrf.mxu0
      %v2201 = vadd.f32 0.0, %v2200
      %v2202 = vpop.f32.mrf.mxu0
      %v2203 = vadd.f32 0.0, %v2202
      %2204 = vmatmul.bf16.gmra.mxu0 %v2164
      %v2205 = vpop.f32.mrf.mxu0
      %v2206 = vadd.f32 0.0, %v2205
      %v2207 = vpop.f32.mrf.mxu0
      %v2208 = vadd.f32 0.0, %v2207
      %2209 = vmatmul.bf16.gmra.mxu0 %v2167
      %v2210 = vpop.f32.mrf.mxu0
      %v2211 = vadd.f32 0.0, %v2210
      %v2212 = vpop.f32.mrf.mxu0
      %v2213 = vadd.f32 0.0, %v2212
      %2214 = vmatmul.bf16.gmra.mxu0 %v2170
      %v2215 = vpop.f32.mrf.mxu0
      %v2216 = vadd.f32 0.0, %v2215
      %v2217 = vpop.f32.mrf.mxu0
      %v2218 = vadd.f32 0.0, %v2217
      %2219 = vmatmul.bf16.gmra.mxu0 %v2173
      %v2220 = vpop.f32.mrf.mxu0
      %v2221 = vadd.f32 0.0, %v2220
      %v2222 = vpop.f32.mrf.mxu0
      %v2223 = vadd.f32 0.0, %v2222
      %2224 = vdwg.mxu0
      %2225 = vmatpush.bf16.msra.mxu0 0
      %2226 = vmatpush.bf16.msra.mxu0 0
      %2227 = vmatpush.bf16.msra.mxu0 0
      %2228 = vmatpush.bf16.msra.mxu0 0
      %2229 = vmatpush.bf16.msra.mxu0 0
      %2230 = vmatpush.bf16.msra.mxu0 0
      %2231 = vmatpush.bf16.msra.mxu0 0
      %2232 = vmatpush.bf16.msra.mxu0 %v2177
      %2233 = vmatmul.bf16.gmra.mxu0 %v2155
      %v2234 = vpop.f32.mrf.mxu0
      %v2235 = vadd.f32 0.0, %v2234
      %v2236 = vpop.f32.mrf.mxu0
      %v2237 = vadd.f32 0.0, %v2236
      %2238 = vmatmul.bf16.gmra.mxu0 %v2158
      %v2239 = vpop.f32.mrf.mxu0
      %v2240 = vadd.f32 0.0, %v2239
      %v2241 = vpop.f32.mrf.mxu0
      %v2242 = vadd.f32 0.0, %v2241
      %2243 = vmatmul.bf16.gmra.mxu0 %v2161
      %v2244 = vpop.f32.mrf.mxu0
      %v2245 = vadd.f32 0.0, %v2244
      %v2246 = vpop.f32.mrf.mxu0
      %v2247 = vadd.f32 0.0, %v2246
      %2248 = vmatmul.bf16.gmra.mxu0 %v2164
      %v2249 = vpop.f32.mrf.mxu0
      %v2250 = vadd.f32 0.0, %v2249
      %v2251 = vpop.f32.mrf.mxu0
      %v2252 = vadd.f32 0.0, %v2251
      %2253 = vmatmul.bf16.gmra.mxu0 %v2167
      %v2254 = vpop.f32.mrf.mxu0
      %v2255 = vadd.f32 0.0, %v2254
      %v2256 = vpop.f32.mrf.mxu0
      %v2257 = vadd.f32 0.0, %v2256
      %2258 = vmatmul.bf16.gmra.mxu0 %v2170
      %v2259 = vpop.f32.mrf.mxu0
      %v2260 = vadd.f32 0.0, %v2259
      %v2261 = vpop.f32.mrf.mxu0
      %v2262 = vadd.f32 0.0, %v2261
      %2263 = vmatmul.bf16.gmra.mxu0 %v2173
      %v2264 = vpop.f32.mrf.mxu0
      %v2265 = vadd.f32 0.0, %v2264
      %v2266 = vpop.f32.mrf.mxu0
      %v2267 = vadd.f32 0.0, %v2266
      %2268 = vdwg.mxu0
      %2269 = vmatpush.bf16.msra.mxu0 0
      %2270 = vmatpush.bf16.msra.mxu0 0
      %2271 = vmatpush.bf16.msra.mxu0 0
      %2272 = vmatpush.bf16.msra.mxu0 0
      %2273 = vmatpush.bf16.msra.mxu0 0
      %2274 = vmatpush.bf16.msra.mxu0 0
      %2275 = vmatpush.bf16.msra.mxu0 0
      %2276 = vmatpush.bf16.msra.mxu0 %v2179
      %2277 = vmatmul.bf16.gmra.mxu0 %v2155
      %v2278 = vpop.f32.mrf.mxu0
      %v2279 = vadd.f32 0.0, %v2278
      %v2280 = vpop.f32.mrf.mxu0
      %v2281 = vadd.f32 0.0, %v2280
      %2282 = vmatmul.bf16.gmra.mxu0 %v2158
      %v2283 = vpop.f32.mrf.mxu0
      %v2284 = vadd.f32 0.0, %v2283
      %v2285 = vpop.f32.mrf.mxu0
      %v2286 = vadd.f32 0.0, %v2285
      %2287 = vmatmul.bf16.gmra.mxu0 %v2161
      %v2288 = vpop.f32.mrf.mxu0
      %v2289 = vadd.f32 0.0, %v2288
      %v2290 = vpop.f32.mrf.mxu0
      %v2291 = vadd.f32 0.0, %v2290
      %2292 = vmatmul.bf16.gmra.mxu0 %v2164
      %v2293 = vpop.f32.mrf.mxu0
      %v2294 = vadd.f32 0.0, %v2293
      %v2295 = vpop.f32.mrf.mxu0
      %v2296 = vadd.f32 0.0, %v2295
      %2297 = vmatmul.bf16.gmra.mxu0 %v2167
      %v2298 = vpop.f32.mrf.mxu0
      %v2299 = vadd.f32 0.0, %v2298
      %v2300 = vpop.f32.mrf.mxu0
      %v2301 = vadd.f32 0.0, %v2300
      %2302 = vmatmul.bf16.gmra.mxu0 %v2170
      %v2303 = vpop.f32.mrf.mxu0
      %v2304 = vadd.f32 0.0, %v2303
      %v2305 = vpop.f32.mrf.mxu0
      %v2306 = vadd.f32 0.0, %v2305
      %2307 = vmatmul.bf16.gmra.mxu0 %v2173
      %v2308 = vpop.f32.mrf.mxu0
      %v2309 = vadd.f32 0.0, %v2308
      %v2310 = vpop.f32.mrf.mxu0
      %v2311 = vadd.f32 0.0, %v2310
      %2312 = vdwg.mxu0
      %v2313 = vadd.f32 %v2055, %v2191
      %v2314 = vadd.f32 %v2056, %v2235
      %v2315 = vadd.f32 %v2057, %v2279
      %v2316 = vadd.f32 %v2058, %v2193
      %v2317 = vadd.f32 %v2059, %v2237
      %v2318 = vadd.f32 %v2060, %v2281
      %v2319 = vadd.f32 %v2061, %v2196
      %v2320 = vadd.f32 %v2062, %v2240
      %v2321 = vadd.f32 %v2063, %v2284
      %v2322 = vadd.f32 %v2064, %v2198
      %v2323 = vadd.f32 %v2065, %v2242
      %v2324 = vadd.f32 %v2066, %v2286
      %v2325 = vadd.f32 %v2067, %v2201
      %v2326 = vadd.f32 %v2068, %v2245
      %v2327 = vadd.f32 %v2069, %v2289
      %v2328 = vadd.f32 %v2070, %v2203
      %v2329 = vadd.f32 %v2071, %v2247
      %v2330 = vadd.f32 %v2072, %v2291
      %v2331 = vadd.f32 %v2073, %v2206
      %v2332 = vadd.f32 %v2074, %v2250
      %v2333 = vadd.f32 %v2075, %v2294
      %v2334 = vadd.f32 %v2076, %v2208
      %v2335 = vadd.f32 %v2077, %v2252
      %v2336 = vadd.f32 %v2078, %v2296
      %v2337 = vadd.f32 %v2079, %v2211
      %v2338 = vadd.f32 %v2080, %v2255
      %v2339 = vadd.f32 %v2081, %v2299
      %v2340 = vadd.f32 %v2082, %v2213
      %v2341 = vadd.f32 %v2083, %v2257
      %v2342 = vadd.f32 %v2084, %v2301
      %v2343 = vadd.f32 %v2085, %v2216
      %v2344 = vadd.f32 %v2086, %v2260
      %v2345 = vadd.f32 %v2087, %v2304
      %v2346 = vadd.f32 %v2088, %v2218
      %v2347 = vadd.f32 %v2089, %v2262
      %v2348 = vadd.f32 %v2090, %v2306
      %v2349 = vadd.f32 %v2091, %v2221
      %v2350 = vadd.f32 %v2092, %v2265
      %v2351 = vadd.f32 %v2093, %v2309
      %v2352 = vadd.f32 %v2094, %v2223
      %v2353 = vadd.f32 %v2095, %v2267
      %v2354 = vadd.f32 %v2096, %v2311
      %s2355 = scalar_lea.vmem %s296, 12
      %v2356 = vld [vmem:[%s2355] sm:$0xf]
      %v2357 = vld [vmem:[%s2355 + $0x4] sm:$0xf]
      %v2358 = vld [vmem:[%s2355 + $0xc] sm:$0xf]
      %v2359 = vld [vmem:[%s2355 + $0x10] sm:$0xf]
      %v2360 = vld [vmem:[%s2355 + $0x18] sm:$0xf]
      %v2361 = vld [vmem:[%s2355 + $0x1c] sm:$0xf]
      %v2362 = vld [vmem:[%s2355 + $0x24] sm:$0xf]
      %v2363 = vld [vmem:[%s2355 + $0x28] sm:$0xf]
      %v2364 = vld [vmem:[%s2355 + $0x30] sm:$0xf]
      %v2365 = vld [vmem:[%s2355 + $0x34] sm:$0xf]
      %v2366 = vld [vmem:[%s2355 + $0x3c] sm:$0xf]
      %v2367 = vld [vmem:[%s2355 + $0x40] sm:$0xf]
      %v2368 = vld [vmem:[%s2355 + $0x48] sm:$0xf]
      %v2369 = vld [vmem:[%s2355 + $0x4c] sm:$0xf]
      %s2370 = scalar_lea.vmem %s4, 42
      %v2371 = vld [vmem:[%s2370] sm:$0x3f]
      %v2386 = vunpack.c.l.b16 %v2356
      %v2387 = vunpack.c.l.b16 %v2357
      %v2388 = vunpack.c.l.b16 %v2358
      %v2389 = vunpack.c.l.b16 %v2359
      %v2390 = vunpack.c.l.b16 %v2360
      %v2391 = vunpack.c.l.b16 %v2361
      %v2392 = vunpack.c.l.b16 %v2362
      %v2393 = vunpack.c.l.b16 %v2363
      %v2394 = vunpack.c.l.b16 %v2364
      %v2395 = vunpack.c.l.b16 %v2365
      %v2396 = vunpack.c.l.b16 %v2366
      %v2397 = vunpack.c.l.b16 %v2367
      %v2398 = vunpack.c.l.b16 %v2368
      %v2399 = vunpack.c.l.b16 %v2369
      %v2400 = vpack.c.b16 %v2387, %v2386
      %v2401 = vpack.c.b16 %v2389, %v2388
      %v2402 = vpack.c.b16 %v2391, %v2390
      %v2403 = vpack.c.b16 %v2393, %v2392
      %v2404 = vpack.c.b16 %v2395, %v2394
      %v2405 = vpack.c.b16 %v2397, %v2396
      %v2406 = vpack.c.b16 %v2399, %v2398
      %2408 = vst [vmem:[#allocation1] ss:$4 sm:$0xff] %v2371
      %v2409 = vld.sshfl [vmem:[#allocation1] sm:$0xff pattern:$0x73625140]
      %v2410 = vld.sshfl [vmem:[#allocation1 + $0x8] sm:$0xff pattern:$0x73625140]
      %v2411 = vld.sshfl [vmem:[#allocation1 + $0x10] sm:$0xff pattern:$0x73625140]
      %v2413 = vsel %vm384, %v2400, 0
      %v2416 = vsel %vm384, %v2401, 0
      %v2419 = vsel %vm384, %v2402, 0
      %v2422 = vsel %vm384, %v2403, 0
      %v2425 = vsel %vm384, %v2404, 0
      %v2428 = vsel %vm384, %v2405, 0
      %v2431 = vsel %vm384, %v2406, 0
      %v2433 = vsel %vm406, %v2409, 0
      %v2435 = vsel %vm406, %v2410, 0
      %v2437 = vsel %vm406, %v2411, 0
      %2439 = vmatpush.bf16.msra.mxu0 0
      %2440 = vmatpush.bf16.msra.mxu0 0
      %2441 = vmatpush.bf16.msra.mxu0 0
      %2442 = vmatpush.bf16.msra.mxu0 0
      %2443 = vmatpush.bf16.msra.mxu0 0
      %2444 = vmatpush.bf16.msra.mxu0 0
      %2445 = vmatpush.bf16.msra.mxu0 0
      %2446 = vmatpush.bf16.msra.mxu0 %v2433
      %2447 = vmatmul.bf16.gmra.mxu0 %v2413
      %v2448 = vpop.f32.mrf.mxu0
      %v2449 = vadd.f32 0.0, %v2448
      %v2450 = vpop.f32.mrf.mxu0
      %v2451 = vadd.f32 0.0, %v2450
      %2452 = vmatmul.bf16.gmra.mxu0 %v2416
      %v2453 = vpop.f32.mrf.mxu0
      %v2454 = vadd.f32 0.0, %v2453
      %v2455 = vpop.f32.mrf.mxu0
      %v2456 = vadd.f32 0.0, %v2455
      %2457 = vmatmul.bf16.gmra.mxu0 %v2419
      %v2458 = vpop.f32.mrf.mxu0
      %v2459 = vadd.f32 0.0, %v2458
      %v2460 = vpop.f32.mrf.mxu0
      %v2461 = vadd.f32 0.0, %v2460
      %2462 = vmatmul.bf16.gmra.mxu0 %v2422
      %v2463 = vpop.f32.mrf.mxu0
      %v2464 = vadd.f32 0.0, %v2463
      %v2465 = vpop.f32.mrf.mxu0
      %v2466 = vadd.f32 0.0, %v2465
      %2467 = vmatmul.bf16.gmra.mxu0 %v2425
      %v2468 = vpop.f32.mrf.mxu0
      %v2469 = vadd.f32 0.0, %v2468
      %v2470 = vpop.f32.mrf.mxu0
      %v2471 = vadd.f32 0.0, %v2470
      %2472 = vmatmul.bf16.gmra.mxu0 %v2428
      %v2473 = vpop.f32.mrf.mxu0
      %v2474 = vadd.f32 0.0, %v2473
      %v2475 = vpop.f32.mrf.mxu0
      %v2476 = vadd.f32 0.0, %v2475
      %2477 = vmatmul.bf16.gmra.mxu0 %v2431
      %v2478 = vpop.f32.mrf.mxu0
      %v2479 = vadd.f32 0.0, %v2478
      %v2480 = vpop.f32.mrf.mxu0
      %v2481 = vadd.f32 0.0, %v2480
      %2482 = vdwg.mxu0
      %2483 = vmatpush.bf16.msra.mxu0 0
      %2484 = vmatpush.bf16.msra.mxu0 0
      %2485 = vmatpush.bf16.msra.mxu0 0
      %2486 = vmatpush.bf16.msra.mxu0 0
      %2487 = vmatpush.bf16.msra.mxu0 0
      %2488 = vmatpush.bf16.msra.mxu0 0
      %2489 = vmatpush.bf16.msra.mxu0 0
      %2490 = vmatpush.bf16.msra.mxu0 %v2435
      %2491 = vmatmul.bf16.gmra.mxu0 %v2413
      %v2492 = vpop.f32.mrf.mxu0
      %v2493 = vadd.f32 0.0, %v2492
      %v2494 = vpop.f32.mrf.mxu0
      %v2495 = vadd.f32 0.0, %v2494
      %2496 = vmatmul.bf16.gmra.mxu0 %v2416
      %v2497 = vpop.f32.mrf.mxu0
      %v2498 = vadd.f32 0.0, %v2497
      %v2499 = vpop.f32.mrf.mxu0
      %v2500 = vadd.f32 0.0, %v2499
      %2501 = vmatmul.bf16.gmra.mxu0 %v2419
      %v2502 = vpop.f32.mrf.mxu0
      %v2503 = vadd.f32 0.0, %v2502
      %v2504 = vpop.f32.mrf.mxu0
      %v2505 = vadd.f32 0.0, %v2504
      %2506 = vmatmul.bf16.gmra.mxu0 %v2422
      %v2507 = vpop.f32.mrf.mxu0
      %v2508 = vadd.f32 0.0, %v2507
      %v2509 = vpop.f32.mrf.mxu0
      %v2510 = vadd.f32 0.0, %v2509
      %2511 = vmatmul.bf16.gmra.mxu0 %v2425
      %v2512 = vpop.f32.mrf.mxu0
      %v2513 = vadd.f32 0.0, %v2512
      %v2514 = vpop.f32.mrf.mxu0
      %v2515 = vadd.f32 0.0, %v2514
      %2516 = vmatmul.bf16.gmra.mxu0 %v2428
      %v2517 = vpop.f32.mrf.mxu0
      %v2518 = vadd.f32 0.0, %v2517
      %v2519 = vpop.f32.mrf.mxu0
      %v2520 = vadd.f32 0.0, %v2519
      %2521 = vmatmul.bf16.gmra.mxu0 %v2431
      %v2522 = vpop.f32.mrf.mxu0
      %v2523 = vadd.f32 0.0, %v2522
      %v2524 = vpop.f32.mrf.mxu0
      %v2525 = vadd.f32 0.0, %v2524
      %2526 = vdwg.mxu0
      %2527 = vmatpush.bf16.msra.mxu0 0
      %2528 = vmatpush.bf16.msra.mxu0 0
      %2529 = vmatpush.bf16.msra.mxu0 0
      %2530 = vmatpush.bf16.msra.mxu0 0
      %2531 = vmatpush.bf16.msra.mxu0 0
      %2532 = vmatpush.bf16.msra.mxu0 0
      %2533 = vmatpush.bf16.msra.mxu0 0
      %2534 = vmatpush.bf16.msra.mxu0 %v2437
      %2535 = vmatmul.bf16.gmra.mxu0 %v2413
      %v2536 = vpop.f32.mrf.mxu0
      %v2537 = vadd.f32 0.0, %v2536
      %v2538 = vpop.f32.mrf.mxu0
      %v2539 = vadd.f32 0.0, %v2538
      %2540 = vmatmul.bf16.gmra.mxu0 %v2416
      %v2541 = vpop.f32.mrf.mxu0
      %v2542 = vadd.f32 0.0, %v2541
      %v2543 = vpop.f32.mrf.mxu0
      %v2544 = vadd.f32 0.0, %v2543
      %2545 = vmatmul.bf16.gmra.mxu0 %v2419
      %v2546 = vpop.f32.mrf.mxu0
      %v2547 = vadd.f32 0.0, %v2546
      %v2548 = vpop.f32.mrf.mxu0
      %v2549 = vadd.f32 0.0, %v2548
      %2550 = vmatmul.bf16.gmra.mxu0 %v2422
      %v2551 = vpop.f32.mrf.mxu0
      %v2552 = vadd.f32 0.0, %v2551
      %v2553 = vpop.f32.mrf.mxu0
      %v2554 = vadd.f32 0.0, %v2553
      %2555 = vmatmul.bf16.gmra.mxu0 %v2425
      %v2556 = vpop.f32.mrf.mxu0
      %v2557 = vadd.f32 0.0, %v2556
      %v2558 = vpop.f32.mrf.mxu0
      %v2559 = vadd.f32 0.0, %v2558
      %2560 = vmatmul.bf16.gmra.mxu0 %v2428
      %v2561 = vpop.f32.mrf.mxu0
      %v2562 = vadd.f32 0.0, %v2561
      %v2563 = vpop.f32.mrf.mxu0
      %v2564 = vadd.f32 0.0, %v2563
      %2565 = vmatmul.bf16.gmra.mxu0 %v2431
      %v2566 = vpop.f32.mrf.mxu0
      %v2567 = vadd.f32 0.0, %v2566
      %v2568 = vpop.f32.mrf.mxu0
      %v2569 = vadd.f32 0.0, %v2568
      %2570 = vdwg.mxu0
      %v2571 = vadd.f32 %v2313, %v2449
      %v2572 = vadd.f32 %v2314, %v2493
      %v2573 = vadd.f32 %v2315, %v2537
      %v2574 = vadd.f32 %v2316, %v2451
      %v2575 = vadd.f32 %v2317, %v2495
      %v2576 = vadd.f32 %v2318, %v2539
      %v2577 = vadd.f32 %v2319, %v2454
      %v2578 = vadd.f32 %v2320, %v2498
      %v2579 = vadd.f32 %v2321, %v2542
      %v2580 = vadd.f32 %v2322, %v2456
      %v2581 = vadd.f32 %v2323, %v2500
      %v2582 = vadd.f32 %v2324, %v2544
      %v2583 = vadd.f32 %v2325, %v2459
      %v2584 = vadd.f32 %v2326, %v2503
      %v2585 = vadd.f32 %v2327, %v2547
      %v2586 = vadd.f32 %v2328, %v2461
      %v2587 = vadd.f32 %v2329, %v2505
      %v2588 = vadd.f32 %v2330, %v2549
      %v2589 = vadd.f32 %v2331, %v2464
      %v2590 = vadd.f32 %v2332, %v2508
      %v2591 = vadd.f32 %v2333, %v2552
      %v2592 = vadd.f32 %v2334, %v2466
      %v2593 = vadd.f32 %v2335, %v2510
      %v2594 = vadd.f32 %v2336, %v2554
      %v2595 = vadd.f32 %v2337, %v2469
      %v2596 = vadd.f32 %v2338, %v2513
      %v2597 = vadd.f32 %v2339, %v2557
      %v2598 = vadd.f32 %v2340, %v2471
      %v2599 = vadd.f32 %v2341, %v2515
      %v2600 = vadd.f32 %v2342, %v2559
      %v2601 = vadd.f32 %v2343, %v2474
      %v2602 = vadd.f32 %v2344, %v2518
      %v2603 = vadd.f32 %v2345, %v2562
      %v2604 = vadd.f32 %v2346, %v2476
      %v2605 = vadd.f32 %v2347, %v2520
      %v2606 = vadd.f32 %v2348, %v2564
      %v2607 = vadd.f32 %v2349, %v2479
      %v2608 = vadd.f32 %v2350, %v2523
      %v2609 = vadd.f32 %v2351, %v2567
      %v2610 = vadd.f32 %v2352, %v2481
      %v2611 = vadd.f32 %v2353, %v2525
      %v2612 = vadd.f32 %v2354, %v2569
      %v2613 = vld [vmem:[%s2097] sm:$0xf]
      %v2614 = vld [vmem:[%s2097 + $0x4] sm:$0xf]
      %v2615 = vld [vmem:[%s2097 + $0x8] sm:$0x1]
      %v2616 = vld [vmem:[%s2097 + $0xc] sm:$0xf]
      %v2617 = vld [vmem:[%s2097 + $0x10] sm:$0xf]
      %v2618 = vld [vmem:[%s2097 + $0x14] sm:$0x1]
      %v2619 = vld [vmem:[%s2097 + $0x18] sm:$0xf]
      %v2620 = vld [vmem:[%s2097 + $0x1c] sm:$0xf]
      %v2621 = vld [vmem:[%s2097 + $0x20] sm:$0x1]
      %v2622 = vld [vmem:[%s2097 + $0x24] sm:$0xf]
      %v2623 = vld [vmem:[%s2097 + $0x28] sm:$0xf]
      %v2624 = vld [vmem:[%s2097 + $0x2c] sm:$0x1]
      %v2625 = vld [vmem:[%s2097 + $0x30] sm:$0xf]
      %v2626 = vld [vmem:[%s2097 + $0x34] sm:$0xf]
      %v2627 = vld [vmem:[%s2097 + $0x38] sm:$0x1]
      %v2628 = vld [vmem:[%s2097 + $0x3c] sm:$0xf]
      %v2629 = vld [vmem:[%s2097 + $0x40] sm:$0xf]
      %v2630 = vld [vmem:[%s2097 + $0x44] sm:$0x1]
      %v2631 = vld [vmem:[%s2097 + $0x48] sm:$0xf]
      %v2632 = vld [vmem:[%s2097 + $0x4c] sm:$0xf]
      %v2633 = vld [vmem:[%s2097 + $0x50] sm:$0x1]
      %v2635 = vshrl.u32 %v2613, 16
      %v2637 = vrot.slane %v2635, 4
      %v2638 = vshll.u32 %v2613, 16
      %v2640 = vrot.slane %v2638, 5
      %v2641 = vor.u32 %v2637, %v2640
      %v2642 = vrot.slane %v2641, 4
      %v2644 = vshll.u32 %v2614, 16
      %v2646 = vrot.slane %v2644, 5
      %v2647 = vsel %vm767, %v2642, %v2646
      %v2648 = vshrl.u32 %v2614, 16
      %v2650 = vrot.slane %v2648, 4
      %v2651 = vor.u32 %v2650, %v2646
      %v2652 = vrot.slane %v2651, 4
      %v2654 = vshll.u32 %v2615, 16
      %v2656 = vrot.slane %v2654, 5
      %v2657 = vsel %vm767, %v2652, %v2656
      %v2659 = vshrl.u32 %v2616, 16
      %v2661 = vrot.slane %v2659, 4
      %v2662 = vshll.u32 %v2616, 16
      %v2664 = vrot.slane %v2662, 5
      %v2665 = vor.u32 %v2661, %v2664
      %v2666 = vrot.slane %v2665, 4
      %v2668 = vshll.u32 %v2617, 16
      %v2670 = vrot.slane %v2668, 5
      %v2671 = vsel %vm767, %v2666, %v2670
      %v2672 = vshrl.u32 %v2617, 16
      %v2674 = vrot.slane %v2672, 4
      %v2675 = vor.u32 %v2674, %v2670
      %v2676 = vrot.slane %v2675, 4
      %v2678 = vshll.u32 %v2618, 16
      %v2680 = vrot.slane %v2678, 5
      %v2681 = vsel %vm767, %v2676, %v2680
      %v2683 = vshrl.u32 %v2619, 16
      %v2685 = vrot.slane %v2683, 4
      %v2686 = vshll.u32 %v2619, 16
      %v2688 = vrot.slane %v2686, 5
      %v2689 = vor.u32 %v2685, %v2688
      %v2690 = vrot.slane %v2689, 4
      %v2692 = vshll.u32 %v2620, 16
      %v2694 = vrot.slane %v2692, 5
      %v2695 = vsel %vm767, %v2690, %v2694
      %v2696 = vshrl.u32 %v2620, 16
      %v2698 = vrot.slane %v2696, 4
      %v2699 = vor.u32 %v2698, %v2694
      %v2700 = vrot.slane %v2699, 4
      %v2702 = vshll.u32 %v2621, 16
      %v2704 = vrot.slane %v2702, 5
      %v2705 = vsel %vm767, %v2700, %v2704
      %v2707 = vshrl.u32 %v2622, 16
      %v2709 = vrot.slane %v2707, 4
      %v2710 = vshll.u32 %v2622, 16
      %v2712 = vrot.slane %v2710, 5
      %v2713 = vor.u32 %v2709, %v2712
      %v2714 = vrot.slane %v2713, 4
      %v2716 = vshll.u32 %v2623, 16
      %v2718 = vrot.slane %v2716, 5
      %v2719 = vsel %vm767, %v2714, %v2718
      %v2720 = vshrl.u32 %v2623, 16
      %v2722 = vrot.slane %v2720, 4
      %v2723 = vor.u32 %v2722, %v2718
      %v2724 = vrot.slane %v2723, 4
      %v2726 = vshll.u32 %v2624, 16
      %v2728 = vrot.slane %v2726, 5
      %v2729 = vsel %vm767, %v2724, %v2728
      %v2731 = vshrl.u32 %v2625, 16
      %v2733 = vrot.slane %v2731, 4
      %v2734 = vshll.u32 %v2625, 16
      %v2736 = vrot.slane %v2734, 5
      %v2737 = vor.u32 %v2733, %v2736
      %v2738 = vrot.slane %v2737, 4
      %v2740 = vshll.u32 %v2626, 16
      %v2742 = vrot.slane %v2740, 5
      %v2743 = vsel %vm767, %v2738, %v2742
      %v2744 = vshrl.u32 %v2626, 16
      %v2746 = vrot.slane %v2744, 4
      %v2747 = vor.u32 %v2746, %v2742
      %v2748 = vrot.slane %v2747, 4
      %v2750 = vshll.u32 %v2627, 16
      %v2752 = vrot.slane %v2750, 5
      %v2753 = vsel %vm767, %v2748, %v2752
      %v2755 = vshrl.u32 %v2628, 16
      %v2757 = vrot.slane %v2755, 4
      %v2758 = vshll.u32 %v2628, 16
      %v2760 = vrot.slane %v2758, 5
      %v2761 = vor.u32 %v2757, %v2760
      %v2762 = vrot.slane %v2761, 4
      %v2764 = vshll.u32 %v2629, 16
      %v2766 = vrot.slane %v2764, 5
      %v2767 = vsel %vm767, %v2762, %v2766
      %v2768 = vshrl.u32 %v2629, 16
      %v2770 = vrot.slane %v2768, 4
      %v2771 = vor.u32 %v2770, %v2766
      %v2772 = vrot.slane %v2771, 4
      %v2774 = vshll.u32 %v2630, 16
      %v2776 = vrot.slane %v2774, 5
      %v2777 = vsel %vm767, %v2772, %v2776
      %v2779 = vshrl.u32 %v2631, 16
      %v2781 = vrot.slane %v2779, 4
      %v2782 = vshll.u32 %v2631, 16
      %v2784 = vrot.slane %v2782, 5
      %v2785 = vor.u32 %v2781, %v2784
      %v2786 = vrot.slane %v2785, 4
      %v2788 = vshll.u32 %v2632, 16
      %v2790 = vrot.slane %v2788, 5
      %v2791 = vsel %vm767, %v2786, %v2790
      %v2792 = vshrl.u32 %v2632, 16
      %v2794 = vrot.slane %v2792, 4
      %v2795 = vor.u32 %v2794, %v2790
      %v2796 = vrot.slane %v2795, 4
      %v2798 = vshll.u32 %v2633, 16
      %v2800 = vrot.slane %v2798, 5
      %v2801 = vsel %vm767, %v2796, %v2800
      %s2802 = scalar_lea.vmem %s4, 48
      %v2803 = vld [vmem:[%s2802] sm:$0x3f]
      %v2804 = vunpack.c.l.b16 %v2647
      %v2805 = vunpack.c.l.b16 %v2657
      %v2806 = vunpack.c.l.b16 %v2671
      %v2807 = vunpack.c.l.b16 %v2681
      %v2808 = vunpack.c.l.b16 %v2695
      %v2809 = vunpack.c.l.b16 %v2705
      %v2810 = vunpack.c.l.b16 %v2719
      %v2811 = vunpack.c.l.b16 %v2729
      %v2812 = vunpack.c.l.b16 %v2743
      %v2813 = vunpack.c.l.b16 %v2753
      %v2814 = vunpack.c.l.b16 %v2767
      %v2815 = vunpack.c.l.b16 %v2777
      %v2816 = vunpack.c.l.b16 %v2791
      %v2817 = vunpack.c.l.b16 %v2801
      %v2818 = vpack.c.b16 %v2805, %v2804
      %v2819 = vpack.c.b16 %v2807, %v2806
      %v2820 = vpack.c.b16 %v2809, %v2808
      %v2821 = vpack.c.b16 %v2811, %v2810
      %v2822 = vpack.c.b16 %v2813, %v2812
      %v2823 = vpack.c.b16 %v2815, %v2814
      %v2824 = vpack.c.b16 %v2817, %v2816
      %2826 = vst [vmem:[#allocation1] ss:$4 sm:$0xff] %v2803
      %v2827 = vld.sshfl [vmem:[#allocation1] sm:$0xff pattern:$0x73625140]
      %v2828 = vld.sshfl [vmem:[#allocation1 + $0x8] sm:$0xff pattern:$0x73625140]
      %v2829 = vld.sshfl [vmem:[#allocation1 + $0x10] sm:$0xff pattern:$0x73625140]
      %v2831 = vsel %vm384, %v2818, 0
      %v2834 = vsel %vm384, %v2819, 0
      %v2837 = vsel %vm384, %v2820, 0
      %v2840 = vsel %vm384, %v2821, 0
      %v2843 = vsel %vm384, %v2822, 0
      %v2846 = vsel %vm384, %v2823, 0
      %v2849 = vsel %vm384, %v2824, 0
      %v2851 = vsel %vm406, %v2827, 0
      %v2853 = vsel %vm406, %v2828, 0
      %v2855 = vsel %vm406, %v2829, 0
      %2857 = vmatpush.bf16.msra.mxu0 0
      %2858 = vmatpush.bf16.msra.mxu0 0
      %2859 = vmatpush.bf16.msra.mxu0 0
      %2860 = vmatpush.bf16.msra.mxu0 0
      %2861 = vmatpush.bf16.msra.mxu0 0
      %2862 = vmatpush.bf16.msra.mxu0 0
      %2863 = vmatpush.bf16.msra.mxu0 0
      %2864 = vmatpush.bf16.msra.mxu0 %v2851
      %2865 = vmatmul.bf16.gmra.mxu0 %v2831
      %v2866 = vpop.f32.mrf.mxu0
      %v2867 = vadd.f32 0.0, %v2866
      %v2868 = vpop.f32.mrf.mxu0
      %v2869 = vadd.f32 0.0, %v2868
      %2870 = vmatmul.bf16.gmra.mxu0 %v2834
      %v2871 = vpop.f32.mrf.mxu0
      %v2872 = vadd.f32 0.0, %v2871
      %v2873 = vpop.f32.mrf.mxu0
      %v2874 = vadd.f32 0.0, %v2873
      %2875 = vmatmul.bf16.gmra.mxu0 %v2837
      %v2876 = vpop.f32.mrf.mxu0
      %v2877 = vadd.f32 0.0, %v2876
      %v2878 = vpop.f32.mrf.mxu0
      %v2879 = vadd.f32 0.0, %v2878
      %2880 = vmatmul.bf16.gmra.mxu0 %v2840
      %v2881 = vpop.f32.mrf.mxu0
      %v2882 = vadd.f32 0.0, %v2881
      %v2883 = vpop.f32.mrf.mxu0
      %v2884 = vadd.f32 0.0, %v2883
      %2885 = vmatmul.bf16.gmra.mxu0 %v2843
      %v2886 = vpop.f32.mrf.mxu0
      %v2887 = vadd.f32 0.0, %v2886
      %v2888 = vpop.f32.mrf.mxu0
      %v2889 = vadd.f32 0.0, %v2888
      %2890 = vmatmul.bf16.gmra.mxu0 %v2846
      %v2891 = vpop.f32.mrf.mxu0
      %v2892 = vadd.f32 0.0, %v2891
      %v2893 = vpop.f32.mrf.mxu0
      %v2894 = vadd.f32 0.0, %v2893
      %2895 = vmatmul.bf16.gmra.mxu0 %v2849
      %v2896 = vpop.f32.mrf.mxu0
      %v2897 = vadd.f32 0.0, %v2896
      %v2898 = vpop.f32.mrf.mxu0
      %v2899 = vadd.f32 0.0, %v2898
      %2900 = vdwg.mxu0
      %2901 = vmatpush.bf16.msra.mxu0 0
      %2902 = vmatpush.bf16.msra.mxu0 0
      %2903 = vmatpush.bf16.msra.mxu0 0
      %2904 = vmatpush.bf16.msra.mxu0 0
      %2905 = vmatpush.bf16.msra.mxu0 0
      %2906 = vmatpush.bf16.msra.mxu0 0
      %2907 = vmatpush.bf16.msra.mxu0 0
      %2908 = vmatpush.bf16.msra.mxu0 %v2853
      %2909 = vmatmul.bf16.gmra.mxu0 %v2831
      %v2910 = vpop.f32.mrf.mxu0
      %v2911 = vadd.f32 0.0, %v2910
      %v2912 = vpop.f32.mrf.mxu0
      %v2913 = vadd.f32 0.0, %v2912
      %2914 = vmatmul.bf16.gmra.mxu0 %v2834
      %v2915 = vpop.f32.mrf.mxu0
      %v2916 = vadd.f32 0.0, %v2915
      %v2917 = vpop.f32.mrf.mxu0
      %v2918 = vadd.f32 0.0, %v2917
      %2919 = vmatmul.bf16.gmra.mxu0 %v2837
      %v2920 = vpop.f32.mrf.mxu0
      %v2921 = vadd.f32 0.0, %v2920
      %v2922 = vpop.f32.mrf.mxu0
      %v2923 = vadd.f32 0.0, %v2922
      %2924 = vmatmul.bf16.gmra.mxu0 %v2840
      %v2925 = vpop.f32.mrf.mxu0
      %v2926 = vadd.f32 0.0, %v2925
      %v2927 = vpop.f32.mrf.mxu0
      %v2928 = vadd.f32 0.0, %v2927
      %2929 = vmatmul.bf16.gmra.mxu0 %v2843
      %v2930 = vpop.f32.mrf.mxu0
      %v2931 = vadd.f32 0.0, %v2930
      %v2932 = vpop.f32.mrf.mxu0
      %v2933 = vadd.f32 0.0, %v2932
      %2934 = vmatmul.bf16.gmra.mxu0 %v2846
      %v2935 = vpop.f32.mrf.mxu0
      %v2936 = vadd.f32 0.0, %v2935
      %v2937 = vpop.f32.mrf.mxu0
      %v2938 = vadd.f32 0.0, %v2937
      %2939 = vmatmul.bf16.gmra.mxu0 %v2849
      %v2940 = vpop.f32.mrf.mxu0
      %v2941 = vadd.f32 0.0, %v2940
      %v2942 = vpop.f32.mrf.mxu0
      %v2943 = vadd.f32 0.0, %v2942
      %2944 = vdwg.mxu0
      %2945 = vmatpush.bf16.msra.mxu0 0
      %2946 = vmatpush.bf16.msra.mxu0 0
      %2947 = vmatpush.bf16.msra.mxu0 0
      %2948 = vmatpush.bf16.msra.mxu0 0
      %2949 = vmatpush.bf16.msra.mxu0 0
      %2950 = vmatpush.bf16.msra.mxu0 0
      %2951 = vmatpush.bf16.msra.mxu0 0
      %2952 = vmatpush.bf16.msra.mxu0 %v2855
      %2953 = vmatmul.bf16.gmra.mxu0 %v2831
      %v2954 = vpop.f32.mrf.mxu0
      %v2955 = vadd.f32 0.0, %v2954
      %v2956 = vpop.f32.mrf.mxu0
      %v2957 = vadd.f32 0.0, %v2956
      %2958 = vmatmul.bf16.gmra.mxu0 %v2834
      %v2959 = vpop.f32.mrf.mxu0
      %v2960 = vadd.f32 0.0, %v2959
      %v2961 = vpop.f32.mrf.mxu0
      %v2962 = vadd.f32 0.0, %v2961
      %2963 = vmatmul.bf16.gmra.mxu0 %v2837
      %v2964 = vpop.f32.mrf.mxu0
      %v2965 = vadd.f32 0.0, %v2964
      %v2966 = vpop.f32.mrf.mxu0
      %v2967 = vadd.f32 0.0, %v2966
      %2968 = vmatmul.bf16.gmra.mxu0 %v2840
      %v2969 = vpop.f32.mrf.mxu0
      %v2970 = vadd.f32 0.0, %v2969
      %v2971 = vpop.f32.mrf.mxu0
      %v2972 = vadd.f32 0.0, %v2971
      %2973 = vmatmul.bf16.gmra.mxu0 %v2843
      %v2974 = vpop.f32.mrf.mxu0
      %v2975 = vadd.f32 0.0, %v2974
      %v2976 = vpop.f32.mrf.mxu0
      %v2977 = vadd.f32 0.0, %v2976
      %2978 = vmatmul.bf16.gmra.mxu0 %v2846
      %v2979 = vpop.f32.mrf.mxu0
      %v2980 = vadd.f32 0.0, %v2979
      %v2981 = vpop.f32.mrf.mxu0
      %v2982 = vadd.f32 0.0, %v2981
      %2983 = vmatmul.bf16.gmra.mxu0 %v2849
      %v2984 = vpop.f32.mrf.mxu0
      %v2985 = vadd.f32 0.0, %v2984
      %v2986 = vpop.f32.mrf.mxu0
      %v2987 = vadd.f32 0.0, %v2986
      %2988 = vdwg.mxu0
      %v2989 = vadd.f32 %v2571, %v2867
      %v2990 = vadd.f32 %v2572, %v2911
      %v2991 = vadd.f32 %v2573, %v2955
      %v2992 = vadd.f32 %v2574, %v2869
      %v2993 = vadd.f32 %v2575, %v2913
      %v2994 = vadd.f32 %v2576, %v2957
      %v2995 = vadd.f32 %v2577, %v2872
      %v2996 = vadd.f32 %v2578, %v2916
      %v2997 = vadd.f32 %v2579, %v2960
      %v2998 = vadd.f32 %v2580, %v2874
      %v2999 = vadd.f32 %v2581, %v2918
      %v3000 = vadd.f32 %v2582, %v2962
      %v3001 = vadd.f32 %v2583, %v2877
      %v3002 = vadd.f32 %v2584, %v2921
      %v3003 = vadd.f32 %v2585, %v2965
      %v3004 = vadd.f32 %v2586, %v2879
      %v3005 = vadd.f32 %v2587, %v2923
      %v3006 = vadd.f32 %v2588, %v2967
      %v3007 = vadd.f32 %v2589, %v2882
      %v3008 = vadd.f32 %v2590, %v2926
      %v3009 = vadd.f32 %v2591, %v2970
      %v3010 = vadd.f32 %v2592, %v2884
      %v3011 = vadd.f32 %v2593, %v2928
      %v3012 = vadd.f32 %v2594, %v2972
      %v3013 = vadd.f32 %v2595, %v2887
      %v3014 = vadd.f32 %v2596, %v2931
      %v3015 = vadd.f32 %v2597, %v2975
      %v3016 = vadd.f32 %v2598, %v2889
      %v3017 = vadd.f32 %v2599, %v2933
      %v3018 = vadd.f32 %v2600, %v2977
      %v3019 = vadd.f32 %v2601, %v2892
      %v3020 = vadd.f32 %v2602, %v2936
      %v3021 = vadd.f32 %v2603, %v2980
      %v3022 = vadd.f32 %v2604, %v2894
      %v3023 = vadd.f32 %v2605, %v2938
      %v3024 = vadd.f32 %v2606, %v2982
      %v3025 = vadd.f32 %v2607, %v2897
      %v3026 = vadd.f32 %v2608, %v2941
      %v3027 = vadd.f32 %v2609, %v2985
      %v3028 = vadd.f32 %v2610, %v2899
      %v3029 = vadd.f32 %v2611, %v2943
      %v3030 = vadd.f32 %v2612, %v2987
      %v3031 = vld [vmem:[%s5] sm:$0x7]
      %v3033 = vperm.slane %v3031, 0
      %v3034 = vperm.slane %v3031, 1
      %v3035 = vperm.slane %v3031, 2
      %v3039 = vadd.f32 %v2989, %v3033
      %v3040 = vadd.f32 %v2990, %v3034
      %v3041 = vadd.f32 %v2991, %v3035
      %v3042 = vadd.f32 %v2992, %v3033
      %v3043 = vadd.f32 %v2993, %v3034
      %v3044 = vadd.f32 %v2994, %v3035
      %v3045 = vadd.f32 %v2995, %v3033
      %v3046 = vadd.f32 %v2996, %v3034
      %v3047 = vadd.f32 %v2997, %v3035
      %v3048 = vadd.f32 %v2998, %v3033
      %v3049 = vadd.f32 %v2999, %v3034
      %v3050 = vadd.f32 %v3000, %v3035
      %v3051 = vadd.f32 %v3001, %v3033
      %v3052 = vadd.f32 %v3002, %v3034
      %v3053 = vadd.f32 %v3003, %v3035
      %v3054 = vadd.f32 %v3004, %v3033
      %v3055 = vadd.f32 %v3005, %v3034
      %v3056 = vadd.f32 %v3006, %v3035
      %v3057 = vadd.f32 %v3007, %v3033
      %v3058 = vadd.f32 %v3008, %v3034
      %v3059 = vadd.f32 %v3009, %v3035
      %v3060 = vadd.f32 %v3010, %v3033
      %v3061 = vadd.f32 %v3011, %v3034
      %v3062 = vadd.f32 %v3012, %v3035
      %v3063 = vadd.f32 %v3013, %v3033
      %v3064 = vadd.f32 %v3014, %v3034
      %v3065 = vadd.f32 %v3015, %v3035
      %v3066 = vadd.f32 %v3016, %v3033
      %v3067 = vadd.f32 %v3017, %v3034
      %v3068 = vadd.f32 %v3018, %v3035
      %v3069 = vadd.f32 %v3019, %v3033
      %v3070 = vadd.f32 %v3020, %v3034
      %v3071 = vadd.f32 %v3021, %v3035
      %v3072 = vadd.f32 %v3022, %v3033
      %v3073 = vadd.f32 %v3023, %v3034
      %v3074 = vadd.f32 %v3024, %v3035
      %v3075 = vadd.f32 %v3025, %v3033
      %v3076 = vadd.f32 %v3026, %v3034
      %v3077 = vadd.f32 %v3027, %v3035
      %v3078 = vadd.f32 %v3028, %v3033
      %v3079 = vadd.f32 %v3029, %v3034
      %v3080 = vadd.f32 %v3030, %v3035
      %v3081 = vmax.f32 %v3039, 0.0
      %v3082 = vmax.f32 %v3040, 0.0
      %v3083 = vmax.f32 %v3041, 0.0
      %v3084 = vmax.f32 %v3042, 0.0
      %v3085 = vmax.f32 %v3043, 0.0
      %v3086 = vmax.f32 %v3044, 0.0
      %v3087 = vmax.f32 %v3045, 0.0
      %v3088 = vmax.f32 %v3046, 0.0
      %v3089 = vmax.f32 %v3047, 0.0
      %v3090 = vmax.f32 %v3048, 0.0
      %v3091 = vmax.f32 %v3049, 0.0
      %v3092 = vmax.f32 %v3050, 0.0
      %v3093 = vmax.f32 %v3051, 0.0
      %v3094 = vmax.f32 %v3052, 0.0
      %v3095 = vmax.f32 %v3053, 0.0
      %v3096 = vmax.f32 %v3054, 0.0
      %v3097 = vmax.f32 %v3055, 0.0
      %v3098 = vmax.f32 %v3056, 0.0
      %v3099 = vmax.f32 %v3057, 0.0
      %v3100 = vmax.f32 %v3058, 0.0
      %v3101 = vmax.f32 %v3059, 0.0
      %v3102 = vmax.f32 %v3060, 0.0
      %v3103 = vmax.f32 %v3061, 0.0
      %v3104 = vmax.f32 %v3062, 0.0
      %v3105 = vmax.f32 %v3063, 0.0
      %v3106 = vmax.f32 %v3064, 0.0
      %v3107 = vmax.f32 %v3065, 0.0
      %v3108 = vmax.f32 %v3066, 0.0
      %v3109 = vmax.f32 %v3067, 0.0
      %v3110 = vmax.f32 %v3068, 0.0
      %v3111 = vmax.f32 %v3069, 0.0
      %v3112 = vmax.f32 %v3070, 0.0
      %v3113 = vmax.f32 %v3071, 0.0
      %v3114 = vmax.f32 %v3072, 0.0
      %v3115 = vmax.f32 %v3073, 0.0
      %v3116 = vmax.f32 %v3074, 0.0
      %v3117 = vmax.f32 %v3075, 0.0
      %v3118 = vmax.f32 %v3076, 0.0
      %v3119 = vmax.f32 %v3077, 0.0
      %v3120 = vmax.f32 %v3078, 0.0
      %v3121 = vmax.f32 %v3079, 0.0
      %v3122 = vmax.f32 %v3080, 0.0
      %3123 = vst [vmem:[%s311] sm:$0xff] %v3081
      %3124 = vst [vmem:[%s311 + $0x8] sm:$0xff] %v3082
      %3125 = vst [vmem:[%s311 + $0x10] sm:$0xff] %v3083
      %3126 = vst [vmem:[%s311 + $0x18] sm:$0xff] %v3084
      %3127 = vst [vmem:[%s311 + $0x20] sm:$0xff] %v3085
      %3128 = vst [vmem:[%s311 + $0x28] sm:$0xff] %v3086
      %3129 = vst [vmem:[%s311 + $0x30] sm:$0xff] %v3087
      %3130 = vst [vmem:[%s311 + $0x38] sm:$0xff] %v3088
      %3131 = vst [vmem:[%s311 + $0x40] sm:$0xff] %v3089
      %3132 = vst [vmem:[%s311 + $0x48] sm:$0xff] %v3090
      %3133 = vst [vmem:[%s311 + $0x50] sm:$0xff] %v3091
      %3134 = vst [vmem:[%s311 + $0x58] sm:$0xff] %v3092
      %3135 = vst [vmem:[%s311 + $0x60] sm:$0xff] %v3093
      %3136 = vst [vmem:[%s311 + $0x68] sm:$0xff] %v3094
      %3137 = vst [vmem:[%s311 + $0x70] sm:$0xff] %v3095
      %3138 = vst [vmem:[%s311 + $0x78] sm:$0xff] %v3096
      %3139 = vst [vmem:[%s311 + $0x80] sm:$0xff] %v3097
      %3140 = vst [vmem:[%s311 + $0x88] sm:$0xff] %v3098
      %3141 = vst [vmem:[%s311 + $0x90] sm:$0xff] %v3099
      %3142 = vst [vmem:[%s311 + $0x98] sm:$0xff] %v3100
      %3143 = vst [vmem:[%s311 + $0xa0] sm:$0xff] %v3101
      %3144 = vst [vmem:[%s311 + $0xa8] sm:$0xff] %v3102
      %3145 = vst [vmem:[%s311 + $0xb0] sm:$0xff] %v3103
      %3146 = vst [vmem:[%s311 + $0xb8] sm:$0xff] %v3104
      %3147 = vst [vmem:[%s311 + $0xc0] sm:$0xff] %v3105
      %3148 = vst [vmem:[%s311 + $0xc8] sm:$0xff] %v3106
      %3149 = vst [vmem:[%s311 + $0xd0] sm:$0xff] %v3107
      %3150 = vst [vmem:[%s311 + $0xd8] sm:$0xff] %v3108
      %3151 = vst [vmem:[%s311 + $0xe0] sm:$0xff] %v3109
      %3152 = vst [vmem:[%s311 + $0xe8] sm:$0xff] %v3110
      %3153 = vst [vmem:[%s311 + $0xf0] sm:$0xff] %v3111
      %3154 = vst [vmem:[%s311 + $0xf8] sm:$0xff] %v3112
      %3155 = vst [vmem:[%s311 + $0x100] sm:$0xff] %v3113
      %3156 = vst [vmem:[%s311 + $0x108] sm:$0xff] %v3114
      %3157 = vst [vmem:[%s311 + $0x110] sm:$0xff] %v3115
      %3158 = vst [vmem:[%s311 + $0x118] sm:$0xff] %v3116
      %3159 = vst [vmem:[%s311 + $0x120] sm:$0xff] %v3117
      %3160 = vst [vmem:[%s311 + $0x128] sm:$0xff] %v3118
      %3161 = vst [vmem:[%s311 + $0x130] sm:$0xff] %v3119
      %3162 = vst [vmem:[%s311 + $0x138] sm:$0xff] %v3120
      %3163 = vst [vmem:[%s311 + $0x140] sm:$0xff] %v3121
      %3164 = vst [vmem:[%s311 + $0x148] sm:$0xff] %v3122
      %p3165 = scmp.lt.s32.totalorder %s17, 1
      %s3166 = scalar_select %p3165, %s17, 1
      %s3167 = smul.addr %s3166, 42
      %s3168 = smul.addr %s3167, 8
      %s3169 = scalar_lea.vmem %s6, %s3168
      // Predicated region
      $region45: #{inception_b_forward.5} parent=43 // pred_check
        %p3170 = pneg %p181
      $region46: #{inception_b_forward.5} parent=43 // pred_check_branch
        %3172 = sbr.rel (%p3170) target = $region48
      $region47: #{inception_b_forward.5} parent=43 // pred_region
        _
      $region48: #{inception_b_forward.5} parent=43 // pred_fallthru
        _
    $region44: #{inception_b_forward.5} parent=5 // pred_fallthru
      _
    %p3173 = scmp.le.s32.totalorder 2, %s12
    // Predicated region
    $region49: #{inception_b_forward.5} parent=5 // pred_check
      %p3174 = pneg %p3173
    $region50: #{inception_b_forward.5} parent=5 // pred_check_branch
      %3176 = sbr.rel (%p3174) target = $region52
    $region51: #{inception_b_forward.5} parent=5 // pred_region
      %s3177 = ssub.s32 %s12, 2
      // Predicated region
      $region53: #{inception_b_forward.5} parent=51 // pred_check
        %p3178 = pneg %p187
      $region54: #{inception_b_forward.5} parent=51 // pred_check_branch
        %3180 = sbr.rel (%p3178) target = $region56
      $region55: #{inception_b_forward.5} parent=51 // pred_region
        %p3181 = scmp.lt.s32.totalorder %s18, 1
        %s3182 = scalar_select %p3181, %s18, 1
        %s3183 = smul.addr %s3182, 42
        %s3184 = smul.addr %s3183, 8
        %s3185 = scalar_lea.vmem %s6, %s3184
      $region56: #{inception_b_forward.5} parent=51 // pred_fallthru
        _
    $region52: #{inception_b_forward.5} parent=5 // pred_fallthru
      _
  $region6: #{inception_b_forward.5} parent=0 // loop_footer
    %s16 = sadd.s32 1, %s12
  $region7: #{inception_b_forward.5} parent=0 // loop_footer_branch
    %11 = sbr.rel target = $region3
  $region8: #{inception_b_forward.5} parent=0 // loop_exit
    _

</llo_original>
